<compile_context>
chip_gen: v7x
topology: tpu7x:2x2x1
jax: 0.10.0
libtpu: 0.0.40
codegen_flags: <defaults>
</compile_context>

<pallas_src>
import functools

import jax
import jax.numpy as jnp
import numpy as np
from jax.experimental import pallas as pl
from jax.experimental.pallas import tpu as pltpu

EMBEDDING_DIM = 32
MAX_NUM_SOURCES = 3
BN_EPS = 1e-5
CONV_CHANNELS = 64
HIDDEN = 128
POOLS = (8, 8, 2)

_EMB_W = MAX_NUM_SOURCES * EMBEDDING_DIM      # 96  (per-source emb incl. pos slot)
_NOISE_OFF = 128                              # lane-aligned start of noise columns
_HEAD_SLAB = 256                              # packed head width (lane dense)


# ---------------------------------------------------------------------------
# Fused kernel: the whole forward pass in one invocation (no grid).
# ---------------------------------------------------------------------------
def _fused_kernel(x_ref, a1_ref, o1_ref, eye_ref,
                  w2_ref, o2_ref, w3_ref, o3_ref,
                  wf1_ref, bf1_ref, wf2_ref, bf2_ref, wf3_ref, bf3_ref,
                  wh_ref, bh_ref, pos_ref,
                  emb_ref, noise_ref, *, B, C_in, T, F0):
    CC = CONV_CHANNELS
    f1 = F0 // POOLS[0]
    f2 = f1 // POOLS[1]
    dot = functools.partial(jnp.dot, preferred_element_type=jnp.float32)

    # ---- layer 1: banded-weight conv, frequency kept in the 128-lane dim ----
    def shifted_stack(b):
        xb = x_ref[b].reshape(C_in * T, F0)                       # rows (c, t), lanes f
        left = jnp.concatenate([xb[:, :1], xb[:, :F0 - 1]], axis=1)   # f-1, edge clamped
        right = jnp.concatenate([xb[:, 1:], xb[:, F0 - 1:]], axis=1)  # f+1, edge clamped
        return jnp.concatenate([left, xb, right], axis=0)         # (3*C_in*T, F0), kw-major

    xk = jnp.concatenate([shifted_stack(b) for b in range(B)], axis=1)  # (3*C_in*T, B*F0)
    # One lane-dense matmul does the 3x3 conv (time taps + replicate time
    # padding + folded-BN scale are all baked into a1 host-side).
    y = dot(a1_ref[...], xk)                  # (T*64, B*F0): rows (t, co), lanes (b, f)

    # Move co from rows into lanes with an exact MXU "identity transpose"
    # (A @ B^T dot_general pattern; avoids a vector transpose of a
    # non-128-aligned tile).
    yt = jax.lax.dot_general(eye_ref[...], y, (((1,), (1,)), ((), ())),
                             preferred_element_type=jnp.float32)   # (B*F0, T*64)
    yt = jnp.maximum(yt + o1_ref[...], 0.0)                         # BN offset + ReLU
    yt = jnp.max(yt.reshape(B * f1, POOLS[0], T * CC), axis=1)      # MaxPool(1,8) over freq rows

    # Regroup to channels-last (T, B, f1, 64) for layers 2/3.
    h = jnp.concatenate(
        [yt[:, t * CC:(t + 1) * CC].reshape(1, B, f1, CC) for t in range(T)],
        axis=0)

    # ---- layers 2 & 3: value-space im2col (no padded-scratch round trips) ---
    def conv_bn_relu_pool(h, w_ref, o_ref, Ff, pool):
        hp = jnp.concatenate([h[:1], h, h[T - 1:]], axis=0)                  # replicate time pad
        hp = jnp.concatenate([hp[:, :, :1], hp, hp[:, :, Ff - 1:]], axis=2)  # replicate freq pad
        patches = jnp.concatenate(
            [hp[dy:dy + T, :, dx:dx + Ff, :].reshape(T * B * Ff, CC)
             for dy in range(3) for dx in range(3)], axis=-1)                # (rows, 576)
        y = jnp.maximum(dot(patches, w_ref[...]) + o_ref[...], 0.0)          # BN(+scale folded)+ReLU
        y = jnp.max(y.reshape(T * B * (Ff // pool), pool, CC), axis=1)       # MaxPool(1,pool)
        return y.reshape(T, B, Ff // pool, CC)

    h = conv_bn_relu_pool(h, w2_ref, o2_ref, f1, POOLS[1])          # (T, B, 2, 64)
    h = conv_bn_relu_pool(h, w3_ref, o3_ref, f2, POOLS[2])          # (T, B, 1, 64)
    h = h.reshape(T * B, CC)                                        # flatten (final freq extent 1)

    # ---- FC trunk + fused output heads --------------------------------------
    h = jnp.maximum(dot(h, wf1_ref[...]) + bf1_ref[...], 0.0)
    h = jnp.maximum(dot(h, wf2_ref[...]) + bf2_ref[...], 0.0)
    h = jnp.maximum(dot(h, wf3_ref[...]) + bf3_ref[...], 0.0)
    heads = dot(h, wh_ref[...]) + bh_ref[...]                       # (T*B, 256)

    # Positional-encoding additive term is a precomputed constant input.
    emb = (heads[:, :_EMB_W] + pos_ref[...]).reshape(T, B, _EMB_W)
    noi = jnp.exp(heads[:, _NOISE_OFF:_NOISE_OFF + _EMB_W]).reshape(T, B, _EMB_W)

    # Final-shaped writes: (B, source, T, EMBEDDING_DIM), zero post-processing.
    for b in range(B):
        for s in range(MAX_NUM_SOURCES):
            emb_ref[b, s] = emb[:, b, s * EMBEDDING_DIM:(s + 1) * EMBEDDING_DIM]
            noise_ref[b, s] = noi[:, b, s * EMBEDDING_DIM:(s + 1) * EMBEDDING_DIM]


# ---------------------------------------------------------------------------
# Wrapper: single pallas_call for the whole forward pass.
# ---------------------------------------------------------------------------
def _forward_impl(audio_features, kp):
    """audio_features: (B, 8, T, F) float32 (PyTorch NCHW convention)."""
    B, C_in, T, F0 = audio_features.shape
    f1 = F0 // POOLS[0]
    f2 = f1 // POOLS[1]
    f3 = f2 // POOLS[2]
    assert F0 % POOLS[0] == 0 and f1 % POOLS[1] == 0 and f2 % POOLS[2] == 0
    # TODO(synk): ceil_mode pooling for non-divisible F and the (C, Fo)-ordered
    # flatten for f3 > 1 are not implemented in the fused kernel.
    assert f3 == 1

    # Shape-only constants (baked into the executable at trace time).
    eye = jnp.asarray(np.eye(B * F0, dtype=np.float32))            # MXU transpose identity
    pos = np.zeros((T * B, _EMB_W), np.float32)                    # rows ordered (t, b)
    tgrid = np.repeat(np.linspace(0.0, 1.0, T, dtype=np.float32), B)
    for s in range(MAX_NUM_SOURCES):
        pos[:, (s + 1) * EMBEDDING_DIM - 1] = tgrid
    pos = jnp.asarray(pos)

    kernel = functools.partial(_fused_kernel, B=B, C_in=C_in, T=T, F0=F0)
    out_sds = jax.ShapeDtypeStruct((B, MAX_NUM_SOURCES, T, EMBEDDING_DIM),
                                   jnp.float32)
    vmem = pl.BlockSpec(memory_space=pltpu.MemorySpace.VMEM)
    operands = (audio_features, kp["a1"], kp["o1"], eye,
                kp["w2"], kp["o2"], kp["w3"], kp["o3"],
                kp["wf1"], kp["bf1"], kp["wf2"], kp["bf2"],
                kp["wf3"], kp["bf3"], kp["wh"], kp["bh"], pos)
    emb, noise = pl.pallas_call(
        kernel,
        out_shape=(out_sds, out_sds),
        in_specs=[vmem] * len(operands),
        out_specs=(vmem, vmem),
    )(*operands)
    return emb, noise


feature_extraction_forward = jax.jit(_forward_impl)


# ---------------------------------------------------------------------------
# Deterministic synthetic parameters (BatchNorm folded, inference mode).
# ---------------------------------------------------------------------------
def init_params(key, flatten_dim):
    keys = iter(jax.random.split(key, 40))

    def nrm(shape, std):
        return std * jax.random.normal(next(keys), shape, jnp.float32)

    p = {}
    cins = {1: 8, 2: CONV_CHANNELS, 3: CONV_CHANNELS}
    for i in (1, 2, 3):
        w = nrm((3, 3, cins[i], CONV_CHANNELS), 0.08)
        conv_b = nrm((CONV_CHANNELS,), 0.02)
        gamma = 1.0 + nrm((CONV_CHANNELS,), 0.1)
        beta = nrm((CONV_CHANNELS,), 0.05)
        mean = nrm((CONV_CHANNELS,), 0.05)
        var = 0.5 + jnp.abs(nrm((CONV_CHANNELS,), 0.2))
        inv = gamma / jnp.sqrt(var + BN_EPS)
        p[f"w_c{i}"] = w
        p[f"s_c{i}"] = inv                              # folded BN scale
        p[f"o_c{i}"] = (conv_b - mean) * inv + beta     # folded BN offset
    p["w_f1"] = nrm((flatten_dim, HIDDEN), 0.08); p["b_f1"] = nrm((HIDDEN,), 0.02)
    p["w_f2"] = nrm((HIDDEN, HIDDEN), 0.08);      p["b_f2"] = nrm((HIDDEN,), 0.02)
    p["w_f3"] = nrm((HIDDEN, HIDDEN), 0.08);      p["b_f3"] = nrm((HIDDEN,), 0.02)
    d_e = (EMBEDDING_DIM - 1) * MAX_NUM_SOURCES
    d_n = EMBEDDING_DIM * MAX_NUM_SOURCES
    p["w_emb"] = nrm((HIDDEN, d_e), 0.08);   p["b_emb"] = nrm((d_e,), 0.02)
    p["w_noise"] = nrm((HIDDEN, d_n), 0.08); p["b_noise"] = nrm((d_n,), 0.02)
    return p


def pack_params(p, T):
    """One-time host-side packing into the fused kernel's layout."""
    kp = {}
    CC = CONV_CHANNELS

    # Layer 1: banded (T*64, 3*C*T) weight.  Time taps + replicate time
    # padding + folded-BN scale are all baked in; freq taps are selected by
    # the kernel's edge-clamped lane shifts (kw-major row blocks of xk).
    w1 = np.asarray(p["w_c1"], np.float32)            # (3, 3, C, 64), (kh=time, kw=freq)
    s1 = np.asarray(p["s_c1"], np.float32)
    o1 = np.asarray(p["o_c1"], np.float32)
    C = w1.shape[2]
    a1 = np.zeros((T * CC, 3 * C * T), np.float32)
    for t_out in range(T):
        for kh in range(3):
            t_src = min(max(t_out + kh - 1, 0), T - 1)          # replicate padding in time
            for kw in range(3):
                for c in range(C):
                    a1[t_out * CC:(t_out + 1) * CC,
                       (kw * C + c) * T + t_src] += w1[kh, kw, c, :] * s1
    kp["a1"] = jnp.asarray(a1)
    kp["o1"] = jnp.asarray(np.tile(o1, T).reshape(1, T * CC))   # lanes ordered (t, co)

    # Layers 2/3: im2col weights with the folded-BN scale in the columns.
    for i in (2, 3):
        w = np.asarray(p[f"w_c{i}"], np.float32).reshape(9 * CC, CC)
        kp[f"w{i}"] = jnp.asarray(w * np.asarray(p[f"s_c{i}"], np.float32)[None, :])
        kp[f"o{i}"] = jnp.asarray(np.asarray(p[f"o_c{i}"], np.float32).reshape(1, CC))

    kp["wf1"] = p["w_f1"]; kp["bf1"] = p["b_f1"].reshape(1, -1)
    kp["wf2"] = p["w_f2"]; kp["bf2"] = p["b_f2"].reshape(1, -1)
    kp["wf3"] = p["w_f3"]; kp["bf3"] = p["b_f3"].reshape(1, -1)

    # Pack both heads into one lane-dense (128, 256) weight.  Embedding columns
    # are per-source blocks of 32 with a zero "positional" slot at 31/63/95;
    # noise columns start at the vreg-aligned offset 128.
    d_e = EMBEDDING_DIM - 1
    wh = np.zeros((HIDDEN, _HEAD_SLAB), np.float32)
    bh = np.zeros((1, _HEAD_SLAB), np.float32)
    w_emb = np.asarray(p["w_emb"], np.float32); b_emb = np.asarray(p["b_emb"], np.float32)
    w_noi = np.asarray(p["w_noise"], np.float32); b_noi = np.asarray(p["b_noise"], np.float32)
    for s in range(MAX_NUM_SOURCES):
        wh[:, s * EMBEDDING_DIM:s * EMBEDDING_DIM + d_e] = w_emb[:, s * d_e:(s + 1) * d_e]
        bh[0, s * EMBEDDING_DIM:s * EMBEDDING_DIM + d_e] = b_emb[s * d_e:(s + 1) * d_e]
    wh[:, _NOISE_OFF:_NOISE_OFF + _EMB_W] = w_noi
    bh[0, _NOISE_OFF:_NOISE_OFF + _EMB_W] = b_noi
    kp["wh"] = jnp.asarray(wh)
    kp["bh"] = jnp.asarray(bh)
    return kp


# ---------------------------------------------------------------------------
# Pure-JAX reference (for correctness check).
# ---------------------------------------------------------------------------
def _conv_layer_ref(x, w, scale, bias, pool):
    xp = jnp.pad(x, ((0, 0), (1, 1), (1, 1), (0, 0)), mode="edge")
    y = jax.lax.conv_general_dilated(
        xp, w, window_strides=(1, 1), padding="VALID",
        dimension_numbers=("NHWC", "HWIO", "NHWC"))
    y = jnp.maximum(y * scale[None, None, None, :] + bias[None, None, None, :],
                    0.0)
    B, T, F, C = y.shape
    return jnp.max(y.reshape(B, T, F // pool, pool, C), axis=3)


def feature_extraction_ref(audio_features, params):
    B, _, T, _ = audio_features.shape
    x = jnp.transpose(audio_features, (0, 2, 3, 1))
    x = _conv_layer_ref(x, params["w_c1"], params["s_c1"], params["o_c1"], 8)
    x = _conv_layer_ref(x, params["w_c2"], params["s_c2"], params["o_c2"], 8)
    x = _conv_layer_ref(x, params["w_c3"], params["s_c3"], params["o_c3"], 2)
    _, _, Fo, Co = x.shape
    h = jnp.transpose(x, (0, 1, 3, 2)).reshape(B * T, Co * Fo)
    h = jnp.maximum(h @ params["w_f1"] + params["b_f1"], 0.0)
    h = jnp.maximum(h @ params["w_f2"] + params["b_f2"], 0.0)
    h = jnp.maximum(h @ params["w_f3"] + params["b_f3"], 0.0)
    emb = (h @ params["w_emb"] + params["b_emb"]
           ).reshape(B, T, MAX_NUM_SOURCES, -1).transpose(0, 2, 1, 3)
    noise = jnp.exp(h @ params["w_noise"] + params["b_noise"]
                    ).reshape(B, T, MAX_NUM_SOURCES, -1).transpose(0, 2, 1, 3)
    pos = jnp.linspace(0.0, 1.0, T)[None, :, None, None]
    pos = jnp.tile(pos, (B, 1, MAX_NUM_SOURCES, 1)).transpose(0, 2, 1, 3)
    return jnp.concatenate([emb, pos.astype(emb.dtype)], axis=-1), noise


if __name__ == "__main__":
    # Small shapes consistent with the module: 8 input channels, T=8 frames,
    # F=128 freq bins (num_fft_bins=256) -> flatten_dim = 64 * 1 = 64.
    B, C, T, F = 2, 8, 8, 128
    key = jax.random.PRNGKey(0)
    k_x, k_p = jax.random.split(key)
    audio_features = jax.random.normal(k_x, (B, C, T, F), jnp.float32)
    flatten_dim = CONV_CHANNELS * (F // 8 // 8 // 2)
    params = init_params(k_p, flatten_dim)
    kparams = pack_params(params, T)

    embeddings, noise = jax.block_until_ready(
        feature_extraction_forward(audio_features, kparams))
    ref_emb, ref_noise = feature_extraction_ref(audio_features, params)

    assert embeddings.shape == (B, MAX_NUM_SOURCES, T, EMBEDDING_DIM)
    assert noise.shape == (B, MAX_NUM_SOURCES, T, EMBEDDING_DIM)
    np.testing.assert_allclose(np.asarray(embeddings), np.asarray(ref_emb),
                               rtol=2e-2, atol=2e-2)
    np.testing.assert_allclose(np.asarray(noise), np.asarray(ref_noise),
                               rtol=2e-2, atol=2e-2)
    print("KERNEL_OK")
</pallas_src>

<mosaic_0001>
module attributes {stable_mosaic.version = 11 : i64} {
  func.func @_fused_kernel(%arg0: memref<2x8x8x128xf32, #tpu.memory_space<vmem>>, %arg1: memref<512x192xf32, #tpu.memory_space<vmem>>, %arg2: memref<1x512xf32, #tpu.memory_space<vmem>>, %arg3: memref<256x256xf32, #tpu.memory_space<vmem>>, %arg4: memref<576x64xf32, #tpu.memory_space<vmem>>, %arg5: memref<1x64xf32, #tpu.memory_space<vmem>>, %arg6: memref<576x64xf32, #tpu.memory_space<vmem>>, %arg7: memref<1x64xf32, #tpu.memory_space<vmem>>, %arg8: memref<64x128xf32, #tpu.memory_space<vmem>>, %arg9: memref<1x128xf32, #tpu.memory_space<vmem>>, %arg10: memref<128x128xf32, #tpu.memory_space<vmem>>, %arg11: memref<1x128xf32, #tpu.memory_space<vmem>>, %arg12: memref<128x128xf32, #tpu.memory_space<vmem>>, %arg13: memref<1x128xf32, #tpu.memory_space<vmem>>, %arg14: memref<128x256xf32, #tpu.memory_space<vmem>>, %arg15: memref<1x256xf32, #tpu.memory_space<vmem>>, %arg16: memref<16x96xf32, #tpu.memory_space<vmem>>, %arg17: memref<2x3x8x32xf32, #tpu.memory_space<vmem>>, %arg18: memref<2x3x8x32xf32, #tpu.memory_space<vmem>>) attributes {dimension_semantics = [], scalar_prefetch = 0 : i64, scratch_operands = 0 : i64, tpu.core_type = #tpu.core_type<tc>} {
    %c0 = arith.constant 0 : index
    %c0_0 = arith.constant 0 : index
    %c0_1 = arith.constant 0 : index
    %c0_2 = arith.constant 0 : index
    %0 = vector.load %arg0[%c0, %c0_0, %c0_1, %c0_2] : memref<2x8x8x128xf32, #tpu.memory_space<vmem>>, vector<1x8x8x128xf32>
    %1 = vector.shape_cast %0 : vector<1x8x8x128xf32> to vector<8x8x128xf32>
    %2 = vector.shape_cast %1 : vector<8x8x128xf32> to vector<64x128xf32>
    %3 = vector.extract_strided_slice %2 {offsets = [0, 0], sizes = [64, 1], strides = [1, 1]} : vector<64x128xf32> to vector<64x1xf32>
    %4 = vector.extract_strided_slice %2 {offsets = [0, 0], sizes = [64, 127], strides = [1, 1]} : vector<64x128xf32> to vector<64x127xf32>
    %5 = tpu.concatenate %3, %4 in 1 : vector<64x1xf32>, vector<64x127xf32> -> vector<64x128xf32>
    %6 = vector.extract_strided_slice %2 {offsets = [0, 1], sizes = [64, 127], strides = [1, 1]} : vector<64x128xf32> to vector<64x127xf32>
    %7 = vector.extract_strided_slice %2 {offsets = [0, 127], sizes = [64, 1], strides = [1, 1]} : vector<64x128xf32> to vector<64x1xf32>
    %8 = tpu.concatenate %6, %7 in 1 : vector<64x127xf32>, vector<64x1xf32> -> vector<64x128xf32>
    %9 = tpu.concatenate %5, %2, %8 in 0 : vector<64x128xf32>, vector<64x128xf32>, vector<64x128xf32> -> vector<192x128xf32>
    %c1 = arith.constant 1 : index
    %c0_3 = arith.constant 0 : index
    %c0_4 = arith.constant 0 : index
    %c0_5 = arith.constant 0 : index
    %10 = vector.load %arg0[%c1, %c0_3, %c0_4, %c0_5] : memref<2x8x8x128xf32, #tpu.memory_space<vmem>>, vector<1x8x8x128xf32>
    %11 = vector.shape_cast %10 : vector<1x8x8x128xf32> to vector<8x8x128xf32>
    %12 = vector.shape_cast %11 : vector<8x8x128xf32> to vector<64x128xf32>
    %13 = vector.extract_strided_slice %12 {offsets = [0, 0], sizes = [64, 1], strides = [1, 1]} : vector<64x128xf32> to vector<64x1xf32>
    %14 = vector.extract_strided_slice %12 {offsets = [0, 0], sizes = [64, 127], strides = [1, 1]} : vector<64x128xf32> to vector<64x127xf32>
    %15 = tpu.concatenate %13, %14 in 1 : vector<64x1xf32>, vector<64x127xf32> -> vector<64x128xf32>
    %16 = vector.extract_strided_slice %12 {offsets = [0, 1], sizes = [64, 127], strides = [1, 1]} : vector<64x128xf32> to vector<64x127xf32>
    %17 = vector.extract_strided_slice %12 {offsets = [0, 127], sizes = [64, 1], strides = [1, 1]} : vector<64x128xf32> to vector<64x1xf32>
    %18 = tpu.concatenate %16, %17 in 1 : vector<64x127xf32>, vector<64x1xf32> -> vector<64x128xf32>
    %19 = tpu.concatenate %15, %12, %18 in 0 : vector<64x128xf32>, vector<64x128xf32>, vector<64x128xf32> -> vector<192x128xf32>
    %20 = tpu.concatenate %9, %19 in 1 : vector<192x128xf32>, vector<192x128xf32> -> vector<192x256xf32>
    %c0_6 = arith.constant 0 : index
    %c0_7 = arith.constant 0 : index
    %21 = vector.load %arg1[%c0_6, %c0_7] : memref<512x192xf32, #tpu.memory_space<vmem>>, vector<512x192xf32>
    %cst = arith.constant dense<0.000000e+00> : vector<512x256xf32>
    %22 = tpu.matmul %21, %20, %cst {dimension_numbers = #tpu.dot_dimension_numbers<[1], [0], [0], [1], [0, 0, 1, 1], [], []>} : vector<512x192xf32>, vector<192x256xf32>, vector<512x256xf32> -> vector<512x256xf32>
    %c0_8 = arith.constant 0 : index
    %c0_9 = arith.constant 0 : index
    %23 = vector.load %arg3[%c0_8, %c0_9] : memref<256x256xf32, #tpu.memory_space<vmem>>, vector<256x256xf32>
    %cst_10 = arith.constant dense<0.000000e+00> : vector<256x512xf32>
    %24 = tpu.matmul %23, %22, %cst_10 {dimension_numbers = #tpu.dot_dimension_numbers<[1], [1], [0], [0], [0, 0, 1, 0], [], []>} : vector<256x256xf32>, vector<512x256xf32>, vector<256x512xf32> -> vector<256x512xf32>
    %c0_11 = arith.constant 0 : index
    %c0_12 = arith.constant 0 : index
    %25 = vector.load %arg2[%c0_11, %c0_12] : memref<1x512xf32, #tpu.memory_space<vmem>>, vector<1x512xf32>
    %26 = vector.broadcast %25 : vector<1x512xf32> to vector<256x512xf32>
    %27 = arith.addf %24, %26 : vector<256x512xf32>
    %cst_13 = arith.constant 0.000000e+00 : f32
    %28 = vector.broadcast %cst_13 : f32 to vector<256x512xf32>
    %29 = arith.maximumf %27, %28 : vector<256x512xf32>
    %30 = vector.shape_cast %29 : vector<256x512xf32> to vector<32x8x512xf32>
    %cst_14 = arith.constant dense<0xFF800000> : vector<32x512xf32>
    %31 = vector.multi_reduction <maximumf>, %30, %cst_14 [1] : vector<32x8x512xf32> to vector<32x512xf32>
    %32 = vector.extract_strided_slice %31 {offsets = [0, 0], sizes = [32, 64], strides = [1, 1]} : vector<32x512xf32> to vector<32x64xf32>
    %33 = vector.shape_cast %32 : vector<32x64xf32> to vector<1x2x16x64xf32>
    %34 = vector.extract_strided_slice %31 {offsets = [0, 64], sizes = [32, 64], strides = [1, 1]} : vector<32x512xf32> to vector<32x64xf32>
    %35 = vector.shape_cast %34 : vector<32x64xf32> to vector<1x2x16x64xf32>
    %36 = vector.extract_strided_slice %31 {offsets = [0, 128], sizes = [32, 64], strides = [1, 1]} : vector<32x512xf32> to vector<32x64xf32>
    %37 = vector.shape_cast %36 : vector<32x64xf32> to vector<1x2x16x64xf32>
    %38 = vector.extract_strided_slice %31 {offsets = [0, 192], sizes = [32, 64], strides = [1, 1]} : vector<32x512xf32> to vector<32x64xf32>
    %39 = vector.shape_cast %38 : vector<32x64xf32> to vector<1x2x16x64xf32>
    %40 = vector.extract_strided_slice %31 {offsets = [0, 256], sizes = [32, 64], strides = [1, 1]} : vector<32x512xf32> to vector<32x64xf32>
    %41 = vector.shape_cast %40 : vector<32x64xf32> to vector<1x2x16x64xf32>
    %42 = vector.extract_strided_slice %31 {offsets = [0, 320], sizes = [32, 64], strides = [1, 1]} : vector<32x512xf32> to vector<32x64xf32>
    %43 = vector.shape_cast %42 : vector<32x64xf32> to vector<1x2x16x64xf32>
    %44 = vector.extract_strided_slice %31 {offsets = [0, 384], sizes = [32, 64], strides = [1, 1]} : vector<32x512xf32> to vector<32x64xf32>
    %45 = vector.shape_cast %44 : vector<32x64xf32> to vector<1x2x16x64xf32>
    %46 = vector.extract_strided_slice %31 {offsets = [0, 448], sizes = [32, 64], strides = [1, 1]} : vector<32x512xf32> to vector<32x64xf32>
    %47 = vector.shape_cast %46 : vector<32x64xf32> to vector<1x2x16x64xf32>
    %48 = tpu.concatenate %33, %35, %37, %39, %41, %43, %45, %47 in 0 : vector<1x2x16x64xf32>, vector<1x2x16x64xf32>, vector<1x2x16x64xf32>, vector<1x2x16x64xf32>, vector<1x2x16x64xf32>, vector<1x2x16x64xf32>, vector<1x2x16x64xf32>, vector<1x2x16x64xf32> -> vector<8x2x16x64xf32>
    %49 = vector.extract_strided_slice %48 {offsets = [0, 0, 0, 0], sizes = [1, 2, 16, 64], strides = [1, 1, 1, 1]} : vector<8x2x16x64xf32> to vector<1x2x16x64xf32>
    %50 = vector.extract_strided_slice %48 {offsets = [7, 0, 0, 0], sizes = [1, 2, 16, 64], strides = [1, 1, 1, 1]} : vector<8x2x16x64xf32> to vector<1x2x16x64xf32>
    %51 = tpu.concatenate %49, %48, %50 in 0 : vector<1x2x16x64xf32>, vector<8x2x16x64xf32>, vector<1x2x16x64xf32> -> vector<10x2x16x64xf32>
    %52 = vector.extract_strided_slice %51 {offsets = [0, 0, 0, 0], sizes = [10, 2, 1, 64], strides = [1, 1, 1, 1]} : vector<10x2x16x64xf32> to vector<10x2x1x64xf32>
    %53 = vector.extract_strided_slice %51 {offsets = [0, 0, 15, 0], sizes = [10, 2, 1, 64], strides = [1, 1, 1, 1]} : vector<10x2x16x64xf32> to vector<10x2x1x64xf32>
    %54 = tpu.concatenate %52, %51, %53 in 2 : vector<10x2x1x64xf32>, vector<10x2x16x64xf32>, vector<10x2x1x64xf32> -> vector<10x2x18x64xf32>
    %55 = vector.extract_strided_slice %54 {offsets = [0, 0, 0, 0], sizes = [8, 2, 16, 64], strides = [1, 1, 1, 1]} : vector<10x2x18x64xf32> to vector<8x2x16x64xf32>
    %56 = vector.shape_cast %55 : vector<8x2x16x64xf32> to vector<256x64xf32>
    %57 = vector.extract_strided_slice %54 {offsets = [0, 0, 1, 0], sizes = [8, 2, 16, 64], strides = [1, 1, 1, 1]} : vector<10x2x18x64xf32> to vector<8x2x16x64xf32>
    %58 = vector.shape_cast %57 : vector<8x2x16x64xf32> to vector<256x64xf32>
    %59 = vector.extract_strided_slice %54 {offsets = [0, 0, 2, 0], sizes = [8, 2, 16, 64], strides = [1, 1, 1, 1]} : vector<10x2x18x64xf32> to vector<8x2x16x64xf32>
    %60 = vector.shape_cast %59 : vector<8x2x16x64xf32> to vector<256x64xf32>
    %61 = vector.extract_strided_slice %54 {offsets = [1, 0, 0, 0], sizes = [8, 2, 16, 64], strides = [1, 1, 1, 1]} : vector<10x2x18x64xf32> to vector<8x2x16x64xf32>
    %62 = vector.shape_cast %61 : vector<8x2x16x64xf32> to vector<256x64xf32>
    %63 = vector.extract_strided_slice %54 {offsets = [1, 0, 1, 0], sizes = [8, 2, 16, 64], strides = [1, 1, 1, 1]} : vector<10x2x18x64xf32> to vector<8x2x16x64xf32>
    %64 = vector.shape_cast %63 : vector<8x2x16x64xf32> to vector<256x64xf32>
    %65 = vector.extract_strided_slice %54 {offsets = [1, 0, 2, 0], sizes = [8, 2, 16, 64], strides = [1, 1, 1, 1]} : vector<10x2x18x64xf32> to vector<8x2x16x64xf32>
    %66 = vector.shape_cast %65 : vector<8x2x16x64xf32> to vector<256x64xf32>
    %67 = vector.extract_strided_slice %54 {offsets = [2, 0, 0, 0], sizes = [8, 2, 16, 64], strides = [1, 1, 1, 1]} : vector<10x2x18x64xf32> to vector<8x2x16x64xf32>
    %68 = vector.shape_cast %67 : vector<8x2x16x64xf32> to vector<256x64xf32>
    %69 = vector.extract_strided_slice %54 {offsets = [2, 0, 1, 0], sizes = [8, 2, 16, 64], strides = [1, 1, 1, 1]} : vector<10x2x18x64xf32> to vector<8x2x16x64xf32>
    %70 = vector.shape_cast %69 : vector<8x2x16x64xf32> to vector<256x64xf32>
    %71 = vector.extract_strided_slice %54 {offsets = [2, 0, 2, 0], sizes = [8, 2, 16, 64], strides = [1, 1, 1, 1]} : vector<10x2x18x64xf32> to vector<8x2x16x64xf32>
    %72 = vector.shape_cast %71 : vector<8x2x16x64xf32> to vector<256x64xf32>
    %73 = tpu.concatenate %56, %58, %60, %62, %64, %66, %68, %70, %72 in 1 : vector<256x64xf32>, vector<256x64xf32>, vector<256x64xf32>, vector<256x64xf32>, vector<256x64xf32>, vector<256x64xf32>, vector<256x64xf32>, vector<256x64xf32>, vector<256x64xf32> -> vector<256x576xf32>
    %c0_15 = arith.constant 0 : index
    %c0_16 = arith.constant 0 : index
    %74 = vector.load %arg4[%c0_15, %c0_16] : memref<576x64xf32, #tpu.memory_space<vmem>>, vector<576x64xf32>
    %cst_17 = arith.constant dense<0.000000e+00> : vector<256x64xf32>
    %75 = tpu.matmul %73, %74, %cst_17 {dimension_numbers = #tpu.dot_dimension_numbers<[1], [0], [0], [1], [0, 0, 1, 1], [], []>} : vector<256x576xf32>, vector<576x64xf32>, vector<256x64xf32> -> vector<256x64xf32>
    %c0_18 = arith.constant 0 : index
    %c0_19 = arith.constant 0 : index
    %76 = vector.load %arg5[%c0_18, %c0_19] : memref<1x64xf32, #tpu.memory_space<vmem>>, vector<1x64xf32>
    %77 = vector.broadcast %76 : vector<1x64xf32> to vector<256x64xf32>
    %78 = arith.addf %75, %77 : vector<256x64xf32>
    %cst_20 = arith.constant 0.000000e+00 : f32
    %79 = vector.broadcast %cst_20 : f32 to vector<256x64xf32>
    %80 = arith.maximumf %78, %79 : vector<256x64xf32>
    %81 = vector.shape_cast %80 : vector<256x64xf32> to vector<32x8x64xf32>
    %cst_21 = arith.constant dense<0xFF800000> : vector<32x64xf32>
    %82 = vector.multi_reduction <maximumf>, %81, %cst_21 [1] : vector<32x8x64xf32> to vector<32x64xf32>
    %83 = vector.shape_cast %82 : vector<32x64xf32> to vector<8x2x2x64xf32>
    %84 = vector.extract_strided_slice %83 {offsets = [0, 0, 0, 0], sizes = [1, 2, 2, 64], strides = [1, 1, 1, 1]} : vector<8x2x2x64xf32> to vector<1x2x2x64xf32>
    %85 = vector.extract_strided_slice %83 {offsets = [7, 0, 0, 0], sizes = [1, 2, 2, 64], strides = [1, 1, 1, 1]} : vector<8x2x2x64xf32> to vector<1x2x2x64xf32>
    %86 = tpu.concatenate %84, %83, %85 in 0 : vector<1x2x2x64xf32>, vector<8x2x2x64xf32>, vector<1x2x2x64xf32> -> vector<10x2x2x64xf32>
    %87 = vector.extract_strided_slice %86 {offsets = [0, 0, 0, 0], sizes = [10, 2, 1, 64], strides = [1, 1, 1, 1]} : vector<10x2x2x64xf32> to vector<10x2x1x64xf32>
    %88 = vector.extract_strided_slice %86 {offsets = [0, 0, 1, 0], sizes = [10, 2, 1, 64], strides = [1, 1, 1, 1]} : vector<10x2x2x64xf32> to vector<10x2x1x64xf32>
    %89 = tpu.concatenate %87, %86, %88 in 2 : vector<10x2x1x64xf32>, vector<10x2x2x64xf32>, vector<10x2x1x64xf32> -> vector<10x2x4x64xf32>
    %90 = vector.extract_strided_slice %89 {offsets = [0, 0, 0, 0], sizes = [8, 2, 2, 64], strides = [1, 1, 1, 1]} : vector<10x2x4x64xf32> to vector<8x2x2x64xf32>
    %91 = vector.shape_cast %90 : vector<8x2x2x64xf32> to vector<32x64xf32>
    %92 = vector.extract_strided_slice %89 {offsets = [0, 0, 1, 0], sizes = [8, 2, 2, 64], strides = [1, 1, 1, 1]} : vector<10x2x4x64xf32> to vector<8x2x2x64xf32>
    %93 = vector.shape_cast %92 : vector<8x2x2x64xf32> to vector<32x64xf32>
    %94 = vector.extract_strided_slice %89 {offsets = [0, 0, 2, 0], sizes = [8, 2, 2, 64], strides = [1, 1, 1, 1]} : vector<10x2x4x64xf32> to vector<8x2x2x64xf32>
    %95 = vector.shape_cast %94 : vector<8x2x2x64xf32> to vector<32x64xf32>
    %96 = vector.extract_strided_slice %89 {offsets = [1, 0, 0, 0], sizes = [8, 2, 2, 64], strides = [1, 1, 1, 1]} : vector<10x2x4x64xf32> to vector<8x2x2x64xf32>
    %97 = vector.shape_cast %96 : vector<8x2x2x64xf32> to vector<32x64xf32>
    %98 = vector.extract_strided_slice %89 {offsets = [1, 0, 1, 0], sizes = [8, 2, 2, 64], strides = [1, 1, 1, 1]} : vector<10x2x4x64xf32> to vector<8x2x2x64xf32>
    %99 = vector.shape_cast %98 : vector<8x2x2x64xf32> to vector<32x64xf32>
    %100 = vector.extract_strided_slice %89 {offsets = [1, 0, 2, 0], sizes = [8, 2, 2, 64], strides = [1, 1, 1, 1]} : vector<10x2x4x64xf32> to vector<8x2x2x64xf32>
    %101 = vector.shape_cast %100 : vector<8x2x2x64xf32> to vector<32x64xf32>
    %102 = vector.extract_strided_slice %89 {offsets = [2, 0, 0, 0], sizes = [8, 2, 2, 64], strides = [1, 1, 1, 1]} : vector<10x2x4x64xf32> to vector<8x2x2x64xf32>
    %103 = vector.shape_cast %102 : vector<8x2x2x64xf32> to vector<32x64xf32>
    %104 = vector.extract_strided_slice %89 {offsets = [2, 0, 1, 0], sizes = [8, 2, 2, 64], strides = [1, 1, 1, 1]} : vector<10x2x4x64xf32> to vector<8x2x2x64xf32>
    %105 = vector.shape_cast %104 : vector<8x2x2x64xf32> to vector<32x64xf32>
    %106 = vector.extract_strided_slice %89 {offsets = [2, 0, 2, 0], sizes = [8, 2, 2, 64], strides = [1, 1, 1, 1]} : vector<10x2x4x64xf32> to vector<8x2x2x64xf32>
    %107 = vector.shape_cast %106 : vector<8x2x2x64xf32> to vector<32x64xf32>
    %108 = tpu.concatenate %91, %93, %95, %97, %99, %101, %103, %105, %107 in 1 : vector<32x64xf32>, vector<32x64xf32>, vector<32x64xf32>, vector<32x64xf32>, vector<32x64xf32>, vector<32x64xf32>, vector<32x64xf32>, vector<32x64xf32>, vector<32x64xf32> -> vector<32x576xf32>
    %c0_22 = arith.constant 0 : index
    %c0_23 = arith.constant 0 : index
    %109 = vector.load %arg6[%c0_22, %c0_23] : memref<576x64xf32, #tpu.memory_space<vmem>>, vector<576x64xf32>
    %cst_24 = arith.constant dense<0.000000e+00> : vector<32x64xf32>
    %110 = tpu.matmul %108, %109, %cst_24 {dimension_numbers = #tpu.dot_dimension_numbers<[1], [0], [0], [1], [0, 0, 1, 1], [], []>} : vector<32x576xf32>, vector<576x64xf32>, vector<32x64xf32> -> vector<32x64xf32>
    %c0_25 = arith.constant 0 : index
    %c0_26 = arith.constant 0 : index
    %111 = vector.load %arg7[%c0_25, %c0_26] : memref<1x64xf32, #tpu.memory_space<vmem>>, vector<1x64xf32>
    %112 = vector.broadcast %111 : vector<1x64xf32> to vector<32x64xf32>
    %113 = arith.addf %110, %112 : vector<32x64xf32>
    %cst_27 = arith.constant 0.000000e+00 : f32
    %114 = vector.broadcast %cst_27 : f32 to vector<32x64xf32>
    %115 = arith.maximumf %113, %114 : vector<32x64xf32>
    %116 = vector.shape_cast %115 : vector<32x64xf32> to vector<16x2x64xf32>
    %cst_28 = arith.constant dense<0xFF800000> : vector<16x64xf32>
    %117 = vector.multi_reduction <maximumf>, %116, %cst_28 [1] : vector<16x2x64xf32> to vector<16x64xf32>
    %118 = vector.shape_cast %117 : vector<16x64xf32> to vector<8x2x1x64xf32>
    %119 = vector.shape_cast %118 : vector<8x2x1x64xf32> to vector<16x64xf32>
    %c0_29 = arith.constant 0 : index
    %c0_30 = arith.constant 0 : index
    %120 = vector.load %arg8[%c0_29, %c0_30] : memref<64x128xf32, #tpu.memory_space<vmem>>, vector<64x128xf32>
    %cst_31 = arith.constant dense<0.000000e+00> : vector<16x128xf32>
    %121 = tpu.matmul %119, %120, %cst_31 {dimension_numbers = #tpu.dot_dimension_numbers<[1], [0], [0], [1], [0, 0, 1, 1], [], []>} : vector<16x64xf32>, vector<64x128xf32>, vector<16x128xf32> -> vector<16x128xf32>
    %c0_32 = arith.constant 0 : index
    %c0_33 = arith.constant 0 : index
    %122 = vector.load %arg9[%c0_32, %c0_33] : memref<1x128xf32, #tpu.memory_space<vmem>>, vector<1x128xf32>
    %123 = vector.broadcast %122 : vector<1x128xf32> to vector<16x128xf32>
    %124 = arith.addf %121, %123 : vector<16x128xf32>
    %cst_34 = arith.constant 0.000000e+00 : f32
    %125 = vector.broadcast %cst_34 : f32 to vector<16x128xf32>
    %126 = arith.maximumf %124, %125 : vector<16x128xf32>
    %c0_35 = arith.constant 0 : index
    %c0_36 = arith.constant 0 : index
    %127 = vector.load %arg10[%c0_35, %c0_36] : memref<128x128xf32, #tpu.memory_space<vmem>>, vector<128x128xf32>
    %cst_37 = arith.constant dense<0.000000e+00> : vector<16x128xf32>
    %128 = tpu.matmul %126, %127, %cst_37 {dimension_numbers = #tpu.dot_dimension_numbers<[1], [0], [0], [1], [0, 0, 1, 1], [], []>} : vector<16x128xf32>, vector<128x128xf32>, vector<16x128xf32> -> vector<16x128xf32>
    %c0_38 = arith.constant 0 : index
    %c0_39 = arith.constant 0 : index
    %129 = vector.load %arg11[%c0_38, %c0_39] : memref<1x128xf32, #tpu.memory_space<vmem>>, vector<1x128xf32>
    %130 = vector.broadcast %129 : vector<1x128xf32> to vector<16x128xf32>
    %131 = arith.addf %128, %130 : vector<16x128xf32>
    %cst_40 = arith.constant 0.000000e+00 : f32
    %132 = vector.broadcast %cst_40 : f32 to vector<16x128xf32>
    %133 = arith.maximumf %131, %132 : vector<16x128xf32>
    %c0_41 = arith.constant 0 : index
    %c0_42 = arith.constant 0 : index
    %134 = vector.load %arg12[%c0_41, %c0_42] : memref<128x128xf32, #tpu.memory_space<vmem>>, vector<128x128xf32>
    %cst_43 = arith.constant dense<0.000000e+00> : vector<16x128xf32>
    %135 = tpu.matmul %133, %134, %cst_43 {dimension_numbers = #tpu.dot_dimension_numbers<[1], [0], [0], [1], [0, 0, 1, 1], [], []>} : vector<16x128xf32>, vector<128x128xf32>, vector<16x128xf32> -> vector<16x128xf32>
    %c0_44 = arith.constant 0 : index
    %c0_45 = arith.constant 0 : index
    %136 = vector.load %arg13[%c0_44, %c0_45] : memref<1x128xf32, #tpu.memory_space<vmem>>, vector<1x128xf32>
    %137 = vector.broadcast %136 : vector<1x128xf32> to vector<16x128xf32>
    %138 = arith.addf %135, %137 : vector<16x128xf32>
    %cst_46 = arith.constant 0.000000e+00 : f32
    %139 = vector.broadcast %cst_46 : f32 to vector<16x128xf32>
    %140 = arith.maximumf %138, %139 : vector<16x128xf32>
    %c0_47 = arith.constant 0 : index
    %c0_48 = arith.constant 0 : index
    %141 = vector.load %arg14[%c0_47, %c0_48] : memref<128x256xf32, #tpu.memory_space<vmem>>, vector<128x256xf32>
    %cst_49 = arith.constant dense<0.000000e+00> : vector<16x256xf32>
    %142 = tpu.matmul %140, %141, %cst_49 {dimension_numbers = #tpu.dot_dimension_numbers<[1], [0], [0], [1], [0, 0, 1, 1], [], []>} : vector<16x128xf32>, vector<128x256xf32>, vector<16x256xf32> -> vector<16x256xf32>
    %c0_50 = arith.constant 0 : index
    %c0_51 = arith.constant 0 : index
    %143 = vector.load %arg15[%c0_50, %c0_51] : memref<1x256xf32, #tpu.memory_space<vmem>>, vector<1x256xf32>
    %144 = vector.broadcast %143 : vector<1x256xf32> to vector<16x256xf32>
    %145 = arith.addf %142, %144 : vector<16x256xf32>
    %146 = vector.extract_strided_slice %145 {offsets = [0, 0], sizes = [16, 96], strides = [1, 1]} : vector<16x256xf32> to vector<16x96xf32>
    %c0_52 = arith.constant 0 : index
    %c0_53 = arith.constant 0 : index
    %147 = vector.load %arg16[%c0_52, %c0_53] : memref<16x96xf32, #tpu.memory_space<vmem>>, vector<16x96xf32>
    %148 = arith.addf %146, %147 : vector<16x96xf32>
    %149 = vector.shape_cast %148 : vector<16x96xf32> to vector<8x2x96xf32>
    %150 = vector.extract_strided_slice %145 {offsets = [0, 128], sizes = [16, 96], strides = [1, 1]} : vector<16x256xf32> to vector<16x96xf32>
    %151 = math.exp %150 : vector<16x96xf32>
    %152 = vector.shape_cast %151 : vector<16x96xf32> to vector<8x2x96xf32>
    %153 = vector.extract_strided_slice %149 {offsets = [0, 0, 0], sizes = [8, 1, 32], strides = [1, 1, 1]} : vector<8x2x96xf32> to vector<8x1x32xf32>
    %154 = vector.shape_cast %153 : vector<8x1x32xf32> to vector<8x32xf32>
    %c0_54 = arith.constant 0 : index
    %c0_55 = arith.constant 0 : index
    %c0_56 = arith.constant 0 : index
    %c0_57 = arith.constant 0 : index
    %155 = vector.load %arg17[%c0_54, %c0_55, %c0_56, %c0_57] : memref<2x3x8x32xf32, #tpu.memory_space<vmem>>, vector<1x1x8x32xf32>
    %156 = vector.shape_cast %155 : vector<1x1x8x32xf32> to vector<8x32xf32>
    %157 = vector.shape_cast %154 : vector<8x32xf32> to vector<1x1x8x32xf32>
    tpu.vector_store %arg17[%c0_54, %c0_55, %c0_56, %c0_57], %157 {strides = array<i32>} : memref<2x3x8x32xf32, #tpu.memory_space<vmem>>, vector<1x1x8x32xf32>,
    %158 = vector.extract_strided_slice %152 {offsets = [0, 0, 0], sizes = [8, 1, 32], strides = [1, 1, 1]} : vector<8x2x96xf32> to vector<8x1x32xf32>
    %159 = vector.shape_cast %158 : vector<8x1x32xf32> to vector<8x32xf32>
    %c0_58 = arith.constant 0 : index
    %c0_59 = arith.constant 0 : index
    %c0_60 = arith.constant 0 : index
    %c0_61 = arith.constant 0 : index
    %160 = vector.load %arg18[%c0_58, %c0_59, %c0_60, %c0_61] : memref<2x3x8x32xf32, #tpu.memory_space<vmem>>, vector<1x1x8x32xf32>
    %161 = vector.shape_cast %160 : vector<1x1x8x32xf32> to vector<8x32xf32>
    %162 = vector.shape_cast %159 : vector<8x32xf32> to vector<1x1x8x32xf32>
    tpu.vector_store %arg18[%c0_58, %c0_59, %c0_60, %c0_61], %162 {strides = array<i32>} : memref<2x3x8x32xf32, #tpu.memory_space<vmem>>, vector<1x1x8x32xf32>,
    %163 = vector.extract_strided_slice %149 {offsets = [0, 0, 32], sizes = [8, 1, 32], strides = [1, 1, 1]} : vector<8x2x96xf32> to vector<8x1x32xf32>
    %164 = vector.shape_cast %163 : vector<8x1x32xf32> to vector<8x32xf32>
    %c0_62 = arith.constant 0 : index
    %c1_63 = arith.constant 1 : index
    %c0_64 = arith.constant 0 : index
    %c0_65 = arith.constant 0 : index
    %165 = vector.load %arg17[%c0_62, %c1_63, %c0_64, %c0_65] : memref<2x3x8x32xf32, #tpu.memory_space<vmem>>, vector<1x1x8x32xf32>
    %166 = vector.shape_cast %165 : vector<1x1x8x32xf32> to vector<8x32xf32>
    %167 = vector.shape_cast %164 : vector<8x32xf32> to vector<1x1x8x32xf32>
    tpu.vector_store %arg17[%c0_62, %c1_63, %c0_64, %c0_65], %167 {strides = array<i32>} : memref<2x3x8x32xf32, #tpu.memory_space<vmem>>, vector<1x1x8x32xf32>,
    %168 = vector.extract_strided_slice %152 {offsets = [0, 0, 32], sizes = [8, 1, 32], strides = [1, 1, 1]} : vector<8x2x96xf32> to vector<8x1x32xf32>
    %169 = vector.shape_cast %168 : vector<8x1x32xf32> to vector<8x32xf32>
    %c0_66 = arith.constant 0 : index
    %c1_67 = arith.constant 1 : index
    %c0_68 = arith.constant 0 : index
    %c0_69 = arith.constant 0 : index
    %170 = vector.load %arg18[%c0_66, %c1_67, %c0_68, %c0_69] : memref<2x3x8x32xf32, #tpu.memory_space<vmem>>, vector<1x1x8x32xf32>
    %171 = vector.shape_cast %170 : vector<1x1x8x32xf32> to vector<8x32xf32>
    %172 = vector.shape_cast %169 : vector<8x32xf32> to vector<1x1x8x32xf32>
    tpu.vector_store %arg18[%c0_66, %c1_67, %c0_68, %c0_69], %172 {strides = array<i32>} : memref<2x3x8x32xf32, #tpu.memory_space<vmem>>, vector<1x1x8x32xf32>,
    %173 = vector.extract_strided_slice %149 {offsets = [0, 0, 64], sizes = [8, 1, 32], strides = [1, 1, 1]} : vector<8x2x96xf32> to vector<8x1x32xf32>
    %174 = vector.shape_cast %173 : vector<8x1x32xf32> to vector<8x32xf32>
    %c0_70 = arith.constant 0 : index
    %c2 = arith.constant 2 : index
    %c0_71 = arith.constant 0 : index
    %c0_72 = arith.constant 0 : index
    %175 = vector.load %arg17[%c0_70, %c2, %c0_71, %c0_72] : memref<2x3x8x32xf32, #tpu.memory_space<vmem>>, vector<1x1x8x32xf32>
    %176 = vector.shape_cast %175 : vector<1x1x8x32xf32> to vector<8x32xf32>
    %177 = vector.shape_cast %174 : vector<8x32xf32> to vector<1x1x8x32xf32>
    tpu.vector_store %arg17[%c0_70, %c2, %c0_71, %c0_72], %177 {strides = array<i32>} : memref<2x3x8x32xf32, #tpu.memory_space<vmem>>, vector<1x1x8x32xf32>,
    %178 = vector.extract_strided_slice %152 {offsets = [0, 0, 64], sizes = [8, 1, 32], strides = [1, 1, 1]} : vector<8x2x96xf32> to vector<8x1x32xf32>
    %179 = vector.shape_cast %178 : vector<8x1x32xf32> to vector<8x32xf32>
    %c0_73 = arith.constant 0 : index
    %c2_74 = arith.constant 2 : index
    %c0_75 = arith.constant 0 : index
    %c0_76 = arith.constant 0 : index
    %180 = vector.load %arg18[%c0_73, %c2_74, %c0_75, %c0_76] : memref<2x3x8x32xf32, #tpu.memory_space<vmem>>, vector<1x1x8x32xf32>
    %181 = vector.shape_cast %180 : vector<1x1x8x32xf32> to vector<8x32xf32>
    %182 = vector.shape_cast %179 : vector<8x32xf32> to vector<1x1x8x32xf32>
    tpu.vector_store %arg18[%c0_73, %c2_74, %c0_75, %c0_76], %182 {strides = array<i32>} : memref<2x3x8x32xf32, #tpu.memory_space<vmem>>, vector<1x1x8x32xf32>,
    %183 = vector.extract_strided_slice %149 {offsets = [0, 1, 0], sizes = [8, 1, 32], strides = [1, 1, 1]} : vector<8x2x96xf32> to vector<8x1x32xf32>
    %184 = vector.shape_cast %183 : vector<8x1x32xf32> to vector<8x32xf32>
    %c1_77 = arith.constant 1 : index
    %c0_78 = arith.constant 0 : index
    %c0_79 = arith.constant 0 : index
    %c0_80 = arith.constant 0 : index
    %185 = vector.load %arg17[%c1_77, %c0_78, %c0_79, %c0_80] : memref<2x3x8x32xf32, #tpu.memory_space<vmem>>, vector<1x1x8x32xf32>
    %186 = vector.shape_cast %185 : vector<1x1x8x32xf32> to vector<8x32xf32>
    %187 = vector.shape_cast %184 : vector<8x32xf32> to vector<1x1x8x32xf32>
    tpu.vector_store %arg17[%c1_77, %c0_78, %c0_79, %c0_80], %187 {strides = array<i32>} : memref<2x3x8x32xf32, #tpu.memory_space<vmem>>, vector<1x1x8x32xf32>,
    %188 = vector.extract_strided_slice %152 {offsets = [0, 1, 0], sizes = [8, 1, 32], strides = [1, 1, 1]} : vector<8x2x96xf32> to vector<8x1x32xf32>
    %189 = vector.shape_cast %188 : vector<8x1x32xf32> to vector<8x32xf32>
    %c1_81 = arith.constant 1 : index
    %c0_82 = arith.constant 0 : index
    %c0_83 = arith.constant 0 : index
    %c0_84 = arith.constant 0 : index
    %190 = vector.load %arg18[%c1_81, %c0_82, %c0_83, %c0_84] : memref<2x3x8x32xf32, #tpu.memory_space<vmem>>, vector<1x1x8x32xf32>
    %191 = vector.shape_cast %190 : vector<1x1x8x32xf32> to vector<8x32xf32>
    %192 = vector.shape_cast %189 : vector<8x32xf32> to vector<1x1x8x32xf32>
    tpu.vector_store %arg18[%c1_81, %c0_82, %c0_83, %c0_84], %192 {strides = array<i32>} : memref<2x3x8x32xf32, #tpu.memory_space<vmem>>, vector<1x1x8x32xf32>,
    %193 = vector.extract_strided_slice %149 {offsets = [0, 1, 32], sizes = [8, 1, 32], strides = [1, 1, 1]} : vector<8x2x96xf32> to vector<8x1x32xf32>
    %194 = vector.shape_cast %193 : vector<8x1x32xf32> to vector<8x32xf32>
    %c1_85 = arith.constant 1 : index
    %c1_86 = arith.constant 1 : index
    %c0_87 = arith.constant 0 : index
    %c0_88 = arith.constant 0 : index
    %195 = vector.load %arg17[%c1_85, %c1_86, %c0_87, %c0_88] : memref<2x3x8x32xf32, #tpu.memory_space<vmem>>, vector<1x1x8x32xf32>
    %196 = vector.shape_cast %195 : vector<1x1x8x32xf32> to vector<8x32xf32>
    %197 = vector.shape_cast %194 : vector<8x32xf32> to vector<1x1x8x32xf32>
    tpu.vector_store %arg17[%c1_85, %c1_86, %c0_87, %c0_88], %197 {strides = array<i32>} : memref<2x3x8x32xf32, #tpu.memory_space<vmem>>, vector<1x1x8x32xf32>,
    %198 = vector.extract_strided_slice %152 {offsets = [0, 1, 32], sizes = [8, 1, 32], strides = [1, 1, 1]} : vector<8x2x96xf32> to vector<8x1x32xf32>
    %199 = vector.shape_cast %198 : vector<8x1x32xf32> to vector<8x32xf32>
    %c1_89 = arith.constant 1 : index
    %c1_90 = arith.constant 1 : index
    %c0_91 = arith.constant 0 : index
    %c0_92 = arith.constant 0 : index
    %200 = vector.load %arg18[%c1_89, %c1_90, %c0_91, %c0_92] : memref<2x3x8x32xf32, #tpu.memory_space<vmem>>, vector<1x1x8x32xf32>
    %201 = vector.shape_cast %200 : vector<1x1x8x32xf32> to vector<8x32xf32>
    %202 = vector.shape_cast %199 : vector<8x32xf32> to vector<1x1x8x32xf32>
    tpu.vector_store %arg18[%c1_89, %c1_90, %c0_91, %c0_92], %202 {strides = array<i32>} : memref<2x3x8x32xf32, #tpu.memory_space<vmem>>, vector<1x1x8x32xf32>,
    %203 = vector.extract_strided_slice %149 {offsets = [0, 1, 64], sizes = [8, 1, 32], strides = [1, 1, 1]} : vector<8x2x96xf32> to vector<8x1x32xf32>
    %204 = vector.shape_cast %203 : vector<8x1x32xf32> to vector<8x32xf32>
    %c1_93 = arith.constant 1 : index
    %c2_94 = arith.constant 2 : index
    %c0_95 = arith.constant 0 : index
    %c0_96 = arith.constant 0 : index
    %205 = vector.load %arg17[%c1_93, %c2_94, %c0_95, %c0_96] : memref<2x3x8x32xf32, #tpu.memory_space<vmem>>, vector<1x1x8x32xf32>
    %206 = vector.shape_cast %205 : vector<1x1x8x32xf32> to vector<8x32xf32>
    %207 = vector.shape_cast %204 : vector<8x32xf32> to vector<1x1x8x32xf32>
    tpu.vector_store %arg17[%c1_93, %c2_94, %c0_95, %c0_96], %207 {strides = array<i32>} : memref<2x3x8x32xf32, #tpu.memory_space<vmem>>, vector<1x1x8x32xf32>,
    %208 = vector.extract_strided_slice %152 {offsets = [0, 1, 64], sizes = [8, 1, 32], strides = [1, 1, 1]} : vector<8x2x96xf32> to vector<8x1x32xf32>
    %209 = vector.shape_cast %208 : vector<8x1x32xf32> to vector<8x32xf32>
    %c1_97 = arith.constant 1 : index
    %c2_98 = arith.constant 2 : index
    %c0_99 = arith.constant 0 : index
    %c0_100 = arith.constant 0 : index
    %210 = vector.load %arg18[%c1_97, %c2_98, %c0_99, %c0_100] : memref<2x3x8x32xf32, #tpu.memory_space<vmem>>, vector<1x1x8x32xf32>
    %211 = vector.shape_cast %210 : vector<1x1x8x32xf32> to vector<8x32xf32>
    %212 = vector.shape_cast %209 : vector<8x32xf32> to vector<1x1x8x32xf32>
    tpu.vector_store %arg18[%c1_97, %c2_98, %c0_99, %c0_100], %212 {strides = array<i32>} : memref<2x3x8x32xf32, #tpu.memory_space<vmem>>, vector<1x1x8x32xf32>,
    return
  }
}

</mosaic_0001>

<llo_original>
// kernel: _forward_impl.1
$region0: #{_forward_impl.1}
  #allocation0 [shape = 'u32[]', space=smem, size = 0x4, offset = 0x4, fixed_abs, tag = 'smem constant byte address 0x4 - core index']
  #allocation1 [shape = 'u32[144,128]{1,0:T(1,128)}', space=vmem, size = 0x12000, scoped, tag = 'internal scratch']
  %s0 = inlined_call_operand.vmem [shape: f32[2,8,8,128], index: 0, kind: input, shape index: {}]
  %s1 = inlined_call_operand.vmem [shape: f32[512,192], index: 1, kind: input, shape index: {}]
  %s2 = inlined_call_operand.vmem [shape: f32[1,512], index: 2, kind: input, shape index: {}]
  %s3 = inlined_call_operand.vmem [shape: f32[256,256], index: 3, kind: input, shape index: {}]
  %s4 = inlined_call_operand.vmem [shape: f32[576,64], index: 4, kind: input, shape index: {}]
  %s5 = inlined_call_operand.vmem [shape: f32[1,64], index: 5, kind: input, shape index: {}]
  %s6 = inlined_call_operand.vmem [shape: f32[576,64], index: 6, kind: input, shape index: {}]
  %s7 = inlined_call_operand.vmem [shape: f32[1,64], index: 7, kind: input, shape index: {}]
  %s8 = inlined_call_operand.vmem [shape: f32[64,128], index: 8, kind: input, shape index: {}]
  %s9 = inlined_call_operand.vmem [shape: f32[1,128], index: 9, kind: input, shape index: {}]
  %s10 = inlined_call_operand.vmem [shape: f32[128,128], index: 10, kind: input, shape index: {}]
  %s11 = inlined_call_operand.vmem [shape: f32[1,128], index: 11, kind: input, shape index: {}]
  %s12 = inlined_call_operand.vmem [shape: f32[128,128], index: 12, kind: input, shape index: {}]
  %s13 = inlined_call_operand.vmem [shape: f32[1,128], index: 13, kind: input, shape index: {}]
  %s14 = inlined_call_operand.vmem [shape: f32[128,256], index: 14, kind: input, shape index: {}]
  %s15 = inlined_call_operand.vmem [shape: f32[1,256], index: 15, kind: input, shape index: {}]
  %s16 = inlined_call_operand.vmem [shape: f32[16,96], index: 16, kind: input, shape index: {}]
  %s17 = inlined_call_operand.hbm [shape: f32[2,3,8,32], index: 17, kind: output, shape index: {0}]
  %s18 = inlined_call_operand.hbm [shape: f32[2,3,8,32], index: 18, kind: output, shape index: {1}]
  %19 = xla_tuple %s17, %s18
  %s20 = sld [smem:[#allocation0]]
  $region86: #{_forward_impl.1} parent=0
    _
  %s22 = ssub.s32 1, %s20
  %s23 = scalar_select 0, %s22, %s20
  $region1: #{_forward_impl.1} parent=0
    #allocation2 [shape = 'u8[24576]{0}', space=vmem, size = 0x6000, scoped, tag = 'output window, operand 0, single buffered']
    #allocation3 [shape = 's32[1]{0}', space=sflag, size = 0x4, scoped, tag = 'scoped memory for _forward_impl.1']
    #allocation4 [shape = 'u8[24576]{0}', space=vmem, size = 0x6000, scoped, tag = 'output window, operand 1, single buffered']
    #allocation5 [shape = 's32[1]{0}', space=sflag, size = 0x4, scoped, tag = 'scoped memory for _forward_impl.1']
    %24 = vsyncpa [#allocation3], 0
    %25 = vsyncpa [#allocation5], 0
    // Predicated region
    $region2: #{_forward_impl.1} parent=1 // pred_check
      _
    $region3: #{_forward_impl.1} parent=1 // pred_check_branch
      %27 = sbr.rel (0) target = $region5
    $region4: #{_forward_impl.1} parent=1 // pred_region
      _
    $region5: #{_forward_impl.1} parent=1 // pred_fallthru
      _
    // Predicated region
    $region6: #{_forward_impl.1} parent=1 // pred_check
      _
    $region7: #{_forward_impl.1} parent=1 // pred_check_branch
      %29 = sbr.rel (0) target = $region9
    $region8: #{_forward_impl.1} parent=1 // pred_region
      _
    $region9: #{_forward_impl.1} parent=1 // pred_fallthru
      _
    // Predicated region
    $region10: #{_forward_impl.1} parent=1 // pred_check
      _
    $region11: #{_forward_impl.1} parent=1 // pred_check_branch
      %31 = sbr.rel (0) target = $region13
    $region12: #{_forward_impl.1} parent=1 // pred_region
      _
    $region13: #{_forward_impl.1} parent=1 // pred_fallthru
      _
    // Predicated region
    $region14: #{_forward_impl.1} parent=1 // pred_check
      _
    $region15: #{_forward_impl.1} parent=1 // pred_check_branch
      %33 = sbr.rel (0) target = $region17
    $region16: #{_forward_impl.1} parent=1 // pred_region
      _
    $region17: #{_forward_impl.1} parent=1 // pred_fallthru
      _
    // Predicated region
    $region18: #{_forward_impl.1} parent=1 // pred_check
      _
    $region19: #{_forward_impl.1} parent=1 // pred_check_branch
      %35 = sbr.rel (0) target = $region21
    $region20: #{_forward_impl.1} parent=1 // pred_region
      _
    $region21: #{_forward_impl.1} parent=1 // pred_fallthru
      _
    // Predicated region
    $region22: #{_forward_impl.1} parent=1 // pred_check
      _
    $region23: #{_forward_impl.1} parent=1 // pred_check_branch
      %37 = sbr.rel (0) target = $region25
    $region24: #{_forward_impl.1} parent=1 // pred_region
      _
    $region25: #{_forward_impl.1} parent=1 // pred_fallthru
      _
    // Predicated region
    $region26: #{_forward_impl.1} parent=1 // pred_check
      _
    $region27: #{_forward_impl.1} parent=1 // pred_check_branch
      %39 = sbr.rel (0) target = $region29
    $region28: #{_forward_impl.1} parent=1 // pred_region
      _
    $region29: #{_forward_impl.1} parent=1 // pred_fallthru
      _
    // Predicated region
    $region30: #{_forward_impl.1} parent=1 // pred_check
      _
    $region31: #{_forward_impl.1} parent=1 // pred_check_branch
      %41 = sbr.rel (0) target = $region33
    $region32: #{_forward_impl.1} parent=1 // pred_region
      _
    $region33: #{_forward_impl.1} parent=1 // pred_fallthru
      _
    // Predicated region
    $region34: #{_forward_impl.1} parent=1 // pred_check
      _
    $region35: #{_forward_impl.1} parent=1 // pred_check_branch
      %43 = sbr.rel (0) target = $region37
    $region36: #{_forward_impl.1} parent=1 // pred_region
      _
    $region37: #{_forward_impl.1} parent=1 // pred_fallthru
      _
    // Predicated region
    $region38: #{_forward_impl.1} parent=1 // pred_check
      _
    $region39: #{_forward_impl.1} parent=1 // pred_check_branch
      %45 = sbr.rel (0) target = $region41
    $region40: #{_forward_impl.1} parent=1 // pred_region
      _
    $region41: #{_forward_impl.1} parent=1 // pred_fallthru
      _
    // Predicated region
    $region42: #{_forward_impl.1} parent=1 // pred_check
      _
    $region43: #{_forward_impl.1} parent=1 // pred_check_branch
      %47 = sbr.rel (0) target = $region45
    $region44: #{_forward_impl.1} parent=1 // pred_region
      _
    $region45: #{_forward_impl.1} parent=1 // pred_fallthru
      _
    // Predicated region
    $region46: #{_forward_impl.1} parent=1 // pred_check
      _
    $region47: #{_forward_impl.1} parent=1 // pred_check_branch
      %49 = sbr.rel (0) target = $region49
    $region48: #{_forward_impl.1} parent=1 // pred_region
      _
    $region49: #{_forward_impl.1} parent=1 // pred_fallthru
      _
    // Predicated region
    $region50: #{_forward_impl.1} parent=1 // pred_check
      _
    $region51: #{_forward_impl.1} parent=1 // pred_check_branch
      %51 = sbr.rel (0) target = $region53
    $region52: #{_forward_impl.1} parent=1 // pred_region
      _
    $region53: #{_forward_impl.1} parent=1 // pred_fallthru
      _
    // Predicated region
    $region54: #{_forward_impl.1} parent=1 // pred_check
      _
    $region55: #{_forward_impl.1} parent=1 // pred_check_branch
      %53 = sbr.rel (0) target = $region57
    $region56: #{_forward_impl.1} parent=1 // pred_region
      _
    $region57: #{_forward_impl.1} parent=1 // pred_fallthru
      _
    // Predicated region
    $region58: #{_forward_impl.1} parent=1 // pred_check
      _
    $region59: #{_forward_impl.1} parent=1 // pred_check_branch
      %55 = sbr.rel (0) target = $region61
    $region60: #{_forward_impl.1} parent=1 // pred_region
      _
    $region61: #{_forward_impl.1} parent=1 // pred_fallthru
      _
    // Predicated region
    $region62: #{_forward_impl.1} parent=1 // pred_check
      _
    $region63: #{_forward_impl.1} parent=1 // pred_check_branch
      %57 = sbr.rel (0) target = $region65
    $region64: #{_forward_impl.1} parent=1 // pred_region
      _
    $region65: #{_forward_impl.1} parent=1 // pred_fallthru
      _
    // Predicated region
    $region66: #{_forward_impl.1} parent=1 // pred_check
      _
    $region67: #{_forward_impl.1} parent=1 // pred_check_branch
      %59 = sbr.rel (0) target = $region69
    $region68: #{_forward_impl.1} parent=1 // pred_region
      _
    $region69: #{_forward_impl.1} parent=1 // pred_fallthru
      _
    %v60 = vld [vmem:[%s0] sm:$0xff]
    %v61 = vld [vmem:[%s0 + $0x8] sm:$0xff]
    %v62 = vld [vmem:[%s0 + $0x10] sm:$0xff]
    %v63 = vld [vmem:[%s0 + $0x18] sm:$0xff]
    %v64 = vld [vmem:[%s0 + $0x20] sm:$0xff]
    %v65 = vld [vmem:[%s0 + $0x28] sm:$0xff]
    %v66 = vld [vmem:[%s0 + $0x30] sm:$0xff]
    %v67 = vld [vmem:[%s0 + $0x38] sm:$0xff]
    %76 = vrot.lane.b32.xlu0 %v60, 1
    %v77 = vpop.permute.xlu0 %76
    %78 = vrot.lane.b32.xlu0 %v61, 1
    %v79 = vpop.permute.xlu0 %78
    %80 = vrot.lane.b32.xlu0 %v62, 1
    %v81 = vpop.permute.xlu0 %80
    %82 = vrot.lane.b32.xlu0 %v63, 1
    %v83 = vpop.permute.xlu0 %82
    %84 = vrot.lane.b32.xlu0 %v64, 1
    %v85 = vpop.permute.xlu0 %84
    %86 = vrot.lane.b32.xlu0 %v65, 1
    %v87 = vpop.permute.xlu0 %86
    %88 = vrot.lane.b32.xlu0 %v66, 1
    %v89 = vpop.permute.xlu0 %88
    %90 = vrot.lane.b32.xlu0 %v67, 1
    %v91 = vpop.permute.xlu0 %90
    %vm100 = vcmask 7168
    %v101 = vsel %vm100, %v60, %v77
    %v102 = vsel %vm100, %v61, %v79
    %v103 = vsel %vm100, %v62, %v81
    %v104 = vsel %vm100, %v63, %v83
    %v105 = vsel %vm100, %v64, %v85
    %v106 = vsel %vm100, %v65, %v87
    %v107 = vsel %vm100, %v66, %v89
    %v108 = vsel %vm100, %v67, %v91
    %109 = vrot.lane.b32.xlu0 %v60, 127
    %v110 = vpop.permute.xlu0 %109
    %111 = vrot.lane.b32.xlu0 %v61, 127
    %v112 = vpop.permute.xlu0 %111
    %113 = vrot.lane.b32.xlu0 %v62, 127
    %v114 = vpop.permute.xlu0 %113
    %115 = vrot.lane.b32.xlu0 %v63, 127
    %v116 = vpop.permute.xlu0 %115
    %117 = vrot.lane.b32.xlu0 %v64, 127
    %v118 = vpop.permute.xlu0 %117
    %119 = vrot.lane.b32.xlu0 %v65, 127
    %v120 = vpop.permute.xlu0 %119
    %121 = vrot.lane.b32.xlu0 %v66, 127
    %v122 = vpop.permute.xlu0 %121
    %123 = vrot.lane.b32.xlu0 %v67, 127
    %v124 = vpop.permute.xlu0 %123
    %vm133 = vcmask 1039360
    %v134 = vsel %vm133, %v110, %v60
    %v135 = vsel %vm133, %v112, %v61
    %v136 = vsel %vm133, %v114, %v62
    %v137 = vsel %vm133, %v116, %v63
    %v138 = vsel %vm133, %v118, %v64
    %v139 = vsel %vm133, %v120, %v65
    %v140 = vsel %vm133, %v122, %v66
    %v141 = vsel %vm133, %v124, %v67
    %s142 = scalar_lea.vmem %s0, 64
    %v143 = vld [vmem:[%s142] sm:$0xff]
    %v144 = vld [vmem:[%s142 + $0x8] sm:$0xff]
    %v145 = vld [vmem:[%s142 + $0x10] sm:$0xff]
    %v146 = vld [vmem:[%s142 + $0x18] sm:$0xff]
    %v147 = vld [vmem:[%s142 + $0x20] sm:$0xff]
    %v148 = vld [vmem:[%s142 + $0x28] sm:$0xff]
    %v149 = vld [vmem:[%s142 + $0x30] sm:$0xff]
    %v150 = vld [vmem:[%s142 + $0x38] sm:$0xff]
    %159 = vrot.lane.b32.xlu0 %v143, 1
    %v160 = vpop.permute.xlu0 %159
    %161 = vrot.lane.b32.xlu0 %v144, 1
    %v162 = vpop.permute.xlu0 %161
    %163 = vrot.lane.b32.xlu0 %v145, 1
    %v164 = vpop.permute.xlu0 %163
    %165 = vrot.lane.b32.xlu0 %v146, 1
    %v166 = vpop.permute.xlu0 %165
    %167 = vrot.lane.b32.xlu0 %v147, 1
    %v168 = vpop.permute.xlu0 %167
    %169 = vrot.lane.b32.xlu0 %v148, 1
    %v170 = vpop.permute.xlu0 %169
    %171 = vrot.lane.b32.xlu0 %v149, 1
    %v172 = vpop.permute.xlu0 %171
    %173 = vrot.lane.b32.xlu0 %v150, 1
    %v174 = vpop.permute.xlu0 %173
    %v183 = vsel %vm100, %v143, %v160
    %v184 = vsel %vm100, %v144, %v162
    %v185 = vsel %vm100, %v145, %v164
    %v186 = vsel %vm100, %v146, %v166
    %v187 = vsel %vm100, %v147, %v168
    %v188 = vsel %vm100, %v148, %v170
    %v189 = vsel %vm100, %v149, %v172
    %v190 = vsel %vm100, %v150, %v174
    %191 = vrot.lane.b32.xlu0 %v143, 127
    %v192 = vpop.permute.xlu0 %191
    %193 = vrot.lane.b32.xlu0 %v144, 127
    %v194 = vpop.permute.xlu0 %193
    %195 = vrot.lane.b32.xlu0 %v145, 127
    %v196 = vpop.permute.xlu0 %195
    %197 = vrot.lane.b32.xlu0 %v146, 127
    %v198 = vpop.permute.xlu0 %197
    %199 = vrot.lane.b32.xlu0 %v147, 127
    %v200 = vpop.permute.xlu0 %199
    %201 = vrot.lane.b32.xlu0 %v148, 127
    %v202 = vpop.permute.xlu0 %201
    %203 = vrot.lane.b32.xlu0 %v149, 127
    %v204 = vpop.permute.xlu0 %203
    %205 = vrot.lane.b32.xlu0 %v150, 127
    %v206 = vpop.permute.xlu0 %205
    %v215 = vsel %vm133, %v192, %v143
    %v216 = vsel %vm133, %v194, %v144
    %v217 = vsel %vm133, %v196, %v145
    %v218 = vsel %vm133, %v198, %v146
    %v219 = vsel %vm133, %v200, %v147
    %v220 = vsel %vm133, %v202, %v148
    %v221 = vsel %vm133, %v204, %v149
    %v222 = vsel %vm133, %v206, %v150
    %v223 = vld [vmem:[%s1] sm:$0xff]
    %v224 = vld [vmem:[%s1 + $0x8] sm:$0xff]
    %v225 = vld [vmem:[%s1 + $0x10] sm:$0xff]
    %v226 = vld [vmem:[%s1 + $0x18] sm:$0xff]
    %v227 = vld [vmem:[%s1 + $0x20] sm:$0xff]
    %v228 = vld [vmem:[%s1 + $0x28] sm:$0xff]
    %v229 = vld [vmem:[%s1 + $0x30] sm:$0xff]
    %v230 = vld [vmem:[%s1 + $0x38] sm:$0xff]
    %v231 = vld [vmem:[%s1 + $0x40] sm:$0xff]
    %v232 = vld [vmem:[%s1 + $0x48] sm:$0xff]
    %v233 = vld [vmem:[%s1 + $0x50] sm:$0xff]
    %v234 = vld [vmem:[%s1 + $0x58] sm:$0xff]
    %v235 = vld [vmem:[%s1 + $0x60] sm:$0xff]
    %v236 = vld [vmem:[%s1 + $0x68] sm:$0xff]
    %v237 = vld [vmem:[%s1 + $0x70] sm:$0xff]
    %v238 = vld [vmem:[%s1 + $0x78] sm:$0xff]
    %v239 = vld [vmem:[%s1 + $0x80] sm:$0xff]
    %v240 = vld [vmem:[%s1 + $0x88] sm:$0xff]
    %v241 = vld [vmem:[%s1 + $0x90] sm:$0xff]
    %v242 = vld [vmem:[%s1 + $0x98] sm:$0xff]
    %v243 = vld [vmem:[%s1 + $0xa0] sm:$0xff]
    %v244 = vld [vmem:[%s1 + $0xa8] sm:$0xff]
    %v245 = vld [vmem:[%s1 + $0xb0] sm:$0xff]
    %v246 = vld [vmem:[%s1 + $0xb8] sm:$0xff]
    %v247 = vld [vmem:[%s1 + $0xc0] sm:$0xff]
    %v248 = vld [vmem:[%s1 + $0xc8] sm:$0xff]
    %v249 = vld [vmem:[%s1 + $0xd0] sm:$0xff]
    %v250 = vld [vmem:[%s1 + $0xd8] sm:$0xff]
    %v251 = vld [vmem:[%s1 + $0xe0] sm:$0xff]
    %v252 = vld [vmem:[%s1 + $0xe8] sm:$0xff]
    %v253 = vld [vmem:[%s1 + $0xf0] sm:$0xff]
    %v254 = vld [vmem:[%s1 + $0xf8] sm:$0xff]
    %v255 = vld [vmem:[%s1 + $0x100] sm:$0xff]
    %v256 = vld [vmem:[%s1 + $0x108] sm:$0xff]
    %v257 = vld [vmem:[%s1 + $0x110] sm:$0xff]
    %v258 = vld [vmem:[%s1 + $0x118] sm:$0xff]
    %v259 = vld [vmem:[%s1 + $0x120] sm:$0xff]
    %v260 = vld [vmem:[%s1 + $0x128] sm:$0xff]
    %v261 = vld [vmem:[%s1 + $0x130] sm:$0xff]
    %v262 = vld [vmem:[%s1 + $0x138] sm:$0xff]
    %v263 = vld [vmem:[%s1 + $0x140] sm:$0xff]
    %v264 = vld [vmem:[%s1 + $0x148] sm:$0xff]
    %v265 = vld [vmem:[%s1 + $0x150] sm:$0xff]
    %v266 = vld [vmem:[%s1 + $0x158] sm:$0xff]
    %v267 = vld [vmem:[%s1 + $0x160] sm:$0xff]
    %v268 = vld [vmem:[%s1 + $0x168] sm:$0xff]
    %v269 = vld [vmem:[%s1 + $0x170] sm:$0xff]
    %v270 = vld [vmem:[%s1 + $0x178] sm:$0xff]
    %v271 = vld [vmem:[%s1 + $0x180] sm:$0xff]
    %v272 = vld [vmem:[%s1 + $0x188] sm:$0xff]
    %v273 = vld [vmem:[%s1 + $0x190] sm:$0xff]
    %v274 = vld [vmem:[%s1 + $0x198] sm:$0xff]
    %v275 = vld [vmem:[%s1 + $0x1a0] sm:$0xff]
    %v276 = vld [vmem:[%s1 + $0x1a8] sm:$0xff]
    %v277 = vld [vmem:[%s1 + $0x1b0] sm:$0xff]
    %v278 = vld [vmem:[%s1 + $0x1b8] sm:$0xff]
    %v279 = vld [vmem:[%s1 + $0x1c0] sm:$0xff]
    %v280 = vld [vmem:[%s1 + $0x1c8] sm:$0xff]
    %v281 = vld [vmem:[%s1 + $0x1d0] sm:$0xff]
    %v282 = vld [vmem:[%s1 + $0x1d8] sm:$0xff]
    %v283 = vld [vmem:[%s1 + $0x1e0] sm:$0xff]
    %v284 = vld [vmem:[%s1 + $0x1e8] sm:$0xff]
    %v285 = vld [vmem:[%s1 + $0x1f0] sm:$0xff]
    %v286 = vld [vmem:[%s1 + $0x1f8] sm:$0xff]
    %v287 = vld [vmem:[%s1 + $0x200] sm:$0xff]
    %v288 = vld [vmem:[%s1 + $0x208] sm:$0xff]
    %v289 = vld [vmem:[%s1 + $0x210] sm:$0xff]
    %v290 = vld [vmem:[%s1 + $0x218] sm:$0xff]
    %v291 = vld [vmem:[%s1 + $0x220] sm:$0xff]
    %v292 = vld [vmem:[%s1 + $0x228] sm:$0xff]
    %v293 = vld [vmem:[%s1 + $0x230] sm:$0xff]
    %v294 = vld [vmem:[%s1 + $0x238] sm:$0xff]
    %v295 = vld [vmem:[%s1 + $0x240] sm:$0xff]
    %v296 = vld [vmem:[%s1 + $0x248] sm:$0xff]
    %v297 = vld [vmem:[%s1 + $0x250] sm:$0xff]
    %v298 = vld [vmem:[%s1 + $0x258] sm:$0xff]
    %v299 = vld [vmem:[%s1 + $0x260] sm:$0xff]
    %v300 = vld [vmem:[%s1 + $0x268] sm:$0xff]
    %v301 = vld [vmem:[%s1 + $0x270] sm:$0xff]
    %v302 = vld [vmem:[%s1 + $0x278] sm:$0xff]
    %v303 = vld [vmem:[%s1 + $0x280] sm:$0xff]
    %v304 = vld [vmem:[%s1 + $0x288] sm:$0xff]
    %v305 = vld [vmem:[%s1 + $0x290] sm:$0xff]
    %v306 = vld [vmem:[%s1 + $0x298] sm:$0xff]
    %v307 = vld [vmem:[%s1 + $0x2a0] sm:$0xff]
    %v308 = vld [vmem:[%s1 + $0x2a8] sm:$0xff]
    %v309 = vld [vmem:[%s1 + $0x2b0] sm:$0xff]
    %v310 = vld [vmem:[%s1 + $0x2b8] sm:$0xff]
    %v311 = vld [vmem:[%s1 + $0x2c0] sm:$0xff]
    %v312 = vld [vmem:[%s1 + $0x2c8] sm:$0xff]
    %v313 = vld [vmem:[%s1 + $0x2d0] sm:$0xff]
    %v314 = vld [vmem:[%s1 + $0x2d8] sm:$0xff]
    %v315 = vld [vmem:[%s1 + $0x2e0] sm:$0xff]
    %v316 = vld [vmem:[%s1 + $0x2e8] sm:$0xff]
    %v317 = vld [vmem:[%s1 + $0x2f0] sm:$0xff]
    %v318 = vld [vmem:[%s1 + $0x2f8] sm:$0xff]
    %v319 = vld [vmem:[%s1 + $0x300] sm:$0xff]
    %v320 = vld [vmem:[%s1 + $0x308] sm:$0xff]
    %v321 = vld [vmem:[%s1 + $0x310] sm:$0xff]
    %v322 = vld [vmem:[%s1 + $0x318] sm:$0xff]
    %v323 = vld [vmem:[%s1 + $0x320] sm:$0xff]
    %v324 = vld [vmem:[%s1 + $0x328] sm:$0xff]
    %v325 = vld [vmem:[%s1 + $0x330] sm:$0xff]
    %v326 = vld [vmem:[%s1 + $0x338] sm:$0xff]
    %v327 = vld [vmem:[%s1 + $0x340] sm:$0xff]
    %v328 = vld [vmem:[%s1 + $0x348] sm:$0xff]
    %v329 = vld [vmem:[%s1 + $0x350] sm:$0xff]
    %v330 = vld [vmem:[%s1 + $0x358] sm:$0xff]
    %v331 = vld [vmem:[%s1 + $0x360] sm:$0xff]
    %v332 = vld [vmem:[%s1 + $0x368] sm:$0xff]
    %v333 = vld [vmem:[%s1 + $0x370] sm:$0xff]
    %v334 = vld [vmem:[%s1 + $0x378] sm:$0xff]
    %v335 = vld [vmem:[%s1 + $0x380] sm:$0xff]
    %v336 = vld [vmem:[%s1 + $0x388] sm:$0xff]
    %v337 = vld [vmem:[%s1 + $0x390] sm:$0xff]
    %v338 = vld [vmem:[%s1 + $0x398] sm:$0xff]
    %v339 = vld [vmem:[%s1 + $0x3a0] sm:$0xff]
    %v340 = vld [vmem:[%s1 + $0x3a8] sm:$0xff]
    %v341 = vld [vmem:[%s1 + $0x3b0] sm:$0xff]
    %v342 = vld [vmem:[%s1 + $0x3b8] sm:$0xff]
    %v343 = vld [vmem:[%s1 + $0x3c0] sm:$0xff]
    %v344 = vld [vmem:[%s1 + $0x3c8] sm:$0xff]
    %v345 = vld [vmem:[%s1 + $0x3d0] sm:$0xff]
    %v346 = vld [vmem:[%s1 + $0x3d8] sm:$0xff]
    %v347 = vld [vmem:[%s1 + $0x3e0] sm:$0xff]
    %v348 = vld [vmem:[%s1 + $0x3e8] sm:$0xff]
    %v349 = vld [vmem:[%s1 + $0x3f0] sm:$0xff]
    %v350 = vld [vmem:[%s1 + $0x3f8] sm:$0xff]
    %vm351 = vcmask 523264
    %v353 = vsel %vm351, %v224, 0
    %v356 = vsel %vm351, %v226, 0
    %v359 = vsel %vm351, %v228, 0
    %v362 = vsel %vm351, %v230, 0
    %v365 = vsel %vm351, %v232, 0
    %v368 = vsel %vm351, %v234, 0
    %v371 = vsel %vm351, %v236, 0
    %v374 = vsel %vm351, %v238, 0
    %v377 = vsel %vm351, %v240, 0
    %v380 = vsel %vm351, %v242, 0
    %v383 = vsel %vm351, %v244, 0
    %v386 = vsel %vm351, %v246, 0
    %v389 = vsel %vm351, %v248, 0
    %v392 = vsel %vm351, %v250, 0
    %v395 = vsel %vm351, %v252, 0
    %v398 = vsel %vm351, %v254, 0
    %v401 = vsel %vm351, %v256, 0
    %v404 = vsel %vm351, %v258, 0
    %v407 = vsel %vm351, %v260, 0
    %v410 = vsel %vm351, %v262, 0
    %v413 = vsel %vm351, %v264, 0
    %v416 = vsel %vm351, %v266, 0
    %v419 = vsel %vm351, %v268, 0
    %v422 = vsel %vm351, %v270, 0
    %v425 = vsel %vm351, %v272, 0
    %v428 = vsel %vm351, %v274, 0
    %v431 = vsel %vm351, %v276, 0
    %v434 = vsel %vm351, %v278, 0
    %v437 = vsel %vm351, %v280, 0
    %v440 = vsel %vm351, %v282, 0
    %v443 = vsel %vm351, %v284, 0
    %v446 = vsel %vm351, %v286, 0
    %v449 = vsel %vm351, %v288, 0
    %v452 = vsel %vm351, %v290, 0
    %v455 = vsel %vm351, %v292, 0
    %v458 = vsel %vm351, %v294, 0
    %v461 = vsel %vm351, %v296, 0
    %v464 = vsel %vm351, %v298, 0
    %v467 = vsel %vm351, %v300, 0
    %v470 = vsel %vm351, %v302, 0
    %v473 = vsel %vm351, %v304, 0
    %v476 = vsel %vm351, %v306, 0
    %v479 = vsel %vm351, %v308, 0
    %v482 = vsel %vm351, %v310, 0
    %v485 = vsel %vm351, %v312, 0
    %v488 = vsel %vm351, %v314, 0
    %v491 = vsel %vm351, %v316, 0
    %v494 = vsel %vm351, %v318, 0
    %v497 = vsel %vm351, %v320, 0
    %v500 = vsel %vm351, %v322, 0
    %v503 = vsel %vm351, %v324, 0
    %v506 = vsel %vm351, %v326, 0
    %v509 = vsel %vm351, %v328, 0
    %v512 = vsel %vm351, %v330, 0
    %v515 = vsel %vm351, %v332, 0
    %v518 = vsel %vm351, %v334, 0
    %v521 = vsel %vm351, %v336, 0
    %v524 = vsel %vm351, %v338, 0
    %v527 = vsel %vm351, %v340, 0
    %v530 = vsel %vm351, %v342, 0
    %v533 = vsel %vm351, %v344, 0
    %v536 = vsel %vm351, %v346, 0
    %v539 = vsel %vm351, %v348, 0
    %v542 = vsel %vm351, %v350, 0
    %544 = vmatprep.subr.mxu0 %v183
    %545 = vmatpush1.msra.mxu0 %v101
    %546 = vmatprep.subr.mxu0 %v184
    %547 = vmatpush1.msra.mxu0 %v102
    %548 = vmatprep.subr.mxu0 %v185
    %549 = vmatpush1.msra.mxu0 %v103
    %550 = vmatprep.subr.mxu0 %v186
    %551 = vmatpush1.msra.mxu0 %v104
    %552 = vmatprep.subr.mxu0 %v187
    %553 = vmatpush1.msra.mxu0 %v105
    %554 = vmatprep.subr.mxu0 %v188
    %555 = vmatpush1.msra.mxu0 %v106
    %556 = vmatprep.subr.mxu0 %v189
    %557 = vmatpush1.msra.mxu0 %v107
    %558 = vmatprep.subr.mxu0 %v190
    %559 = vmatpush1.msra.mxu0 %v108
    %560 = vmatprep.subr.mxu0 %v143
    %561 = vmatpush1.msra.mxu0 %v60
    %562 = vmatprep.subr.mxu0 %v144
    %563 = vmatpush1.msra.mxu0 %v61
    %564 = vmatprep.subr.mxu0 %v145
    %565 = vmatpush1.msra.mxu0 %v62
    %566 = vmatprep.subr.mxu0 %v146
    %567 = vmatpush1.msra.mxu0 %v63
    %568 = vmatprep.subr.mxu0 %v147
    %569 = vmatpush1.msra.mxu0 %v64
    %570 = vmatprep.subr.mxu0 %v148
    %571 = vmatpush1.msra.mxu0 %v65
    %572 = vmatprep.subr.mxu0 %v149
    %573 = vmatpush1.msra.mxu0 %v66
    %574 = vmatprep.subr.mxu0 %v150
    %575 = vmatpush1.msra.mxu0 %v67
    %576 = vmatprep.subr.mxu0 %v215
    %577 = vmatpush1.msra.mxu0 %v134
    %578 = vmatprep.subr.mxu0 %v216
    %579 = vmatpush1.msra.mxu0 %v135
    %580 = vmatprep.subr.mxu0 %v217
    %581 = vmatpush1.msra.mxu0 %v136
    %582 = vmatprep.subr.mxu0 %v218
    %583 = vmatpush1.msra.mxu0 %v137
    %584 = vmatprep.subr.mxu0 %v219
    %585 = vmatpush1.msra.mxu0 %v138
    %586 = vmatprep.subr.mxu0 %v220
    %587 = vmatpush1.msra.mxu0 %v139
    %588 = vmatprep.subr.mxu0 %v221
    %589 = vmatpush1.msra.mxu0 %v140
    %590 = vmatprep.subr.mxu0 %v222
    %591 = vmatpush1.msra.mxu0 %v141
    %592 = vmatprep.subr.mxu0 0.0
    %593 = vmatpush1.msra.mxu0 0.0
    %594 = vmatprep.subr.mxu0 0.0
    %595 = vmatpush1.msra.mxu0 0.0
    %596 = vmatprep.subr.mxu0 0.0
    %597 = vmatpush1.msra.mxu0 0.0
    %598 = vmatprep.subr.mxu0 0.0
    %599 = vmatpush1.msra.mxu0 0.0
    %600 = vmatprep.subr.mxu0 0.0
    %601 = vmatpush1.msra.mxu0 0.0
    %602 = vmatprep.subr.mxu0 0.0
    %603 = vmatpush1.msra.mxu0 0.0
    %604 = vmatprep.subr.mxu0 0.0
    %605 = vmatpush1.msra.mxu0 0.0
    %606 = vmatprep.subr.mxu0 0.0
    %607 = vmatpush1.msra.mxu0 0.0
    %608 = vmatprep.mubr.f32.mxu0 %v353
    %609 = vmatmul.mubr.f32.gmra.mrb[0].mxu0 %v223
    %v610 = vpop.f32.mrb[0].mxu0
    %v611 = vadd.f32 0.0, %v610
    %v612 = vpop.f32.mrb[0].mxu0
    %v613 = vadd.f32 0.0, %v612
    %614 = vmatprep.mubr.f32.mxu0 %v356
    %615 = vmatmul.mubr.f32.gmra.mrb[0].mxu0 %v225
    %v616 = vpop.f32.mrb[0].mxu0
    %v617 = vadd.f32 0.0, %v616
    %v618 = vpop.f32.mrb[0].mxu0
    %v619 = vadd.f32 0.0, %v618
    %620 = vmatprep.mubr.f32.mxu0 %v359
    %621 = vmatmul.mubr.f32.gmra.mrb[0].mxu0 %v227
    %v622 = vpop.f32.mrb[0].mxu0
    %v623 = vadd.f32 0.0, %v622
    %v624 = vpop.f32.mrb[0].mxu0
    %v625 = vadd.f32 0.0, %v624
    %626 = vmatprep.mubr.f32.mxu0 %v362
    %627 = vmatmul.mubr.f32.gmra.mrb[0].mxu0 %v229
    %v628 = vpop.f32.mrb[0].mxu0
    %v629 = vadd.f32 0.0, %v628
    %v630 = vpop.f32.mrb[0].mxu0
    %v631 = vadd.f32 0.0, %v630
    %632 = vmatprep.mubr.f32.mxu0 %v365
    %633 = vmatmul.mubr.f32.gmra.mrb[0].mxu0 %v231
    %v634 = vpop.f32.mrb[0].mxu0
    %v635 = vadd.f32 0.0, %v634
    %v636 = vpop.f32.mrb[0].mxu0
    %v637 = vadd.f32 0.0, %v636
    %638 = vmatprep.mubr.f32.mxu0 %v368
    %639 = vmatmul.mubr.f32.gmra.mrb[0].mxu0 %v233
    %v640 = vpop.f32.mrb[0].mxu0
    %v641 = vadd.f32 0.0, %v640
    %v642 = vpop.f32.mrb[0].mxu0
    %v643 = vadd.f32 0.0, %v642
    %644 = vmatprep.mubr.f32.mxu0 %v371
    %645 = vmatmul.mubr.f32.gmra.mrb[0].mxu0 %v235
    %v646 = vpop.f32.mrb[0].mxu0
    %v647 = vadd.f32 0.0, %v646
    %v648 = vpop.f32.mrb[0].mxu0
    %v649 = vadd.f32 0.0, %v648
    %650 = vmatprep.mubr.f32.mxu0 %v374
    %651 = vmatmul.mubr.f32.gmra.mrb[0].mxu0 %v237
    %v652 = vpop.f32.mrb[0].mxu0
    %v653 = vadd.f32 0.0, %v652
    %v654 = vpop.f32.mrb[0].mxu0
    %v655 = vadd.f32 0.0, %v654
    %656 = vmatprep.mubr.f32.mxu0 %v377
    %657 = vmatmul.mubr.f32.gmra.mrb[0].mxu0 %v239
    %v658 = vpop.f32.mrb[0].mxu0
    %v659 = vadd.f32 0.0, %v658
    %v660 = vpop.f32.mrb[0].mxu0
    %v661 = vadd.f32 0.0, %v660
    %662 = vmatprep.mubr.f32.mxu0 %v380
    %663 = vmatmul.mubr.f32.gmra.mrb[0].mxu0 %v241
    %v664 = vpop.f32.mrb[0].mxu0
    %v665 = vadd.f32 0.0, %v664
    %v666 = vpop.f32.mrb[0].mxu0
    %v667 = vadd.f32 0.0, %v666
    %668 = vmatprep.mubr.f32.mxu0 %v383
    %669 = vmatmul.mubr.f32.gmra.mrb[0].mxu0 %v243
    %v670 = vpop.f32.mrb[0].mxu0
    %v671 = vadd.f32 0.0, %v670
    %v672 = vpop.f32.mrb[0].mxu0
    %v673 = vadd.f32 0.0, %v672
    %674 = vmatprep.mubr.f32.mxu0 %v386
    %675 = vmatmul.mubr.f32.gmra.mrb[0].mxu0 %v245
    %v676 = vpop.f32.mrb[0].mxu0
    %v677 = vadd.f32 0.0, %v676
    %v678 = vpop.f32.mrb[0].mxu0
    %v679 = vadd.f32 0.0, %v678
    %680 = vmatprep.mubr.f32.mxu0 %v389
    %681 = vmatmul.mubr.f32.gmra.mrb[0].mxu0 %v247
    %v682 = vpop.f32.mrb[0].mxu0
    %v683 = vadd.f32 0.0, %v682
    %v684 = vpop.f32.mrb[0].mxu0
    %v685 = vadd.f32 0.0, %v684
    %686 = vmatprep.mubr.f32.mxu0 %v392
    %687 = vmatmul.mubr.f32.gmra.mrb[0].mxu0 %v249
    %v688 = vpop.f32.mrb[0].mxu0
    %v689 = vadd.f32 0.0, %v688
    %v690 = vpop.f32.mrb[0].mxu0
    %v691 = vadd.f32 0.0, %v690
    %692 = vmatprep.mubr.f32.mxu0 %v395
    %693 = vmatmul.mubr.f32.gmra.mrb[0].mxu0 %v251
    %v694 = vpop.f32.mrb[0].mxu0
    %v695 = vadd.f32 0.0, %v694
    %v696 = vpop.f32.mrb[0].mxu0
    %v697 = vadd.f32 0.0, %v696
    %698 = vmatprep.mubr.f32.mxu0 %v398
    %699 = vmatmul.mubr.f32.gmra.mrb[0].mxu0 %v253
    %v700 = vpop.f32.mrb[0].mxu0
    %v701 = vadd.f32 0.0, %v700
    %v702 = vpop.f32.mrb[0].mxu0
    %v703 = vadd.f32 0.0, %v702
    %704 = vmatprep.mubr.f32.mxu0 %v401
    %705 = vmatmul.mubr.f32.gmra.mrb[0].mxu0 %v255
    %v706 = vpop.f32.mrb[0].mxu0
    %v707 = vadd.f32 0.0, %v706
    %v708 = vpop.f32.mrb[0].mxu0
    %v709 = vadd.f32 0.0, %v708
    %710 = vmatprep.mubr.f32.mxu0 %v404
    %711 = vmatmul.mubr.f32.gmra.mrb[0].mxu0 %v257
    %v712 = vpop.f32.mrb[0].mxu0
    %v713 = vadd.f32 0.0, %v712
    %v714 = vpop.f32.mrb[0].mxu0
    %v715 = vadd.f32 0.0, %v714
    %716 = vmatprep.mubr.f32.mxu0 %v407
    %717 = vmatmul.mubr.f32.gmra.mrb[0].mxu0 %v259
    %v718 = vpop.f32.mrb[0].mxu0
    %v719 = vadd.f32 0.0, %v718
    %v720 = vpop.f32.mrb[0].mxu0
    %v721 = vadd.f32 0.0, %v720
    %722 = vmatprep.mubr.f32.mxu0 %v410
    %723 = vmatmul.mubr.f32.gmra.mrb[0].mxu0 %v261
    %v724 = vpop.f32.mrb[0].mxu0
    %v725 = vadd.f32 0.0, %v724
    %v726 = vpop.f32.mrb[0].mxu0
    %v727 = vadd.f32 0.0, %v726
    %728 = vmatprep.mubr.f32.mxu0 %v413
    %729 = vmatmul.mubr.f32.gmra.mrb[0].mxu0 %v263
    %v730 = vpop.f32.mrb[0].mxu0
    %v731 = vadd.f32 0.0, %v730
    %v732 = vpop.f32.mrb[0].mxu0
    %v733 = vadd.f32 0.0, %v732
    %734 = vmatprep.mubr.f32.mxu0 %v416
    %735 = vmatmul.mubr.f32.gmra.mrb[0].mxu0 %v265
    %v736 = vpop.f32.mrb[0].mxu0
    %v737 = vadd.f32 0.0, %v736
    %v738 = vpop.f32.mrb[0].mxu0
    %v739 = vadd.f32 0.0, %v738
    %740 = vmatprep.mubr.f32.mxu0 %v419
    %741 = vmatmul.mubr.f32.gmra.mrb[0].mxu0 %v267
    %v742 = vpop.f32.mrb[0].mxu0
    %v743 = vadd.f32 0.0, %v742
    %v744 = vpop.f32.mrb[0].mxu0
    %v745 = vadd.f32 0.0, %v744
    %746 = vmatprep.mubr.f32.mxu0 %v422
    %747 = vmatmul.mubr.f32.gmra.mrb[0].mxu0 %v269
    %v748 = vpop.f32.mrb[0].mxu0
    %v749 = vadd.f32 0.0, %v748
    %v750 = vpop.f32.mrb[0].mxu0
    %v751 = vadd.f32 0.0, %v750
    %752 = vmatprep.mubr.f32.mxu0 %v425
    %753 = vmatmul.mubr.f32.gmra.mrb[0].mxu0 %v271
    %v754 = vpop.f32.mrb[0].mxu0
    %v755 = vadd.f32 0.0, %v754
    %v756 = vpop.f32.mrb[0].mxu0
    %v757 = vadd.f32 0.0, %v756
    %758 = vmatprep.mubr.f32.mxu0 %v428
    %759 = vmatmul.mubr.f32.gmra.mrb[0].mxu0 %v273
    %v760 = vpop.f32.mrb[0].mxu0
    %v761 = vadd.f32 0.0, %v760
    %v762 = vpop.f32.mrb[0].mxu0
    %v763 = vadd.f32 0.0, %v762
    %764 = vmatprep.mubr.f32.mxu0 %v431
    %765 = vmatmul.mubr.f32.gmra.mrb[0].mxu0 %v275
    %v766 = vpop.f32.mrb[0].mxu0
    %v767 = vadd.f32 0.0, %v766
    %v768 = vpop.f32.mrb[0].mxu0
    %v769 = vadd.f32 0.0, %v768
    %770 = vmatprep.mubr.f32.mxu0 %v434
    %771 = vmatmul.mubr.f32.gmra.mrb[0].mxu0 %v277
    %v772 = vpop.f32.mrb[0].mxu0
    %v773 = vadd.f32 0.0, %v772
    %v774 = vpop.f32.mrb[0].mxu0
    %v775 = vadd.f32 0.0, %v774
    %776 = vmatprep.mubr.f32.mxu0 %v437
    %777 = vmatmul.mubr.f32.gmra.mrb[0].mxu0 %v279
    %v778 = vpop.f32.mrb[0].mxu0
    %v779 = vadd.f32 0.0, %v778
    %v780 = vpop.f32.mrb[0].mxu0
    %v781 = vadd.f32 0.0, %v780
    %782 = vmatprep.mubr.f32.mxu0 %v440
    %783 = vmatmul.mubr.f32.gmra.mrb[0].mxu0 %v281
    %v784 = vpop.f32.mrb[0].mxu0
    %v785 = vadd.f32 0.0, %v784
    %v786 = vpop.f32.mrb[0].mxu0
    %v787 = vadd.f32 0.0, %v786
    %788 = vmatprep.mubr.f32.mxu0 %v443
    %789 = vmatmul.mubr.f32.gmra.mrb[0].mxu0 %v283
    %v790 = vpop.f32.mrb[0].mxu0
    %v791 = vadd.f32 0.0, %v790
    %v792 = vpop.f32.mrb[0].mxu0
    %v793 = vadd.f32 0.0, %v792
    %794 = vmatprep.mubr.f32.mxu0 %v446
    %795 = vmatmul.mubr.f32.gmra.mrb[0].mxu0 %v285
    %v796 = vpop.f32.mrb[0].mxu0
    %v797 = vadd.f32 0.0, %v796
    %v798 = vpop.f32.mrb[0].mxu0
    %v799 = vadd.f32 0.0, %v798
    %800 = vmatprep.mubr.f32.mxu0 %v449
    %801 = vmatmul.mubr.f32.gmra.mrb[0].mxu0 %v287
    %v802 = vpop.f32.mrb[0].mxu0
    %v803 = vadd.f32 0.0, %v802
    %v804 = vpop.f32.mrb[0].mxu0
    %v805 = vadd.f32 0.0, %v804
    %806 = vmatprep.mubr.f32.mxu0 %v452
    %807 = vmatmul.mubr.f32.gmra.mrb[0].mxu0 %v289
    %v808 = vpop.f32.mrb[0].mxu0
    %v809 = vadd.f32 0.0, %v808
    %v810 = vpop.f32.mrb[0].mxu0
    %v811 = vadd.f32 0.0, %v810
    %812 = vmatprep.mubr.f32.mxu0 %v455
    %813 = vmatmul.mubr.f32.gmra.mrb[0].mxu0 %v291
    %v814 = vpop.f32.mrb[0].mxu0
    %v815 = vadd.f32 0.0, %v814
    %v816 = vpop.f32.mrb[0].mxu0
    %v817 = vadd.f32 0.0, %v816
    %818 = vmatprep.mubr.f32.mxu0 %v458
    %819 = vmatmul.mubr.f32.gmra.mrb[0].mxu0 %v293
    %v820 = vpop.f32.mrb[0].mxu0
    %v821 = vadd.f32 0.0, %v820
    %v822 = vpop.f32.mrb[0].mxu0
    %v823 = vadd.f32 0.0, %v822
    %824 = vmatprep.mubr.f32.mxu0 %v461
    %825 = vmatmul.mubr.f32.gmra.mrb[0].mxu0 %v295
    %v826 = vpop.f32.mrb[0].mxu0
    %v827 = vadd.f32 0.0, %v826
    %v828 = vpop.f32.mrb[0].mxu0
    %v829 = vadd.f32 0.0, %v828
    %830 = vmatprep.mubr.f32.mxu0 %v464
    %831 = vmatmul.mubr.f32.gmra.mrb[0].mxu0 %v297
    %v832 = vpop.f32.mrb[0].mxu0
    %v833 = vadd.f32 0.0, %v832
    %v834 = vpop.f32.mrb[0].mxu0
    %v835 = vadd.f32 0.0, %v834
    %836 = vmatprep.mubr.f32.mxu0 %v467
    %837 = vmatmul.mubr.f32.gmra.mrb[0].mxu0 %v299
    %v838 = vpop.f32.mrb[0].mxu0
    %v839 = vadd.f32 0.0, %v838
    %v840 = vpop.f32.mrb[0].mxu0
    %v841 = vadd.f32 0.0, %v840
    %842 = vmatprep.mubr.f32.mxu0 %v470
    %843 = vmatmul.mubr.f32.gmra.mrb[0].mxu0 %v301
    %v844 = vpop.f32.mrb[0].mxu0
    %v845 = vadd.f32 0.0, %v844
    %v846 = vpop.f32.mrb[0].mxu0
    %v847 = vadd.f32 0.0, %v846
    %848 = vmatprep.mubr.f32.mxu0 %v473
    %849 = vmatmul.mubr.f32.gmra.mrb[0].mxu0 %v303
    %v850 = vpop.f32.mrb[0].mxu0
    %v851 = vadd.f32 0.0, %v850
    %v852 = vpop.f32.mrb[0].mxu0
    %v853 = vadd.f32 0.0, %v852
    %854 = vmatprep.mubr.f32.mxu0 %v476
    %855 = vmatmul.mubr.f32.gmra.mrb[0].mxu0 %v305
    %v856 = vpop.f32.mrb[0].mxu0
    %v857 = vadd.f32 0.0, %v856
    %v858 = vpop.f32.mrb[0].mxu0
    %v859 = vadd.f32 0.0, %v858
    %860 = vmatprep.mubr.f32.mxu0 %v479
    %861 = vmatmul.mubr.f32.gmra.mrb[0].mxu0 %v307
    %v862 = vpop.f32.mrb[0].mxu0
    %v863 = vadd.f32 0.0, %v862
    %v864 = vpop.f32.mrb[0].mxu0
    %v865 = vadd.f32 0.0, %v864
    %866 = vmatprep.mubr.f32.mxu0 %v482
    %867 = vmatmul.mubr.f32.gmra.mrb[0].mxu0 %v309
    %v868 = vpop.f32.mrb[0].mxu0
    %v869 = vadd.f32 0.0, %v868
    %v870 = vpop.f32.mrb[0].mxu0
    %v871 = vadd.f32 0.0, %v870
    %872 = vmatprep.mubr.f32.mxu0 %v485
    %873 = vmatmul.mubr.f32.gmra.mrb[0].mxu0 %v311
    %v874 = vpop.f32.mrb[0].mxu0
    %v875 = vadd.f32 0.0, %v874
    %v876 = vpop.f32.mrb[0].mxu0
    %v877 = vadd.f32 0.0, %v876
    %878 = vmatprep.mubr.f32.mxu0 %v488
    %879 = vmatmul.mubr.f32.gmra.mrb[0].mxu0 %v313
    %v880 = vpop.f32.mrb[0].mxu0
    %v881 = vadd.f32 0.0, %v880
    %v882 = vpop.f32.mrb[0].mxu0
    %v883 = vadd.f32 0.0, %v882
    %884 = vmatprep.mubr.f32.mxu0 %v491
    %885 = vmatmul.mubr.f32.gmra.mrb[0].mxu0 %v315
    %v886 = vpop.f32.mrb[0].mxu0
    %v887 = vadd.f32 0.0, %v886
    %v888 = vpop.f32.mrb[0].mxu0
    %v889 = vadd.f32 0.0, %v888
    %890 = vmatprep.mubr.f32.mxu0 %v494
    %891 = vmatmul.mubr.f32.gmra.mrb[0].mxu0 %v317
    %v892 = vpop.f32.mrb[0].mxu0
    %v893 = vadd.f32 0.0, %v892
    %v894 = vpop.f32.mrb[0].mxu0
    %v895 = vadd.f32 0.0, %v894
    %896 = vmatprep.mubr.f32.mxu0 %v497
    %897 = vmatmul.mubr.f32.gmra.mrb[0].mxu0 %v319
    %v898 = vpop.f32.mrb[0].mxu0
    %v899 = vadd.f32 0.0, %v898
    %v900 = vpop.f32.mrb[0].mxu0
    %v901 = vadd.f32 0.0, %v900
    %902 = vmatprep.mubr.f32.mxu0 %v500
    %903 = vmatmul.mubr.f32.gmra.mrb[0].mxu0 %v321
    %v904 = vpop.f32.mrb[0].mxu0
    %v905 = vadd.f32 0.0, %v904
    %v906 = vpop.f32.mrb[0].mxu0
    %v907 = vadd.f32 0.0, %v906
    %908 = vmatprep.mubr.f32.mxu0 %v503
    %909 = vmatmul.mubr.f32.gmra.mrb[0].mxu0 %v323
    %v910 = vpop.f32.mrb[0].mxu0
    %v911 = vadd.f32 0.0, %v910
    %v912 = vpop.f32.mrb[0].mxu0
    %v913 = vadd.f32 0.0, %v912
    %914 = vmatprep.mubr.f32.mxu0 %v506
    %915 = vmatmul.mubr.f32.gmra.mrb[0].mxu0 %v325
    %v916 = vpop.f32.mrb[0].mxu0
    %v917 = vadd.f32 0.0, %v916
    %v918 = vpop.f32.mrb[0].mxu0
    %v919 = vadd.f32 0.0, %v918
    %920 = vmatprep.mubr.f32.mxu0 %v509
    %921 = vmatmul.mubr.f32.gmra.mrb[0].mxu0 %v327
    %v922 = vpop.f32.mrb[0].mxu0
    %v923 = vadd.f32 0.0, %v922
    %v924 = vpop.f32.mrb[0].mxu0
    %v925 = vadd.f32 0.0, %v924
    %926 = vmatprep.mubr.f32.mxu0 %v512
    %927 = vmatmul.mubr.f32.gmra.mrb[0].mxu0 %v329
    %v928 = vpop.f32.mrb[0].mxu0
    %v929 = vadd.f32 0.0, %v928
    %v930 = vpop.f32.mrb[0].mxu0
    %v931 = vadd.f32 0.0, %v930
    %932 = vmatprep.mubr.f32.mxu0 %v515
    %933 = vmatmul.mubr.f32.gmra.mrb[0].mxu0 %v331
    %v934 = vpop.f32.mrb[0].mxu0
    %v935 = vadd.f32 0.0, %v934
    %v936 = vpop.f32.mrb[0].mxu0
    %v937 = vadd.f32 0.0, %v936
    %938 = vmatprep.mubr.f32.mxu0 %v518
    %939 = vmatmul.mubr.f32.gmra.mrb[0].mxu0 %v333
    %v940 = vpop.f32.mrb[0].mxu0
    %v941 = vadd.f32 0.0, %v940
    %v942 = vpop.f32.mrb[0].mxu0
    %v943 = vadd.f32 0.0, %v942
    %944 = vmatprep.mubr.f32.mxu0 %v521
    %945 = vmatmul.mubr.f32.gmra.mrb[0].mxu0 %v335
    %v946 = vpop.f32.mrb[0].mxu0
    %v947 = vadd.f32 0.0, %v946
    %v948 = vpop.f32.mrb[0].mxu0
    %v949 = vadd.f32 0.0, %v948
    %950 = vmatprep.mubr.f32.mxu0 %v524
    %951 = vmatmul.mubr.f32.gmra.mrb[0].mxu0 %v337
    %v952 = vpop.f32.mrb[0].mxu0
    %v953 = vadd.f32 0.0, %v952
    %v954 = vpop.f32.mrb[0].mxu0
    %v955 = vadd.f32 0.0, %v954
    %956 = vmatprep.mubr.f32.mxu0 %v527
    %957 = vmatmul.mubr.f32.gmra.mrb[0].mxu0 %v339
    %v958 = vpop.f32.mrb[0].mxu0
    %v959 = vadd.f32 0.0, %v958
    %v960 = vpop.f32.mrb[0].mxu0
    %v961 = vadd.f32 0.0, %v960
    %962 = vmatprep.mubr.f32.mxu0 %v530
    %963 = vmatmul.mubr.f32.gmra.mrb[0].mxu0 %v341
    %v964 = vpop.f32.mrb[0].mxu0
    %v965 = vadd.f32 0.0, %v964
    %v966 = vpop.f32.mrb[0].mxu0
    %v967 = vadd.f32 0.0, %v966
    %968 = vmatprep.mubr.f32.mxu0 %v533
    %969 = vmatmul.mubr.f32.gmra.mrb[0].mxu0 %v343
    %v970 = vpop.f32.mrb[0].mxu0
    %v971 = vadd.f32 0.0, %v970
    %v972 = vpop.f32.mrb[0].mxu0
    %v973 = vadd.f32 0.0, %v972
    %974 = vmatprep.mubr.f32.mxu0 %v536
    %975 = vmatmul.mubr.f32.gmra.mrb[0].mxu0 %v345
    %v976 = vpop.f32.mrb[0].mxu0
    %v977 = vadd.f32 0.0, %v976
    %v978 = vpop.f32.mrb[0].mxu0
    %v979 = vadd.f32 0.0, %v978
    %980 = vmatprep.mubr.f32.mxu0 %v539
    %981 = vmatmul.mubr.f32.gmra.mrb[0].mxu0 %v347
    %v982 = vpop.f32.mrb[0].mxu0
    %v983 = vadd.f32 0.0, %v982
    %v984 = vpop.f32.mrb[0].mxu0
    %v985 = vadd.f32 0.0, %v984
    %986 = vmatprep.mubr.f32.mxu0 %v542
    %987 = vmatmul.mubr.f32.gmra.mrb[0].mxu0 %v349
    %v988 = vpop.f32.mrb[0].mxu0
    %v989 = vadd.f32 0.0, %v988
    %v990 = vpop.f32.mrb[0].mxu0
    %v991 = vadd.f32 0.0, %v990
    %992 = vdwg.mxu0
    %v993 = vld [vmem:[%s3] sm:$0xff]
    %v994 = vld [vmem:[%s3 + $0x8] sm:$0xff]
    %v995 = vld [vmem:[%s3 + $0x10] sm:$0xff]
    %v996 = vld [vmem:[%s3 + $0x18] sm:$0xff]
    %v997 = vld [vmem:[%s3 + $0x20] sm:$0xff]
    %v998 = vld [vmem:[%s3 + $0x28] sm:$0xff]
    %v999 = vld [vmem:[%s3 + $0x30] sm:$0xff]
    %v1000 = vld [vmem:[%s3 + $0x38] sm:$0xff]
    %v1001 = vld [vmem:[%s3 + $0x40] sm:$0xff]
    %v1002 = vld [vmem:[%s3 + $0x48] sm:$0xff]
    %v1003 = vld [vmem:[%s3 + $0x50] sm:$0xff]
    %v1004 = vld [vmem:[%s3 + $0x58] sm:$0xff]
    %v1005 = vld [vmem:[%s3 + $0x60] sm:$0xff]
    %v1006 = vld [vmem:[%s3 + $0x68] sm:$0xff]
    %v1007 = vld [vmem:[%s3 + $0x70] sm:$0xff]
    %v1008 = vld [vmem:[%s3 + $0x78] sm:$0xff]
    %v1009 = vld [vmem:[%s3 + $0x80] sm:$0xff]
    %v1010 = vld [vmem:[%s3 + $0x88] sm:$0xff]
    %v1011 = vld [vmem:[%s3 + $0x90] sm:$0xff]
    %v1012 = vld [vmem:[%s3 + $0x98] sm:$0xff]
    %v1013 = vld [vmem:[%s3 + $0xa0] sm:$0xff]
    %v1014 = vld [vmem:[%s3 + $0xa8] sm:$0xff]
    %v1015 = vld [vmem:[%s3 + $0xb0] sm:$0xff]
    %v1016 = vld [vmem:[%s3 + $0xb8] sm:$0xff]
    %v1017 = vld [vmem:[%s3 + $0xc0] sm:$0xff]
    %v1018 = vld [vmem:[%s3 + $0xc8] sm:$0xff]
    %v1019 = vld [vmem:[%s3 + $0xd0] sm:$0xff]
    %v1020 = vld [vmem:[%s3 + $0xd8] sm:$0xff]
    %v1021 = vld [vmem:[%s3 + $0xe0] sm:$0xff]
    %v1022 = vld [vmem:[%s3 + $0xe8] sm:$0xff]
    %v1023 = vld [vmem:[%s3 + $0xf0] sm:$0xff]
    %v1024 = vld [vmem:[%s3 + $0xf8] sm:$0xff]
    %v1025 = vld [vmem:[%s3 + $0x100] sm:$0xff]
    %v1026 = vld [vmem:[%s3 + $0x108] sm:$0xff]
    %v1027 = vld [vmem:[%s3 + $0x110] sm:$0xff]
    %v1028 = vld [vmem:[%s3 + $0x118] sm:$0xff]
    %v1029 = vld [vmem:[%s3 + $0x120] sm:$0xff]
    %v1030 = vld [vmem:[%s3 + $0x128] sm:$0xff]
    %v1031 = vld [vmem:[%s3 + $0x130] sm:$0xff]
    %v1032 = vld [vmem:[%s3 + $0x138] sm:$0xff]
    %v1033 = vld [vmem:[%s3 + $0x140] sm:$0xff]
    %v1034 = vld [vmem:[%s3 + $0x148] sm:$0xff]
    %v1035 = vld [vmem:[%s3 + $0x150] sm:$0xff]
    %v1036 = vld [vmem:[%s3 + $0x158] sm:$0xff]
    %v1037 = vld [vmem:[%s3 + $0x160] sm:$0xff]
    %v1038 = vld [vmem:[%s3 + $0x168] sm:$0xff]
    %v1039 = vld [vmem:[%s3 + $0x170] sm:$0xff]
    %v1040 = vld [vmem:[%s3 + $0x178] sm:$0xff]
    %v1041 = vld [vmem:[%s3 + $0x180] sm:$0xff]
    %v1042 = vld [vmem:[%s3 + $0x188] sm:$0xff]
    %v1043 = vld [vmem:[%s3 + $0x190] sm:$0xff]
    %v1044 = vld [vmem:[%s3 + $0x198] sm:$0xff]
    %v1045 = vld [vmem:[%s3 + $0x1a0] sm:$0xff]
    %v1046 = vld [vmem:[%s3 + $0x1a8] sm:$0xff]
    %v1047 = vld [vmem:[%s3 + $0x1b0] sm:$0xff]
    %v1048 = vld [vmem:[%s3 + $0x1b8] sm:$0xff]
    %v1049 = vld [vmem:[%s3 + $0x1c0] sm:$0xff]
    %v1050 = vld [vmem:[%s3 + $0x1c8] sm:$0xff]
    %v1051 = vld [vmem:[%s3 + $0x1d0] sm:$0xff]
    %v1052 = vld [vmem:[%s3 + $0x1d8] sm:$0xff]
    %v1053 = vld [vmem:[%s3 + $0x1e0] sm:$0xff]
    %v1054 = vld [vmem:[%s3 + $0x1e8] sm:$0xff]
    %v1055 = vld [vmem:[%s3 + $0x1f0] sm:$0xff]
    %v1056 = vld [vmem:[%s3 + $0x1f8] sm:$0xff]
    %v1057 = vld [vmem:[%s2] sm:$0xf]
    %v1059 = vlaneseq
    %v1060 = vshrl.u32 %v1059, 7
    %v1061 = vsub.s32 0, %v1060
    %v1062 = vrot.slane %v1057, %v1061
    %v1063 = vlaneseq
    %v1064 = vshrl.u32 %v1063, 7
    %v1065 = vsub.s32 1, %v1064
    %v1066 = vrot.slane %v1057, %v1065
    %v1067 = vlaneseq
    %v1068 = vshrl.u32 %v1067, 7
    %v1069 = vsub.s32 2, %v1068
    %v1070 = vrot.slane %v1057, %v1069
    %v1071 = vlaneseq
    %v1072 = vshrl.u32 %v1071, 7
    %v1073 = vsub.s32 3, %v1072
    %v1074 = vrot.slane %v1057, %v1073
    %1079 = vmatprep.subr.mxu0 %v613
    %1080 = vmatpush1.xpose.msra.mxu0 %v611
    %1081 = vmatprep.subr.mxu0 %v619
    %1082 = vmatpush1.xpose.msra.mxu0 %v617
    %1083 = vmatprep.subr.mxu0 %v625
    %1084 = vmatpush1.xpose.msra.mxu0 %v623
    %1085 = vmatprep.subr.mxu0 %v631
    %1086 = vmatpush1.xpose.msra.mxu0 %v629
    %1087 = vmatprep.subr.mxu0 %v637
    %1088 = vmatpush1.xpose.msra.mxu0 %v635
    %1089 = vmatprep.subr.mxu0 %v643
    %1090 = vmatpush1.xpose.msra.mxu0 %v641
    %1091 = vmatprep.subr.mxu0 %v649
    %1092 = vmatpush1.xpose.msra.mxu0 %v647
    %1093 = vmatprep.subr.mxu0 %v655
    %1094 = vmatpush1.xpose.msra.mxu0 %v653
    %1095 = vmatprep.subr.mxu0 %v661
    %1096 = vmatpush1.xpose.msra.mxu0 %v659
    %1097 = vmatprep.subr.mxu0 %v667
    %1098 = vmatpush1.xpose.msra.mxu0 %v665
    %1099 = vmatprep.subr.mxu0 %v673
    %1100 = vmatpush1.xpose.msra.mxu0 %v671
    %1101 = vmatprep.subr.mxu0 %v679
    %1102 = vmatpush1.xpose.msra.mxu0 %v677
    %1103 = vmatprep.subr.mxu0 %v685
    %1104 = vmatpush1.xpose.msra.mxu0 %v683
    %1105 = vmatprep.subr.mxu0 %v691
    %1106 = vmatpush1.xpose.msra.mxu0 %v689
    %1107 = vmatprep.subr.mxu0 %v697
    %1108 = vmatpush1.xpose.msra.mxu0 %v695
    %1109 = vmatprep.subr.mxu0 %v703
    %1110 = vmatpush1.xpose.msra.mxu0 %v701
    %1111 = vmatprep.subr.mxu0 %v709
    %1112 = vmatpush1.xpose.msra.mxu0 %v707
    %1113 = vmatprep.subr.mxu0 %v715
    %1114 = vmatpush1.xpose.msra.mxu0 %v713
    %1115 = vmatprep.subr.mxu0 %v721
    %1116 = vmatpush1.xpose.msra.mxu0 %v719
    %1117 = vmatprep.subr.mxu0 %v727
    %1118 = vmatpush1.xpose.msra.mxu0 %v725
    %1119 = vmatprep.subr.mxu0 %v733
    %1120 = vmatpush1.xpose.msra.mxu0 %v731
    %1121 = vmatprep.subr.mxu0 %v739
    %1122 = vmatpush1.xpose.msra.mxu0 %v737
    %1123 = vmatprep.subr.mxu0 %v745
    %1124 = vmatpush1.xpose.msra.mxu0 %v743
    %1125 = vmatprep.subr.mxu0 %v751
    %1126 = vmatpush1.xpose.msra.mxu0 %v749
    %1127 = vmatprep.subr.mxu0 %v757
    %1128 = vmatpush1.xpose.msra.mxu0 %v755
    %1129 = vmatprep.subr.mxu0 %v763
    %1130 = vmatpush1.xpose.msra.mxu0 %v761
    %1131 = vmatprep.subr.mxu0 %v769
    %1132 = vmatpush1.xpose.msra.mxu0 %v767
    %1133 = vmatprep.subr.mxu0 %v775
    %1134 = vmatpush1.xpose.msra.mxu0 %v773
    %1135 = vmatprep.subr.mxu0 %v781
    %1136 = vmatpush1.xpose.msra.mxu0 %v779
    %1137 = vmatprep.subr.mxu0 %v787
    %1138 = vmatpush1.xpose.msra.mxu0 %v785
    %1139 = vmatprep.subr.mxu0 %v793
    %1140 = vmatpush1.xpose.msra.mxu0 %v791
    %1141 = vmatprep.subr.mxu0 %v799
    %1142 = vmatpush1.xpose.msra.mxu0 %v797
    %1143 = vmatprep.mubr.f32.mxu0 %v994
    %1144 = vmatmul.mubr.f32.gmra.mrb[0].mxu0 %v993
    %v1145 = vpop.f32.mrb[0].mxu0
    %v1146 = vadd.f32 %v1062, %v1145
    %v1147 = vpop.f32.mrb[0].mxu0
    %v1148 = vadd.f32 %v1066, %v1147
    %1149 = vmatprep.mubr.f32.mxu0 %v996
    %1150 = vmatmul.mubr.f32.gmra.mrb[0].mxu0 %v995
    %v1151 = vpop.f32.mrb[0].mxu0
    %v1152 = vadd.f32 %v1062, %v1151
    %v1153 = vpop.f32.mrb[0].mxu0
    %v1154 = vadd.f32 %v1066, %v1153
    %1155 = vmatprep.mubr.f32.mxu0 %v998
    %1156 = vmatmul.mubr.f32.gmra.mrb[0].mxu0 %v997
    %v1157 = vpop.f32.mrb[0].mxu0
    %v1158 = vadd.f32 %v1062, %v1157
    %v1159 = vpop.f32.mrb[0].mxu0
    %v1160 = vadd.f32 %v1066, %v1159
    %1161 = vmatprep.mubr.f32.mxu0 %v1000
    %1162 = vmatmul.mubr.f32.gmra.mrb[0].mxu0 %v999
    %v1163 = vpop.f32.mrb[0].mxu0
    %v1164 = vadd.f32 %v1062, %v1163
    %v1165 = vpop.f32.mrb[0].mxu0
    %v1166 = vadd.f32 %v1066, %v1165
    %1167 = vmatprep.mubr.f32.mxu0 %v1002
    %1168 = vmatmul.mubr.f32.gmra.mrb[0].mxu0 %v1001
    %v1169 = vpop.f32.mrb[0].mxu0
    %v1170 = vadd.f32 %v1062, %v1169
    %v1171 = vpop.f32.mrb[0].mxu0
    %v1172 = vadd.f32 %v1066, %v1171
    %1173 = vmatprep.mubr.f32.mxu0 %v1004
    %1174 = vmatmul.mubr.f32.gmra.mrb[0].mxu0 %v1003
    %v1175 = vpop.f32.mrb[0].mxu0
    %v1176 = vadd.f32 %v1062, %v1175
    %v1177 = vpop.f32.mrb[0].mxu0
    %v1178 = vadd.f32 %v1066, %v1177
    %1179 = vmatprep.mubr.f32.mxu0 %v1006
    %1180 = vmatmul.mubr.f32.gmra.mrb[0].mxu0 %v1005
    %v1181 = vpop.f32.mrb[0].mxu0
    %v1182 = vadd.f32 %v1062, %v1181
    %v1183 = vpop.f32.mrb[0].mxu0
    %v1184 = vadd.f32 %v1066, %v1183
    %1185 = vmatprep.mubr.f32.mxu0 %v1008
    %1186 = vmatmul.mubr.f32.gmra.mrb[0].mxu0 %v1007
    %v1187 = vpop.f32.mrb[0].mxu0
    %v1188 = vadd.f32 %v1062, %v1187
    %v1189 = vpop.f32.mrb[0].mxu0
    %v1190 = vadd.f32 %v1066, %v1189
    %1191 = vmatprep.mubr.f32.mxu0 %v1010
    %1192 = vmatmul.mubr.f32.gmra.mrb[0].mxu0 %v1009
    %v1193 = vpop.f32.mrb[0].mxu0
    %v1194 = vadd.f32 %v1062, %v1193
    %v1195 = vpop.f32.mrb[0].mxu0
    %v1196 = vadd.f32 %v1066, %v1195
    %1197 = vmatprep.mubr.f32.mxu0 %v1012
    %1198 = vmatmul.mubr.f32.gmra.mrb[0].mxu0 %v1011
    %v1199 = vpop.f32.mrb[0].mxu0
    %v1200 = vadd.f32 %v1062, %v1199
    %v1201 = vpop.f32.mrb[0].mxu0
    %v1202 = vadd.f32 %v1066, %v1201
    %1203 = vmatprep.mubr.f32.mxu0 %v1014
    %1204 = vmatmul.mubr.f32.gmra.mrb[0].mxu0 %v1013
    %v1205 = vpop.f32.mrb[0].mxu0
    %v1206 = vadd.f32 %v1062, %v1205
    %v1207 = vpop.f32.mrb[0].mxu0
    %v1208 = vadd.f32 %v1066, %v1207
    %1209 = vmatprep.mubr.f32.mxu0 %v1016
    %1210 = vmatmul.mubr.f32.gmra.mrb[0].mxu0 %v1015
    %v1211 = vpop.f32.mrb[0].mxu0
    %v1212 = vadd.f32 %v1062, %v1211
    %v1213 = vpop.f32.mrb[0].mxu0
    %v1214 = vadd.f32 %v1066, %v1213
    %1215 = vmatprep.mubr.f32.mxu0 %v1018
    %1216 = vmatmul.mubr.f32.gmra.mrb[0].mxu0 %v1017
    %v1217 = vpop.f32.mrb[0].mxu0
    %v1218 = vadd.f32 %v1062, %v1217
    %v1219 = vpop.f32.mrb[0].mxu0
    %v1220 = vadd.f32 %v1066, %v1219
    %1221 = vmatprep.mubr.f32.mxu0 %v1020
    %1222 = vmatmul.mubr.f32.gmra.mrb[0].mxu0 %v1019
    %v1223 = vpop.f32.mrb[0].mxu0
    %v1224 = vadd.f32 %v1062, %v1223
    %v1225 = vpop.f32.mrb[0].mxu0
    %v1226 = vadd.f32 %v1066, %v1225
    %1227 = vmatprep.mubr.f32.mxu0 %v1022
    %1228 = vmatmul.mubr.f32.gmra.mrb[0].mxu0 %v1021
    %v1229 = vpop.f32.mrb[0].mxu0
    %v1230 = vadd.f32 %v1062, %v1229
    %v1231 = vpop.f32.mrb[0].mxu0
    %v1232 = vadd.f32 %v1066, %v1231
    %1233 = vmatprep.mubr.f32.mxu0 %v1024
    %1234 = vmatmul.mubr.f32.gmra.mrb[0].mxu0 %v1023
    %v1235 = vpop.f32.mrb[0].mxu0
    %v1236 = vadd.f32 %v1062, %v1235
    %v1237 = vpop.f32.mrb[0].mxu0
    %v1238 = vadd.f32 %v1066, %v1237
    %1239 = vmatprep.mubr.f32.mxu0 %v1026
    %1240 = vmatmul.mubr.f32.gmra.mrb[0].mxu0 %v1025
    %v1241 = vpop.f32.mrb[0].mxu0
    %v1242 = vadd.f32 %v1062, %v1241
    %v1243 = vpop.f32.mrb[0].mxu0
    %v1244 = vadd.f32 %v1066, %v1243
    %1245 = vmatprep.mubr.f32.mxu0 %v1028
    %1246 = vmatmul.mubr.f32.gmra.mrb[0].mxu0 %v1027
    %v1247 = vpop.f32.mrb[0].mxu0
    %v1248 = vadd.f32 %v1062, %v1247
    %v1249 = vpop.f32.mrb[0].mxu0
    %v1250 = vadd.f32 %v1066, %v1249
    %1251 = vmatprep.mubr.f32.mxu0 %v1030
    %1252 = vmatmul.mubr.f32.gmra.mrb[0].mxu0 %v1029
    %v1253 = vpop.f32.mrb[0].mxu0
    %v1254 = vadd.f32 %v1062, %v1253
    %v1255 = vpop.f32.mrb[0].mxu0
    %v1256 = vadd.f32 %v1066, %v1255
    %1257 = vmatprep.mubr.f32.mxu0 %v1032
    %1258 = vmatmul.mubr.f32.gmra.mrb[0].mxu0 %v1031
    %v1259 = vpop.f32.mrb[0].mxu0
    %v1260 = vadd.f32 %v1062, %v1259
    %v1261 = vpop.f32.mrb[0].mxu0
    %v1262 = vadd.f32 %v1066, %v1261
    %1263 = vmatprep.mubr.f32.mxu0 %v1034
    %1264 = vmatmul.mubr.f32.gmra.mrb[0].mxu0 %v1033
    %v1265 = vpop.f32.mrb[0].mxu0
    %v1266 = vadd.f32 %v1062, %v1265
    %v1267 = vpop.f32.mrb[0].mxu0
    %v1268 = vadd.f32 %v1066, %v1267
    %1269 = vmatprep.mubr.f32.mxu0 %v1036
    %1270 = vmatmul.mubr.f32.gmra.mrb[0].mxu0 %v1035
    %v1271 = vpop.f32.mrb[0].mxu0
    %v1272 = vadd.f32 %v1062, %v1271
    %v1273 = vpop.f32.mrb[0].mxu0
    %v1274 = vadd.f32 %v1066, %v1273
    %1275 = vmatprep.mubr.f32.mxu0 %v1038
    %1276 = vmatmul.mubr.f32.gmra.mrb[0].mxu0 %v1037
    %v1277 = vpop.f32.mrb[0].mxu0
    %v1278 = vadd.f32 %v1062, %v1277
    %v1279 = vpop.f32.mrb[0].mxu0
    %v1280 = vadd.f32 %v1066, %v1279
    %1281 = vmatprep.mubr.f32.mxu0 %v1040
    %1282 = vmatmul.mubr.f32.gmra.mrb[0].mxu0 %v1039
    %v1283 = vpop.f32.mrb[0].mxu0
    %v1284 = vadd.f32 %v1062, %v1283
    %v1285 = vpop.f32.mrb[0].mxu0
    %v1286 = vadd.f32 %v1066, %v1285
    %1287 = vmatprep.mubr.f32.mxu0 %v1042
    %1288 = vmatmul.mubr.f32.gmra.mrb[0].mxu0 %v1041
    %v1289 = vpop.f32.mrb[0].mxu0
    %v1290 = vadd.f32 %v1062, %v1289
    %v1291 = vpop.f32.mrb[0].mxu0
    %v1292 = vadd.f32 %v1066, %v1291
    %1293 = vmatprep.mubr.f32.mxu0 %v1044
    %1294 = vmatmul.mubr.f32.gmra.mrb[0].mxu0 %v1043
    %v1295 = vpop.f32.mrb[0].mxu0
    %v1296 = vadd.f32 %v1062, %v1295
    %v1297 = vpop.f32.mrb[0].mxu0
    %v1298 = vadd.f32 %v1066, %v1297
    %1299 = vmatprep.mubr.f32.mxu0 %v1046
    %1300 = vmatmul.mubr.f32.gmra.mrb[0].mxu0 %v1045
    %v1301 = vpop.f32.mrb[0].mxu0
    %v1302 = vadd.f32 %v1062, %v1301
    %v1303 = vpop.f32.mrb[0].mxu0
    %v1304 = vadd.f32 %v1066, %v1303
    %1305 = vmatprep.mubr.f32.mxu0 %v1048
    %1306 = vmatmul.mubr.f32.gmra.mrb[0].mxu0 %v1047
    %v1307 = vpop.f32.mrb[0].mxu0
    %v1308 = vadd.f32 %v1062, %v1307
    %v1309 = vpop.f32.mrb[0].mxu0
    %v1310 = vadd.f32 %v1066, %v1309
    %1311 = vmatprep.mubr.f32.mxu0 %v1050
    %1312 = vmatmul.mubr.f32.gmra.mrb[0].mxu0 %v1049
    %v1313 = vpop.f32.mrb[0].mxu0
    %v1314 = vadd.f32 %v1062, %v1313
    %v1315 = vpop.f32.mrb[0].mxu0
    %v1316 = vadd.f32 %v1066, %v1315
    %1317 = vmatprep.mubr.f32.mxu0 %v1052
    %1318 = vmatmul.mubr.f32.gmra.mrb[0].mxu0 %v1051
    %v1319 = vpop.f32.mrb[0].mxu0
    %v1320 = vadd.f32 %v1062, %v1319
    %v1321 = vpop.f32.mrb[0].mxu0
    %v1322 = vadd.f32 %v1066, %v1321
    %1323 = vmatprep.mubr.f32.mxu0 %v1054
    %1324 = vmatmul.mubr.f32.gmra.mrb[0].mxu0 %v1053
    %v1325 = vpop.f32.mrb[0].mxu0
    %v1326 = vadd.f32 %v1062, %v1325
    %v1327 = vpop.f32.mrb[0].mxu0
    %v1328 = vadd.f32 %v1066, %v1327
    %1329 = vmatprep.mubr.f32.mxu0 %v1056
    %1330 = vmatmul.mubr.f32.gmra.mrb[0].mxu0 %v1055
    %v1331 = vpop.f32.mrb[0].mxu0
    %v1332 = vadd.f32 %v1062, %v1331
    %v1333 = vpop.f32.mrb[0].mxu0
    %v1334 = vadd.f32 %v1066, %v1333
    %1335 = vdwg.mxu0
    %1336 = vmatprep.subr.mxu0 %v805
    %1337 = vmatpush1.xpose.msra.mxu0 %v803
    %1338 = vmatprep.subr.mxu0 %v811
    %1339 = vmatpush1.xpose.msra.mxu0 %v809
    %1340 = vmatprep.subr.mxu0 %v817
    %1341 = vmatpush1.xpose.msra.mxu0 %v815
    %1342 = vmatprep.subr.mxu0 %v823
    %1343 = vmatpush1.xpose.msra.mxu0 %v821
    %1344 = vmatprep.subr.mxu0 %v829
    %1345 = vmatpush1.xpose.msra.mxu0 %v827
    %1346 = vmatprep.subr.mxu0 %v835
    %1347 = vmatpush1.xpose.msra.mxu0 %v833
    %1348 = vmatprep.subr.mxu0 %v841
    %1349 = vmatpush1.xpose.msra.mxu0 %v839
    %1350 = vmatprep.subr.mxu0 %v847
    %1351 = vmatpush1.xpose.msra.mxu0 %v845
    %1352 = vmatprep.subr.mxu0 %v853
    %1353 = vmatpush1.xpose.msra.mxu0 %v851
    %1354 = vmatprep.subr.mxu0 %v859
    %1355 = vmatpush1.xpose.msra.mxu0 %v857
    %1356 = vmatprep.subr.mxu0 %v865
    %1357 = vmatpush1.xpose.msra.mxu0 %v863
    %1358 = vmatprep.subr.mxu0 %v871
    %1359 = vmatpush1.xpose.msra.mxu0 %v869
    %1360 = vmatprep.subr.mxu0 %v877
    %1361 = vmatpush1.xpose.msra.mxu0 %v875
    %1362 = vmatprep.subr.mxu0 %v883
    %1363 = vmatpush1.xpose.msra.mxu0 %v881
    %1364 = vmatprep.subr.mxu0 %v889
    %1365 = vmatpush1.xpose.msra.mxu0 %v887
    %1366 = vmatprep.subr.mxu0 %v895
    %1367 = vmatpush1.xpose.msra.mxu0 %v893
    %1368 = vmatprep.subr.mxu0 %v901
    %1369 = vmatpush1.xpose.msra.mxu0 %v899
    %1370 = vmatprep.subr.mxu0 %v907
    %1371 = vmatpush1.xpose.msra.mxu0 %v905
    %1372 = vmatprep.subr.mxu0 %v913
    %1373 = vmatpush1.xpose.msra.mxu0 %v911
    %1374 = vmatprep.subr.mxu0 %v919
    %1375 = vmatpush1.xpose.msra.mxu0 %v917
    %1376 = vmatprep.subr.mxu0 %v925
    %1377 = vmatpush1.xpose.msra.mxu0 %v923
    %1378 = vmatprep.subr.mxu0 %v931
    %1379 = vmatpush1.xpose.msra.mxu0 %v929
    %1380 = vmatprep.subr.mxu0 %v937
    %1381 = vmatpush1.xpose.msra.mxu0 %v935
    %1382 = vmatprep.subr.mxu0 %v943
    %1383 = vmatpush1.xpose.msra.mxu0 %v941
    %1384 = vmatprep.subr.mxu0 %v949
    %1385 = vmatpush1.xpose.msra.mxu0 %v947
    %1386 = vmatprep.subr.mxu0 %v955
    %1387 = vmatpush1.xpose.msra.mxu0 %v953
    %1388 = vmatprep.subr.mxu0 %v961
    %1389 = vmatpush1.xpose.msra.mxu0 %v959
    %1390 = vmatprep.subr.mxu0 %v967
    %1391 = vmatpush1.xpose.msra.mxu0 %v965
    %1392 = vmatprep.subr.mxu0 %v973
    %1393 = vmatpush1.xpose.msra.mxu0 %v971
    %1394 = vmatprep.subr.mxu0 %v979
    %1395 = vmatpush1.xpose.msra.mxu0 %v977
    %1396 = vmatprep.subr.mxu0 %v985
    %1397 = vmatpush1.xpose.msra.mxu0 %v983
    %1398 = vmatprep.subr.mxu0 %v991
    %1399 = vmatpush1.xpose.msra.mxu0 %v989
    %1400 = vmatprep.mubr.f32.mxu0 %v994
    %1401 = vmatmul.mubr.f32.gmra.mrb[0].mxu0 %v993
    %v1402 = vpop.f32.mrb[0].mxu0
    %v1403 = vadd.f32 %v1070, %v1402
    %v1404 = vpop.f32.mrb[0].mxu0
    %v1405 = vadd.f32 %v1074, %v1404
    %1406 = vmatprep.mubr.f32.mxu0 %v996
    %1407 = vmatmul.mubr.f32.gmra.mrb[0].mxu0 %v995
    %v1408 = vpop.f32.mrb[0].mxu0
    %v1409 = vadd.f32 %v1070, %v1408
    %v1410 = vpop.f32.mrb[0].mxu0
    %v1411 = vadd.f32 %v1074, %v1410
    %1412 = vmatprep.mubr.f32.mxu0 %v998
    %1413 = vmatmul.mubr.f32.gmra.mrb[0].mxu0 %v997
    %v1414 = vpop.f32.mrb[0].mxu0
    %v1415 = vadd.f32 %v1070, %v1414
    %v1416 = vpop.f32.mrb[0].mxu0
    %v1417 = vadd.f32 %v1074, %v1416
    %1418 = vmatprep.mubr.f32.mxu0 %v1000
    %1419 = vmatmul.mubr.f32.gmra.mrb[0].mxu0 %v999
    %v1420 = vpop.f32.mrb[0].mxu0
    %v1421 = vadd.f32 %v1070, %v1420
    %v1422 = vpop.f32.mrb[0].mxu0
    %v1423 = vadd.f32 %v1074, %v1422
    %1424 = vmatprep.mubr.f32.mxu0 %v1002
    %1425 = vmatmul.mubr.f32.gmra.mrb[0].mxu0 %v1001
    %v1426 = vpop.f32.mrb[0].mxu0
    %v1427 = vadd.f32 %v1070, %v1426
    %v1428 = vpop.f32.mrb[0].mxu0
    %v1429 = vadd.f32 %v1074, %v1428
    %1430 = vmatprep.mubr.f32.mxu0 %v1004
    %1431 = vmatmul.mubr.f32.gmra.mrb[0].mxu0 %v1003
    %v1432 = vpop.f32.mrb[0].mxu0
    %v1433 = vadd.f32 %v1070, %v1432
    %v1434 = vpop.f32.mrb[0].mxu0
    %v1435 = vadd.f32 %v1074, %v1434
    %1436 = vmatprep.mubr.f32.mxu0 %v1006
    %1437 = vmatmul.mubr.f32.gmra.mrb[0].mxu0 %v1005
    %v1438 = vpop.f32.mrb[0].mxu0
    %v1439 = vadd.f32 %v1070, %v1438
    %v1440 = vpop.f32.mrb[0].mxu0
    %v1441 = vadd.f32 %v1074, %v1440
    %1442 = vmatprep.mubr.f32.mxu0 %v1008
    %1443 = vmatmul.mubr.f32.gmra.mrb[0].mxu0 %v1007
    %v1444 = vpop.f32.mrb[0].mxu0
    %v1445 = vadd.f32 %v1070, %v1444
    %v1446 = vpop.f32.mrb[0].mxu0
    %v1447 = vadd.f32 %v1074, %v1446
    %1448 = vmatprep.mubr.f32.mxu0 %v1010
    %1449 = vmatmul.mubr.f32.gmra.mrb[0].mxu0 %v1009
    %v1450 = vpop.f32.mrb[0].mxu0
    %v1451 = vadd.f32 %v1070, %v1450
    %v1452 = vpop.f32.mrb[0].mxu0
    %v1453 = vadd.f32 %v1074, %v1452
    %1454 = vmatprep.mubr.f32.mxu0 %v1012
    %1455 = vmatmul.mubr.f32.gmra.mrb[0].mxu0 %v1011
    %v1456 = vpop.f32.mrb[0].mxu0
    %v1457 = vadd.f32 %v1070, %v1456
    %v1458 = vpop.f32.mrb[0].mxu0
    %v1459 = vadd.f32 %v1074, %v1458
    %1460 = vmatprep.mubr.f32.mxu0 %v1014
    %1461 = vmatmul.mubr.f32.gmra.mrb[0].mxu0 %v1013
    %v1462 = vpop.f32.mrb[0].mxu0
    %v1463 = vadd.f32 %v1070, %v1462
    %v1464 = vpop.f32.mrb[0].mxu0
    %v1465 = vadd.f32 %v1074, %v1464
    %1466 = vmatprep.mubr.f32.mxu0 %v1016
    %1467 = vmatmul.mubr.f32.gmra.mrb[0].mxu0 %v1015
    %v1468 = vpop.f32.mrb[0].mxu0
    %v1469 = vadd.f32 %v1070, %v1468
    %v1470 = vpop.f32.mrb[0].mxu0
    %v1471 = vadd.f32 %v1074, %v1470
    %1472 = vmatprep.mubr.f32.mxu0 %v1018
    %1473 = vmatmul.mubr.f32.gmra.mrb[0].mxu0 %v1017
    %v1474 = vpop.f32.mrb[0].mxu0
    %v1475 = vadd.f32 %v1070, %v1474
    %v1476 = vpop.f32.mrb[0].mxu0
    %v1477 = vadd.f32 %v1074, %v1476
    %1478 = vmatprep.mubr.f32.mxu0 %v1020
    %1479 = vmatmul.mubr.f32.gmra.mrb[0].mxu0 %v1019
    %v1480 = vpop.f32.mrb[0].mxu0
    %v1481 = vadd.f32 %v1070, %v1480
    %v1482 = vpop.f32.mrb[0].mxu0
    %v1483 = vadd.f32 %v1074, %v1482
    %1484 = vmatprep.mubr.f32.mxu0 %v1022
    %1485 = vmatmul.mubr.f32.gmra.mrb[0].mxu0 %v1021
    %v1486 = vpop.f32.mrb[0].mxu0
    %v1487 = vadd.f32 %v1070, %v1486
    %v1488 = vpop.f32.mrb[0].mxu0
    %v1489 = vadd.f32 %v1074, %v1488
    %1490 = vmatprep.mubr.f32.mxu0 %v1024
    %1491 = vmatmul.mubr.f32.gmra.mrb[0].mxu0 %v1023
    %v1492 = vpop.f32.mrb[0].mxu0
    %v1493 = vadd.f32 %v1070, %v1492
    %v1494 = vpop.f32.mrb[0].mxu0
    %v1495 = vadd.f32 %v1074, %v1494
    %1496 = vmatprep.mubr.f32.mxu0 %v1026
    %1497 = vmatmul.mubr.f32.gmra.mrb[0].mxu0 %v1025
    %v1498 = vpop.f32.mrb[0].mxu0
    %v1499 = vadd.f32 %v1070, %v1498
    %v1500 = vpop.f32.mrb[0].mxu0
    %v1501 = vadd.f32 %v1074, %v1500
    %1502 = vmatprep.mubr.f32.mxu0 %v1028
    %1503 = vmatmul.mubr.f32.gmra.mrb[0].mxu0 %v1027
    %v1504 = vpop.f32.mrb[0].mxu0
    %v1505 = vadd.f32 %v1070, %v1504
    %v1506 = vpop.f32.mrb[0].mxu0
    %v1507 = vadd.f32 %v1074, %v1506
    %1508 = vmatprep.mubr.f32.mxu0 %v1030
    %1509 = vmatmul.mubr.f32.gmra.mrb[0].mxu0 %v1029
    %v1510 = vpop.f32.mrb[0].mxu0
    %v1511 = vadd.f32 %v1070, %v1510
    %v1512 = vpop.f32.mrb[0].mxu0
    %v1513 = vadd.f32 %v1074, %v1512
    %1514 = vmatprep.mubr.f32.mxu0 %v1032
    %1515 = vmatmul.mubr.f32.gmra.mrb[0].mxu0 %v1031
    %v1516 = vpop.f32.mrb[0].mxu0
    %v1517 = vadd.f32 %v1070, %v1516
    %v1518 = vpop.f32.mrb[0].mxu0
    %v1519 = vadd.f32 %v1074, %v1518
    %1520 = vmatprep.mubr.f32.mxu0 %v1034
    %1521 = vmatmul.mubr.f32.gmra.mrb[0].mxu0 %v1033
    %v1522 = vpop.f32.mrb[0].mxu0
    %v1523 = vadd.f32 %v1070, %v1522
    %v1524 = vpop.f32.mrb[0].mxu0
    %v1525 = vadd.f32 %v1074, %v1524
    %1526 = vmatprep.mubr.f32.mxu0 %v1036
    %1527 = vmatmul.mubr.f32.gmra.mrb[0].mxu0 %v1035
    %v1528 = vpop.f32.mrb[0].mxu0
    %v1529 = vadd.f32 %v1070, %v1528
    %v1530 = vpop.f32.mrb[0].mxu0
    %v1531 = vadd.f32 %v1074, %v1530
    %1532 = vmatprep.mubr.f32.mxu0 %v1038
    %1533 = vmatmul.mubr.f32.gmra.mrb[0].mxu0 %v1037
    %v1534 = vpop.f32.mrb[0].mxu0
    %v1535 = vadd.f32 %v1070, %v1534
    %v1536 = vpop.f32.mrb[0].mxu0
    %v1537 = vadd.f32 %v1074, %v1536
    %1538 = vmatprep.mubr.f32.mxu0 %v1040
    %1539 = vmatmul.mubr.f32.gmra.mrb[0].mxu0 %v1039
    %v1540 = vpop.f32.mrb[0].mxu0
    %v1541 = vadd.f32 %v1070, %v1540
    %v1542 = vpop.f32.mrb[0].mxu0
    %v1543 = vadd.f32 %v1074, %v1542
    %1544 = vmatprep.mubr.f32.mxu0 %v1042
    %1545 = vmatmul.mubr.f32.gmra.mrb[0].mxu0 %v1041
    %v1546 = vpop.f32.mrb[0].mxu0
    %v1547 = vadd.f32 %v1070, %v1546
    %v1548 = vpop.f32.mrb[0].mxu0
    %v1549 = vadd.f32 %v1074, %v1548
    %1550 = vmatprep.mubr.f32.mxu0 %v1044
    %1551 = vmatmul.mubr.f32.gmra.mrb[0].mxu0 %v1043
    %v1552 = vpop.f32.mrb[0].mxu0
    %v1553 = vadd.f32 %v1070, %v1552
    %v1554 = vpop.f32.mrb[0].mxu0
    %v1555 = vadd.f32 %v1074, %v1554
    %1556 = vmatprep.mubr.f32.mxu0 %v1046
    %1557 = vmatmul.mubr.f32.gmra.mrb[0].mxu0 %v1045
    %v1558 = vpop.f32.mrb[0].mxu0
    %v1559 = vadd.f32 %v1070, %v1558
    %v1560 = vpop.f32.mrb[0].mxu0
    %v1561 = vadd.f32 %v1074, %v1560
    %1562 = vmatprep.mubr.f32.mxu0 %v1048
    %1563 = vmatmul.mubr.f32.gmra.mrb[0].mxu0 %v1047
    %v1564 = vpop.f32.mrb[0].mxu0
    %v1565 = vadd.f32 %v1070, %v1564
    %v1566 = vpop.f32.mrb[0].mxu0
    %v1567 = vadd.f32 %v1074, %v1566
    %1568 = vmatprep.mubr.f32.mxu0 %v1050
    %1569 = vmatmul.mubr.f32.gmra.mrb[0].mxu0 %v1049
    %v1570 = vpop.f32.mrb[0].mxu0
    %v1571 = vadd.f32 %v1070, %v1570
    %v1572 = vpop.f32.mrb[0].mxu0
    %v1573 = vadd.f32 %v1074, %v1572
    %1574 = vmatprep.mubr.f32.mxu0 %v1052
    %1575 = vmatmul.mubr.f32.gmra.mrb[0].mxu0 %v1051
    %v1576 = vpop.f32.mrb[0].mxu0
    %v1577 = vadd.f32 %v1070, %v1576
    %v1578 = vpop.f32.mrb[0].mxu0
    %v1579 = vadd.f32 %v1074, %v1578
    %1580 = vmatprep.mubr.f32.mxu0 %v1054
    %1581 = vmatmul.mubr.f32.gmra.mrb[0].mxu0 %v1053
    %v1582 = vpop.f32.mrb[0].mxu0
    %v1583 = vadd.f32 %v1070, %v1582
    %v1584 = vpop.f32.mrb[0].mxu0
    %v1585 = vadd.f32 %v1074, %v1584
    %1586 = vmatprep.mubr.f32.mxu0 %v1056
    %1587 = vmatmul.mubr.f32.gmra.mrb[0].mxu0 %v1055
    %v1588 = vpop.f32.mrb[0].mxu0
    %v1589 = vadd.f32 %v1070, %v1588
    %v1590 = vpop.f32.mrb[0].mxu0
    %v1591 = vadd.f32 %v1074, %v1590
    %1592 = vdwg.mxu0
    %v1593 = vmax.f32 %v1146, 0.0
    %v1594 = vmax.f32 %v1148, 0.0
    %v1595 = vmax.f32 %v1403, 0.0
    %v1596 = vmax.f32 %v1405, 0.0
    %v1597 = vmax.f32 %v1152, 0.0
    %v1598 = vmax.f32 %v1154, 0.0
    %v1599 = vmax.f32 %v1409, 0.0
    %v1600 = vmax.f32 %v1411, 0.0
    %v1601 = vmax.f32 %v1158, 0.0
    %v1602 = vmax.f32 %v1160, 0.0
    %v1603 = vmax.f32 %v1415, 0.0
    %v1604 = vmax.f32 %v1417, 0.0
    %v1605 = vmax.f32 %v1164, 0.0
    %v1606 = vmax.f32 %v1166, 0.0
    %v1607 = vmax.f32 %v1421, 0.0
    %v1608 = vmax.f32 %v1423, 0.0
    %v1609 = vmax.f32 %v1170, 0.0
    %v1610 = vmax.f32 %v1172, 0.0
    %v1611 = vmax.f32 %v1427, 0.0
    %v1612 = vmax.f32 %v1429, 0.0
    %v1613 = vmax.f32 %v1176, 0.0
    %v1614 = vmax.f32 %v1178, 0.0
    %v1615 = vmax.f32 %v1433, 0.0
    %v1616 = vmax.f32 %v1435, 0.0
    %v1617 = vmax.f32 %v1182, 0.0
    %v1618 = vmax.f32 %v1184, 0.0
    %v1619 = vmax.f32 %v1439, 0.0
    %v1620 = vmax.f32 %v1441, 0.0
    %v1621 = vmax.f32 %v1188, 0.0
    %v1622 = vmax.f32 %v1190, 0.0
    %v1623 = vmax.f32 %v1445, 0.0
    %v1624 = vmax.f32 %v1447, 0.0
    %v1625 = vmax.f32 %v1194, 0.0
    %v1626 = vmax.f32 %v1196, 0.0
    %v1627 = vmax.f32 %v1451, 0.0
    %v1628 = vmax.f32 %v1453, 0.0
    %v1629 = vmax.f32 %v1200, 0.0
    %v1630 = vmax.f32 %v1202, 0.0
    %v1631 = vmax.f32 %v1457, 0.0
    %v1632 = vmax.f32 %v1459, 0.0
    %v1633 = vmax.f32 %v1206, 0.0
    %v1634 = vmax.f32 %v1208, 0.0
    %v1635 = vmax.f32 %v1463, 0.0
    %v1636 = vmax.f32 %v1465, 0.0
    %v1637 = vmax.f32 %v1212, 0.0
    %v1638 = vmax.f32 %v1214, 0.0
    %v1639 = vmax.f32 %v1469, 0.0
    %v1640 = vmax.f32 %v1471, 0.0
    %v1641 = vmax.f32 %v1218, 0.0
    %v1642 = vmax.f32 %v1220, 0.0
    %v1643 = vmax.f32 %v1475, 0.0
    %v1644 = vmax.f32 %v1477, 0.0
    %v1645 = vmax.f32 %v1224, 0.0
    %v1646 = vmax.f32 %v1226, 0.0
    %v1647 = vmax.f32 %v1481, 0.0
    %v1648 = vmax.f32 %v1483, 0.0
    %v1649 = vmax.f32 %v1230, 0.0
    %v1650 = vmax.f32 %v1232, 0.0
    %v1651 = vmax.f32 %v1487, 0.0
    %v1652 = vmax.f32 %v1489, 0.0
    %v1653 = vmax.f32 %v1236, 0.0
    %v1654 = vmax.f32 %v1238, 0.0
    %v1655 = vmax.f32 %v1493, 0.0
    %v1656 = vmax.f32 %v1495, 0.0
    %v1657 = vmax.f32 %v1242, 0.0
    %v1658 = vmax.f32 %v1244, 0.0
    %v1659 = vmax.f32 %v1499, 0.0
    %v1660 = vmax.f32 %v1501, 0.0
    %v1661 = vmax.f32 %v1248, 0.0
    %v1662 = vmax.f32 %v1250, 0.0
    %v1663 = vmax.f32 %v1505, 0.0
    %v1664 = vmax.f32 %v1507, 0.0
    %v1665 = vmax.f32 %v1254, 0.0
    %v1666 = vmax.f32 %v1256, 0.0
    %v1667 = vmax.f32 %v1511, 0.0
    %v1668 = vmax.f32 %v1513, 0.0
    %v1669 = vmax.f32 %v1260, 0.0
    %v1670 = vmax.f32 %v1262, 0.0
    %v1671 = vmax.f32 %v1517, 0.0
    %v1672 = vmax.f32 %v1519, 0.0
    %v1673 = vmax.f32 %v1266, 0.0
    %v1674 = vmax.f32 %v1268, 0.0
    %v1675 = vmax.f32 %v1523, 0.0
    %v1676 = vmax.f32 %v1525, 0.0
    %v1677 = vmax.f32 %v1272, 0.0
    %v1678 = vmax.f32 %v1274, 0.0
    %v1679 = vmax.f32 %v1529, 0.0
    %v1680 = vmax.f32 %v1531, 0.0
    %v1681 = vmax.f32 %v1278, 0.0
    %v1682 = vmax.f32 %v1280, 0.0
    %v1683 = vmax.f32 %v1535, 0.0
    %v1684 = vmax.f32 %v1537, 0.0
    %v1685 = vmax.f32 %v1284, 0.0
    %v1686 = vmax.f32 %v1286, 0.0
    %v1687 = vmax.f32 %v1541, 0.0
    %v1688 = vmax.f32 %v1543, 0.0
    %v1689 = vmax.f32 %v1290, 0.0
    %v1690 = vmax.f32 %v1292, 0.0
    %v1691 = vmax.f32 %v1547, 0.0
    %v1692 = vmax.f32 %v1549, 0.0
    %v1693 = vmax.f32 %v1296, 0.0
    %v1694 = vmax.f32 %v1298, 0.0
    %v1695 = vmax.f32 %v1553, 0.0
    %v1696 = vmax.f32 %v1555, 0.0
    %v1697 = vmax.f32 %v1302, 0.0
    %v1698 = vmax.f32 %v1304, 0.0
    %v1699 = vmax.f32 %v1559, 0.0
    %v1700 = vmax.f32 %v1561, 0.0
    %v1701 = vmax.f32 %v1308, 0.0
    %v1702 = vmax.f32 %v1310, 0.0
    %v1703 = vmax.f32 %v1565, 0.0
    %v1704 = vmax.f32 %v1567, 0.0
    %v1705 = vmax.f32 %v1314, 0.0
    %v1706 = vmax.f32 %v1316, 0.0
    %v1707 = vmax.f32 %v1571, 0.0
    %v1708 = vmax.f32 %v1573, 0.0
    %v1709 = vmax.f32 %v1320, 0.0
    %v1710 = vmax.f32 %v1322, 0.0
    %v1711 = vmax.f32 %v1577, 0.0
    %v1712 = vmax.f32 %v1579, 0.0
    %v1713 = vmax.f32 %v1326, 0.0
    %v1714 = vmax.f32 %v1328, 0.0
    %v1715 = vmax.f32 %v1583, 0.0
    %v1716 = vmax.f32 %v1585, 0.0
    %v1717 = vmax.f32 %v1332, 0.0
    %v1718 = vmax.f32 %v1334, 0.0
    %v1719 = vmax.f32 %v1589, 0.0
    %v1720 = vmax.f32 %v1591, 0.0
    %v1721 = vrot.slane %v1593, 4
    %v1722 = vmax.f32 %v1593, %v1721
    %v1723 = vrot.slane %v1722, 2
    %v1724 = vmax.f32 %v1722, %v1723
    %v1725 = vrot.slane %v1724, 1
    %v1726 = vmax.f32 %v1724, %v1725
    %v1727 = vrot.slane %v1594, 4
    %v1728 = vmax.f32 %v1594, %v1727
    %v1729 = vrot.slane %v1728, 2
    %v1730 = vmax.f32 %v1728, %v1729
    %v1731 = vrot.slane %v1730, 1
    %v1732 = vmax.f32 %v1730, %v1731
    %v1733 = vrot.slane %v1595, 4
    %v1734 = vmax.f32 %v1595, %v1733
    %v1735 = vrot.slane %v1734, 2
    %v1736 = vmax.f32 %v1734, %v1735
    %v1737 = vrot.slane %v1736, 1
    %v1738 = vmax.f32 %v1736, %v1737
    %v1739 = vrot.slane %v1596, 4
    %v1740 = vmax.f32 %v1596, %v1739
    %v1741 = vrot.slane %v1740, 2
    %v1742 = vmax.f32 %v1740, %v1741
    %v1743 = vrot.slane %v1742, 1
    %v1744 = vmax.f32 %v1742, %v1743
    %v1745 = vrot.slane %v1597, 4
    %v1746 = vmax.f32 %v1597, %v1745
    %v1747 = vrot.slane %v1746, 2
    %v1748 = vmax.f32 %v1746, %v1747
    %v1749 = vrot.slane %v1748, 1
    %v1750 = vmax.f32 %v1748, %v1749
    %v1751 = vrot.slane %v1598, 4
    %v1752 = vmax.f32 %v1598, %v1751
    %v1753 = vrot.slane %v1752, 2
    %v1754 = vmax.f32 %v1752, %v1753
    %v1755 = vrot.slane %v1754, 1
    %v1756 = vmax.f32 %v1754, %v1755
    %v1757 = vrot.slane %v1599, 4
    %v1758 = vmax.f32 %v1599, %v1757
    %v1759 = vrot.slane %v1758, 2
    %v1760 = vmax.f32 %v1758, %v1759
    %v1761 = vrot.slane %v1760, 1
    %v1762 = vmax.f32 %v1760, %v1761
    %v1763 = vrot.slane %v1600, 4
    %v1764 = vmax.f32 %v1600, %v1763
    %v1765 = vrot.slane %v1764, 2
    %v1766 = vmax.f32 %v1764, %v1765
    %v1767 = vrot.slane %v1766, 1
    %v1768 = vmax.f32 %v1766, %v1767
    %v1769 = vrot.slane %v1601, 4
    %v1770 = vmax.f32 %v1601, %v1769
    %v1771 = vrot.slane %v1770, 2
    %v1772 = vmax.f32 %v1770, %v1771
    %v1773 = vrot.slane %v1772, 1
    %v1774 = vmax.f32 %v1772, %v1773
    %v1775 = vrot.slane %v1602, 4
    %v1776 = vmax.f32 %v1602, %v1775
    %v1777 = vrot.slane %v1776, 2
    %v1778 = vmax.f32 %v1776, %v1777
    %v1779 = vrot.slane %v1778, 1
    %v1780 = vmax.f32 %v1778, %v1779
    %v1781 = vrot.slane %v1603, 4
    %v1782 = vmax.f32 %v1603, %v1781
    %v1783 = vrot.slane %v1782, 2
    %v1784 = vmax.f32 %v1782, %v1783
    %v1785 = vrot.slane %v1784, 1
    %v1786 = vmax.f32 %v1784, %v1785
    %v1787 = vrot.slane %v1604, 4
    %v1788 = vmax.f32 %v1604, %v1787
    %v1789 = vrot.slane %v1788, 2
    %v1790 = vmax.f32 %v1788, %v1789
    %v1791 = vrot.slane %v1790, 1
    %v1792 = vmax.f32 %v1790, %v1791
    %v1793 = vrot.slane %v1605, 4
    %v1794 = vmax.f32 %v1605, %v1793
    %v1795 = vrot.slane %v1794, 2
    %v1796 = vmax.f32 %v1794, %v1795
    %v1797 = vrot.slane %v1796, 1
    %v1798 = vmax.f32 %v1796, %v1797
    %v1799 = vrot.slane %v1606, 4
    %v1800 = vmax.f32 %v1606, %v1799
    %v1801 = vrot.slane %v1800, 2
    %v1802 = vmax.f32 %v1800, %v1801
    %v1803 = vrot.slane %v1802, 1
    %v1804 = vmax.f32 %v1802, %v1803
    %v1805 = vrot.slane %v1607, 4
    %v1806 = vmax.f32 %v1607, %v1805
    %v1807 = vrot.slane %v1806, 2
    %v1808 = vmax.f32 %v1806, %v1807
    %v1809 = vrot.slane %v1808, 1
    %v1810 = vmax.f32 %v1808, %v1809
    %v1811 = vrot.slane %v1608, 4
    %v1812 = vmax.f32 %v1608, %v1811
    %v1813 = vrot.slane %v1812, 2
    %v1814 = vmax.f32 %v1812, %v1813
    %v1815 = vrot.slane %v1814, 1
    %v1816 = vmax.f32 %v1814, %v1815
    %v1817 = vrot.slane %v1609, 4
    %v1818 = vmax.f32 %v1609, %v1817
    %v1819 = vrot.slane %v1818, 2
    %v1820 = vmax.f32 %v1818, %v1819
    %v1821 = vrot.slane %v1820, 1
    %v1822 = vmax.f32 %v1820, %v1821
    %v1823 = vrot.slane %v1610, 4
    %v1824 = vmax.f32 %v1610, %v1823
    %v1825 = vrot.slane %v1824, 2
    %v1826 = vmax.f32 %v1824, %v1825
    %v1827 = vrot.slane %v1826, 1
    %v1828 = vmax.f32 %v1826, %v1827
    %v1829 = vrot.slane %v1611, 4
    %v1830 = vmax.f32 %v1611, %v1829
    %v1831 = vrot.slane %v1830, 2
    %v1832 = vmax.f32 %v1830, %v1831
    %v1833 = vrot.slane %v1832, 1
    %v1834 = vmax.f32 %v1832, %v1833
    %v1835 = vrot.slane %v1612, 4
    %v1836 = vmax.f32 %v1612, %v1835
    %v1837 = vrot.slane %v1836, 2
    %v1838 = vmax.f32 %v1836, %v1837
    %v1839 = vrot.slane %v1838, 1
    %v1840 = vmax.f32 %v1838, %v1839
    %v1841 = vrot.slane %v1613, 4
    %v1842 = vmax.f32 %v1613, %v1841
    %v1843 = vrot.slane %v1842, 2
    %v1844 = vmax.f32 %v1842, %v1843
    %v1845 = vrot.slane %v1844, 1
    %v1846 = vmax.f32 %v1844, %v1845
    %v1847 = vrot.slane %v1614, 4
    %v1848 = vmax.f32 %v1614, %v1847
    %v1849 = vrot.slane %v1848, 2
    %v1850 = vmax.f32 %v1848, %v1849
    %v1851 = vrot.slane %v1850, 1
    %v1852 = vmax.f32 %v1850, %v1851
    %v1853 = vrot.slane %v1615, 4
    %v1854 = vmax.f32 %v1615, %v1853
    %v1855 = vrot.slane %v1854, 2
    %v1856 = vmax.f32 %v1854, %v1855
    %v1857 = vrot.slane %v1856, 1
    %v1858 = vmax.f32 %v1856, %v1857
    %v1859 = vrot.slane %v1616, 4
    %v1860 = vmax.f32 %v1616, %v1859
    %v1861 = vrot.slane %v1860, 2
    %v1862 = vmax.f32 %v1860, %v1861
    %v1863 = vrot.slane %v1862, 1
    %v1864 = vmax.f32 %v1862, %v1863
    %v1865 = vrot.slane %v1617, 4
    %v1866 = vmax.f32 %v1617, %v1865
    %v1867 = vrot.slane %v1866, 2
    %v1868 = vmax.f32 %v1866, %v1867
    %v1869 = vrot.slane %v1868, 1
    %v1870 = vmax.f32 %v1868, %v1869
    %v1871 = vrot.slane %v1618, 4
    %v1872 = vmax.f32 %v1618, %v1871
    %v1873 = vrot.slane %v1872, 2
    %v1874 = vmax.f32 %v1872, %v1873
    %v1875 = vrot.slane %v1874, 1
    %v1876 = vmax.f32 %v1874, %v1875
    %v1877 = vrot.slane %v1619, 4
    %v1878 = vmax.f32 %v1619, %v1877
    %v1879 = vrot.slane %v1878, 2
    %v1880 = vmax.f32 %v1878, %v1879
    %v1881 = vrot.slane %v1880, 1
    %v1882 = vmax.f32 %v1880, %v1881
    %v1883 = vrot.slane %v1620, 4
    %v1884 = vmax.f32 %v1620, %v1883
    %v1885 = vrot.slane %v1884, 2
    %v1886 = vmax.f32 %v1884, %v1885
    %v1887 = vrot.slane %v1886, 1
    %v1888 = vmax.f32 %v1886, %v1887
    %v1889 = vrot.slane %v1621, 4
    %v1890 = vmax.f32 %v1621, %v1889
    %v1891 = vrot.slane %v1890, 2
    %v1892 = vmax.f32 %v1890, %v1891
    %v1893 = vrot.slane %v1892, 1
    %v1894 = vmax.f32 %v1892, %v1893
    %v1895 = vrot.slane %v1622, 4
    %v1896 = vmax.f32 %v1622, %v1895
    %v1897 = vrot.slane %v1896, 2
    %v1898 = vmax.f32 %v1896, %v1897
    %v1899 = vrot.slane %v1898, 1
    %v1900 = vmax.f32 %v1898, %v1899
    %v1901 = vrot.slane %v1623, 4
    %v1902 = vmax.f32 %v1623, %v1901
    %v1903 = vrot.slane %v1902, 2
    %v1904 = vmax.f32 %v1902, %v1903
    %v1905 = vrot.slane %v1904, 1
    %v1906 = vmax.f32 %v1904, %v1905
    %v1907 = vrot.slane %v1624, 4
    %v1908 = vmax.f32 %v1624, %v1907
    %v1909 = vrot.slane %v1908, 2
    %v1910 = vmax.f32 %v1908, %v1909
    %v1911 = vrot.slane %v1910, 1
    %v1912 = vmax.f32 %v1910, %v1911
    %v1913 = vrot.slane %v1625, 4
    %v1914 = vmax.f32 %v1625, %v1913
    %v1915 = vrot.slane %v1914, 2
    %v1916 = vmax.f32 %v1914, %v1915
    %v1917 = vrot.slane %v1916, 1
    %v1918 = vmax.f32 %v1916, %v1917
    %v1919 = vrot.slane %v1626, 4
    %v1920 = vmax.f32 %v1626, %v1919
    %v1921 = vrot.slane %v1920, 2
    %v1922 = vmax.f32 %v1920, %v1921
    %v1923 = vrot.slane %v1922, 1
    %v1924 = vmax.f32 %v1922, %v1923
    %v1925 = vrot.slane %v1627, 4
    %v1926 = vmax.f32 %v1627, %v1925
    %v1927 = vrot.slane %v1926, 2
    %v1928 = vmax.f32 %v1926, %v1927
    %v1929 = vrot.slane %v1928, 1
    %v1930 = vmax.f32 %v1928, %v1929
    %v1931 = vrot.slane %v1628, 4
    %v1932 = vmax.f32 %v1628, %v1931
    %v1933 = vrot.slane %v1932, 2
    %v1934 = vmax.f32 %v1932, %v1933
    %v1935 = vrot.slane %v1934, 1
    %v1936 = vmax.f32 %v1934, %v1935
    %v1937 = vrot.slane %v1629, 4
    %v1938 = vmax.f32 %v1629, %v1937
    %v1939 = vrot.slane %v1938, 2
    %v1940 = vmax.f32 %v1938, %v1939
    %v1941 = vrot.slane %v1940, 1
    %v1942 = vmax.f32 %v1940, %v1941
    %v1943 = vrot.slane %v1630, 4
    %v1944 = vmax.f32 %v1630, %v1943
    %v1945 = vrot.slane %v1944, 2
    %v1946 = vmax.f32 %v1944, %v1945
    %v1947 = vrot.slane %v1946, 1
    %v1948 = vmax.f32 %v1946, %v1947
    %v1949 = vrot.slane %v1631, 4
    %v1950 = vmax.f32 %v1631, %v1949
    %v1951 = vrot.slane %v1950, 2
    %v1952 = vmax.f32 %v1950, %v1951
    %v1953 = vrot.slane %v1952, 1
    %v1954 = vmax.f32 %v1952, %v1953
    %v1955 = vrot.slane %v1632, 4
    %v1956 = vmax.f32 %v1632, %v1955
    %v1957 = vrot.slane %v1956, 2
    %v1958 = vmax.f32 %v1956, %v1957
    %v1959 = vrot.slane %v1958, 1
    %v1960 = vmax.f32 %v1958, %v1959
    %v1961 = vrot.slane %v1633, 4
    %v1962 = vmax.f32 %v1633, %v1961
    %v1963 = vrot.slane %v1962, 2
    %v1964 = vmax.f32 %v1962, %v1963
    %v1965 = vrot.slane %v1964, 1
    %v1966 = vmax.f32 %v1964, %v1965
    %v1967 = vrot.slane %v1634, 4
    %v1968 = vmax.f32 %v1634, %v1967
    %v1969 = vrot.slane %v1968, 2
    %v1970 = vmax.f32 %v1968, %v1969
    %v1971 = vrot.slane %v1970, 1
    %v1972 = vmax.f32 %v1970, %v1971
    %v1973 = vrot.slane %v1635, 4
    %v1974 = vmax.f32 %v1635, %v1973
    %v1975 = vrot.slane %v1974, 2
    %v1976 = vmax.f32 %v1974, %v1975
    %v1977 = vrot.slane %v1976, 1
    %v1978 = vmax.f32 %v1976, %v1977
    %v1979 = vrot.slane %v1636, 4
    %v1980 = vmax.f32 %v1636, %v1979
    %v1981 = vrot.slane %v1980, 2
    %v1982 = vmax.f32 %v1980, %v1981
    %v1983 = vrot.slane %v1982, 1
    %v1984 = vmax.f32 %v1982, %v1983
    %v1985 = vrot.slane %v1637, 4
    %v1986 = vmax.f32 %v1637, %v1985
    %v1987 = vrot.slane %v1986, 2
    %v1988 = vmax.f32 %v1986, %v1987
    %v1989 = vrot.slane %v1988, 1
    %v1990 = vmax.f32 %v1988, %v1989
    %v1991 = vrot.slane %v1638, 4
    %v1992 = vmax.f32 %v1638, %v1991
    %v1993 = vrot.slane %v1992, 2
    %v1994 = vmax.f32 %v1992, %v1993
    %v1995 = vrot.slane %v1994, 1
    %v1996 = vmax.f32 %v1994, %v1995
    %v1997 = vrot.slane %v1639, 4
    %v1998 = vmax.f32 %v1639, %v1997
    %v1999 = vrot.slane %v1998, 2
    %v2000 = vmax.f32 %v1998, %v1999
    %v2001 = vrot.slane %v2000, 1
    %v2002 = vmax.f32 %v2000, %v2001
    %v2003 = vrot.slane %v1640, 4
    %v2004 = vmax.f32 %v1640, %v2003
    %v2005 = vrot.slane %v2004, 2
    %v2006 = vmax.f32 %v2004, %v2005
    %v2007 = vrot.slane %v2006, 1
    %v2008 = vmax.f32 %v2006, %v2007
    %v2009 = vrot.slane %v1641, 4
    %v2010 = vmax.f32 %v1641, %v2009
    %v2011 = vrot.slane %v2010, 2
    %v2012 = vmax.f32 %v2010, %v2011
    %v2013 = vrot.slane %v2012, 1
    %v2014 = vmax.f32 %v2012, %v2013
    %v2015 = vrot.slane %v1642, 4
    %v2016 = vmax.f32 %v1642, %v2015
    %v2017 = vrot.slane %v2016, 2
    %v2018 = vmax.f32 %v2016, %v2017
    %v2019 = vrot.slane %v2018, 1
    %v2020 = vmax.f32 %v2018, %v2019
    %v2021 = vrot.slane %v1643, 4
    %v2022 = vmax.f32 %v1643, %v2021
    %v2023 = vrot.slane %v2022, 2
    %v2024 = vmax.f32 %v2022, %v2023
    %v2025 = vrot.slane %v2024, 1
    %v2026 = vmax.f32 %v2024, %v2025
    %v2027 = vrot.slane %v1644, 4
    %v2028 = vmax.f32 %v1644, %v2027
    %v2029 = vrot.slane %v2028, 2
    %v2030 = vmax.f32 %v2028, %v2029
    %v2031 = vrot.slane %v2030, 1
    %v2032 = vmax.f32 %v2030, %v2031
    %v2033 = vrot.slane %v1645, 4
    %v2034 = vmax.f32 %v1645, %v2033
    %v2035 = vrot.slane %v2034, 2
    %v2036 = vmax.f32 %v2034, %v2035
    %v2037 = vrot.slane %v2036, 1
    %v2038 = vmax.f32 %v2036, %v2037
    %v2039 = vrot.slane %v1646, 4
    %v2040 = vmax.f32 %v1646, %v2039
    %v2041 = vrot.slane %v2040, 2
    %v2042 = vmax.f32 %v2040, %v2041
    %v2043 = vrot.slane %v2042, 1
    %v2044 = vmax.f32 %v2042, %v2043
    %v2045 = vrot.slane %v1647, 4
    %v2046 = vmax.f32 %v1647, %v2045
    %v2047 = vrot.slane %v2046, 2
    %v2048 = vmax.f32 %v2046, %v2047
    %v2049 = vrot.slane %v2048, 1
    %v2050 = vmax.f32 %v2048, %v2049
    %v2051 = vrot.slane %v1648, 4
    %v2052 = vmax.f32 %v1648, %v2051
    %v2053 = vrot.slane %v2052, 2
    %v2054 = vmax.f32 %v2052, %v2053
    %v2055 = vrot.slane %v2054, 1
    %v2056 = vmax.f32 %v2054, %v2055
    %v2057 = vrot.slane %v1649, 4
    %v2058 = vmax.f32 %v1649, %v2057
    %v2059 = vrot.slane %v2058, 2
    %v2060 = vmax.f32 %v2058, %v2059
    %v2061 = vrot.slane %v2060, 1
    %v2062 = vmax.f32 %v2060, %v2061
    %v2063 = vrot.slane %v1650, 4
    %v2064 = vmax.f32 %v1650, %v2063
    %v2065 = vrot.slane %v2064, 2
    %v2066 = vmax.f32 %v2064, %v2065
    %v2067 = vrot.slane %v2066, 1
    %v2068 = vmax.f32 %v2066, %v2067
    %v2069 = vrot.slane %v1651, 4
    %v2070 = vmax.f32 %v1651, %v2069
    %v2071 = vrot.slane %v2070, 2
    %v2072 = vmax.f32 %v2070, %v2071
    %v2073 = vrot.slane %v2072, 1
    %v2074 = vmax.f32 %v2072, %v2073
    %v2075 = vrot.slane %v1652, 4
    %v2076 = vmax.f32 %v1652, %v2075
    %v2077 = vrot.slane %v2076, 2
    %v2078 = vmax.f32 %v2076, %v2077
    %v2079 = vrot.slane %v2078, 1
    %v2080 = vmax.f32 %v2078, %v2079
    %v2081 = vrot.slane %v1653, 4
    %v2082 = vmax.f32 %v1653, %v2081
    %v2083 = vrot.slane %v2082, 2
    %v2084 = vmax.f32 %v2082, %v2083
    %v2085 = vrot.slane %v2084, 1
    %v2086 = vmax.f32 %v2084, %v2085
    %v2087 = vrot.slane %v1654, 4
    %v2088 = vmax.f32 %v1654, %v2087
    %v2089 = vrot.slane %v2088, 2
    %v2090 = vmax.f32 %v2088, %v2089
    %v2091 = vrot.slane %v2090, 1
    %v2092 = vmax.f32 %v2090, %v2091
    %v2093 = vrot.slane %v1655, 4
    %v2094 = vmax.f32 %v1655, %v2093
    %v2095 = vrot.slane %v2094, 2
    %v2096 = vmax.f32 %v2094, %v2095
    %v2097 = vrot.slane %v2096, 1
    %v2098 = vmax.f32 %v2096, %v2097
    %v2099 = vrot.slane %v1656, 4
    %v2100 = vmax.f32 %v1656, %v2099
    %v2101 = vrot.slane %v2100, 2
    %v2102 = vmax.f32 %v2100, %v2101
    %v2103 = vrot.slane %v2102, 1
    %v2104 = vmax.f32 %v2102, %v2103
    %v2105 = vrot.slane %v1657, 4
    %v2106 = vmax.f32 %v1657, %v2105
    %v2107 = vrot.slane %v2106, 2
    %v2108 = vmax.f32 %v2106, %v2107
    %v2109 = vrot.slane %v2108, 1
    %v2110 = vmax.f32 %v2108, %v2109
    %v2111 = vrot.slane %v1658, 4
    %v2112 = vmax.f32 %v1658, %v2111
    %v2113 = vrot.slane %v2112, 2
    %v2114 = vmax.f32 %v2112, %v2113
    %v2115 = vrot.slane %v2114, 1
    %v2116 = vmax.f32 %v2114, %v2115
    %v2117 = vrot.slane %v1659, 4
    %v2118 = vmax.f32 %v1659, %v2117
    %v2119 = vrot.slane %v2118, 2
    %v2120 = vmax.f32 %v2118, %v2119
    %v2121 = vrot.slane %v2120, 1
    %v2122 = vmax.f32 %v2120, %v2121
    %v2123 = vrot.slane %v1660, 4
    %v2124 = vmax.f32 %v1660, %v2123
    %v2125 = vrot.slane %v2124, 2
    %v2126 = vmax.f32 %v2124, %v2125
    %v2127 = vrot.slane %v2126, 1
    %v2128 = vmax.f32 %v2126, %v2127
    %v2129 = vrot.slane %v1661, 4
    %v2130 = vmax.f32 %v1661, %v2129
    %v2131 = vrot.slane %v2130, 2
    %v2132 = vmax.f32 %v2130, %v2131
    %v2133 = vrot.slane %v2132, 1
    %v2134 = vmax.f32 %v2132, %v2133
    %v2135 = vrot.slane %v1662, 4
    %v2136 = vmax.f32 %v1662, %v2135
    %v2137 = vrot.slane %v2136, 2
    %v2138 = vmax.f32 %v2136, %v2137
    %v2139 = vrot.slane %v2138, 1
    %v2140 = vmax.f32 %v2138, %v2139
    %v2141 = vrot.slane %v1663, 4
    %v2142 = vmax.f32 %v1663, %v2141
    %v2143 = vrot.slane %v2142, 2
    %v2144 = vmax.f32 %v2142, %v2143
    %v2145 = vrot.slane %v2144, 1
    %v2146 = vmax.f32 %v2144, %v2145
    %v2147 = vrot.slane %v1664, 4
    %v2148 = vmax.f32 %v1664, %v2147
    %v2149 = vrot.slane %v2148, 2
    %v2150 = vmax.f32 %v2148, %v2149
    %v2151 = vrot.slane %v2150, 1
    %v2152 = vmax.f32 %v2150, %v2151
    %v2153 = vrot.slane %v1665, 4
    %v2154 = vmax.f32 %v1665, %v2153
    %v2155 = vrot.slane %v2154, 2
    %v2156 = vmax.f32 %v2154, %v2155
    %v2157 = vrot.slane %v2156, 1
    %v2158 = vmax.f32 %v2156, %v2157
    %v2159 = vrot.slane %v1666, 4
    %v2160 = vmax.f32 %v1666, %v2159
    %v2161 = vrot.slane %v2160, 2
    %v2162 = vmax.f32 %v2160, %v2161
    %v2163 = vrot.slane %v2162, 1
    %v2164 = vmax.f32 %v2162, %v2163
    %v2165 = vrot.slane %v1667, 4
    %v2166 = vmax.f32 %v1667, %v2165
    %v2167 = vrot.slane %v2166, 2
    %v2168 = vmax.f32 %v2166, %v2167
    %v2169 = vrot.slane %v2168, 1
    %v2170 = vmax.f32 %v2168, %v2169
    %v2171 = vrot.slane %v1668, 4
    %v2172 = vmax.f32 %v1668, %v2171
    %v2173 = vrot.slane %v2172, 2
    %v2174 = vmax.f32 %v2172, %v2173
    %v2175 = vrot.slane %v2174, 1
    %v2176 = vmax.f32 %v2174, %v2175
    %v2177 = vrot.slane %v1669, 4
    %v2178 = vmax.f32 %v1669, %v2177
    %v2179 = vrot.slane %v2178, 2
    %v2180 = vmax.f32 %v2178, %v2179
    %v2181 = vrot.slane %v2180, 1
    %v2182 = vmax.f32 %v2180, %v2181
    %v2183 = vrot.slane %v1670, 4
    %v2184 = vmax.f32 %v1670, %v2183
    %v2185 = vrot.slane %v2184, 2
    %v2186 = vmax.f32 %v2184, %v2185
    %v2187 = vrot.slane %v2186, 1
    %v2188 = vmax.f32 %v2186, %v2187
    %v2189 = vrot.slane %v1671, 4
    %v2190 = vmax.f32 %v1671, %v2189
    %v2191 = vrot.slane %v2190, 2
    %v2192 = vmax.f32 %v2190, %v2191
    %v2193 = vrot.slane %v2192, 1
    %v2194 = vmax.f32 %v2192, %v2193
    %v2195 = vrot.slane %v1672, 4
    %v2196 = vmax.f32 %v1672, %v2195
    %v2197 = vrot.slane %v2196, 2
    %v2198 = vmax.f32 %v2196, %v2197
    %v2199 = vrot.slane %v2198, 1
    %v2200 = vmax.f32 %v2198, %v2199
    %v2201 = vrot.slane %v1673, 4
    %v2202 = vmax.f32 %v1673, %v2201
    %v2203 = vrot.slane %v2202, 2
    %v2204 = vmax.f32 %v2202, %v2203
    %v2205 = vrot.slane %v2204, 1
    %v2206 = vmax.f32 %v2204, %v2205
    %v2207 = vrot.slane %v1674, 4
    %v2208 = vmax.f32 %v1674, %v2207
    %v2209 = vrot.slane %v2208, 2
    %v2210 = vmax.f32 %v2208, %v2209
    %v2211 = vrot.slane %v2210, 1
    %v2212 = vmax.f32 %v2210, %v2211
    %v2213 = vrot.slane %v1675, 4
    %v2214 = vmax.f32 %v1675, %v2213
    %v2215 = vrot.slane %v2214, 2
    %v2216 = vmax.f32 %v2214, %v2215
    %v2217 = vrot.slane %v2216, 1
    %v2218 = vmax.f32 %v2216, %v2217
    %v2219 = vrot.slane %v1676, 4
    %v2220 = vmax.f32 %v1676, %v2219
    %v2221 = vrot.slane %v2220, 2
    %v2222 = vmax.f32 %v2220, %v2221
    %v2223 = vrot.slane %v2222, 1
    %v2224 = vmax.f32 %v2222, %v2223
    %v2225 = vrot.slane %v1677, 4
    %v2226 = vmax.f32 %v1677, %v2225
    %v2227 = vrot.slane %v2226, 2
    %v2228 = vmax.f32 %v2226, %v2227
    %v2229 = vrot.slane %v2228, 1
    %v2230 = vmax.f32 %v2228, %v2229
    %v2231 = vrot.slane %v1678, 4
    %v2232 = vmax.f32 %v1678, %v2231
    %v2233 = vrot.slane %v2232, 2
    %v2234 = vmax.f32 %v2232, %v2233
    %v2235 = vrot.slane %v2234, 1
    %v2236 = vmax.f32 %v2234, %v2235
    %v2237 = vrot.slane %v1679, 4
    %v2238 = vmax.f32 %v1679, %v2237
    %v2239 = vrot.slane %v2238, 2
    %v2240 = vmax.f32 %v2238, %v2239
    %v2241 = vrot.slane %v2240, 1
    %v2242 = vmax.f32 %v2240, %v2241
    %v2243 = vrot.slane %v1680, 4
    %v2244 = vmax.f32 %v1680, %v2243
    %v2245 = vrot.slane %v2244, 2
    %v2246 = vmax.f32 %v2244, %v2245
    %v2247 = vrot.slane %v2246, 1
    %v2248 = vmax.f32 %v2246, %v2247
    %v2249 = vrot.slane %v1681, 4
    %v2250 = vmax.f32 %v1681, %v2249
    %v2251 = vrot.slane %v2250, 2
    %v2252 = vmax.f32 %v2250, %v2251
    %v2253 = vrot.slane %v2252, 1
    %v2254 = vmax.f32 %v2252, %v2253
    %v2255 = vrot.slane %v1682, 4
    %v2256 = vmax.f32 %v1682, %v2255
    %v2257 = vrot.slane %v2256, 2
    %v2258 = vmax.f32 %v2256, %v2257
    %v2259 = vrot.slane %v2258, 1
    %v2260 = vmax.f32 %v2258, %v2259
    %v2261 = vrot.slane %v1683, 4
    %v2262 = vmax.f32 %v1683, %v2261
    %v2263 = vrot.slane %v2262, 2
    %v2264 = vmax.f32 %v2262, %v2263
    %v2265 = vrot.slane %v2264, 1
    %v2266 = vmax.f32 %v2264, %v2265
    %v2267 = vrot.slane %v1684, 4
    %v2268 = vmax.f32 %v1684, %v2267
    %v2269 = vrot.slane %v2268, 2
    %v2270 = vmax.f32 %v2268, %v2269
    %v2271 = vrot.slane %v2270, 1
    %v2272 = vmax.f32 %v2270, %v2271
    %v2273 = vrot.slane %v1685, 4
    %v2274 = vmax.f32 %v1685, %v2273
    %v2275 = vrot.slane %v2274, 2
    %v2276 = vmax.f32 %v2274, %v2275
    %v2277 = vrot.slane %v2276, 1
    %v2278 = vmax.f32 %v2276, %v2277
    %v2279 = vrot.slane %v1686, 4
    %v2280 = vmax.f32 %v1686, %v2279
    %v2281 = vrot.slane %v2280, 2
    %v2282 = vmax.f32 %v2280, %v2281
    %v2283 = vrot.slane %v2282, 1
    %v2284 = vmax.f32 %v2282, %v2283
    %v2285 = vrot.slane %v1687, 4
    %v2286 = vmax.f32 %v1687, %v2285
    %v2287 = vrot.slane %v2286, 2
    %v2288 = vmax.f32 %v2286, %v2287
    %v2289 = vrot.slane %v2288, 1
    %v2290 = vmax.f32 %v2288, %v2289
    %v2291 = vrot.slane %v1688, 4
    %v2292 = vmax.f32 %v1688, %v2291
    %v2293 = vrot.slane %v2292, 2
    %v2294 = vmax.f32 %v2292, %v2293
    %v2295 = vrot.slane %v2294, 1
    %v2296 = vmax.f32 %v2294, %v2295
    %v2297 = vrot.slane %v1689, 4
    %v2298 = vmax.f32 %v1689, %v2297
    %v2299 = vrot.slane %v2298, 2
    %v2300 = vmax.f32 %v2298, %v2299
    %v2301 = vrot.slane %v2300, 1
    %v2302 = vmax.f32 %v2300, %v2301
    %v2303 = vrot.slane %v1690, 4
    %v2304 = vmax.f32 %v1690, %v2303
    %v2305 = vrot.slane %v2304, 2
    %v2306 = vmax.f32 %v2304, %v2305
    %v2307 = vrot.slane %v2306, 1
    %v2308 = vmax.f32 %v2306, %v2307
    %v2309 = vrot.slane %v1691, 4
    %v2310 = vmax.f32 %v1691, %v2309
    %v2311 = vrot.slane %v2310, 2
    %v2312 = vmax.f32 %v2310, %v2311
    %v2313 = vrot.slane %v2312, 1
    %v2314 = vmax.f32 %v2312, %v2313
    %v2315 = vrot.slane %v1692, 4
    %v2316 = vmax.f32 %v1692, %v2315
    %v2317 = vrot.slane %v2316, 2
    %v2318 = vmax.f32 %v2316, %v2317
    %v2319 = vrot.slane %v2318, 1
    %v2320 = vmax.f32 %v2318, %v2319
    %v2321 = vrot.slane %v1693, 4
    %v2322 = vmax.f32 %v1693, %v2321
    %v2323 = vrot.slane %v2322, 2
    %v2324 = vmax.f32 %v2322, %v2323
    %v2325 = vrot.slane %v2324, 1
    %v2326 = vmax.f32 %v2324, %v2325
    %v2327 = vrot.slane %v1694, 4
    %v2328 = vmax.f32 %v1694, %v2327
    %v2329 = vrot.slane %v2328, 2
    %v2330 = vmax.f32 %v2328, %v2329
    %v2331 = vrot.slane %v2330, 1
    %v2332 = vmax.f32 %v2330, %v2331
    %v2333 = vrot.slane %v1695, 4
    %v2334 = vmax.f32 %v1695, %v2333
    %v2335 = vrot.slane %v2334, 2
    %v2336 = vmax.f32 %v2334, %v2335
    %v2337 = vrot.slane %v2336, 1
    %v2338 = vmax.f32 %v2336, %v2337
    %v2339 = vrot.slane %v1696, 4
    %v2340 = vmax.f32 %v1696, %v2339
    %v2341 = vrot.slane %v2340, 2
    %v2342 = vmax.f32 %v2340, %v2341
    %v2343 = vrot.slane %v2342, 1
    %v2344 = vmax.f32 %v2342, %v2343
    %v2345 = vrot.slane %v1697, 4
    %v2346 = vmax.f32 %v1697, %v2345
    %v2347 = vrot.slane %v2346, 2
    %v2348 = vmax.f32 %v2346, %v2347
    %v2349 = vrot.slane %v2348, 1
    %v2350 = vmax.f32 %v2348, %v2349
    %v2351 = vrot.slane %v1698, 4
    %v2352 = vmax.f32 %v1698, %v2351
    %v2353 = vrot.slane %v2352, 2
    %v2354 = vmax.f32 %v2352, %v2353
    %v2355 = vrot.slane %v2354, 1
    %v2356 = vmax.f32 %v2354, %v2355
    %v2357 = vrot.slane %v1699, 4
    %v2358 = vmax.f32 %v1699, %v2357
    %v2359 = vrot.slane %v2358, 2
    %v2360 = vmax.f32 %v2358, %v2359
    %v2361 = vrot.slane %v2360, 1
    %v2362 = vmax.f32 %v2360, %v2361
    %v2363 = vrot.slane %v1700, 4
    %v2364 = vmax.f32 %v1700, %v2363
    %v2365 = vrot.slane %v2364, 2
    %v2366 = vmax.f32 %v2364, %v2365
    %v2367 = vrot.slane %v2366, 1
    %v2368 = vmax.f32 %v2366, %v2367
    %v2369 = vrot.slane %v1701, 4
    %v2370 = vmax.f32 %v1701, %v2369
    %v2371 = vrot.slane %v2370, 2
    %v2372 = vmax.f32 %v2370, %v2371
    %v2373 = vrot.slane %v2372, 1
    %v2374 = vmax.f32 %v2372, %v2373
    %v2375 = vrot.slane %v1702, 4
    %v2376 = vmax.f32 %v1702, %v2375
    %v2377 = vrot.slane %v2376, 2
    %v2378 = vmax.f32 %v2376, %v2377
    %v2379 = vrot.slane %v2378, 1
    %v2380 = vmax.f32 %v2378, %v2379
    %v2381 = vrot.slane %v1703, 4
    %v2382 = vmax.f32 %v1703, %v2381
    %v2383 = vrot.slane %v2382, 2
    %v2384 = vmax.f32 %v2382, %v2383
    %v2385 = vrot.slane %v2384, 1
    %v2386 = vmax.f32 %v2384, %v2385
    %v2387 = vrot.slane %v1704, 4
    %v2388 = vmax.f32 %v1704, %v2387
    %v2389 = vrot.slane %v2388, 2
    %v2390 = vmax.f32 %v2388, %v2389
    %v2391 = vrot.slane %v2390, 1
    %v2392 = vmax.f32 %v2390, %v2391
    %v2393 = vrot.slane %v1705, 4
    %v2394 = vmax.f32 %v1705, %v2393
    %v2395 = vrot.slane %v2394, 2
    %v2396 = vmax.f32 %v2394, %v2395
    %v2397 = vrot.slane %v2396, 1
    %v2398 = vmax.f32 %v2396, %v2397
    %v2399 = vrot.slane %v1706, 4
    %v2400 = vmax.f32 %v1706, %v2399
    %v2401 = vrot.slane %v2400, 2
    %v2402 = vmax.f32 %v2400, %v2401
    %v2403 = vrot.slane %v2402, 1
    %v2404 = vmax.f32 %v2402, %v2403
    %v2405 = vrot.slane %v1707, 4
    %v2406 = vmax.f32 %v1707, %v2405
    %v2407 = vrot.slane %v2406, 2
    %v2408 = vmax.f32 %v2406, %v2407
    %v2409 = vrot.slane %v2408, 1
    %v2410 = vmax.f32 %v2408, %v2409
    %v2411 = vrot.slane %v1708, 4
    %v2412 = vmax.f32 %v1708, %v2411
    %v2413 = vrot.slane %v2412, 2
    %v2414 = vmax.f32 %v2412, %v2413
    %v2415 = vrot.slane %v2414, 1
    %v2416 = vmax.f32 %v2414, %v2415
    %v2417 = vrot.slane %v1709, 4
    %v2418 = vmax.f32 %v1709, %v2417
    %v2419 = vrot.slane %v2418, 2
    %v2420 = vmax.f32 %v2418, %v2419
    %v2421 = vrot.slane %v2420, 1
    %v2422 = vmax.f32 %v2420, %v2421
    %v2423 = vrot.slane %v1710, 4
    %v2424 = vmax.f32 %v1710, %v2423
    %v2425 = vrot.slane %v2424, 2
    %v2426 = vmax.f32 %v2424, %v2425
    %v2427 = vrot.slane %v2426, 1
    %v2428 = vmax.f32 %v2426, %v2427
    %v2429 = vrot.slane %v1711, 4
    %v2430 = vmax.f32 %v1711, %v2429
    %v2431 = vrot.slane %v2430, 2
    %v2432 = vmax.f32 %v2430, %v2431
    %v2433 = vrot.slane %v2432, 1
    %v2434 = vmax.f32 %v2432, %v2433
    %v2435 = vrot.slane %v1712, 4
    %v2436 = vmax.f32 %v1712, %v2435
    %v2437 = vrot.slane %v2436, 2
    %v2438 = vmax.f32 %v2436, %v2437
    %v2439 = vrot.slane %v2438, 1
    %v2440 = vmax.f32 %v2438, %v2439
    %v2441 = vrot.slane %v1713, 4
    %v2442 = vmax.f32 %v1713, %v2441
    %v2443 = vrot.slane %v2442, 2
    %v2444 = vmax.f32 %v2442, %v2443
    %v2445 = vrot.slane %v2444, 1
    %v2446 = vmax.f32 %v2444, %v2445
    %v2447 = vrot.slane %v1714, 4
    %v2448 = vmax.f32 %v1714, %v2447
    %v2449 = vrot.slane %v2448, 2
    %v2450 = vmax.f32 %v2448, %v2449
    %v2451 = vrot.slane %v2450, 1
    %v2452 = vmax.f32 %v2450, %v2451
    %v2453 = vrot.slane %v1715, 4
    %v2454 = vmax.f32 %v1715, %v2453
    %v2455 = vrot.slane %v2454, 2
    %v2456 = vmax.f32 %v2454, %v2455
    %v2457 = vrot.slane %v2456, 1
    %v2458 = vmax.f32 %v2456, %v2457
    %v2459 = vrot.slane %v1716, 4
    %v2460 = vmax.f32 %v1716, %v2459
    %v2461 = vrot.slane %v2460, 2
    %v2462 = vmax.f32 %v2460, %v2461
    %v2463 = vrot.slane %v2462, 1
    %v2464 = vmax.f32 %v2462, %v2463
    %v2465 = vrot.slane %v1717, 4
    %v2466 = vmax.f32 %v1717, %v2465
    %v2467 = vrot.slane %v2466, 2
    %v2468 = vmax.f32 %v2466, %v2467
    %v2469 = vrot.slane %v2468, 1
    %v2470 = vmax.f32 %v2468, %v2469
    %v2471 = vrot.slane %v1718, 4
    %v2472 = vmax.f32 %v1718, %v2471
    %v2473 = vrot.slane %v2472, 2
    %v2474 = vmax.f32 %v2472, %v2473
    %v2475 = vrot.slane %v2474, 1
    %v2476 = vmax.f32 %v2474, %v2475
    %v2477 = vrot.slane %v1719, 4
    %v2478 = vmax.f32 %v1719, %v2477
    %v2479 = vrot.slane %v2478, 2
    %v2480 = vmax.f32 %v2478, %v2479
    %v2481 = vrot.slane %v2480, 1
    %v2482 = vmax.f32 %v2480, %v2481
    %v2483 = vrot.slane %v1720, 4
    %v2484 = vmax.f32 %v1720, %v2483
    %v2485 = vrot.slane %v2484, 2
    %v2486 = vmax.f32 %v2484, %v2485
    %v2487 = vrot.slane %v2486, 1
    %v2488 = vmax.f32 %v2486, %v2487
    %2521 = vrot.lane.b32.xlu0 %v1726, 64
    %v2522 = vpop.permute.xlu0 %2521
    %2523 = vrot.lane.b32.xlu0 %v1750, 64
    %v2524 = vpop.permute.xlu0 %2523
    %2525 = vrot.lane.b32.xlu0 %v1774, 64
    %v2526 = vpop.permute.xlu0 %2525
    %2527 = vrot.lane.b32.xlu0 %v1798, 64
    %v2528 = vpop.permute.xlu0 %2527
    %2529 = vrot.lane.b32.xlu0 %v1822, 64
    %v2530 = vpop.permute.xlu0 %2529
    %2531 = vrot.lane.b32.xlu0 %v1846, 64
    %v2532 = vpop.permute.xlu0 %2531
    %2533 = vrot.lane.b32.xlu0 %v1870, 64
    %v2534 = vpop.permute.xlu0 %2533
    %2535 = vrot.lane.b32.xlu0 %v1894, 64
    %v2536 = vpop.permute.xlu0 %2535
    %2537 = vrot.lane.b32.xlu0 %v1918, 64
    %v2538 = vpop.permute.xlu0 %2537
    %2539 = vrot.lane.b32.xlu0 %v1942, 64
    %v2540 = vpop.permute.xlu0 %2539
    %2541 = vrot.lane.b32.xlu0 %v1966, 64
    %v2542 = vpop.permute.xlu0 %2541
    %2543 = vrot.lane.b32.xlu0 %v1990, 64
    %v2544 = vpop.permute.xlu0 %2543
    %2545 = vrot.lane.b32.xlu0 %v2014, 64
    %v2546 = vpop.permute.xlu0 %2545
    %2547 = vrot.lane.b32.xlu0 %v2038, 64
    %v2548 = vpop.permute.xlu0 %2547
    %2549 = vrot.lane.b32.xlu0 %v2062, 64
    %v2550 = vpop.permute.xlu0 %2549
    %2551 = vrot.lane.b32.xlu0 %v2086, 64
    %v2552 = vpop.permute.xlu0 %2551
    %2553 = vrot.lane.b32.xlu0 %v2110, 64
    %v2554 = vpop.permute.xlu0 %2553
    %2555 = vrot.lane.b32.xlu0 %v2134, 64
    %v2556 = vpop.permute.xlu0 %2555
    %2557 = vrot.lane.b32.xlu0 %v2158, 64
    %v2558 = vpop.permute.xlu0 %2557
    %2559 = vrot.lane.b32.xlu0 %v2182, 64
    %v2560 = vpop.permute.xlu0 %2559
    %2561 = vrot.lane.b32.xlu0 %v2206, 64
    %v2562 = vpop.permute.xlu0 %2561
    %2563 = vrot.lane.b32.xlu0 %v2230, 64
    %v2564 = vpop.permute.xlu0 %2563
    %2565 = vrot.lane.b32.xlu0 %v2254, 64
    %v2566 = vpop.permute.xlu0 %2565
    %2567 = vrot.lane.b32.xlu0 %v2278, 64
    %v2568 = vpop.permute.xlu0 %2567
    %2569 = vrot.lane.b32.xlu0 %v2302, 64
    %v2570 = vpop.permute.xlu0 %2569
    %2571 = vrot.lane.b32.xlu0 %v2326, 64
    %v2572 = vpop.permute.xlu0 %2571
    %2573 = vrot.lane.b32.xlu0 %v2350, 64
    %v2574 = vpop.permute.xlu0 %2573
    %2575 = vrot.lane.b32.xlu0 %v2374, 64
    %v2576 = vpop.permute.xlu0 %2575
    %2577 = vrot.lane.b32.xlu0 %v2398, 64
    %v2578 = vpop.permute.xlu0 %2577
    %2579 = vrot.lane.b32.xlu0 %v2422, 64
    %v2580 = vpop.permute.xlu0 %2579
    %2581 = vrot.lane.b32.xlu0 %v2446, 64
    %v2582 = vpop.permute.xlu0 %2581
    %2583 = vrot.lane.b32.xlu0 %v2470, 64
    %v2584 = vpop.permute.xlu0 %2583
    %2619 = vrot.lane.b32.xlu0 %v1732, 64
    %v2620 = vpop.permute.xlu0 %2619
    %2621 = vrot.lane.b32.xlu0 %v1756, 64
    %v2622 = vpop.permute.xlu0 %2621
    %2623 = vrot.lane.b32.xlu0 %v1780, 64
    %v2624 = vpop.permute.xlu0 %2623
    %2625 = vrot.lane.b32.xlu0 %v1804, 64
    %v2626 = vpop.permute.xlu0 %2625
    %2627 = vrot.lane.b32.xlu0 %v1828, 64
    %v2628 = vpop.permute.xlu0 %2627
    %2629 = vrot.lane.b32.xlu0 %v1852, 64
    %v2630 = vpop.permute.xlu0 %2629
    %2631 = vrot.lane.b32.xlu0 %v1876, 64
    %v2632 = vpop.permute.xlu0 %2631
    %2633 = vrot.lane.b32.xlu0 %v1900, 64
    %v2634 = vpop.permute.xlu0 %2633
    %2635 = vrot.lane.b32.xlu0 %v1924, 64
    %v2636 = vpop.permute.xlu0 %2635
    %2637 = vrot.lane.b32.xlu0 %v1948, 64
    %v2638 = vpop.permute.xlu0 %2637
    %2639 = vrot.lane.b32.xlu0 %v1972, 64
    %v2640 = vpop.permute.xlu0 %2639
    %2641 = vrot.lane.b32.xlu0 %v1996, 64
    %v2642 = vpop.permute.xlu0 %2641
    %2643 = vrot.lane.b32.xlu0 %v2020, 64
    %v2644 = vpop.permute.xlu0 %2643
    %2645 = vrot.lane.b32.xlu0 %v2044, 64
    %v2646 = vpop.permute.xlu0 %2645
    %2647 = vrot.lane.b32.xlu0 %v2068, 64
    %v2648 = vpop.permute.xlu0 %2647
    %2649 = vrot.lane.b32.xlu0 %v2092, 64
    %v2650 = vpop.permute.xlu0 %2649
    %2651 = vrot.lane.b32.xlu0 %v2116, 64
    %v2652 = vpop.permute.xlu0 %2651
    %2653 = vrot.lane.b32.xlu0 %v2140, 64
    %v2654 = vpop.permute.xlu0 %2653
    %2655 = vrot.lane.b32.xlu0 %v2164, 64
    %v2656 = vpop.permute.xlu0 %2655
    %2657 = vrot.lane.b32.xlu0 %v2188, 64
    %v2658 = vpop.permute.xlu0 %2657
    %2659 = vrot.lane.b32.xlu0 %v2212, 64
    %v2660 = vpop.permute.xlu0 %2659
    %2661 = vrot.lane.b32.xlu0 %v2236, 64
    %v2662 = vpop.permute.xlu0 %2661
    %2663 = vrot.lane.b32.xlu0 %v2260, 64
    %v2664 = vpop.permute.xlu0 %2663
    %2665 = vrot.lane.b32.xlu0 %v2284, 64
    %v2666 = vpop.permute.xlu0 %2665
    %2667 = vrot.lane.b32.xlu0 %v2308, 64
    %v2668 = vpop.permute.xlu0 %2667
    %2669 = vrot.lane.b32.xlu0 %v2332, 64
    %v2670 = vpop.permute.xlu0 %2669
    %2671 = vrot.lane.b32.xlu0 %v2356, 64
    %v2672 = vpop.permute.xlu0 %2671
    %2673 = vrot.lane.b32.xlu0 %v2380, 64
    %v2674 = vpop.permute.xlu0 %2673
    %2675 = vrot.lane.b32.xlu0 %v2404, 64
    %v2676 = vpop.permute.xlu0 %2675
    %2677 = vrot.lane.b32.xlu0 %v2428, 64
    %v2678 = vpop.permute.xlu0 %2677
    %2679 = vrot.lane.b32.xlu0 %v2452, 64
    %v2680 = vpop.permute.xlu0 %2679
    %2681 = vrot.lane.b32.xlu0 %v2476, 64
    %v2682 = vpop.permute.xlu0 %2681
    %2717 = vrot.lane.b32.xlu0 %v1738, 64
    %v2718 = vpop.permute.xlu0 %2717
    %2719 = vrot.lane.b32.xlu0 %v1762, 64
    %v2720 = vpop.permute.xlu0 %2719
    %2721 = vrot.lane.b32.xlu0 %v1786, 64
    %v2722 = vpop.permute.xlu0 %2721
    %2723 = vrot.lane.b32.xlu0 %v1810, 64
    %v2724 = vpop.permute.xlu0 %2723
    %2725 = vrot.lane.b32.xlu0 %v1834, 64
    %v2726 = vpop.permute.xlu0 %2725
    %2727 = vrot.lane.b32.xlu0 %v1858, 64
    %v2728 = vpop.permute.xlu0 %2727
    %2729 = vrot.lane.b32.xlu0 %v1882, 64
    %v2730 = vpop.permute.xlu0 %2729
    %2731 = vrot.lane.b32.xlu0 %v1906, 64
    %v2732 = vpop.permute.xlu0 %2731
    %2733 = vrot.lane.b32.xlu0 %v1930, 64
    %v2734 = vpop.permute.xlu0 %2733
    %2735 = vrot.lane.b32.xlu0 %v1954, 64
    %v2736 = vpop.permute.xlu0 %2735
    %2737 = vrot.lane.b32.xlu0 %v1978, 64
    %v2738 = vpop.permute.xlu0 %2737
    %2739 = vrot.lane.b32.xlu0 %v2002, 64
    %v2740 = vpop.permute.xlu0 %2739
    %2741 = vrot.lane.b32.xlu0 %v2026, 64
    %v2742 = vpop.permute.xlu0 %2741
    %2743 = vrot.lane.b32.xlu0 %v2050, 64
    %v2744 = vpop.permute.xlu0 %2743
    %2745 = vrot.lane.b32.xlu0 %v2074, 64
    %v2746 = vpop.permute.xlu0 %2745
    %2747 = vrot.lane.b32.xlu0 %v2098, 64
    %v2748 = vpop.permute.xlu0 %2747
    %2749 = vrot.lane.b32.xlu0 %v2122, 64
    %v2750 = vpop.permute.xlu0 %2749
    %2751 = vrot.lane.b32.xlu0 %v2146, 64
    %v2752 = vpop.permute.xlu0 %2751
    %2753 = vrot.lane.b32.xlu0 %v2170, 64
    %v2754 = vpop.permute.xlu0 %2753
    %2755 = vrot.lane.b32.xlu0 %v2194, 64
    %v2756 = vpop.permute.xlu0 %2755
    %2757 = vrot.lane.b32.xlu0 %v2218, 64
    %v2758 = vpop.permute.xlu0 %2757
    %2759 = vrot.lane.b32.xlu0 %v2242, 64
    %v2760 = vpop.permute.xlu0 %2759
    %2761 = vrot.lane.b32.xlu0 %v2266, 64
    %v2762 = vpop.permute.xlu0 %2761
    %2763 = vrot.lane.b32.xlu0 %v2290, 64
    %v2764 = vpop.permute.xlu0 %2763
    %2765 = vrot.lane.b32.xlu0 %v2314, 64
    %v2766 = vpop.permute.xlu0 %2765
    %2767 = vrot.lane.b32.xlu0 %v2338, 64
    %v2768 = vpop.permute.xlu0 %2767
    %2769 = vrot.lane.b32.xlu0 %v2362, 64
    %v2770 = vpop.permute.xlu0 %2769
    %2771 = vrot.lane.b32.xlu0 %v2386, 64
    %v2772 = vpop.permute.xlu0 %2771
    %2773 = vrot.lane.b32.xlu0 %v2410, 64
    %v2774 = vpop.permute.xlu0 %2773
    %2775 = vrot.lane.b32.xlu0 %v2434, 64
    %v2776 = vpop.permute.xlu0 %2775
    %2777 = vrot.lane.b32.xlu0 %v2458, 64
    %v2778 = vpop.permute.xlu0 %2777
    %2779 = vrot.lane.b32.xlu0 %v2482, 64
    %v2780 = vpop.permute.xlu0 %2779
    %2815 = vrot.lane.b32.xlu0 %v1744, 64
    %v2816 = vpop.permute.xlu0 %2815
    %2817 = vrot.lane.b32.xlu0 %v1768, 64
    %v2818 = vpop.permute.xlu0 %2817
    %2819 = vrot.lane.b32.xlu0 %v1792, 64
    %v2820 = vpop.permute.xlu0 %2819
    %2821 = vrot.lane.b32.xlu0 %v1816, 64
    %v2822 = vpop.permute.xlu0 %2821
    %2823 = vrot.lane.b32.xlu0 %v1840, 64
    %v2824 = vpop.permute.xlu0 %2823
    %2825 = vrot.lane.b32.xlu0 %v1864, 64
    %v2826 = vpop.permute.xlu0 %2825
    %2827 = vrot.lane.b32.xlu0 %v1888, 64
    %v2828 = vpop.permute.xlu0 %2827
    %2829 = vrot.lane.b32.xlu0 %v1912, 64
    %v2830 = vpop.permute.xlu0 %2829
    %2831 = vrot.lane.b32.xlu0 %v1936, 64
    %v2832 = vpop.permute.xlu0 %2831
    %2833 = vrot.lane.b32.xlu0 %v1960, 64
    %v2834 = vpop.permute.xlu0 %2833
    %2835 = vrot.lane.b32.xlu0 %v1984, 64
    %v2836 = vpop.permute.xlu0 %2835
    %2837 = vrot.lane.b32.xlu0 %v2008, 64
    %v2838 = vpop.permute.xlu0 %2837
    %2839 = vrot.lane.b32.xlu0 %v2032, 64
    %v2840 = vpop.permute.xlu0 %2839
    %2841 = vrot.lane.b32.xlu0 %v2056, 64
    %v2842 = vpop.permute.xlu0 %2841
    %2843 = vrot.lane.b32.xlu0 %v2080, 64
    %v2844 = vpop.permute.xlu0 %2843
    %2845 = vrot.lane.b32.xlu0 %v2104, 64
    %v2846 = vpop.permute.xlu0 %2845
    %2847 = vrot.lane.b32.xlu0 %v2128, 64
    %v2848 = vpop.permute.xlu0 %2847
    %2849 = vrot.lane.b32.xlu0 %v2152, 64
    %v2850 = vpop.permute.xlu0 %2849
    %2851 = vrot.lane.b32.xlu0 %v2176, 64
    %v2852 = vpop.permute.xlu0 %2851
    %2853 = vrot.lane.b32.xlu0 %v2200, 64
    %v2854 = vpop.permute.xlu0 %2853
    %2855 = vrot.lane.b32.xlu0 %v2224, 64
    %v2856 = vpop.permute.xlu0 %2855
    %2857 = vrot.lane.b32.xlu0 %v2248, 64
    %v2858 = vpop.permute.xlu0 %2857
    %2859 = vrot.lane.b32.xlu0 %v2272, 64
    %v2860 = vpop.permute.xlu0 %2859
    %2861 = vrot.lane.b32.xlu0 %v2296, 64
    %v2862 = vpop.permute.xlu0 %2861
    %2863 = vrot.lane.b32.xlu0 %v2320, 64
    %v2864 = vpop.permute.xlu0 %2863
    %2865 = vrot.lane.b32.xlu0 %v2344, 64
    %v2866 = vpop.permute.xlu0 %2865
    %2867 = vrot.lane.b32.xlu0 %v2368, 64
    %v2868 = vpop.permute.xlu0 %2867
    %2869 = vrot.lane.b32.xlu0 %v2392, 64
    %v2870 = vpop.permute.xlu0 %2869
    %2871 = vrot.lane.b32.xlu0 %v2416, 64
    %v2872 = vpop.permute.xlu0 %2871
    %2873 = vrot.lane.b32.xlu0 %v2440, 64
    %v2874 = vpop.permute.xlu0 %2873
    %2875 = vrot.lane.b32.xlu0 %v2464, 64
    %v2876 = vpop.permute.xlu0 %2875
    %2877 = vrot.lane.b32.xlu0 %v2488, 64
    %v2878 = vpop.permute.xlu0 %2877
    %v2881 = vrot.slane %v1726, 7
    %v2882 = vrot.slane %v1750, 6
    %vm2883 = vcmask 1042434
    %v2884 = vsel %vm2883, %v2882, %v2881
    %v2885 = vrot.slane %v1774, 5
    %vm2886 = vcmask 1043459
    %v2887 = vsel %vm2886, %v2885, %v2884
    %v2888 = vrot.slane %v1798, 4
    %vm2889 = vcmask 1044484
    %v2890 = vsel %vm2889, %v2888, %v2887
    %v2891 = vrot.slane %v1822, 3
    %vm2892 = vcmask 1045509
    %v2893 = vsel %vm2892, %v2891, %v2890
    %v2894 = vrot.slane %v1846, 2
    %vm2895 = vcmask 1046534
    %v2896 = vsel %vm2895, %v2894, %v2893
    %v2897 = vrot.slane %v1870, 1
    %vm2898 = vcmask 1047559
    %v2899 = vsel %vm2898, %v2897, %v2896
    %v2900 = vrot.slane %v1918, 7
    %vm2901 = vcmask 1041409
    %v2902 = vsel %vm2901, %v2900, %v1894
    %v2903 = vrot.slane %v1942, 6
    %v2904 = vsel %vm2883, %v2903, %v2902
    %v2905 = vrot.slane %v1966, 5
    %v2906 = vsel %vm2886, %v2905, %v2904
    %v2907 = vrot.slane %v1990, 4
    %v2908 = vsel %vm2889, %v2907, %v2906
    %v2909 = vrot.slane %v2014, 3
    %v2910 = vsel %vm2892, %v2909, %v2908
    %v2911 = vrot.slane %v2038, 2
    %v2912 = vsel %vm2895, %v2911, %v2910
    %v2913 = vrot.slane %v2062, 1
    %v2914 = vsel %vm2898, %v2913, %v2912
    %v2915 = vrot.slane %v2110, 7
    %v2916 = vrot.slane %v2134, 6
    %v2917 = vsel %vm2883, %v2916, %v2915
    %v2918 = vrot.slane %v2158, 5
    %v2919 = vsel %vm2886, %v2918, %v2917
    %v2920 = vrot.slane %v2182, 4
    %v2921 = vsel %vm2889, %v2920, %v2919
    %v2922 = vrot.slane %v2206, 3
    %v2923 = vsel %vm2892, %v2922, %v2921
    %v2924 = vrot.slane %v2230, 2
    %v2925 = vsel %vm2895, %v2924, %v2923
    %v2926 = vrot.slane %v2254, 1
    %v2927 = vsel %vm2898, %v2926, %v2925
    %v2928 = vrot.slane %v2302, 7
    %v2929 = vsel %vm2901, %v2928, %v2278
    %v2930 = vrot.slane %v2326, 6
    %v2931 = vsel %vm2883, %v2930, %v2929
    %v2932 = vrot.slane %v2350, 5
    %v2933 = vsel %vm2886, %v2932, %v2931
    %v2934 = vrot.slane %v2374, 4
    %v2935 = vsel %vm2889, %v2934, %v2933
    %v2936 = vrot.slane %v2398, 3
    %v2937 = vsel %vm2892, %v2936, %v2935
    %v2938 = vrot.slane %v2422, 2
    %v2939 = vsel %vm2895, %v2938, %v2937
    %v2940 = vrot.slane %v2446, 1
    %v2941 = vsel %vm2898, %v2940, %v2939
    %v2942 = vrot.slane %v2522, 7
    %v2943 = vrot.slane %v2524, 6
    %v2944 = vsel %vm2883, %v2943, %v2942
    %v2945 = vrot.slane %v2526, 5
    %v2946 = vsel %vm2886, %v2945, %v2944
    %v2947 = vrot.slane %v2528, 4
    %v2948 = vsel %vm2889, %v2947, %v2946
    %v2949 = vrot.slane %v2530, 3
    %v2950 = vsel %vm2892, %v2949, %v2948
    %v2951 = vrot.slane %v2532, 2
    %v2952 = vsel %vm2895, %v2951, %v2950
    %v2953 = vrot.slane %v2534, 1
    %v2954 = vsel %vm2898, %v2953, %v2952
    %v2955 = vrot.slane %v2538, 7
    %v2956 = vsel %vm2901, %v2955, %v2536
    %v2957 = vrot.slane %v2540, 6
    %v2958 = vsel %vm2883, %v2957, %v2956
    %v2959 = vrot.slane %v2542, 5
    %v2960 = vsel %vm2886, %v2959, %v2958
    %v2961 = vrot.slane %v2544, 4
    %v2962 = vsel %vm2889, %v2961, %v2960
    %v2963 = vrot.slane %v2546, 3
    %v2964 = vsel %vm2892, %v2963, %v2962
    %v2965 = vrot.slane %v2548, 2
    %v2966 = vsel %vm2895, %v2965, %v2964
    %v2967 = vrot.slane %v2550, 1
    %v2968 = vsel %vm2898, %v2967, %v2966
    %v2969 = vrot.slane %v2554, 7
    %v2970 = vrot.slane %v2556, 6
    %v2971 = vsel %vm2883, %v2970, %v2969
    %v2972 = vrot.slane %v2558, 5
    %v2973 = vsel %vm2886, %v2972, %v2971
    %v2974 = vrot.slane %v2560, 4
    %v2975 = vsel %vm2889, %v2974, %v2973
    %v2976 = vrot.slane %v2562, 3
    %v2977 = vsel %vm2892, %v2976, %v2975
    %v2978 = vrot.slane %v2564, 2
    %v2979 = vsel %vm2895, %v2978, %v2977
    %v2980 = vrot.slane %v2566, 1
    %v2981 = vsel %vm2898, %v2980, %v2979
    %v2982 = vrot.slane %v2570, 7
    %v2983 = vsel %vm2901, %v2982, %v2568
    %v2984 = vrot.slane %v2572, 6
    %v2985 = vsel %vm2883, %v2984, %v2983
    %v2986 = vrot.slane %v2574, 5
    %v2987 = vsel %vm2886, %v2986, %v2985
    %v2988 = vrot.slane %v2576, 4
    %v2989 = vsel %vm2889, %v2988, %v2987
    %v2990 = vrot.slane %v2578, 3
    %v2991 = vsel %vm2892, %v2990, %v2989
    %v2992 = vrot.slane %v2580, 2
    %v2993 = vsel %vm2895, %v2992, %v2991
    %v2994 = vrot.slane %v2582, 1
    %v2995 = vsel %vm2898, %v2994, %v2993
    %v2996 = vrot.slane %v1732, 7
    %v2997 = vrot.slane %v1756, 6
    %v2998 = vsel %vm2883, %v2997, %v2996
    %v2999 = vrot.slane %v1780, 5
    %v3000 = vsel %vm2886, %v2999, %v2998
    %v3001 = vrot.slane %v1804, 4
    %v3002 = vsel %vm2889, %v3001, %v3000
    %v3003 = vrot.slane %v1828, 3
    %v3004 = vsel %vm2892, %v3003, %v3002
    %v3005 = vrot.slane %v1852, 2
    %v3006 = vsel %vm2895, %v3005, %v3004
    %v3007 = vrot.slane %v1876, 1
    %v3008 = vsel %vm2898, %v3007, %v3006
    %v3009 = vrot.slane %v1924, 7
    %v3010 = vsel %vm2901, %v3009, %v1900
    %v3011 = vrot.slane %v1948, 6
    %v3012 = vsel %vm2883, %v3011, %v3010
    %v3013 = vrot.slane %v1972, 5
    %v3014 = vsel %vm2886, %v3013, %v3012
    %v3015 = vrot.slane %v1996, 4
    %v3016 = vsel %vm2889, %v3015, %v3014
    %v3017 = vrot.slane %v2020, 3
    %v3018 = vsel %vm2892, %v3017, %v3016
    %v3019 = vrot.slane %v2044, 2
    %v3020 = vsel %vm2895, %v3019, %v3018
    %v3021 = vrot.slane %v2068, 1
    %v3022 = vsel %vm2898, %v3021, %v3020
    %v3023 = vrot.slane %v2116, 7
    %v3024 = vrot.slane %v2140, 6
    %v3025 = vsel %vm2883, %v3024, %v3023
    %v3026 = vrot.slane %v2164, 5
    %v3027 = vsel %vm2886, %v3026, %v3025
    %v3028 = vrot.slane %v2188, 4
    %v3029 = vsel %vm2889, %v3028, %v3027
    %v3030 = vrot.slane %v2212, 3
    %v3031 = vsel %vm2892, %v3030, %v3029
    %v3032 = vrot.slane %v2236, 2
    %v3033 = vsel %vm2895, %v3032, %v3031
    %v3034 = vrot.slane %v2260, 1
    %v3035 = vsel %vm2898, %v3034, %v3033
    %v3036 = vrot.slane %v2308, 7
    %v3037 = vsel %vm2901, %v3036, %v2284
    %v3038 = vrot.slane %v2332, 6
    %v3039 = vsel %vm2883, %v3038, %v3037
    %v3040 = vrot.slane %v2356, 5
    %v3041 = vsel %vm2886, %v3040, %v3039
    %v3042 = vrot.slane %v2380, 4
    %v3043 = vsel %vm2889, %v3042, %v3041
    %v3044 = vrot.slane %v2404, 3
    %v3045 = vsel %vm2892, %v3044, %v3043
    %v3046 = vrot.slane %v2428, 2
    %v3047 = vsel %vm2895, %v3046, %v3045
    %v3048 = vrot.slane %v2452, 1
    %v3049 = vsel %vm2898, %v3048, %v3047
    %v3050 = vrot.slane %v2620, 7
    %v3051 = vrot.slane %v2622, 6
    %v3052 = vsel %vm2883, %v3051, %v3050
    %v3053 = vrot.slane %v2624, 5
    %v3054 = vsel %vm2886, %v3053, %v3052
    %v3055 = vrot.slane %v2626, 4
    %v3056 = vsel %vm2889, %v3055, %v3054
    %v3057 = vrot.slane %v2628, 3
    %v3058 = vsel %vm2892, %v3057, %v3056
    %v3059 = vrot.slane %v2630, 2
    %v3060 = vsel %vm2895, %v3059, %v3058
    %v3061 = vrot.slane %v2632, 1
    %v3062 = vsel %vm2898, %v3061, %v3060
    %v3063 = vrot.slane %v2636, 7
    %v3064 = vsel %vm2901, %v3063, %v2634
    %v3065 = vrot.slane %v2638, 6
    %v3066 = vsel %vm2883, %v3065, %v3064
    %v3067 = vrot.slane %v2640, 5
    %v3068 = vsel %vm2886, %v3067, %v3066
    %v3069 = vrot.slane %v2642, 4
    %v3070 = vsel %vm2889, %v3069, %v3068
    %v3071 = vrot.slane %v2644, 3
    %v3072 = vsel %vm2892, %v3071, %v3070
    %v3073 = vrot.slane %v2646, 2
    %v3074 = vsel %vm2895, %v3073, %v3072
    %v3075 = vrot.slane %v2648, 1
    %v3076 = vsel %vm2898, %v3075, %v3074
    %v3077 = vrot.slane %v2652, 7
    %v3078 = vrot.slane %v2654, 6
    %v3079 = vsel %vm2883, %v3078, %v3077
    %v3080 = vrot.slane %v2656, 5
    %v3081 = vsel %vm2886, %v3080, %v3079
    %v3082 = vrot.slane %v2658, 4
    %v3083 = vsel %vm2889, %v3082, %v3081
    %v3084 = vrot.slane %v2660, 3
    %v3085 = vsel %vm2892, %v3084, %v3083
    %v3086 = vrot.slane %v2662, 2
    %v3087 = vsel %vm2895, %v3086, %v3085
    %v3088 = vrot.slane %v2664, 1
    %v3089 = vsel %vm2898, %v3088, %v3087
    %v3090 = vrot.slane %v2668, 7
    %v3091 = vsel %vm2901, %v3090, %v2666
    %v3092 = vrot.slane %v2670, 6
    %v3093 = vsel %vm2883, %v3092, %v3091
    %v3094 = vrot.slane %v2672, 5
    %v3095 = vsel %vm2886, %v3094, %v3093
    %v3096 = vrot.slane %v2674, 4
    %v3097 = vsel %vm2889, %v3096, %v3095
    %v3098 = vrot.slane %v2676, 3
    %v3099 = vsel %vm2892, %v3098, %v3097
    %v3100 = vrot.slane %v2678, 2
    %v3101 = vsel %vm2895, %v3100, %v3099
    %v3102 = vrot.slane %v2680, 1
    %v3103 = vsel %vm2898, %v3102, %v3101
    %v3104 = vrot.slane %v1738, 7
    %v3105 = vrot.slane %v1762, 6
    %v3106 = vsel %vm2883, %v3105, %v3104
    %v3107 = vrot.slane %v1786, 5
    %v3108 = vsel %vm2886, %v3107, %v3106
    %v3109 = vrot.slane %v1810, 4
    %v3110 = vsel %vm2889, %v3109, %v3108
    %v3111 = vrot.slane %v1834, 3
    %v3112 = vsel %vm2892, %v3111, %v3110
    %v3113 = vrot.slane %v1858, 2
    %v3114 = vsel %vm2895, %v3113, %v3112
    %v3115 = vrot.slane %v1882, 1
    %v3116 = vsel %vm2898, %v3115, %v3114
    %v3117 = vrot.slane %v1930, 7
    %v3118 = vsel %vm2901, %v3117, %v1906
    %v3119 = vrot.slane %v1954, 6
    %v3120 = vsel %vm2883, %v3119, %v3118
    %v3121 = vrot.slane %v1978, 5
    %v3122 = vsel %vm2886, %v3121, %v3120
    %v3123 = vrot.slane %v2002, 4
    %v3124 = vsel %vm2889, %v3123, %v3122
    %v3125 = vrot.slane %v2026, 3
    %v3126 = vsel %vm2892, %v3125, %v3124
    %v3127 = vrot.slane %v2050, 2
    %v3128 = vsel %vm2895, %v3127, %v3126
    %v3129 = vrot.slane %v2074, 1
    %v3130 = vsel %vm2898, %v3129, %v3128
    %v3131 = vrot.slane %v2122, 7
    %v3132 = vrot.slane %v2146, 6
    %v3133 = vsel %vm2883, %v3132, %v3131
    %v3134 = vrot.slane %v2170, 5
    %v3135 = vsel %vm2886, %v3134, %v3133
    %v3136 = vrot.slane %v2194, 4
    %v3137 = vsel %vm2889, %v3136, %v3135
    %v3138 = vrot.slane %v2218, 3
    %v3139 = vsel %vm2892, %v3138, %v3137
    %v3140 = vrot.slane %v2242, 2
    %v3141 = vsel %vm2895, %v3140, %v3139
    %v3142 = vrot.slane %v2266, 1
    %v3143 = vsel %vm2898, %v3142, %v3141
    %v3144 = vrot.slane %v2314, 7
    %v3145 = vsel %vm2901, %v3144, %v2290
    %v3146 = vrot.slane %v2338, 6
    %v3147 = vsel %vm2883, %v3146, %v3145
    %v3148 = vrot.slane %v2362, 5
    %v3149 = vsel %vm2886, %v3148, %v3147
    %v3150 = vrot.slane %v2386, 4
    %v3151 = vsel %vm2889, %v3150, %v3149
    %v3152 = vrot.slane %v2410, 3
    %v3153 = vsel %vm2892, %v3152, %v3151
    %v3154 = vrot.slane %v2434, 2
    %v3155 = vsel %vm2895, %v3154, %v3153
    %v3156 = vrot.slane %v2458, 1
    %v3157 = vsel %vm2898, %v3156, %v3155
    %v3158 = vrot.slane %v2718, 7
    %v3159 = vrot.slane %v2720, 6
    %v3160 = vsel %vm2883, %v3159, %v3158
    %v3161 = vrot.slane %v2722, 5
    %v3162 = vsel %vm2886, %v3161, %v3160
    %v3163 = vrot.slane %v2724, 4
    %v3164 = vsel %vm2889, %v3163, %v3162
    %v3165 = vrot.slane %v2726, 3
    %v3166 = vsel %vm2892, %v3165, %v3164
    %v3167 = vrot.slane %v2728, 2
    %v3168 = vsel %vm2895, %v3167, %v3166
    %v3169 = vrot.slane %v2730, 1
    %v3170 = vsel %vm2898, %v3169, %v3168
    %v3171 = vrot.slane %v2734, 7
    %v3172 = vsel %vm2901, %v3171, %v2732
    %v3173 = vrot.slane %v2736, 6
    %v3174 = vsel %vm2883, %v3173, %v3172
    %v3175 = vrot.slane %v2738, 5
    %v3176 = vsel %vm2886, %v3175, %v3174
    %v3177 = vrot.slane %v2740, 4
    %v3178 = vsel %vm2889, %v3177, %v3176
    %v3179 = vrot.slane %v2742, 3
    %v3180 = vsel %vm2892, %v3179, %v3178
    %v3181 = vrot.slane %v2744, 2
    %v3182 = vsel %vm2895, %v3181, %v3180
    %v3183 = vrot.slane %v2746, 1
    %v3184 = vsel %vm2898, %v3183, %v3182
    %v3185 = vrot.slane %v2750, 7
    %v3186 = vrot.slane %v2752, 6
    %v3187 = vsel %vm2883, %v3186, %v3185
    %v3188 = vrot.slane %v2754, 5
    %v3189 = vsel %vm2886, %v3188, %v3187
    %v3190 = vrot.slane %v2756, 4
    %v3191 = vsel %vm2889, %v3190, %v3189
    %v3192 = vrot.slane %v2758, 3
    %v3193 = vsel %vm2892, %v3192, %v3191
    %v3194 = vrot.slane %v2760, 2
    %v3195 = vsel %vm2895, %v3194, %v3193
    %v3196 = vrot.slane %v2762, 1
    %v3197 = vsel %vm2898, %v3196, %v3195
    %v3198 = vrot.slane %v2766, 7
    %v3199 = vsel %vm2901, %v3198, %v2764
    %v3200 = vrot.slane %v2768, 6
    %v3201 = vsel %vm2883, %v3200, %v3199
    %v3202 = vrot.slane %v2770, 5
    %v3203 = vsel %vm2886, %v3202, %v3201
    %v3204 = vrot.slane %v2772, 4
    %v3205 = vsel %vm2889, %v3204, %v3203
    %v3206 = vrot.slane %v2774, 3
    %v3207 = vsel %vm2892, %v3206, %v3205
    %v3208 = vrot.slane %v2776, 2
    %v3209 = vsel %vm2895, %v3208, %v3207
    %v3210 = vrot.slane %v2778, 1
    %v3211 = vsel %vm2898, %v3210, %v3209
    %v3212 = vrot.slane %v1744, 7
    %v3213 = vrot.slane %v1768, 6
    %v3214 = vsel %vm2883, %v3213, %v3212
    %v3215 = vrot.slane %v1792, 5
    %v3216 = vsel %vm2886, %v3215, %v3214
    %v3217 = vrot.slane %v1816, 4
    %v3218 = vsel %vm2889, %v3217, %v3216
    %v3219 = vrot.slane %v1840, 3
    %v3220 = vsel %vm2892, %v3219, %v3218
    %v3221 = vrot.slane %v1864, 2
    %v3222 = vsel %vm2895, %v3221, %v3220
    %v3223 = vrot.slane %v1888, 1
    %v3224 = vsel %vm2898, %v3223, %v3222
    %v3225 = vrot.slane %v1936, 7
    %v3226 = vsel %vm2901, %v3225, %v1912
    %v3227 = vrot.slane %v1960, 6
    %v3228 = vsel %vm2883, %v3227, %v3226
    %v3229 = vrot.slane %v1984, 5
    %v3230 = vsel %vm2886, %v3229, %v3228
    %v3231 = vrot.slane %v2008, 4
    %v3232 = vsel %vm2889, %v3231, %v3230
    %v3233 = vrot.slane %v2032, 3
    %v3234 = vsel %vm2892, %v3233, %v3232
    %v3235 = vrot.slane %v2056, 2
    %v3236 = vsel %vm2895, %v3235, %v3234
    %v3237 = vrot.slane %v2080, 1
    %v3238 = vsel %vm2898, %v3237, %v3236
    %v3239 = vrot.slane %v2128, 7
    %v3240 = vrot.slane %v2152, 6
    %v3241 = vsel %vm2883, %v3240, %v3239
    %v3242 = vrot.slane %v2176, 5
    %v3243 = vsel %vm2886, %v3242, %v3241
    %v3244 = vrot.slane %v2200, 4
    %v3245 = vsel %vm2889, %v3244, %v3243
    %v3246 = vrot.slane %v2224, 3
    %v3247 = vsel %vm2892, %v3246, %v3245
    %v3248 = vrot.slane %v2248, 2
    %v3249 = vsel %vm2895, %v3248, %v3247
    %v3250 = vrot.slane %v2272, 1
    %v3251 = vsel %vm2898, %v3250, %v3249
    %v3252 = vrot.slane %v2320, 7
    %v3253 = vsel %vm2901, %v3252, %v2296
    %v3254 = vrot.slane %v2344, 6
    %v3255 = vsel %vm2883, %v3254, %v3253
    %v3256 = vrot.slane %v2368, 5
    %v3257 = vsel %vm2886, %v3256, %v3255
    %v3258 = vrot.slane %v2392, 4
    %v3259 = vsel %vm2889, %v3258, %v3257
    %v3260 = vrot.slane %v2416, 3
    %v3261 = vsel %vm2892, %v3260, %v3259
    %v3262 = vrot.slane %v2440, 2
    %v3263 = vsel %vm2895, %v3262, %v3261
    %v3264 = vrot.slane %v2464, 1
    %v3265 = vsel %vm2898, %v3264, %v3263
    %v3266 = vrot.slane %v2816, 7
    %v3267 = vrot.slane %v2818, 6
    %v3268 = vsel %vm2883, %v3267, %v3266
    %v3269 = vrot.slane %v2820, 5
    %v3270 = vsel %vm2886, %v3269, %v3268
    %v3271 = vrot.slane %v2822, 4
    %v3272 = vsel %vm2889, %v3271, %v3270
    %v3273 = vrot.slane %v2824, 3
    %v3274 = vsel %vm2892, %v3273, %v3272
    %v3275 = vrot.slane %v2826, 2
    %v3276 = vsel %vm2895, %v3275, %v3274
    %v3277 = vrot.slane %v2828, 1
    %v3278 = vsel %vm2898, %v3277, %v3276
    %v3279 = vrot.slane %v2832, 7
    %v3280 = vsel %vm2901, %v3279, %v2830
    %v3281 = vrot.slane %v2834, 6
    %v3282 = vsel %vm2883, %v3281, %v3280
    %v3283 = vrot.slane %v2836, 5
    %v3284 = vsel %vm2886, %v3283, %v3282
    %v3285 = vrot.slane %v2838, 4
    %v3286 = vsel %vm2889, %v3285, %v3284
    %v3287 = vrot.slane %v2840, 3
    %v3288 = vsel %vm2892, %v3287, %v3286
    %v3289 = vrot.slane %v2842, 2
    %v3290 = vsel %vm2895, %v3289, %v3288
    %v3291 = vrot.slane %v2844, 1
    %v3292 = vsel %vm2898, %v3291, %v3290
    %v3293 = vrot.slane %v2848, 7
    %v3294 = vrot.slane %v2850, 6
    %v3295 = vsel %vm2883, %v3294, %v3293
    %v3296 = vrot.slane %v2852, 5
    %v3297 = vsel %vm2886, %v3296, %v3295
    %v3298 = vrot.slane %v2854, 4
    %v3299 = vsel %vm2889, %v3298, %v3297
    %v3300 = vrot.slane %v2856, 3
    %v3301 = vsel %vm2892, %v3300, %v3299
    %v3302 = vrot.slane %v2858, 2
    %v3303 = vsel %vm2895, %v3302, %v3301
    %v3304 = vrot.slane %v2860, 1
    %v3305 = vsel %vm2898, %v3304, %v3303
    %v3306 = vrot.slane %v2864, 7
    %v3307 = vsel %vm2901, %v3306, %v2862
    %v3308 = vrot.slane %v2866, 6
    %v3309 = vsel %vm2883, %v3308, %v3307
    %v3310 = vrot.slane %v2868, 5
    %v3311 = vsel %vm2886, %v3310, %v3309
    %v3312 = vrot.slane %v2870, 4
    %v3313 = vsel %vm2889, %v3312, %v3311
    %v3314 = vrot.slane %v2872, 3
    %v3315 = vsel %vm2892, %v3314, %v3313
    %v3316 = vrot.slane %v2874, 2
    %v3317 = vsel %vm2895, %v3316, %v3315
    %v3318 = vrot.slane %v2876, 1
    %v3319 = vsel %vm2898, %v3318, %v3317
    %v3368 = vrot.slane %v2086, 7
    %v3369 = vrot.slane %v2470, 7
    %v3370 = vrot.slane %v2552, 7
    %v3371 = vrot.slane %v2584, 7
    %v3372 = vrot.slane %v2092, 7
    %v3373 = vrot.slane %v2476, 7
    %v3374 = vrot.slane %v2650, 7
    %v3375 = vrot.slane %v2682, 7
    %v3376 = vrot.slane %v2098, 7
    %v3377 = vrot.slane %v2482, 7
    %v3378 = vrot.slane %v2748, 7
    %v3379 = vrot.slane %v2780, 7
    %v3380 = vrot.slane %v2104, 7
    %v3381 = vrot.slane %v2488, 7
    %v3382 = vrot.slane %v2846, 7
    %v3383 = vrot.slane %v2878, 7
    %vm3400 = vcmask 1040384
    %v3401 = vsel %vm3400, %v1726, %v2899
    %v3402 = vsel %vm3400, %v2110, %v2927
    %v3403 = vsel %vm3400, %v2522, %v2954
    %v3404 = vsel %vm3400, %v2554, %v2981
    %v3405 = vsel %vm3400, %v1732, %v3008
    %v3406 = vsel %vm3400, %v2116, %v3035
    %v3407 = vsel %vm3400, %v2620, %v3062
    %v3408 = vsel %vm3400, %v2652, %v3089
    %v3409 = vsel %vm3400, %v1738, %v3116
    %v3410 = vsel %vm3400, %v2122, %v3143
    %v3411 = vsel %vm3400, %v2718, %v3170
    %v3412 = vsel %vm3400, %v2750, %v3197
    %v3413 = vsel %vm3400, %v1744, %v3224
    %v3414 = vsel %vm3400, %v2128, %v3251
    %v3415 = vsel %vm3400, %v2816, %v3278
    %v3416 = vsel %vm3400, %v2848, %v3305
    %v3417 = vsel %vm3400, %v2086, %v3368
    %v3418 = vsel %vm3400, %v2470, %v3369
    %v3419 = vsel %vm3400, %v2552, %v3370
    %v3420 = vsel %vm3400, %v2584, %v3371
    %v3421 = vsel %vm3400, %v2092, %v3372
    %v3422 = vsel %vm3400, %v2476, %v3373
    %v3423 = vsel %vm3400, %v2650, %v3374
    %v3424 = vsel %vm3400, %v2682, %v3375
    %v3425 = vsel %vm3400, %v2098, %v3376
    %v3426 = vsel %vm3400, %v2482, %v3377
    %v3427 = vsel %vm3400, %v2748, %v3378
    %v3428 = vsel %vm3400, %v2780, %v3379
    %v3429 = vsel %vm3400, %v2104, %v3380
    %v3430 = vsel %vm3400, %v2488, %v3381
    %v3431 = vsel %vm3400, %v2846, %v3382
    %v3432 = vsel %vm3400, %v2878, %v3383
    %vm3461 = vcmask 1046528
    %v3462 = vrot.slane %v3401, 1
    %v3463 = vrot.slane %v2914, 1
    %v3464 = vsel %vm3461, %v3462, %v3463
    %v3465 = vrot.slane %v3417, 1
    %v3466 = vsel %vm3461, %v3463, %v3465
    %v3467 = vrot.slane %v3402, 1
    %v3468 = vrot.slane %v2941, 1
    %v3469 = vsel %vm3461, %v3467, %v3468
    %v3470 = vrot.slane %v3418, 1
    %v3471 = vsel %vm3461, %v3468, %v3470
    %v3472 = vrot.slane %v3403, 1
    %v3473 = vrot.slane %v2968, 1
    %v3474 = vsel %vm3461, %v3472, %v3473
    %v3475 = vrot.slane %v3419, 1
    %v3476 = vsel %vm3461, %v3473, %v3475
    %v3477 = vrot.slane %v3404, 1
    %v3478 = vrot.slane %v2995, 1
    %v3479 = vsel %vm3461, %v3477, %v3478
    %v3480 = vrot.slane %v3420, 1
    %v3481 = vsel %vm3461, %v3478, %v3480
    %v3482 = vrot.slane %v3405, 1
    %v3483 = vrot.slane %v3022, 1
    %v3484 = vsel %vm3461, %v3482, %v3483
    %v3485 = vrot.slane %v3421, 1
    %v3486 = vsel %vm3461, %v3483, %v3485
    %v3487 = vrot.slane %v3406, 1
    %v3488 = vrot.slane %v3049, 1
    %v3489 = vsel %vm3461, %v3487, %v3488
    %v3490 = vrot.slane %v3422, 1
    %v3491 = vsel %vm3461, %v3488, %v3490
    %v3492 = vrot.slane %v3407, 1
    %v3493 = vrot.slane %v3076, 1
    %v3494 = vsel %vm3461, %v3492, %v3493
    %v3495 = vrot.slane %v3423, 1
    %v3496 = vsel %vm3461, %v3493, %v3495
    %v3497 = vrot.slane %v3408, 1
    %v3498 = vrot.slane %v3103, 1
    %v3499 = vsel %vm3461, %v3497, %v3498
    %v3500 = vrot.slane %v3424, 1
    %v3501 = vsel %vm3461, %v3498, %v3500
    %v3502 = vrot.slane %v3409, 1
    %v3503 = vrot.slane %v3130, 1
    %v3504 = vsel %vm3461, %v3502, %v3503
    %v3505 = vrot.slane %v3425, 1
    %v3506 = vsel %vm3461, %v3503, %v3505
    %v3507 = vrot.slane %v3410, 1
    %v3508 = vrot.slane %v3157, 1
    %v3509 = vsel %vm3461, %v3507, %v3508
    %v3510 = vrot.slane %v3426, 1
    %v3511 = vsel %vm3461, %v3508, %v3510
    %v3512 = vrot.slane %v3411, 1
    %v3513 = vrot.slane %v3184, 1
    %v3514 = vsel %vm3461, %v3512, %v3513
    %v3515 = vrot.slane %v3427, 1
    %v3516 = vsel %vm3461, %v3513, %v3515
    %v3517 = vrot.slane %v3412, 1
    %v3518 = vrot.slane %v3211, 1
    %v3519 = vsel %vm3461, %v3517, %v3518
    %v3520 = vrot.slane %v3428, 1
    %v3521 = vsel %vm3461, %v3518, %v3520
    %v3522 = vrot.slane %v3413, 1
    %v3523 = vrot.slane %v3238, 1
    %v3524 = vsel %vm3461, %v3522, %v3523
    %v3525 = vrot.slane %v3429, 1
    %v3526 = vsel %vm3461, %v3523, %v3525
    %v3527 = vrot.slane %v3414, 1
    %v3528 = vrot.slane %v3265, 1
    %v3529 = vsel %vm3461, %v3527, %v3528
    %v3530 = vrot.slane %v3430, 1
    %v3531 = vsel %vm3461, %v3528, %v3530
    %vm3532 = vcmask 1045504
    %v3533 = vrot.slane %v3401, 2
    %v3534 = vrot.slane %v2914, 2
    %v3535 = vsel %vm3532, %v3533, %v3534
    %v3536 = vrot.slane %v3417, 2
    %v3537 = vsel %vm3532, %v3534, %v3536
    %v3538 = vrot.slane %v3402, 2
    %v3539 = vrot.slane %v2941, 2
    %v3540 = vsel %vm3532, %v3538, %v3539
    %v3541 = vrot.slane %v3418, 2
    %v3542 = vsel %vm3532, %v3539, %v3541
    %v3543 = vrot.slane %v3403, 2
    %v3544 = vrot.slane %v2968, 2
    %v3545 = vsel %vm3532, %v3543, %v3544
    %v3546 = vrot.slane %v3419, 2
    %v3547 = vsel %vm3532, %v3544, %v3546
    %v3548 = vrot.slane %v3404, 2
    %v3549 = vrot.slane %v2995, 2
    %v3550 = vsel %vm3532, %v3548, %v3549
    %v3551 = vrot.slane %v3420, 2
    %v3552 = vsel %vm3532, %v3549, %v3551
    %v3553 = vrot.slane %v3405, 2
    %v3554 = vrot.slane %v3022, 2
    %v3555 = vsel %vm3532, %v3553, %v3554
    %v3556 = vrot.slane %v3421, 2
    %v3557 = vsel %vm3532, %v3554, %v3556
    %v3558 = vrot.slane %v3406, 2
    %v3559 = vrot.slane %v3049, 2
    %v3560 = vsel %vm3532, %v3558, %v3559
    %v3561 = vrot.slane %v3422, 2
    %v3562 = vsel %vm3532, %v3559, %v3561
    %v3563 = vrot.slane %v3407, 2
    %v3564 = vrot.slane %v3076, 2
    %v3565 = vsel %vm3532, %v3563, %v3564
    %v3566 = vrot.slane %v3423, 2
    %v3567 = vsel %vm3532, %v3564, %v3566
    %v3568 = vrot.slane %v3408, 2
    %v3569 = vrot.slane %v3103, 2
    %v3570 = vsel %vm3532, %v3568, %v3569
    %v3571 = vrot.slane %v3424, 2
    %v3572 = vsel %vm3532, %v3569, %v3571
    %v3573 = vrot.slane %v3409, 2
    %v3574 = vrot.slane %v3130, 2
    %v3575 = vsel %vm3532, %v3573, %v3574
    %v3576 = vrot.slane %v3425, 2
    %v3577 = vsel %vm3532, %v3574, %v3576
    %v3578 = vrot.slane %v3410, 2
    %v3579 = vrot.slane %v3157, 2
    %v3580 = vsel %vm3532, %v3578, %v3579
    %v3581 = vrot.slane %v3426, 2
    %v3582 = vsel %vm3532, %v3579, %v3581
    %v3583 = vrot.slane %v3411, 2
    %v3584 = vrot.slane %v3184, 2
    %v3585 = vsel %vm3532, %v3583, %v3584
    %v3586 = vrot.slane %v3427, 2
    %v3587 = vsel %vm3532, %v3584, %v3586
    %v3588 = vrot.slane %v3412, 2
    %v3589 = vrot.slane %v3211, 2
    %v3590 = vsel %vm3532, %v3588, %v3589
    %v3591 = vrot.slane %v3428, 2
    %v3592 = vsel %vm3532, %v3589, %v3591
    %v3593 = vrot.slane %v3413, 2
    %v3594 = vrot.slane %v3238, 2
    %v3595 = vsel %vm3532, %v3593, %v3594
    %v3596 = vrot.slane %v3429, 2
    %v3597 = vsel %vm3532, %v3594, %v3596
    %v3598 = vrot.slane %v3414, 2
    %v3599 = vrot.slane %v3265, 2
    %v3600 = vsel %vm3532, %v3598, %v3599
    %v3601 = vrot.slane %v3430, 2
    %v3602 = vsel %vm3532, %v3599, %v3601
    %v3635 = vrot.slane %v3415, 1
    %v3636 = vrot.slane %v3292, 1
    %v3637 = vsel %vm3461, %v3635, %v3636
    %v3638 = vrot.slane %v3431, 1
    %v3639 = vsel %vm3461, %v3636, %v3638
    %v3640 = vrot.slane %v3416, 1
    %v3641 = vrot.slane %v3319, 1
    %v3642 = vsel %vm3461, %v3640, %v3641
    %v3643 = vrot.slane %v3432, 1
    %v3644 = vsel %vm3461, %v3641, %v3643
    %v3677 = vrot.slane %v3415, 2
    %v3678 = vrot.slane %v3292, 2
    %v3679 = vsel %vm3532, %v3677, %v3678
    %v3680 = vrot.slane %v3431, 2
    %v3681 = vsel %vm3532, %v3678, %v3680
    %v3682 = vrot.slane %v3416, 2
    %v3683 = vrot.slane %v3319, 2
    %v3684 = vsel %vm3532, %v3682, %v3683
    %v3685 = vrot.slane %v3432, 2
    %v3686 = vsel %vm3532, %v3683, %v3685
    %3687 = vrot.lane.b32.xlu0 %v3464, 64
    %v3688 = vpop.permute.xlu0 %3687
    %3689 = vrot.lane.b32.xlu0 %v3466, 64
    %v3690 = vpop.permute.xlu0 %3689
    %3691 = vrot.lane.b32.xlu0 %v3469, 64
    %v3692 = vpop.permute.xlu0 %3691
    %3693 = vrot.lane.b32.xlu0 %v3471, 64
    %v3694 = vpop.permute.xlu0 %3693
    %3695 = vrot.lane.b32.xlu0 %v3474, 64
    %v3696 = vpop.permute.xlu0 %3695
    %3697 = vrot.lane.b32.xlu0 %v3476, 64
    %v3698 = vpop.permute.xlu0 %3697
    %3699 = vrot.lane.b32.xlu0 %v3479, 64
    %v3700 = vpop.permute.xlu0 %3699
    %3701 = vrot.lane.b32.xlu0 %v3481, 64
    %v3702 = vpop.permute.xlu0 %3701
    %3703 = vrot.lane.b32.xlu0 %v3484, 64
    %v3704 = vpop.permute.xlu0 %3703
    %3705 = vrot.lane.b32.xlu0 %v3486, 64
    %v3706 = vpop.permute.xlu0 %3705
    %3707 = vrot.lane.b32.xlu0 %v3489, 64
    %v3708 = vpop.permute.xlu0 %3707
    %3709 = vrot.lane.b32.xlu0 %v3491, 64
    %v3710 = vpop.permute.xlu0 %3709
    %3711 = vrot.lane.b32.xlu0 %v3494, 64
    %v3712 = vpop.permute.xlu0 %3711
    %3713 = vrot.lane.b32.xlu0 %v3496, 64
    %v3714 = vpop.permute.xlu0 %3713
    %3715 = vrot.lane.b32.xlu0 %v3499, 64
    %v3716 = vpop.permute.xlu0 %3715
    %3717 = vrot.lane.b32.xlu0 %v3501, 64
    %v3718 = vpop.permute.xlu0 %3717
    %3719 = vrot.lane.b32.xlu0 %v3504, 64
    %v3720 = vpop.permute.xlu0 %3719
    %3721 = vrot.lane.b32.xlu0 %v3506, 64
    %v3722 = vpop.permute.xlu0 %3721
    %3723 = vrot.lane.b32.xlu0 %v3509, 64
    %v3724 = vpop.permute.xlu0 %3723
    %3725 = vrot.lane.b32.xlu0 %v3511, 64
    %v3726 = vpop.permute.xlu0 %3725
    %3727 = vrot.lane.b32.xlu0 %v3514, 64
    %v3728 = vpop.permute.xlu0 %3727
    %3729 = vrot.lane.b32.xlu0 %v3516, 64
    %v3730 = vpop.permute.xlu0 %3729
    %3731 = vrot.lane.b32.xlu0 %v3519, 64
    %v3732 = vpop.permute.xlu0 %3731
    %3733 = vrot.lane.b32.xlu0 %v3521, 64
    %v3734 = vpop.permute.xlu0 %3733
    %3735 = vrot.lane.b32.xlu0 %v3524, 64
    %v3736 = vpop.permute.xlu0 %3735
    %3737 = vrot.lane.b32.xlu0 %v3526, 64
    %v3738 = vpop.permute.xlu0 %3737
    %3739 = vrot.lane.b32.xlu0 %v3529, 64
    %v3740 = vpop.permute.xlu0 %3739
    %3741 = vrot.lane.b32.xlu0 %v3531, 64
    %v3742 = vpop.permute.xlu0 %3741
    %3771 = vrot.lane.b32.xlu0 %v3401, 64
    %v3772 = vpop.permute.xlu0 %3771
    %3773 = vrot.lane.b32.xlu0 %v2914, 64
    %v3774 = vpop.permute.xlu0 %3773
    %3775 = vrot.lane.b32.xlu0 %v3402, 64
    %v3776 = vpop.permute.xlu0 %3775
    %3777 = vrot.lane.b32.xlu0 %v2941, 64
    %v3778 = vpop.permute.xlu0 %3777
    %3779 = vrot.lane.b32.xlu0 %v3403, 64
    %v3780 = vpop.permute.xlu0 %3779
    %3781 = vrot.lane.b32.xlu0 %v2968, 64
    %v3782 = vpop.permute.xlu0 %3781
    %3783 = vrot.lane.b32.xlu0 %v3404, 64
    %v3784 = vpop.permute.xlu0 %3783
    %3785 = vrot.lane.b32.xlu0 %v2995, 64
    %v3786 = vpop.permute.xlu0 %3785
    %3787 = vrot.lane.b32.xlu0 %v3405, 64
    %v3788 = vpop.permute.xlu0 %3787
    %3789 = vrot.lane.b32.xlu0 %v3022, 64
    %v3790 = vpop.permute.xlu0 %3789
    %3791 = vrot.lane.b32.xlu0 %v3406, 64
    %v3792 = vpop.permute.xlu0 %3791
    %3793 = vrot.lane.b32.xlu0 %v3049, 64
    %v3794 = vpop.permute.xlu0 %3793
    %3795 = vrot.lane.b32.xlu0 %v3407, 64
    %v3796 = vpop.permute.xlu0 %3795
    %3797 = vrot.lane.b32.xlu0 %v3076, 64
    %v3798 = vpop.permute.xlu0 %3797
    %3799 = vrot.lane.b32.xlu0 %v3408, 64
    %v3800 = vpop.permute.xlu0 %3799
    %3801 = vrot.lane.b32.xlu0 %v3103, 64
    %v3802 = vpop.permute.xlu0 %3801
    %3803 = vrot.lane.b32.xlu0 %v3409, 64
    %v3804 = vpop.permute.xlu0 %3803
    %3805 = vrot.lane.b32.xlu0 %v3130, 64
    %v3806 = vpop.permute.xlu0 %3805
    %3807 = vrot.lane.b32.xlu0 %v3410, 64
    %v3808 = vpop.permute.xlu0 %3807
    %3809 = vrot.lane.b32.xlu0 %v3157, 64
    %v3810 = vpop.permute.xlu0 %3809
    %3811 = vrot.lane.b32.xlu0 %v3411, 64
    %v3812 = vpop.permute.xlu0 %3811
    %3813 = vrot.lane.b32.xlu0 %v3184, 64
    %v3814 = vpop.permute.xlu0 %3813
    %3815 = vrot.lane.b32.xlu0 %v3412, 64
    %v3816 = vpop.permute.xlu0 %3815
    %3817 = vrot.lane.b32.xlu0 %v3211, 64
    %v3818 = vpop.permute.xlu0 %3817
    %3819 = vrot.lane.b32.xlu0 %v3413, 64
    %v3820 = vpop.permute.xlu0 %3819
    %3821 = vrot.lane.b32.xlu0 %v3238, 64
    %v3822 = vpop.permute.xlu0 %3821
    %3823 = vrot.lane.b32.xlu0 %v3414, 64
    %v3824 = vpop.permute.xlu0 %3823
    %3825 = vrot.lane.b32.xlu0 %v3265, 64
    %v3826 = vpop.permute.xlu0 %3825
    %3827 = vrot.lane.b32.xlu0 %v3415, 64
    %v3828 = vpop.permute.xlu0 %3827
    %3829 = vrot.lane.b32.xlu0 %v3292, 64
    %v3830 = vpop.permute.xlu0 %3829
    %3831 = vrot.lane.b32.xlu0 %v3416, 64
    %v3832 = vpop.permute.xlu0 %3831
    %3833 = vrot.lane.b32.xlu0 %v3319, 64
    %v3834 = vpop.permute.xlu0 %3833
    %3867 = vrot.lane.b32.xlu0 %v3535, 64
    %v3868 = vpop.permute.xlu0 %3867
    %3869 = vrot.lane.b32.xlu0 %v3537, 64
    %v3870 = vpop.permute.xlu0 %3869
    %3871 = vrot.lane.b32.xlu0 %v3540, 64
    %v3872 = vpop.permute.xlu0 %3871
    %3873 = vrot.lane.b32.xlu0 %v3542, 64
    %v3874 = vpop.permute.xlu0 %3873
    %3875 = vrot.lane.b32.xlu0 %v3545, 64
    %v3876 = vpop.permute.xlu0 %3875
    %3877 = vrot.lane.b32.xlu0 %v3547, 64
    %v3878 = vpop.permute.xlu0 %3877
    %3879 = vrot.lane.b32.xlu0 %v3550, 64
    %v3880 = vpop.permute.xlu0 %3879
    %3881 = vrot.lane.b32.xlu0 %v3552, 64
    %v3882 = vpop.permute.xlu0 %3881
    %3883 = vrot.lane.b32.xlu0 %v3555, 64
    %v3884 = vpop.permute.xlu0 %3883
    %3885 = vrot.lane.b32.xlu0 %v3557, 64
    %v3886 = vpop.permute.xlu0 %3885
    %3887 = vrot.lane.b32.xlu0 %v3560, 64
    %v3888 = vpop.permute.xlu0 %3887
    %3889 = vrot.lane.b32.xlu0 %v3562, 64
    %v3890 = vpop.permute.xlu0 %3889
    %3891 = vrot.lane.b32.xlu0 %v3565, 64
    %v3892 = vpop.permute.xlu0 %3891
    %3893 = vrot.lane.b32.xlu0 %v3567, 64
    %v3894 = vpop.permute.xlu0 %3893
    %3895 = vrot.lane.b32.xlu0 %v3570, 64
    %v3896 = vpop.permute.xlu0 %3895
    %3897 = vrot.lane.b32.xlu0 %v3572, 64
    %v3898 = vpop.permute.xlu0 %3897
    %3899 = vrot.lane.b32.xlu0 %v3575, 64
    %v3900 = vpop.permute.xlu0 %3899
    %3901 = vrot.lane.b32.xlu0 %v3577, 64
    %v3902 = vpop.permute.xlu0 %3901
    %3903 = vrot.lane.b32.xlu0 %v3580, 64
    %v3904 = vpop.permute.xlu0 %3903
    %3905 = vrot.lane.b32.xlu0 %v3582, 64
    %v3906 = vpop.permute.xlu0 %3905
    %3907 = vrot.lane.b32.xlu0 %v3585, 64
    %v3908 = vpop.permute.xlu0 %3907
    %3909 = vrot.lane.b32.xlu0 %v3587, 64
    %v3910 = vpop.permute.xlu0 %3909
    %3911 = vrot.lane.b32.xlu0 %v3590, 64
    %v3912 = vpop.permute.xlu0 %3911
    %3913 = vrot.lane.b32.xlu0 %v3592, 64
    %v3914 = vpop.permute.xlu0 %3913
    %3915 = vrot.lane.b32.xlu0 %v3595, 64
    %v3916 = vpop.permute.xlu0 %3915
    %3917 = vrot.lane.b32.xlu0 %v3597, 64
    %v3918 = vpop.permute.xlu0 %3917
    %3919 = vrot.lane.b32.xlu0 %v3600, 64
    %v3920 = vpop.permute.xlu0 %3919
    %3921 = vrot.lane.b32.xlu0 %v3602, 64
    %v3922 = vpop.permute.xlu0 %3921
    %3923 = vrot.lane.b32.xlu0 %v3679, 64
    %v3924 = vpop.permute.xlu0 %3923
    %3925 = vrot.lane.b32.xlu0 %v3681, 64
    %v3926 = vpop.permute.xlu0 %3925
    %3927 = vrot.lane.b32.xlu0 %v3684, 64
    %v3928 = vpop.permute.xlu0 %3927
    %3929 = vrot.lane.b32.xlu0 %v3686, 64
    %v3930 = vpop.permute.xlu0 %3929
    %3963 = vrot.lane.b32.xlu0 %v3637, 64
    %v3964 = vpop.permute.xlu0 %3963
    %3965 = vrot.lane.b32.xlu0 %v3639, 64
    %v3966 = vpop.permute.xlu0 %3965
    %3967 = vrot.lane.b32.xlu0 %v3642, 64
    %v3968 = vpop.permute.xlu0 %3967
    %3969 = vrot.lane.b32.xlu0 %v3644, 64
    %v3970 = vpop.permute.xlu0 %3969
    %v3975 = vsel %vm351, %v3401, %v3688
    %v3976 = vsel %vm351, %v2914, %v3690
    %v3977 = vsel %vm351, %v3402, %v3692
    %v3978 = vsel %vm351, %v2941, %v3694
    %v3979 = vsel %vm351, %v3403, %v3696
    %v3980 = vsel %vm351, %v2968, %v3698
    %v3981 = vsel %vm351, %v3404, %v3700
    %v3982 = vsel %vm351, %v2995, %v3702
    %v3983 = vsel %vm351, %v3405, %v3704
    %v3984 = vsel %vm351, %v3022, %v3706
    %v3985 = vsel %vm351, %v3406, %v3708
    %v3986 = vsel %vm351, %v3049, %v3710
    %v3987 = vsel %vm351, %v3407, %v3712
    %v3988 = vsel %vm351, %v3076, %v3714
    %v3989 = vsel %vm351, %v3408, %v3716
    %v3990 = vsel %vm351, %v3103, %v3718
    %v3991 = vsel %vm351, %v3409, %v3720
    %v3992 = vsel %vm351, %v3130, %v3722
    %v3993 = vsel %vm351, %v3410, %v3724
    %v3994 = vsel %vm351, %v3157, %v3726
    %v3995 = vsel %vm351, %v3411, %v3728
    %v3996 = vsel %vm351, %v3184, %v3730
    %v3997 = vsel %vm351, %v3412, %v3732
    %v3998 = vsel %vm351, %v3211, %v3734
    %v3999 = vsel %vm351, %v3413, %v3736
    %v4000 = vsel %vm351, %v3238, %v3738
    %v4001 = vsel %vm351, %v3414, %v3740
    %v4002 = vsel %vm351, %v3265, %v3742
    %v4003 = vsel %vm351, %v3535, %v3772
    %v4004 = vsel %vm351, %v3537, %v3774
    %v4005 = vsel %vm351, %v3540, %v3776
    %v4006 = vsel %vm351, %v3542, %v3778
    %v4007 = vsel %vm351, %v3535, %v3780
    %v4008 = vsel %vm351, %v3537, %v3782
    %v4009 = vsel %vm351, %v3540, %v3784
    %v4010 = vsel %vm351, %v3542, %v3786
    %v4011 = vsel %vm351, %v3545, %v3788
    %v4012 = vsel %vm351, %v3547, %v3790
    %v4013 = vsel %vm351, %v3550, %v3792
    %v4014 = vsel %vm351, %v3552, %v3794
    %v4015 = vsel %vm351, %v3555, %v3796
    %v4016 = vsel %vm351, %v3557, %v3798
    %v4017 = vsel %vm351, %v3560, %v3800
    %v4018 = vsel %vm351, %v3562, %v3802
    %v4019 = vsel %vm351, %v3565, %v3804
    %v4020 = vsel %vm351, %v3567, %v3806
    %v4021 = vsel %vm351, %v3570, %v3808
    %v4022 = vsel %vm351, %v3572, %v3810
    %v4023 = vsel %vm351, %v3575, %v3812
    %v4024 = vsel %vm351, %v3577, %v3814
    %v4025 = vsel %vm351, %v3580, %v3816
    %v4026 = vsel %vm351, %v3582, %v3818
    %v4027 = vsel %vm351, %v3585, %v3820
    %v4028 = vsel %vm351, %v3587, %v3822
    %v4029 = vsel %vm351, %v3590, %v3824
    %v4030 = vsel %vm351, %v3592, %v3826
    %v4031 = vsel %vm351, %v3595, %v3828
    %v4032 = vsel %vm351, %v3597, %v3830
    %v4033 = vsel %vm351, %v3600, %v3832
    %v4034 = vsel %vm351, %v3602, %v3834
    %v4035 = vsel %vm351, %v3464, %v3868
    %v4036 = vsel %vm351, %v3466, %v3870
    %v4037 = vsel %vm351, %v3469, %v3872
    %v4038 = vsel %vm351, %v3471, %v3874
    %v4039 = vsel %vm351, %v3474, %v3876
    %v4040 = vsel %vm351, %v3476, %v3878
    %v4041 = vsel %vm351, %v3479, %v3880
    %v4042 = vsel %vm351, %v3481, %v3882
    %v4043 = vsel %vm351, %v3484, %v3884
    %v4044 = vsel %vm351, %v3486, %v3886
    %v4045 = vsel %vm351, %v3489, %v3888
    %v4046 = vsel %vm351, %v3491, %v3890
    %v4047 = vsel %vm351, %v3494, %v3892
    %v4048 = vsel %vm351, %v3496, %v3894
    %v4049 = vsel %vm351, %v3499, %v3896
    %v4050 = vsel %vm351, %v3501, %v3898
    %v4051 = vsel %vm351, %v3504, %v3900
    %v4052 = vsel %vm351, %v3506, %v3902
    %v4053 = vsel %vm351, %v3509, %v3904
    %v4054 = vsel %vm351, %v3511, %v3906
    %v4055 = vsel %vm351, %v3514, %v3908
    %v4056 = vsel %vm351, %v3516, %v3910
    %v4057 = vsel %vm351, %v3519, %v3912
    %v4058 = vsel %vm351, %v3521, %v3914
    %v4059 = vsel %vm351, %v3524, %v3916
    %v4060 = vsel %vm351, %v3526, %v3918
    %v4061 = vsel %vm351, %v3529, %v3920
    %v4062 = vsel %vm351, %v3531, %v3922
    %v4063 = vsel %vm351, %v3637, %v3924
    %v4064 = vsel %vm351, %v3639, %v3926
    %v4065 = vsel %vm351, %v3642, %v3928
    %v4066 = vsel %vm351, %v3644, %v3930
    %v4067 = vsel %vm351, %v3415, %v3964
    %v4068 = vsel %vm351, %v3292, %v3966
    %v4069 = vsel %vm351, %v3416, %v3968
    %v4070 = vsel %vm351, %v3319, %v3970
    %v4071 = vld [vmem:[%s4] sm:$0xff]
    %v4072 = vld [vmem:[%s4 + $0x8] sm:$0xff]
    %v4073 = vld [vmem:[%s4 + $0x10] sm:$0xff]
    %v4074 = vld [vmem:[%s4 + $0x18] sm:$0xff]
    %v4075 = vld [vmem:[%s4 + $0x20] sm:$0xff]
    %v4076 = vld [vmem:[%s4 + $0x28] sm:$0xff]
    %v4077 = vld [vmem:[%s4 + $0x30] sm:$0xff]
    %v4078 = vld [vmem:[%s4 + $0x38] sm:$0xff]
    %v4079 = vld [vmem:[%s4 + $0x40] sm:$0xff]
    %v4080 = vld [vmem:[%s4 + $0x48] sm:$0xff]
    %v4081 = vld [vmem:[%s4 + $0x50] sm:$0xff]
    %v4082 = vld [vmem:[%s4 + $0x58] sm:$0xff]
    %v4083 = vld [vmem:[%s4 + $0x60] sm:$0xff]
    %v4084 = vld [vmem:[%s4 + $0x68] sm:$0xff]
    %v4085 = vld [vmem:[%s4 + $0x70] sm:$0xff]
    %v4086 = vld [vmem:[%s4 + $0x78] sm:$0xff]
    %v4087 = vld [vmem:[%s4 + $0x80] sm:$0xff]
    %v4088 = vld [vmem:[%s4 + $0x88] sm:$0xff]
    %v4089 = vld [vmem:[%s4 + $0x90] sm:$0xff]
    %v4090 = vld [vmem:[%s4 + $0x98] sm:$0xff]
    %v4091 = vld [vmem:[%s4 + $0xa0] sm:$0xff]
    %v4092 = vld [vmem:[%s4 + $0xa8] sm:$0xff]
    %v4093 = vld [vmem:[%s4 + $0xb0] sm:$0xff]
    %v4094 = vld [vmem:[%s4 + $0xb8] sm:$0xff]
    %v4095 = vld [vmem:[%s4 + $0xc0] sm:$0xff]
    %v4096 = vld [vmem:[%s4 + $0xc8] sm:$0xff]
    %v4097 = vld [vmem:[%s4 + $0xd0] sm:$0xff]
    %v4098 = vld [vmem:[%s4 + $0xd8] sm:$0xff]
    %v4099 = vld [vmem:[%s4 + $0xe0] sm:$0xff]
    %v4100 = vld [vmem:[%s4 + $0xe8] sm:$0xff]
    %v4101 = vld [vmem:[%s4 + $0xf0] sm:$0xff]
    %v4102 = vld [vmem:[%s4 + $0xf8] sm:$0xff]
    %v4103 = vld [vmem:[%s4 + $0x100] sm:$0xff]
    %v4104 = vld [vmem:[%s4 + $0x108] sm:$0xff]
    %v4105 = vld [vmem:[%s4 + $0x110] sm:$0xff]
    %v4106 = vld [vmem:[%s4 + $0x118] sm:$0xff]
    %v4107 = vld [vmem:[%s4 + $0x120] sm:$0xff]
    %v4108 = vld [vmem:[%s4 + $0x128] sm:$0xff]
    %v4109 = vld [vmem:[%s4 + $0x130] sm:$0xff]
    %v4110 = vld [vmem:[%s4 + $0x138] sm:$0xff]
    %v4111 = vld [vmem:[%s4 + $0x140] sm:$0xff]
    %v4112 = vld [vmem:[%s4 + $0x148] sm:$0xff]
    %v4113 = vld [vmem:[%s4 + $0x150] sm:$0xff]
    %v4114 = vld [vmem:[%s4 + $0x158] sm:$0xff]
    %v4115 = vld [vmem:[%s4 + $0x160] sm:$0xff]
    %v4116 = vld [vmem:[%s4 + $0x168] sm:$0xff]
    %v4117 = vld [vmem:[%s4 + $0x170] sm:$0xff]
    %v4118 = vld [vmem:[%s4 + $0x178] sm:$0xff]
    %v4119 = vld [vmem:[%s4 + $0x180] sm:$0xff]
    %v4120 = vld [vmem:[%s4 + $0x188] sm:$0xff]
    %v4121 = vld [vmem:[%s4 + $0x190] sm:$0xff]
    %v4122 = vld [vmem:[%s4 + $0x198] sm:$0xff]
    %v4123 = vld [vmem:[%s4 + $0x1a0] sm:$0xff]
    %v4124 = vld [vmem:[%s4 + $0x1a8] sm:$0xff]
    %v4125 = vld [vmem:[%s4 + $0x1b0] sm:$0xff]
    %v4126 = vld [vmem:[%s4 + $0x1b8] sm:$0xff]
    %v4127 = vld [vmem:[%s4 + $0x1c0] sm:$0xff]
    %v4128 = vld [vmem:[%s4 + $0x1c8] sm:$0xff]
    %v4129 = vld [vmem:[%s4 + $0x1d0] sm:$0xff]
    %v4130 = vld [vmem:[%s4 + $0x1d8] sm:$0xff]
    %v4131 = vld [vmem:[%s4 + $0x1e0] sm:$0xff]
    %v4132 = vld [vmem:[%s4 + $0x1e8] sm:$0xff]
    %v4133 = vld [vmem:[%s4 + $0x1f0] sm:$0xff]
    %v4134 = vld [vmem:[%s4 + $0x1f8] sm:$0xff]
    %v4135 = vld [vmem:[%s4 + $0x200] sm:$0xff]
    %v4136 = vld [vmem:[%s4 + $0x208] sm:$0xff]
    %v4137 = vld [vmem:[%s4 + $0x210] sm:$0xff]
    %v4138 = vld [vmem:[%s4 + $0x218] sm:$0xff]
    %v4139 = vld [vmem:[%s4 + $0x220] sm:$0xff]
    %v4140 = vld [vmem:[%s4 + $0x228] sm:$0xff]
    %v4141 = vld [vmem:[%s4 + $0x230] sm:$0xff]
    %v4142 = vld [vmem:[%s4 + $0x238] sm:$0xff]
    %v4143 = vld [vmem:[%s5] sm:$0x1]
    %v4145 = vlaneseq
    %v4146 = vshrl.u32 %v4145, 7
    %v4147 = vsub.s32 0, %v4146
    %v4148 = vrot.slane %v4143, %v4147
    %v4150 = vsel %vm351, %v3545, 0
    %v4152 = vsel %vm351, %v3547, 0
    %v4154 = vsel %vm351, %v3550, 0
    %v4156 = vsel %vm351, %v3552, 0
    %v4158 = vsel %vm351, %v3555, 0
    %v4160 = vsel %vm351, %v3557, 0
    %v4162 = vsel %vm351, %v3560, 0
    %v4164 = vsel %vm351, %v3562, 0
    %v4166 = vsel %vm351, %v3565, 0
    %v4168 = vsel %vm351, %v3567, 0
    %v4170 = vsel %vm351, %v3570, 0
    %v4172 = vsel %vm351, %v3572, 0
    %v4174 = vsel %vm351, %v3575, 0
    %v4176 = vsel %vm351, %v3577, 0
    %v4178 = vsel %vm351, %v3580, 0
    %v4180 = vsel %vm351, %v3582, 0
    %v4182 = vsel %vm351, %v3585, 0
    %v4184 = vsel %vm351, %v3587, 0
    %v4186 = vsel %vm351, %v3590, 0
    %v4188 = vsel %vm351, %v3592, 0
    %v4190 = vsel %vm351, %v3595, 0
    %v4192 = vsel %vm351, %v3597, 0
    %v4194 = vsel %vm351, %v3600, 0
    %v4196 = vsel %vm351, %v3602, 0
    %v4198 = vsel %vm351, %v3679, 0
    %v4200 = vsel %vm351, %v3681, 0
    %v4202 = vsel %vm351, %v3684, 0
    %v4204 = vsel %vm351, %v3686, 0
    %4206 = vmatprep.subr.mxu0 0.0
    %4207 = vmatpush1.msra.mxu0 %v4071
    %4208 = vmatprep.subr.mxu0 0.0
    %4209 = vmatpush1.msra.mxu0 %v4072
    %4210 = vmatprep.subr.mxu0 0.0
    %4211 = vmatpush1.msra.mxu0 %v4073
    %4212 = vmatprep.subr.mxu0 0.0
    %4213 = vmatpush1.msra.mxu0 %v4074
    %4214 = vmatprep.subr.mxu0 0.0
    %4215 = vmatpush1.msra.mxu0 %v4075
    %4216 = vmatprep.subr.mxu0 0.0
    %4217 = vmatpush1.msra.mxu0 %v4076
    %4218 = vmatprep.subr.mxu0 0.0
    %4219 = vmatpush1.msra.mxu0 %v4077
    %4220 = vmatprep.subr.mxu0 0.0
    %4221 = vmatpush1.msra.mxu0 %v4078
    %4222 = vmatprep.subr.mxu0 0.0
    %4223 = vmatpush1.msra.mxu0 %v4079
    %4224 = vmatprep.subr.mxu0 0.0
    %4225 = vmatpush1.msra.mxu0 %v4080
    %4226 = vmatprep.subr.mxu0 0.0
    %4227 = vmatpush1.msra.mxu0 %v4081
    %4228 = vmatprep.subr.mxu0 0.0
    %4229 = vmatpush1.msra.mxu0 %v4082
    %4230 = vmatprep.subr.mxu0 0.0
    %4231 = vmatpush1.msra.mxu0 %v4083
    %4232 = vmatprep.subr.mxu0 0.0
    %4233 = vmatpush1.msra.mxu0 %v4084
    %4234 = vmatprep.subr.mxu0 0.0
    %4235 = vmatpush1.msra.mxu0 %v4085
    %4236 = vmatprep.subr.mxu0 0.0
    %4237 = vmatpush1.msra.mxu0 %v4086
    %4238 = vmatprep.subr.mxu0 0.0
    %4239 = vmatpush1.msra.mxu0 %v4087
    %4240 = vmatprep.subr.mxu0 0.0
    %4241 = vmatpush1.msra.mxu0 %v4088
    %4242 = vmatprep.subr.mxu0 0.0
    %4243 = vmatpush1.msra.mxu0 %v4089
    %4244 = vmatprep.subr.mxu0 0.0
    %4245 = vmatpush1.msra.mxu0 %v4090
    %4246 = vmatprep.subr.mxu0 0.0
    %4247 = vmatpush1.msra.mxu0 %v4091
    %4248 = vmatprep.subr.mxu0 0.0
    %4249 = vmatpush1.msra.mxu0 %v4092
    %4250 = vmatprep.subr.mxu0 0.0
    %4251 = vmatpush1.msra.mxu0 %v4093
    %4252 = vmatprep.subr.mxu0 0.0
    %4253 = vmatpush1.msra.mxu0 %v4094
    %4254 = vmatprep.subr.mxu0 0.0
    %4255 = vmatpush1.msra.mxu0 %v4095
    %4256 = vmatprep.subr.mxu0 0.0
    %4257 = vmatpush1.msra.mxu0 %v4096
    %4258 = vmatprep.subr.mxu0 0.0
    %4259 = vmatpush1.msra.mxu0 %v4097
    %4260 = vmatprep.subr.mxu0 0.0
    %4261 = vmatpush1.msra.mxu0 %v4098
    %4262 = vmatprep.subr.mxu0 0.0
    %4263 = vmatpush1.msra.mxu0 %v4099
    %4264 = vmatprep.subr.mxu0 0.0
    %4265 = vmatpush1.msra.mxu0 %v4100
    %4266 = vmatprep.subr.mxu0 0.0
    %4267 = vmatpush1.msra.mxu0 %v4101
    %4268 = vmatprep.subr.mxu0 0.0
    %4269 = vmatpush1.msra.mxu0 %v4102
    %4270 = vmatprep.mubr.f32.mxu0 %v4003
    %4271 = vmatmul.mubr.f32.gmra.mrb[0].mxu0 %v3975
    %v4272 = vpop.f32.mrb[0].mxu0
    %v4273 = vadd.f32 %v4148, %v4272
    %v4274 = vpop.f32.mrb[0].mxu0
    %4275 = vmatprep.mubr.f32.mxu0 %v4004
    %4276 = vmatmul.mubr.f32.gmra.mrb[0].mxu0 %v3976
    %v4277 = vpop.f32.mrb[0].mxu0
    %v4278 = vadd.f32 %v4148, %v4277
    %v4279 = vpop.f32.mrb[0].mxu0
    %4280 = vmatprep.mubr.f32.mxu0 %v4005
    %4281 = vmatmul.mubr.f32.gmra.mrb[0].mxu0 %v3977
    %v4282 = vpop.f32.mrb[0].mxu0
    %v4283 = vadd.f32 %v4148, %v4282
    %v4284 = vpop.f32.mrb[0].mxu0
    %4285 = vmatprep.mubr.f32.mxu0 %v4006
    %4286 = vmatmul.mubr.f32.gmra.mrb[0].mxu0 %v3978
    %v4287 = vpop.f32.mrb[0].mxu0
    %v4288 = vadd.f32 %v4148, %v4287
    %v4289 = vpop.f32.mrb[0].mxu0
    %4290 = vmatprep.mubr.f32.mxu0 %v4007
    %4291 = vmatmul.mubr.f32.gmra.mrb[0].mxu0 %v3975
    %v4292 = vpop.f32.mrb[0].mxu0
    %v4293 = vadd.f32 %v4148, %v4292
    %v4294 = vpop.f32.mrb[0].mxu0
    %4295 = vmatprep.mubr.f32.mxu0 %v4008
    %4296 = vmatmul.mubr.f32.gmra.mrb[0].mxu0 %v3976
    %v4297 = vpop.f32.mrb[0].mxu0
    %v4298 = vadd.f32 %v4148, %v4297
    %v4299 = vpop.f32.mrb[0].mxu0
    %4300 = vmatprep.mubr.f32.mxu0 %v4009
    %4301 = vmatmul.mubr.f32.gmra.mrb[0].mxu0 %v3977
    %v4302 = vpop.f32.mrb[0].mxu0
    %v4303 = vadd.f32 %v4148, %v4302
    %v4304 = vpop.f32.mrb[0].mxu0
    %4305 = vmatprep.mubr.f32.mxu0 %v4010
    %4306 = vmatmul.mubr.f32.gmra.mrb[0].mxu0 %v3978
    %v4307 = vpop.f32.mrb[0].mxu0
    %v4308 = vadd.f32 %v4148, %v4307
    %v4309 = vpop.f32.mrb[0].mxu0
    %4310 = vmatprep.mubr.f32.mxu0 %v4011
    %4311 = vmatmul.mubr.f32.gmra.mrb[0].mxu0 %v3979
    %v4312 = vpop.f32.mrb[0].mxu0
    %v4313 = vadd.f32 %v4148, %v4312
    %v4314 = vpop.f32.mrb[0].mxu0
    %4315 = vmatprep.mubr.f32.mxu0 %v4012
    %4316 = vmatmul.mubr.f32.gmra.mrb[0].mxu0 %v3980
    %v4317 = vpop.f32.mrb[0].mxu0
    %v4318 = vadd.f32 %v4148, %v4317
    %v4319 = vpop.f32.mrb[0].mxu0
    %4320 = vmatprep.mubr.f32.mxu0 %v4013
    %4321 = vmatmul.mubr.f32.gmra.mrb[0].mxu0 %v3981
    %v4322 = vpop.f32.mrb[0].mxu0
    %v4323 = vadd.f32 %v4148, %v4322
    %v4324 = vpop.f32.mrb[0].mxu0
    %4325 = vmatprep.mubr.f32.mxu0 %v4014
    %4326 = vmatmul.mubr.f32.gmra.mrb[0].mxu0 %v3982
    %v4327 = vpop.f32.mrb[0].mxu0
    %v4328 = vadd.f32 %v4148, %v4327
    %v4329 = vpop.f32.mrb[0].mxu0
    %4330 = vmatprep.mubr.f32.mxu0 %v4015
    %4331 = vmatmul.mubr.f32.gmra.mrb[0].mxu0 %v3983
    %v4332 = vpop.f32.mrb[0].mxu0
    %v4333 = vadd.f32 %v4148, %v4332
    %v4334 = vpop.f32.mrb[0].mxu0
    %4335 = vmatprep.mubr.f32.mxu0 %v4016
    %4336 = vmatmul.mubr.f32.gmra.mrb[0].mxu0 %v3984
    %v4337 = vpop.f32.mrb[0].mxu0
    %v4338 = vadd.f32 %v4148, %v4337
    %v4339 = vpop.f32.mrb[0].mxu0
    %4340 = vmatprep.mubr.f32.mxu0 %v4017
    %4341 = vmatmul.mubr.f32.gmra.mrb[0].mxu0 %v3985
    %v4342 = vpop.f32.mrb[0].mxu0
    %v4343 = vadd.f32 %v4148, %v4342
    %v4344 = vpop.f32.mrb[0].mxu0
    %4345 = vmatprep.mubr.f32.mxu0 %v4018
    %4346 = vmatmul.mubr.f32.gmra.mrb[0].mxu0 %v3986
    %v4347 = vpop.f32.mrb[0].mxu0
    %v4348 = vadd.f32 %v4148, %v4347
    %v4349 = vpop.f32.mrb[0].mxu0
    %4350 = vmatprep.mubr.f32.mxu0 %v4019
    %4351 = vmatmul.mubr.f32.gmra.mrb[0].mxu0 %v3987
    %v4352 = vpop.f32.mrb[0].mxu0
    %v4353 = vadd.f32 %v4148, %v4352
    %v4354 = vpop.f32.mrb[0].mxu0
    %4355 = vmatprep.mubr.f32.mxu0 %v4020
    %4356 = vmatmul.mubr.f32.gmra.mrb[0].mxu0 %v3988
    %v4357 = vpop.f32.mrb[0].mxu0
    %v4358 = vadd.f32 %v4148, %v4357
    %v4359 = vpop.f32.mrb[0].mxu0
    %4360 = vmatprep.mubr.f32.mxu0 %v4021
    %4361 = vmatmul.mubr.f32.gmra.mrb[0].mxu0 %v3989
    %v4362 = vpop.f32.mrb[0].mxu0
    %v4363 = vadd.f32 %v4148, %v4362
    %v4364 = vpop.f32.mrb[0].mxu0
    %4365 = vmatprep.mubr.f32.mxu0 %v4022
    %4366 = vmatmul.mubr.f32.gmra.mrb[0].mxu0 %v3990
    %v4367 = vpop.f32.mrb[0].mxu0
    %v4368 = vadd.f32 %v4148, %v4367
    %v4369 = vpop.f32.mrb[0].mxu0
    %4370 = vmatprep.mubr.f32.mxu0 %v4023
    %4371 = vmatmul.mubr.f32.gmra.mrb[0].mxu0 %v3991
    %v4372 = vpop.f32.mrb[0].mxu0
    %v4373 = vadd.f32 %v4148, %v4372
    %v4374 = vpop.f32.mrb[0].mxu0
    %4375 = vmatprep.mubr.f32.mxu0 %v4024
    %4376 = vmatmul.mubr.f32.gmra.mrb[0].mxu0 %v3992
    %v4377 = vpop.f32.mrb[0].mxu0
    %v4378 = vadd.f32 %v4148, %v4377
    %v4379 = vpop.f32.mrb[0].mxu0
    %4380 = vmatprep.mubr.f32.mxu0 %v4025
    %4381 = vmatmul.mubr.f32.gmra.mrb[0].mxu0 %v3993
    %v4382 = vpop.f32.mrb[0].mxu0
    %v4383 = vadd.f32 %v4148, %v4382
    %v4384 = vpop.f32.mrb[0].mxu0
    %4385 = vmatprep.mubr.f32.mxu0 %v4026
    %4386 = vmatmul.mubr.f32.gmra.mrb[0].mxu0 %v3994
    %v4387 = vpop.f32.mrb[0].mxu0
    %v4388 = vadd.f32 %v4148, %v4387
    %v4389 = vpop.f32.mrb[0].mxu0
    %4390 = vmatprep.mubr.f32.mxu0 %v4027
    %4391 = vmatmul.mubr.f32.gmra.mrb[0].mxu0 %v3995
    %v4392 = vpop.f32.mrb[0].mxu0
    %v4393 = vadd.f32 %v4148, %v4392
    %v4394 = vpop.f32.mrb[0].mxu0
    %4395 = vmatprep.mubr.f32.mxu0 %v4028
    %4396 = vmatmul.mubr.f32.gmra.mrb[0].mxu0 %v3996
    %v4397 = vpop.f32.mrb[0].mxu0
    %v4398 = vadd.f32 %v4148, %v4397
    %v4399 = vpop.f32.mrb[0].mxu0
    %4400 = vmatprep.mubr.f32.mxu0 %v4029
    %4401 = vmatmul.mubr.f32.gmra.mrb[0].mxu0 %v3997
    %v4402 = vpop.f32.mrb[0].mxu0
    %v4403 = vadd.f32 %v4148, %v4402
    %v4404 = vpop.f32.mrb[0].mxu0
    %4405 = vmatprep.mubr.f32.mxu0 %v4030
    %4406 = vmatmul.mubr.f32.gmra.mrb[0].mxu0 %v3998
    %v4407 = vpop.f32.mrb[0].mxu0
    %v4408 = vadd.f32 %v4148, %v4407
    %v4409 = vpop.f32.mrb[0].mxu0
    %4410 = vmatprep.mubr.f32.mxu0 %v4031
    %4411 = vmatmul.mubr.f32.gmra.mrb[0].mxu0 %v3999
    %v4412 = vpop.f32.mrb[0].mxu0
    %v4413 = vadd.f32 %v4148, %v4412
    %v4414 = vpop.f32.mrb[0].mxu0
    %4415 = vmatprep.mubr.f32.mxu0 %v4032
    %4416 = vmatmul.mubr.f32.gmra.mrb[0].mxu0 %v4000
    %v4417 = vpop.f32.mrb[0].mxu0
    %v4418 = vadd.f32 %v4148, %v4417
    %v4419 = vpop.f32.mrb[0].mxu0
    %4420 = vmatprep.mubr.f32.mxu0 %v4033
    %4421 = vmatmul.mubr.f32.gmra.mrb[0].mxu0 %v4001
    %v4422 = vpop.f32.mrb[0].mxu0
    %v4423 = vadd.f32 %v4148, %v4422
    %v4424 = vpop.f32.mrb[0].mxu0
    %4425 = vmatprep.mubr.f32.mxu0 %v4034
    %4426 = vmatmul.mubr.f32.gmra.mrb[0].mxu0 %v4002
    %v4427 = vpop.f32.mrb[0].mxu0
    %v4428 = vadd.f32 %v4148, %v4427
    %v4429 = vpop.f32.mrb[0].mxu0
    %4430 = vdwg.mxu0
    %4431 = vmatprep.subr.mxu0 0.0
    %4432 = vmatpush1.msra.mxu0 %v4103
    %4433 = vmatprep.subr.mxu0 0.0
    %4434 = vmatpush1.msra.mxu0 %v4104
    %4435 = vmatprep.subr.mxu0 0.0
    %4436 = vmatpush1.msra.mxu0 %v4105
    %4437 = vmatprep.subr.mxu0 0.0
    %4438 = vmatpush1.msra.mxu0 %v4106
    %4439 = vmatprep.subr.mxu0 0.0
    %4440 = vmatpush1.msra.mxu0 %v4107
    %4441 = vmatprep.subr.mxu0 0.0
    %4442 = vmatpush1.msra.mxu0 %v4108
    %4443 = vmatprep.subr.mxu0 0.0
    %4444 = vmatpush1.msra.mxu0 %v4109
    %4445 = vmatprep.subr.mxu0 0.0
    %4446 = vmatpush1.msra.mxu0 %v4110
    %4447 = vmatprep.subr.mxu0 0.0
    %4448 = vmatpush1.msra.mxu0 %v4111
    %4449 = vmatprep.subr.mxu0 0.0
    %4450 = vmatpush1.msra.mxu0 %v4112
    %4451 = vmatprep.subr.mxu0 0.0
    %4452 = vmatpush1.msra.mxu0 %v4113
    %4453 = vmatprep.subr.mxu0 0.0
    %4454 = vmatpush1.msra.mxu0 %v4114
    %4455 = vmatprep.subr.mxu0 0.0
    %4456 = vmatpush1.msra.mxu0 %v4115
    %4457 = vmatprep.subr.mxu0 0.0
    %4458 = vmatpush1.msra.mxu0 %v4116
    %4459 = vmatprep.subr.mxu0 0.0
    %4460 = vmatpush1.msra.mxu0 %v4117
    %4461 = vmatprep.subr.mxu0 0.0
    %4462 = vmatpush1.msra.mxu0 %v4118
    %4463 = vmatprep.subr.mxu0 0.0
    %4464 = vmatpush1.msra.mxu0 %v4119
    %4465 = vmatprep.subr.mxu0 0.0
    %4466 = vmatpush1.msra.mxu0 %v4120
    %4467 = vmatprep.subr.mxu0 0.0
    %4468 = vmatpush1.msra.mxu0 %v4121
    %4469 = vmatprep.subr.mxu0 0.0
    %4470 = vmatpush1.msra.mxu0 %v4122
    %4471 = vmatprep.subr.mxu0 0.0
    %4472 = vmatpush1.msra.mxu0 %v4123
    %4473 = vmatprep.subr.mxu0 0.0
    %4474 = vmatpush1.msra.mxu0 %v4124
    %4475 = vmatprep.subr.mxu0 0.0
    %4476 = vmatpush1.msra.mxu0 %v4125
    %4477 = vmatprep.subr.mxu0 0.0
    %4478 = vmatpush1.msra.mxu0 %v4126
    %4479 = vmatprep.subr.mxu0 0.0
    %4480 = vmatpush1.msra.mxu0 %v4127
    %4481 = vmatprep.subr.mxu0 0.0
    %4482 = vmatpush1.msra.mxu0 %v4128
    %4483 = vmatprep.subr.mxu0 0.0
    %4484 = vmatpush1.msra.mxu0 %v4129
    %4485 = vmatprep.subr.mxu0 0.0
    %4486 = vmatpush1.msra.mxu0 %v4130
    %4487 = vmatprep.subr.mxu0 0.0
    %4488 = vmatpush1.msra.mxu0 %v4131
    %4489 = vmatprep.subr.mxu0 0.0
    %4490 = vmatpush1.msra.mxu0 %v4132
    %4491 = vmatprep.subr.mxu0 0.0
    %4492 = vmatpush1.msra.mxu0 %v4133
    %4493 = vmatprep.subr.mxu0 0.0
    %4494 = vmatpush1.msra.mxu0 %v4134
    %4495 = vmatprep.mubr.f32.mxu0 %v3979
    %4496 = vmatmul.mubr.f32.gmra.mrb[0].mxu0 %v4035
    %v4497 = vpop.f32.mrb[0].mxu0
    %v4498 = vadd.f32 %v4273, %v4497
    %v4499 = vpop.f32.mrb[0].mxu0
    %4500 = vmatprep.mubr.f32.mxu0 %v3980
    %4501 = vmatmul.mubr.f32.gmra.mrb[0].mxu0 %v4036
    %v4502 = vpop.f32.mrb[0].mxu0
    %v4503 = vadd.f32 %v4278, %v4502
    %v4504 = vpop.f32.mrb[0].mxu0
    %4505 = vmatprep.mubr.f32.mxu0 %v3981
    %4506 = vmatmul.mubr.f32.gmra.mrb[0].mxu0 %v4037
    %v4507 = vpop.f32.mrb[0].mxu0
    %v4508 = vadd.f32 %v4283, %v4507
    %v4509 = vpop.f32.mrb[0].mxu0
    %4510 = vmatprep.mubr.f32.mxu0 %v3982
    %4511 = vmatmul.mubr.f32.gmra.mrb[0].mxu0 %v4038
    %v4512 = vpop.f32.mrb[0].mxu0
    %v4513 = vadd.f32 %v4288, %v4512
    %v4514 = vpop.f32.mrb[0].mxu0
    %4515 = vmatprep.mubr.f32.mxu0 %v3983
    %4516 = vmatmul.mubr.f32.gmra.mrb[0].mxu0 %v4039
    %v4517 = vpop.f32.mrb[0].mxu0
    %v4518 = vadd.f32 %v4293, %v4517
    %v4519 = vpop.f32.mrb[0].mxu0
    %4520 = vmatprep.mubr.f32.mxu0 %v3984
    %4521 = vmatmul.mubr.f32.gmra.mrb[0].mxu0 %v4040
    %v4522 = vpop.f32.mrb[0].mxu0
    %v4523 = vadd.f32 %v4298, %v4522
    %v4524 = vpop.f32.mrb[0].mxu0
    %4525 = vmatprep.mubr.f32.mxu0 %v3985
    %4526 = vmatmul.mubr.f32.gmra.mrb[0].mxu0 %v4041
    %v4527 = vpop.f32.mrb[0].mxu0
    %v4528 = vadd.f32 %v4303, %v4527
    %v4529 = vpop.f32.mrb[0].mxu0
    %4530 = vmatprep.mubr.f32.mxu0 %v3986
    %4531 = vmatmul.mubr.f32.gmra.mrb[0].mxu0 %v4042
    %v4532 = vpop.f32.mrb[0].mxu0
    %v4533 = vadd.f32 %v4308, %v4532
    %v4534 = vpop.f32.mrb[0].mxu0
    %4535 = vmatprep.mubr.f32.mxu0 %v3987
    %4536 = vmatmul.mubr.f32.gmra.mrb[0].mxu0 %v4043
    %v4537 = vpop.f32.mrb[0].mxu0
    %v4538 = vadd.f32 %v4313, %v4537
    %v4539 = vpop.f32.mrb[0].mxu0
    %4540 = vmatprep.mubr.f32.mxu0 %v3988
    %4541 = vmatmul.mubr.f32.gmra.mrb[0].mxu0 %v4044
    %v4542 = vpop.f32.mrb[0].mxu0
    %v4543 = vadd.f32 %v4318, %v4542
    %v4544 = vpop.f32.mrb[0].mxu0
    %4545 = vmatprep.mubr.f32.mxu0 %v3989
    %4546 = vmatmul.mubr.f32.gmra.mrb[0].mxu0 %v4045
    %v4547 = vpop.f32.mrb[0].mxu0
    %v4548 = vadd.f32 %v4323, %v4547
    %v4549 = vpop.f32.mrb[0].mxu0
    %4550 = vmatprep.mubr.f32.mxu0 %v3990
    %4551 = vmatmul.mubr.f32.gmra.mrb[0].mxu0 %v4046
    %v4552 = vpop.f32.mrb[0].mxu0
    %v4553 = vadd.f32 %v4328, %v4552
    %v4554 = vpop.f32.mrb[0].mxu0
    %4555 = vmatprep.mubr.f32.mxu0 %v3991
    %4556 = vmatmul.mubr.f32.gmra.mrb[0].mxu0 %v4047
    %v4557 = vpop.f32.mrb[0].mxu0
    %v4558 = vadd.f32 %v4333, %v4557
    %v4559 = vpop.f32.mrb[0].mxu0
    %4560 = vmatprep.mubr.f32.mxu0 %v3992
    %4561 = vmatmul.mubr.f32.gmra.mrb[0].mxu0 %v4048
    %v4562 = vpop.f32.mrb[0].mxu0
    %v4563 = vadd.f32 %v4338, %v4562
    %v4564 = vpop.f32.mrb[0].mxu0
    %4565 = vmatprep.mubr.f32.mxu0 %v3993
    %4566 = vmatmul.mubr.f32.gmra.mrb[0].mxu0 %v4049
    %v4567 = vpop.f32.mrb[0].mxu0
    %v4568 = vadd.f32 %v4343, %v4567
    %v4569 = vpop.f32.mrb[0].mxu0
    %4570 = vmatprep.mubr.f32.mxu0 %v3994
    %4571 = vmatmul.mubr.f32.gmra.mrb[0].mxu0 %v4050
    %v4572 = vpop.f32.mrb[0].mxu0
    %v4573 = vadd.f32 %v4348, %v4572
    %v4574 = vpop.f32.mrb[0].mxu0
    %4575 = vmatprep.mubr.f32.mxu0 %v3995
    %4576 = vmatmul.mubr.f32.gmra.mrb[0].mxu0 %v4051
    %v4577 = vpop.f32.mrb[0].mxu0
    %v4578 = vadd.f32 %v4353, %v4577
    %v4579 = vpop.f32.mrb[0].mxu0
    %4580 = vmatprep.mubr.f32.mxu0 %v3996
    %4581 = vmatmul.mubr.f32.gmra.mrb[0].mxu0 %v4052
    %v4582 = vpop.f32.mrb[0].mxu0
    %v4583 = vadd.f32 %v4358, %v4582
    %v4584 = vpop.f32.mrb[0].mxu0
    %4585 = vmatprep.mubr.f32.mxu0 %v3997
    %4586 = vmatmul.mubr.f32.gmra.mrb[0].mxu0 %v4053
    %v4587 = vpop.f32.mrb[0].mxu0
    %v4588 = vadd.f32 %v4363, %v4587
    %v4589 = vpop.f32.mrb[0].mxu0
    %4590 = vmatprep.mubr.f32.mxu0 %v3998
    %4591 = vmatmul.mubr.f32.gmra.mrb[0].mxu0 %v4054
    %v4592 = vpop.f32.mrb[0].mxu0
    %v4593 = vadd.f32 %v4368, %v4592
    %v4594 = vpop.f32.mrb[0].mxu0
    %4595 = vmatprep.mubr.f32.mxu0 %v3999
    %4596 = vmatmul.mubr.f32.gmra.mrb[0].mxu0 %v4055
    %v4597 = vpop.f32.mrb[0].mxu0
    %v4598 = vadd.f32 %v4373, %v4597
    %v4599 = vpop.f32.mrb[0].mxu0
    %4600 = vmatprep.mubr.f32.mxu0 %v4000
    %4601 = vmatmul.mubr.f32.gmra.mrb[0].mxu0 %v4056
    %v4602 = vpop.f32.mrb[0].mxu0
    %v4603 = vadd.f32 %v4378, %v4602
    %v4604 = vpop.f32.mrb[0].mxu0
    %4605 = vmatprep.mubr.f32.mxu0 %v4001
    %4606 = vmatmul.mubr.f32.gmra.mrb[0].mxu0 %v4057
    %v4607 = vpop.f32.mrb[0].mxu0
    %v4608 = vadd.f32 %v4383, %v4607
    %v4609 = vpop.f32.mrb[0].mxu0
    %4610 = vmatprep.mubr.f32.mxu0 %v4002
    %4611 = vmatmul.mubr.f32.gmra.mrb[0].mxu0 %v4058
    %v4612 = vpop.f32.mrb[0].mxu0
    %v4613 = vadd.f32 %v4388, %v4612
    %v4614 = vpop.f32.mrb[0].mxu0
    %4615 = vmatprep.mubr.f32.mxu0 %v4067
    %4616 = vmatmul.mubr.f32.gmra.mrb[0].mxu0 %v4059
    %v4617 = vpop.f32.mrb[0].mxu0
    %v4618 = vadd.f32 %v4393, %v4617
    %v4619 = vpop.f32.mrb[0].mxu0
    %4620 = vmatprep.mubr.f32.mxu0 %v4068
    %4621 = vmatmul.mubr.f32.gmra.mrb[0].mxu0 %v4060
    %v4622 = vpop.f32.mrb[0].mxu0
    %v4623 = vadd.f32 %v4398, %v4622
    %v4624 = vpop.f32.mrb[0].mxu0
    %4625 = vmatprep.mubr.f32.mxu0 %v4069
    %4626 = vmatmul.mubr.f32.gmra.mrb[0].mxu0 %v4061
    %v4627 = vpop.f32.mrb[0].mxu0
    %v4628 = vadd.f32 %v4403, %v4627
    %v4629 = vpop.f32.mrb[0].mxu0
    %4630 = vmatprep.mubr.f32.mxu0 %v4070
    %4631 = vmatmul.mubr.f32.gmra.mrb[0].mxu0 %v4062
    %v4632 = vpop.f32.mrb[0].mxu0
    %v4633 = vadd.f32 %v4408, %v4632
    %v4634 = vpop.f32.mrb[0].mxu0
    %4635 = vmatprep.mubr.f32.mxu0 %v4067
    %4636 = vmatmul.mubr.f32.gmra.mrb[0].mxu0 %v4063
    %v4637 = vpop.f32.mrb[0].mxu0
    %v4638 = vadd.f32 %v4413, %v4637
    %v4639 = vpop.f32.mrb[0].mxu0
    %4640 = vmatprep.mubr.f32.mxu0 %v4068
    %4641 = vmatmul.mubr.f32.gmra.mrb[0].mxu0 %v4064
    %v4642 = vpop.f32.mrb[0].mxu0
    %v4643 = vadd.f32 %v4418, %v4642
    %v4644 = vpop.f32.mrb[0].mxu0
    %4645 = vmatprep.mubr.f32.mxu0 %v4069
    %4646 = vmatmul.mubr.f32.gmra.mrb[0].mxu0 %v4065
    %v4647 = vpop.f32.mrb[0].mxu0
    %v4648 = vadd.f32 %v4423, %v4647
    %v4649 = vpop.f32.mrb[0].mxu0
    %4650 = vmatprep.mubr.f32.mxu0 %v4070
    %4651 = vmatmul.mubr.f32.gmra.mrb[0].mxu0 %v4066
    %v4652 = vpop.f32.mrb[0].mxu0
    %v4653 = vadd.f32 %v4428, %v4652
    %v4654 = vpop.f32.mrb[0].mxu0
    %4655 = vdwg.mxu0
    %4656 = vmatprep.subr.mxu0 0.0
    %4657 = vmatpush1.msra.mxu0 %v4135
    %4658 = vmatprep.subr.mxu0 0.0
    %4659 = vmatpush1.msra.mxu0 %v4136
    %4660 = vmatprep.subr.mxu0 0.0
    %4661 = vmatpush1.msra.mxu0 %v4137
    %4662 = vmatprep.subr.mxu0 0.0
    %4663 = vmatpush1.msra.mxu0 %v4138
    %4664 = vmatprep.subr.mxu0 0.0
    %4665 = vmatpush1.msra.mxu0 %v4139
    %4666 = vmatprep.subr.mxu0 0.0
    %4667 = vmatpush1.msra.mxu0 %v4140
    %4668 = vmatprep.subr.mxu0 0.0
    %4669 = vmatpush1.msra.mxu0 %v4141
    %4670 = vmatprep.subr.mxu0 0.0
    %4671 = vmatpush1.msra.mxu0 %v4142
    %4672 = vmatprep.subr.mxu0 0.0
    %4673 = vmatpush1.msra.mxu0 0.0
    %4674 = vmatprep.subr.mxu0 0.0
    %4675 = vmatpush1.msra.mxu0 0.0
    %4676 = vmatprep.subr.mxu0 0.0
    %4677 = vmatpush1.msra.mxu0 0.0
    %4678 = vmatprep.subr.mxu0 0.0
    %4679 = vmatpush1.msra.mxu0 0.0
    %4680 = vmatprep.subr.mxu0 0.0
    %4681 = vmatpush1.msra.mxu0 0.0
    %4682 = vmatprep.subr.mxu0 0.0
    %4683 = vmatpush1.msra.mxu0 0.0
    %4684 = vmatprep.subr.mxu0 0.0
    %4685 = vmatpush1.msra.mxu0 0.0
    %4686 = vmatprep.subr.mxu0 0.0
    %4687 = vmatpush1.msra.mxu0 0.0
    %4688 = vmatprep.subr.mxu0 0.0
    %4689 = vmatpush1.msra.mxu0 0.0
    %4690 = vmatprep.subr.mxu0 0.0
    %4691 = vmatpush1.msra.mxu0 0.0
    %4692 = vmatprep.subr.mxu0 0.0
    %4693 = vmatpush1.msra.mxu0 0.0
    %4694 = vmatprep.subr.mxu0 0.0
    %4695 = vmatpush1.msra.mxu0 0.0
    %4696 = vmatprep.subr.mxu0 0.0
    %4697 = vmatpush1.msra.mxu0 0.0
    %4698 = vmatprep.subr.mxu0 0.0
    %4699 = vmatpush1.msra.mxu0 0.0
    %4700 = vmatprep.subr.mxu0 0.0
    %4701 = vmatpush1.msra.mxu0 0.0
    %4702 = vmatprep.subr.mxu0 0.0
    %4703 = vmatpush1.msra.mxu0 0.0
    %4704 = vmatprep.subr.mxu0 0.0
    %4705 = vmatpush1.msra.mxu0 0.0
    %4706 = vmatprep.subr.mxu0 0.0
    %4707 = vmatpush1.msra.mxu0 0.0
    %4708 = vmatprep.subr.mxu0 0.0
    %4709 = vmatpush1.msra.mxu0 0.0
    %4710 = vmatprep.subr.mxu0 0.0
    %4711 = vmatpush1.msra.mxu0 0.0
    %4712 = vmatprep.subr.mxu0 0.0
    %4713 = vmatpush1.msra.mxu0 0.0
    %4714 = vmatprep.subr.mxu0 0.0
    %4715 = vmatpush1.msra.mxu0 0.0
    %4716 = vmatprep.subr.mxu0 0.0
    %4717 = vmatpush1.msra.mxu0 0.0
    %4718 = vmatprep.subr.mxu0 0.0
    %4719 = vmatpush1.msra.mxu0 0.0
    %4720 = vmatprep.mubr.f32.mxu0 0.0
    %4721 = vmatmul.mubr.f32.gmra.mrb[0].mxu0 %v4150
    %v4722 = vpop.f32.mrb[0].mxu0
    %v4723 = vadd.f32 %v4498, %v4722
    %v4724 = vpop.f32.mrb[0].mxu0
    %4725 = vmatprep.mubr.f32.mxu0 0.0
    %4726 = vmatmul.mubr.f32.gmra.mrb[0].mxu0 %v4152
    %v4727 = vpop.f32.mrb[0].mxu0
    %v4728 = vadd.f32 %v4503, %v4727
    %v4729 = vpop.f32.mrb[0].mxu0
    %4730 = vmatprep.mubr.f32.mxu0 0.0
    %4731 = vmatmul.mubr.f32.gmra.mrb[0].mxu0 %v4154
    %v4732 = vpop.f32.mrb[0].mxu0
    %v4733 = vadd.f32 %v4508, %v4732
    %v4734 = vpop.f32.mrb[0].mxu0
    %4735 = vmatprep.mubr.f32.mxu0 0.0
    %4736 = vmatmul.mubr.f32.gmra.mrb[0].mxu0 %v4156
    %v4737 = vpop.f32.mrb[0].mxu0
    %v4738 = vadd.f32 %v4513, %v4737
    %v4739 = vpop.f32.mrb[0].mxu0
    %4740 = vmatprep.mubr.f32.mxu0 0.0
    %4741 = vmatmul.mubr.f32.gmra.mrb[0].mxu0 %v4158
    %v4742 = vpop.f32.mrb[0].mxu0
    %v4743 = vadd.f32 %v4518, %v4742
    %v4744 = vpop.f32.mrb[0].mxu0
    %4745 = vmatprep.mubr.f32.mxu0 0.0
    %4746 = vmatmul.mubr.f32.gmra.mrb[0].mxu0 %v4160
    %v4747 = vpop.f32.mrb[0].mxu0
    %v4748 = vadd.f32 %v4523, %v4747
    %v4749 = vpop.f32.mrb[0].mxu0
    %4750 = vmatprep.mubr.f32.mxu0 0.0
    %4751 = vmatmul.mubr.f32.gmra.mrb[0].mxu0 %v4162
    %v4752 = vpop.f32.mrb[0].mxu0
    %v4753 = vadd.f32 %v4528, %v4752
    %v4754 = vpop.f32.mrb[0].mxu0
    %4755 = vmatprep.mubr.f32.mxu0 0.0
    %4756 = vmatmul.mubr.f32.gmra.mrb[0].mxu0 %v4164
    %v4757 = vpop.f32.mrb[0].mxu0
    %v4758 = vadd.f32 %v4533, %v4757
    %v4759 = vpop.f32.mrb[0].mxu0
    %4760 = vmatprep.mubr.f32.mxu0 0.0
    %4761 = vmatmul.mubr.f32.gmra.mrb[0].mxu0 %v4166
    %v4762 = vpop.f32.mrb[0].mxu0
    %v4763 = vadd.f32 %v4538, %v4762
    %v4764 = vpop.f32.mrb[0].mxu0
    %4765 = vmatprep.mubr.f32.mxu0 0.0
    %4766 = vmatmul.mubr.f32.gmra.mrb[0].mxu0 %v4168
    %v4767 = vpop.f32.mrb[0].mxu0
    %v4768 = vadd.f32 %v4543, %v4767
    %v4769 = vpop.f32.mrb[0].mxu0
    %4770 = vmatprep.mubr.f32.mxu0 0.0
    %4771 = vmatmul.mubr.f32.gmra.mrb[0].mxu0 %v4170
    %v4772 = vpop.f32.mrb[0].mxu0
    %v4773 = vadd.f32 %v4548, %v4772
    %v4774 = vpop.f32.mrb[0].mxu0
    %4775 = vmatprep.mubr.f32.mxu0 0.0
    %4776 = vmatmul.mubr.f32.gmra.mrb[0].mxu0 %v4172
    %v4777 = vpop.f32.mrb[0].mxu0
    %v4778 = vadd.f32 %v4553, %v4777
    %v4779 = vpop.f32.mrb[0].mxu0
    %4780 = vmatprep.mubr.f32.mxu0 0.0
    %4781 = vmatmul.mubr.f32.gmra.mrb[0].mxu0 %v4174
    %v4782 = vpop.f32.mrb[0].mxu0
    %v4783 = vadd.f32 %v4558, %v4782
    %v4784 = vpop.f32.mrb[0].mxu0
    %4785 = vmatprep.mubr.f32.mxu0 0.0
    %4786 = vmatmul.mubr.f32.gmra.mrb[0].mxu0 %v4176
    %v4787 = vpop.f32.mrb[0].mxu0
    %v4788 = vadd.f32 %v4563, %v4787
    %v4789 = vpop.f32.mrb[0].mxu0
    %4790 = vmatprep.mubr.f32.mxu0 0.0
    %4791 = vmatmul.mubr.f32.gmra.mrb[0].mxu0 %v4178
    %v4792 = vpop.f32.mrb[0].mxu0
    %v4793 = vadd.f32 %v4568, %v4792
    %v4794 = vpop.f32.mrb[0].mxu0
    %4795 = vmatprep.mubr.f32.mxu0 0.0
    %4796 = vmatmul.mubr.f32.gmra.mrb[0].mxu0 %v4180
    %v4797 = vpop.f32.mrb[0].mxu0
    %v4798 = vadd.f32 %v4573, %v4797
    %v4799 = vpop.f32.mrb[0].mxu0
    %4800 = vmatprep.mubr.f32.mxu0 0.0
    %4801 = vmatmul.mubr.f32.gmra.mrb[0].mxu0 %v4182
    %v4802 = vpop.f32.mrb[0].mxu0
    %v4803 = vadd.f32 %v4578, %v4802
    %v4804 = vpop.f32.mrb[0].mxu0
    %4805 = vmatprep.mubr.f32.mxu0 0.0
    %4806 = vmatmul.mubr.f32.gmra.mrb[0].mxu0 %v4184
    %v4807 = vpop.f32.mrb[0].mxu0
    %v4808 = vadd.f32 %v4583, %v4807
    %v4809 = vpop.f32.mrb[0].mxu0
    %4810 = vmatprep.mubr.f32.mxu0 0.0
    %4811 = vmatmul.mubr.f32.gmra.mrb[0].mxu0 %v4186
    %v4812 = vpop.f32.mrb[0].mxu0
    %v4813 = vadd.f32 %v4588, %v4812
    %v4814 = vpop.f32.mrb[0].mxu0
    %4815 = vmatprep.mubr.f32.mxu0 0.0
    %4816 = vmatmul.mubr.f32.gmra.mrb[0].mxu0 %v4188
    %v4817 = vpop.f32.mrb[0].mxu0
    %v4818 = vadd.f32 %v4593, %v4817
    %v4819 = vpop.f32.mrb[0].mxu0
    %4820 = vmatprep.mubr.f32.mxu0 0.0
    %4821 = vmatmul.mubr.f32.gmra.mrb[0].mxu0 %v4190
    %v4822 = vpop.f32.mrb[0].mxu0
    %v4823 = vadd.f32 %v4598, %v4822
    %v4824 = vpop.f32.mrb[0].mxu0
    %4825 = vmatprep.mubr.f32.mxu0 0.0
    %4826 = vmatmul.mubr.f32.gmra.mrb[0].mxu0 %v4192
    %v4827 = vpop.f32.mrb[0].mxu0
    %v4828 = vadd.f32 %v4603, %v4827
    %v4829 = vpop.f32.mrb[0].mxu0
    %4830 = vmatprep.mubr.f32.mxu0 0.0
    %4831 = vmatmul.mubr.f32.gmra.mrb[0].mxu0 %v4194
    %v4832 = vpop.f32.mrb[0].mxu0
    %v4833 = vadd.f32 %v4608, %v4832
    %v4834 = vpop.f32.mrb[0].mxu0
    %4835 = vmatprep.mubr.f32.mxu0 0.0
    %4836 = vmatmul.mubr.f32.gmra.mrb[0].mxu0 %v4196
    %v4837 = vpop.f32.mrb[0].mxu0
    %v4838 = vadd.f32 %v4613, %v4837
    %v4839 = vpop.f32.mrb[0].mxu0
    %4840 = vmatprep.mubr.f32.mxu0 0.0
    %4841 = vmatmul.mubr.f32.gmra.mrb[0].mxu0 %v4198
    %v4842 = vpop.f32.mrb[0].mxu0
    %v4843 = vadd.f32 %v4618, %v4842
    %v4844 = vpop.f32.mrb[0].mxu0
    %4845 = vmatprep.mubr.f32.mxu0 0.0
    %4846 = vmatmul.mubr.f32.gmra.mrb[0].mxu0 %v4200
    %v4847 = vpop.f32.mrb[0].mxu0
    %v4848 = vadd.f32 %v4623, %v4847
    %v4849 = vpop.f32.mrb[0].mxu0
    %4850 = vmatprep.mubr.f32.mxu0 0.0
    %4851 = vmatmul.mubr.f32.gmra.mrb[0].mxu0 %v4202
    %v4852 = vpop.f32.mrb[0].mxu0
    %v4853 = vadd.f32 %v4628, %v4852
    %v4854 = vpop.f32.mrb[0].mxu0
    %4855 = vmatprep.mubr.f32.mxu0 0.0
    %4856 = vmatmul.mubr.f32.gmra.mrb[0].mxu0 %v4204
    %v4857 = vpop.f32.mrb[0].mxu0
    %v4858 = vadd.f32 %v4633, %v4857
    %v4859 = vpop.f32.mrb[0].mxu0
    %4860 = vmatprep.mubr.f32.mxu0 0.0
    %4861 = vmatmul.mubr.f32.gmra.mrb[0].mxu0 %v4198
    %v4862 = vpop.f32.mrb[0].mxu0
    %v4863 = vadd.f32 %v4638, %v4862
    %v4864 = vpop.f32.mrb[0].mxu0
    %4865 = vmatprep.mubr.f32.mxu0 0.0
    %4866 = vmatmul.mubr.f32.gmra.mrb[0].mxu0 %v4200
    %v4867 = vpop.f32.mrb[0].mxu0
    %v4868 = vadd.f32 %v4643, %v4867
    %v4869 = vpop.f32.mrb[0].mxu0
    %4870 = vmatprep.mubr.f32.mxu0 0.0
    %4871 = vmatmul.mubr.f32.gmra.mrb[0].mxu0 %v4202
    %v4872 = vpop.f32.mrb[0].mxu0
    %v4873 = vadd.f32 %v4648, %v4872
    %v4874 = vpop.f32.mrb[0].mxu0
    %4875 = vmatprep.mubr.f32.mxu0 0.0
    %4876 = vmatmul.mubr.f32.gmra.mrb[0].mxu0 %v4204
    %v4877 = vpop.f32.mrb[0].mxu0
    %v4878 = vadd.f32 %v4653, %v4877
    %v4879 = vpop.f32.mrb[0].mxu0
    %4880 = vdwg.mxu0
    %v4881 = vmax.f32 %v4723, 0.0
    %v4882 = vmax.f32 %v4728, 0.0
    %v4883 = vmax.f32 %v4733, 0.0
    %v4884 = vmax.f32 %v4738, 0.0
    %v4885 = vmax.f32 %v4743, 0.0
    %v4886 = vmax.f32 %v4748, 0.0
    %v4887 = vmax.f32 %v4753, 0.0
    %v4888 = vmax.f32 %v4758, 0.0
    %v4889 = vmax.f32 %v4763, 0.0
    %v4890 = vmax.f32 %v4768, 0.0
    %v4891 = vmax.f32 %v4773, 0.0
    %v4892 = vmax.f32 %v4778, 0.0
    %v4893 = vmax.f32 %v4783, 0.0
    %v4894 = vmax.f32 %v4788, 0.0
    %v4895 = vmax.f32 %v4793, 0.0
    %v4896 = vmax.f32 %v4798, 0.0
    %v4897 = vmax.f32 %v4803, 0.0
    %v4898 = vmax.f32 %v4808, 0.0
    %v4899 = vmax.f32 %v4813, 0.0
    %v4900 = vmax.f32 %v4818, 0.0
    %v4901 = vmax.f32 %v4823, 0.0
    %v4902 = vmax.f32 %v4828, 0.0
    %v4903 = vmax.f32 %v4833, 0.0
    %v4904 = vmax.f32 %v4838, 0.0
    %v4905 = vmax.f32 %v4843, 0.0
    %v4906 = vmax.f32 %v4848, 0.0
    %v4907 = vmax.f32 %v4853, 0.0
    %v4908 = vmax.f32 %v4858, 0.0
    %v4909 = vmax.f32 %v4863, 0.0
    %v4910 = vmax.f32 %v4868, 0.0
    %v4911 = vmax.f32 %v4873, 0.0
    %v4912 = vmax.f32 %v4878, 0.0
    %v4913 = vsel %vm351, %v4881, -inf
    %v4914 = vrot.slane %v4913, 4
    %v4915 = vmax.f32 %v4913, %v4914
    %v4916 = vrot.slane %v4915, 2
    %v4917 = vmax.f32 %v4915, %v4916
    %v4918 = vrot.slane %v4917, 1
    %v4919 = vmax.f32 %v4917, %v4918
    %v4920 = vsel %vm351, %v4882, -inf
    %v4921 = vrot.slane %v4920, 4
    %v4922 = vmax.f32 %v4920, %v4921
    %v4923 = vrot.slane %v4922, 2
    %v4924 = vmax.f32 %v4922, %v4923
    %v4925 = vrot.slane %v4924, 1
    %v4926 = vmax.f32 %v4924, %v4925
    %v4927 = vsel %vm351, %v4883, -inf
    %v4928 = vrot.slane %v4927, 4
    %v4929 = vmax.f32 %v4927, %v4928
    %v4930 = vrot.slane %v4929, 2
    %v4931 = vmax.f32 %v4929, %v4930
    %v4932 = vrot.slane %v4931, 1
    %v4933 = vmax.f32 %v4931, %v4932
    %v4934 = vsel %vm351, %v4884, -inf
    %v4935 = vrot.slane %v4934, 4
    %v4936 = vmax.f32 %v4934, %v4935
    %v4937 = vrot.slane %v4936, 2
    %v4938 = vmax.f32 %v4936, %v4937
    %v4939 = vrot.slane %v4938, 1
    %v4940 = vmax.f32 %v4938, %v4939
    %v4941 = vsel %vm351, %v4885, -inf
    %v4942 = vrot.slane %v4941, 4
    %v4943 = vmax.f32 %v4941, %v4942
    %v4944 = vrot.slane %v4943, 2
    %v4945 = vmax.f32 %v4943, %v4944
    %v4946 = vrot.slane %v4945, 1
    %v4947 = vmax.f32 %v4945, %v4946
    %v4948 = vsel %vm351, %v4886, -inf
    %v4949 = vrot.slane %v4948, 4
    %v4950 = vmax.f32 %v4948, %v4949
    %v4951 = vrot.slane %v4950, 2
    %v4952 = vmax.f32 %v4950, %v4951
    %v4953 = vrot.slane %v4952, 1
    %v4954 = vmax.f32 %v4952, %v4953
    %v4955 = vsel %vm351, %v4887, -inf
    %v4956 = vrot.slane %v4955, 4
    %v4957 = vmax.f32 %v4955, %v4956
    %v4958 = vrot.slane %v4957, 2
    %v4959 = vmax.f32 %v4957, %v4958
    %v4960 = vrot.slane %v4959, 1
    %v4961 = vmax.f32 %v4959, %v4960
    %v4962 = vsel %vm351, %v4888, -inf
    %v4963 = vrot.slane %v4962, 4
    %v4964 = vmax.f32 %v4962, %v4963
    %v4965 = vrot.slane %v4964, 2
    %v4966 = vmax.f32 %v4964, %v4965
    %v4967 = vrot.slane %v4966, 1
    %v4968 = vmax.f32 %v4966, %v4967
    %v4969 = vsel %vm351, %v4889, -inf
    %v4970 = vrot.slane %v4969, 4
    %v4971 = vmax.f32 %v4969, %v4970
    %v4972 = vrot.slane %v4971, 2
    %v4973 = vmax.f32 %v4971, %v4972
    %v4974 = vrot.slane %v4973, 1
    %v4975 = vmax.f32 %v4973, %v4974
    %v4976 = vsel %vm351, %v4890, -inf
    %v4977 = vrot.slane %v4976, 4
    %v4978 = vmax.f32 %v4976, %v4977
    %v4979 = vrot.slane %v4978, 2
    %v4980 = vmax.f32 %v4978, %v4979
    %v4981 = vrot.slane %v4980, 1
    %v4982 = vmax.f32 %v4980, %v4981
    %v4983 = vsel %vm351, %v4891, -inf
    %v4984 = vrot.slane %v4983, 4
    %v4985 = vmax.f32 %v4983, %v4984
    %v4986 = vrot.slane %v4985, 2
    %v4987 = vmax.f32 %v4985, %v4986
    %v4988 = vrot.slane %v4987, 1
    %v4989 = vmax.f32 %v4987, %v4988
    %v4990 = vsel %vm351, %v4892, -inf
    %v4991 = vrot.slane %v4990, 4
    %v4992 = vmax.f32 %v4990, %v4991
    %v4993 = vrot.slane %v4992, 2
    %v4994 = vmax.f32 %v4992, %v4993
    %v4995 = vrot.slane %v4994, 1
    %v4996 = vmax.f32 %v4994, %v4995
    %v4997 = vsel %vm351, %v4893, -inf
    %v4998 = vrot.slane %v4997, 4
    %v4999 = vmax.f32 %v4997, %v4998
    %v5000 = vrot.slane %v4999, 2
    %v5001 = vmax.f32 %v4999, %v5000
    %v5002 = vrot.slane %v5001, 1
    %v5003 = vmax.f32 %v5001, %v5002
    %v5004 = vsel %vm351, %v4894, -inf
    %v5005 = vrot.slane %v5004, 4
    %v5006 = vmax.f32 %v5004, %v5005
    %v5007 = vrot.slane %v5006, 2
    %v5008 = vmax.f32 %v5006, %v5007
    %v5009 = vrot.slane %v5008, 1
    %v5010 = vmax.f32 %v5008, %v5009
    %v5011 = vsel %vm351, %v4895, -inf
    %v5012 = vrot.slane %v5011, 4
    %v5013 = vmax.f32 %v5011, %v5012
    %v5014 = vrot.slane %v5013, 2
    %v5015 = vmax.f32 %v5013, %v5014
    %v5016 = vrot.slane %v5015, 1
    %v5017 = vmax.f32 %v5015, %v5016
    %v5018 = vsel %vm351, %v4896, -inf
    %v5019 = vrot.slane %v5018, 4
    %v5020 = vmax.f32 %v5018, %v5019
    %v5021 = vrot.slane %v5020, 2
    %v5022 = vmax.f32 %v5020, %v5021
    %v5023 = vrot.slane %v5022, 1
    %v5024 = vmax.f32 %v5022, %v5023
    %v5025 = vsel %vm351, %v4897, -inf
    %v5026 = vrot.slane %v5025, 4
    %v5027 = vmax.f32 %v5025, %v5026
    %v5028 = vrot.slane %v5027, 2
    %v5029 = vmax.f32 %v5027, %v5028
    %v5030 = vrot.slane %v5029, 1
    %v5031 = vmax.f32 %v5029, %v5030
    %v5032 = vsel %vm351, %v4898, -inf
    %v5033 = vrot.slane %v5032, 4
    %v5034 = vmax.f32 %v5032, %v5033
    %v5035 = vrot.slane %v5034, 2
    %v5036 = vmax.f32 %v5034, %v5035
    %v5037 = vrot.slane %v5036, 1
    %v5038 = vmax.f32 %v5036, %v5037
    %v5039 = vsel %vm351, %v4899, -inf
    %v5040 = vrot.slane %v5039, 4
    %v5041 = vmax.f32 %v5039, %v5040
    %v5042 = vrot.slane %v5041, 2
    %v5043 = vmax.f32 %v5041, %v5042
    %v5044 = vrot.slane %v5043, 1
    %v5045 = vmax.f32 %v5043, %v5044
    %v5046 = vsel %vm351, %v4900, -inf
    %v5047 = vrot.slane %v5046, 4
    %v5048 = vmax.f32 %v5046, %v5047
    %v5049 = vrot.slane %v5048, 2
    %v5050 = vmax.f32 %v5048, %v5049
    %v5051 = vrot.slane %v5050, 1
    %v5052 = vmax.f32 %v5050, %v5051
    %v5053 = vsel %vm351, %v4901, -inf
    %v5054 = vrot.slane %v5053, 4
    %v5055 = vmax.f32 %v5053, %v5054
    %v5056 = vrot.slane %v5055, 2
    %v5057 = vmax.f32 %v5055, %v5056
    %v5058 = vrot.slane %v5057, 1
    %v5059 = vmax.f32 %v5057, %v5058
    %v5060 = vsel %vm351, %v4902, -inf
    %v5061 = vrot.slane %v5060, 4
    %v5062 = vmax.f32 %v5060, %v5061
    %v5063 = vrot.slane %v5062, 2
    %v5064 = vmax.f32 %v5062, %v5063
    %v5065 = vrot.slane %v5064, 1
    %v5066 = vmax.f32 %v5064, %v5065
    %v5067 = vsel %vm351, %v4903, -inf
    %v5068 = vrot.slane %v5067, 4
    %v5069 = vmax.f32 %v5067, %v5068
    %v5070 = vrot.slane %v5069, 2
    %v5071 = vmax.f32 %v5069, %v5070
    %v5072 = vrot.slane %v5071, 1
    %v5073 = vmax.f32 %v5071, %v5072
    %v5074 = vsel %vm351, %v4904, -inf
    %v5075 = vrot.slane %v5074, 4
    %v5076 = vmax.f32 %v5074, %v5075
    %v5077 = vrot.slane %v5076, 2
    %v5078 = vmax.f32 %v5076, %v5077
    %v5079 = vrot.slane %v5078, 1
    %v5080 = vmax.f32 %v5078, %v5079
    %v5081 = vsel %vm351, %v4905, -inf
    %v5082 = vrot.slane %v5081, 4
    %v5083 = vmax.f32 %v5081, %v5082
    %v5084 = vrot.slane %v5083, 2
    %v5085 = vmax.f32 %v5083, %v5084
    %v5086 = vrot.slane %v5085, 1
    %v5087 = vmax.f32 %v5085, %v5086
    %v5088 = vsel %vm351, %v4906, -inf
    %v5089 = vrot.slane %v5088, 4
    %v5090 = vmax.f32 %v5088, %v5089
    %v5091 = vrot.slane %v5090, 2
    %v5092 = vmax.f32 %v5090, %v5091
    %v5093 = vrot.slane %v5092, 1
    %v5094 = vmax.f32 %v5092, %v5093
    %v5095 = vsel %vm351, %v4907, -inf
    %v5096 = vrot.slane %v5095, 4
    %v5097 = vmax.f32 %v5095, %v5096
    %v5098 = vrot.slane %v5097, 2
    %v5099 = vmax.f32 %v5097, %v5098
    %v5100 = vrot.slane %v5099, 1
    %v5101 = vmax.f32 %v5099, %v5100
    %v5102 = vsel %vm351, %v4908, -inf
    %v5103 = vrot.slane %v5102, 4
    %v5104 = vmax.f32 %v5102, %v5103
    %v5105 = vrot.slane %v5104, 2
    %v5106 = vmax.f32 %v5104, %v5105
    %v5107 = vrot.slane %v5106, 1
    %v5108 = vmax.f32 %v5106, %v5107
    %v5109 = vsel %vm351, %v4909, -inf
    %v5110 = vrot.slane %v5109, 4
    %v5111 = vmax.f32 %v5109, %v5110
    %v5112 = vrot.slane %v5111, 2
    %v5113 = vmax.f32 %v5111, %v5112
    %v5114 = vrot.slane %v5113, 1
    %v5115 = vmax.f32 %v5113, %v5114
    %v5116 = vsel %vm351, %v4910, -inf
    %v5117 = vrot.slane %v5116, 4
    %v5118 = vmax.f32 %v5116, %v5117
    %v5119 = vrot.slane %v5118, 2
    %v5120 = vmax.f32 %v5118, %v5119
    %v5121 = vrot.slane %v5120, 1
    %v5122 = vmax.f32 %v5120, %v5121
    %v5123 = vsel %vm351, %v4911, -inf
    %v5124 = vrot.slane %v5123, 4
    %v5125 = vmax.f32 %v5123, %v5124
    %v5126 = vrot.slane %v5125, 2
    %v5127 = vmax.f32 %v5125, %v5126
    %v5128 = vrot.slane %v5127, 1
    %v5129 = vmax.f32 %v5127, %v5128
    %v5130 = vsel %vm351, %v4912, -inf
    %v5131 = vrot.slane %v5130, 4
    %v5132 = vmax.f32 %v5130, %v5131
    %v5133 = vrot.slane %v5132, 2
    %v5134 = vmax.f32 %v5132, %v5133
    %v5135 = vrot.slane %v5134, 1
    %v5136 = vmax.f32 %v5134, %v5135
    %v5169 = vrot.slane %v4919, 7
    %v5170 = vrot.slane %v4926, 6
    %v5171 = vsel %vm2883, %v5170, %v5169
    %v5172 = vrot.slane %v4933, 7
    %v5173 = vrot.slane %v4940, 6
    %v5174 = vsel %vm2883, %v5173, %v5172
    %v5175 = vrot.slane %v4947, 7
    %v5176 = vrot.slane %v4954, 6
    %v5177 = vsel %vm2883, %v5176, %v5175
    %v5178 = vrot.slane %v4961, 7
    %v5179 = vrot.slane %v4968, 6
    %v5180 = vsel %vm2883, %v5179, %v5178
    %v5181 = vrot.slane %v4975, 7
    %v5182 = vrot.slane %v4982, 6
    %v5183 = vsel %vm2883, %v5182, %v5181
    %v5184 = vrot.slane %v4989, 7
    %v5185 = vrot.slane %v4996, 6
    %v5186 = vsel %vm2883, %v5185, %v5184
    %v5187 = vrot.slane %v5003, 7
    %v5188 = vrot.slane %v5010, 6
    %v5189 = vsel %vm2883, %v5188, %v5187
    %v5190 = vrot.slane %v5017, 7
    %v5191 = vrot.slane %v5024, 6
    %v5192 = vsel %vm2883, %v5191, %v5190
    %v5193 = vrot.slane %v5031, 7
    %v5194 = vrot.slane %v5038, 6
    %v5195 = vsel %vm2883, %v5194, %v5193
    %v5196 = vrot.slane %v5045, 7
    %v5197 = vrot.slane %v5052, 6
    %v5198 = vsel %vm2883, %v5197, %v5196
    %v5199 = vrot.slane %v5059, 7
    %v5200 = vrot.slane %v5066, 6
    %v5201 = vsel %vm2883, %v5200, %v5199
    %v5202 = vrot.slane %v5073, 7
    %v5203 = vrot.slane %v5080, 6
    %v5204 = vsel %vm2883, %v5203, %v5202
    %v5205 = vrot.slane %v5087, 7
    %v5206 = vrot.slane %v5094, 6
    %v5207 = vsel %vm2883, %v5206, %v5205
    %v5208 = vrot.slane %v5101, 7
    %v5209 = vrot.slane %v5108, 6
    %v5210 = vsel %vm2883, %v5209, %v5208
    %v5211 = vrot.slane %v5115, 7
    %v5212 = vrot.slane %v5122, 6
    %v5213 = vsel %vm2883, %v5212, %v5211
    %v5214 = vrot.slane %v5129, 7
    %v5215 = vrot.slane %v5136, 6
    %v5216 = vsel %vm2883, %v5215, %v5214
    %v5233 = vrot.slane %v4926, 5
    %v5234 = vrot.slane %v4940, 5
    %v5235 = vrot.slane %v4954, 5
    %v5236 = vrot.slane %v4968, 5
    %v5237 = vrot.slane %v4982, 5
    %v5238 = vrot.slane %v4996, 5
    %v5239 = vrot.slane %v5010, 5
    %v5240 = vrot.slane %v5024, 5
    %v5241 = vrot.slane %v5038, 5
    %v5242 = vrot.slane %v5052, 5
    %v5243 = vrot.slane %v5066, 5
    %v5244 = vrot.slane %v5080, 5
    %v5245 = vrot.slane %v5094, 5
    %v5246 = vrot.slane %v5108, 5
    %v5247 = vrot.slane %v5122, 5
    %v5248 = vrot.slane %v5136, 5
    %v5265 = vsel %vm3400, %v4919, %v5171
    %v5266 = vsel %vm3400, %v4933, %v5174
    %v5267 = vsel %vm3400, %v4947, %v5177
    %v5268 = vsel %vm3400, %v4961, %v5180
    %v5269 = vsel %vm3400, %v4975, %v5183
    %v5270 = vsel %vm3400, %v4989, %v5186
    %v5271 = vsel %vm3400, %v5003, %v5189
    %v5272 = vsel %vm3400, %v5017, %v5192
    %v5273 = vsel %vm3400, %v5031, %v5195
    %v5274 = vsel %vm3400, %v5045, %v5198
    %v5275 = vsel %vm3400, %v5059, %v5201
    %v5276 = vsel %vm3400, %v5073, %v5204
    %v5277 = vsel %vm3400, %v5087, %v5207
    %v5278 = vsel %vm3400, %v5101, %v5210
    %v5279 = vsel %vm3400, %v5115, %v5213
    %v5280 = vsel %vm3400, %v5129, %v5216
    %vm5281 = vcmask 1042432
    %v5282 = vsel %vm5281, %v5265, %v5233
    %v5283 = vsel %vm5281, %v5266, %v5234
    %v5284 = vsel %vm5281, %v5267, %v5235
    %v5285 = vsel %vm5281, %v5268, %v5236
    %v5286 = vsel %vm5281, %v5269, %v5237
    %v5287 = vsel %vm5281, %v5270, %v5238
    %v5288 = vsel %vm5281, %v5271, %v5239
    %v5289 = vsel %vm5281, %v5272, %v5240
    %v5290 = vsel %vm5281, %v5273, %v5241
    %v5291 = vsel %vm5281, %v5274, %v5242
    %v5292 = vsel %vm5281, %v5275, %v5243
    %v5293 = vsel %vm5281, %v5276, %v5244
    %v5294 = vsel %vm5281, %v5277, %v5245
    %v5295 = vsel %vm5281, %v5278, %v5246
    %v5296 = vsel %vm5281, %v5279, %v5247
    %v5297 = vsel %vm5281, %v5280, %v5248
    %v5313 = vunpack.c.l.s4 1983009808
    %v5314 = vunpack.c.0.s8 %v5313
    %v5315 = vlaneseq
    %v5316 = vshrl.u32 %v5315, 7
    %v5317 = vsub.s32 %v5314, %v5316
    %v5318 = vrot.slane %v5282, %v5317
    %v5319 = vcombine.high %v5318, %v5318
    %v5321 = vunpack.c.l.s4 1983009808
    %v5322 = vunpack.c.0.s8 %v5321
    %v5323 = vlaneseq
    %v5324 = vshrl.u32 %v5323, 7
    %v5325 = vsub.s32 %v5322, %v5324
    %v5326 = vrot.slane %v5283, %v5325
    %v5327 = vcombine.high %v5326, %v5326
    %v5329 = vunpack.c.l.s4 1983009808
    %v5330 = vunpack.c.0.s8 %v5329
    %v5331 = vlaneseq
    %v5332 = vshrl.u32 %v5331, 7
    %v5333 = vsub.s32 %v5330, %v5332
    %v5334 = vrot.slane %v5284, %v5333
    %v5335 = vcombine.high %v5334, %v5334
    %v5337 = vunpack.c.l.s4 1983009808
    %v5338 = vunpack.c.0.s8 %v5337
    %v5339 = vlaneseq
    %v5340 = vshrl.u32 %v5339, 7
    %v5341 = vsub.s32 %v5338, %v5340
    %v5342 = vrot.slane %v5285, %v5341
    %v5343 = vcombine.high %v5342, %v5342
    %v5345 = vunpack.c.l.s4 1983009808
    %v5346 = vunpack.c.0.s8 %v5345
    %v5347 = vlaneseq
    %v5348 = vshrl.u32 %v5347, 7
    %v5349 = vsub.s32 %v5346, %v5348
    %v5350 = vrot.slane %v5286, %v5349
    %v5351 = vcombine.high %v5350, %v5350
    %v5353 = vunpack.c.l.s4 1983009808
    %v5354 = vunpack.c.0.s8 %v5353
    %v5355 = vlaneseq
    %v5356 = vshrl.u32 %v5355, 7
    %v5357 = vsub.s32 %v5354, %v5356
    %v5358 = vrot.slane %v5287, %v5357
    %v5359 = vcombine.high %v5358, %v5358
    %v5361 = vunpack.c.l.s4 1983009808
    %v5362 = vunpack.c.0.s8 %v5361
    %v5363 = vlaneseq
    %v5364 = vshrl.u32 %v5363, 7
    %v5365 = vsub.s32 %v5362, %v5364
    %v5366 = vrot.slane %v5288, %v5365
    %v5367 = vcombine.high %v5366, %v5366
    %v5369 = vunpack.c.l.s4 1983009808
    %v5370 = vunpack.c.0.s8 %v5369
    %v5371 = vlaneseq
    %v5372 = vshrl.u32 %v5371, 7
    %v5373 = vsub.s32 %v5370, %v5372
    %v5374 = vrot.slane %v5289, %v5373
    %v5375 = vcombine.high %v5374, %v5374
    %v5377 = vunpack.c.l.s4 1983009808
    %v5378 = vunpack.c.0.s8 %v5377
    %v5379 = vlaneseq
    %v5380 = vshrl.u32 %v5379, 7
    %v5381 = vsub.s32 %v5378, %v5380
    %v5382 = vrot.slane %v5290, %v5381
    %v5383 = vcombine.high %v5382, %v5382
    %v5385 = vunpack.c.l.s4 1983009808
    %v5386 = vunpack.c.0.s8 %v5385
    %v5387 = vlaneseq
    %v5388 = vshrl.u32 %v5387, 7
    %v5389 = vsub.s32 %v5386, %v5388
    %v5390 = vrot.slane %v5291, %v5389
    %v5391 = vcombine.high %v5390, %v5390
    %v5393 = vunpack.c.l.s4 1983009808
    %v5394 = vunpack.c.0.s8 %v5393
    %v5395 = vlaneseq
    %v5396 = vshrl.u32 %v5395, 7
    %v5397 = vsub.s32 %v5394, %v5396
    %v5398 = vrot.slane %v5292, %v5397
    %v5399 = vcombine.high %v5398, %v5398
    %v5401 = vunpack.c.l.s4 1983009808
    %v5402 = vunpack.c.0.s8 %v5401
    %v5403 = vlaneseq
    %v5404 = vshrl.u32 %v5403, 7
    %v5405 = vsub.s32 %v5402, %v5404
    %v5406 = vrot.slane %v5293, %v5405
    %v5407 = vcombine.high %v5406, %v5406
    %v5409 = vunpack.c.l.s4 1983009808
    %v5410 = vunpack.c.0.s8 %v5409
    %v5411 = vlaneseq
    %v5412 = vshrl.u32 %v5411, 7
    %v5413 = vsub.s32 %v5410, %v5412
    %v5414 = vrot.slane %v5294, %v5413
    %v5415 = vcombine.high %v5414, %v5414
    %v5417 = vunpack.c.l.s4 1983009808
    %v5418 = vunpack.c.0.s8 %v5417
    %v5419 = vlaneseq
    %v5420 = vshrl.u32 %v5419, 7
    %v5421 = vsub.s32 %v5418, %v5420
    %v5422 = vrot.slane %v5295, %v5421
    %v5423 = vcombine.high %v5422, %v5422
    %vm5424 = vmor %vm3400, %vm2883
    %vm5425 = vmor %vm5424, %vm2889
    %vm5426 = vmor %vm5425, %vm2895
    %v5427 = vrot.slane %v5318, 7
    %v5428 = vrot.slane %v5427, 2
    %v5429 = vrot.slane %v5319, 7
    %v5430 = vsel %vm5426, %v5428, %v5429
    %v5431 = vrot.slane %v5326, 7
    %v5432 = vrot.slane %v5431, 2
    %v5433 = vrot.slane %v5327, 7
    %v5434 = vsel %vm5426, %v5432, %v5433
    %v5435 = vrot.slane %v5334, 7
    %v5436 = vrot.slane %v5435, 2
    %v5437 = vrot.slane %v5335, 7
    %v5438 = vsel %vm5426, %v5436, %v5437
    %v5439 = vrot.slane %v5342, 7
    %v5440 = vrot.slane %v5439, 2
    %v5441 = vrot.slane %v5343, 7
    %v5442 = vsel %vm5426, %v5440, %v5441
    %v5443 = vrot.slane %v5350, 7
    %v5444 = vrot.slane %v5443, 2
    %v5445 = vrot.slane %v5351, 7
    %v5446 = vsel %vm5426, %v5444, %v5445
    %v5447 = vrot.slane %v5358, 7
    %v5448 = vrot.slane %v5447, 2
    %v5449 = vrot.slane %v5359, 7
    %v5450 = vsel %vm5426, %v5448, %v5449
    %v5451 = vrot.slane %v5366, 7
    %v5452 = vrot.slane %v5451, 2
    %v5453 = vrot.slane %v5367, 7
    %v5454 = vsel %vm5426, %v5452, %v5453
    %v5455 = vrot.slane %v5374, 7
    %v5456 = vrot.slane %v5455, 2
    %v5457 = vrot.slane %v5375, 7
    %v5458 = vsel %vm5426, %v5456, %v5457
    %v5459 = vrot.slane %v5382, 7
    %v5460 = vrot.slane %v5459, 2
    %v5461 = vrot.slane %v5383, 7
    %v5462 = vsel %vm5426, %v5460, %v5461
    %v5463 = vrot.slane %v5390, 7
    %v5464 = vrot.slane %v5463, 2
    %v5465 = vrot.slane %v5391, 7
    %v5466 = vsel %vm5426, %v5464, %v5465
    %v5467 = vrot.slane %v5398, 7
    %v5468 = vrot.slane %v5467, 2
    %v5469 = vrot.slane %v5399, 7
    %v5470 = vsel %vm5426, %v5468, %v5469
    %v5471 = vrot.slane %v5406, 7
    %v5472 = vrot.slane %v5471, 2
    %v5473 = vrot.slane %v5407, 7
    %v5474 = vsel %vm5426, %v5472, %v5473
    %v5475 = vrot.slane %v5414, 7
    %v5476 = vrot.slane %v5475, 2
    %v5477 = vrot.slane %v5415, 7
    %v5478 = vsel %vm5426, %v5476, %v5477
    %v5479 = vrot.slane %v5422, 7
    %v5480 = vrot.slane %v5479, 2
    %v5481 = vrot.slane %v5423, 7
    %v5482 = vsel %vm5426, %v5480, %v5481
    %v5486 = vunpack.c.l.s4 1983009808
    %v5487 = vunpack.c.0.s8 %v5486
    %v5488 = vlaneseq
    %v5489 = vshrl.u32 %v5488, 7
    %v5490 = vsub.s32 %v5487, %v5489
    %v5491 = vrot.slane %v5296, %v5490
    %v5492 = vcombine.high %v5491, %v5491
    %v5494 = vunpack.c.l.s4 1983009808
    %v5495 = vunpack.c.0.s8 %v5494
    %v5496 = vlaneseq
    %v5497 = vshrl.u32 %v5496, 7
    %v5498 = vsub.s32 %v5495, %v5497
    %v5499 = vrot.slane %v5297, %v5498
    %v5500 = vcombine.high %v5499, %v5499
    %v5501 = vrot.slane %v5491, 7
    %v5502 = vrot.slane %v5501, 2
    %v5503 = vrot.slane %v5492, 7
    %v5504 = vsel %vm5426, %v5502, %v5503
    %v5505 = vrot.slane %v5499, 7
    %v5506 = vrot.slane %v5505, 2
    %v5507 = vrot.slane %v5500, 7
    %v5508 = vsel %vm5426, %v5506, %v5507
    %v5509 = vcombine.low %v5282, %v5283
    %v5511 = vunpack.c.l.s4 1983009808
    %v5512 = vunpack.c.0.s8 %v5511
    %v5513 = vlaneseq
    %v5514 = vshrl.u32 %v5513, 7
    %v5515 = vsub.s32 %v5512, %v5514
    %v5516 = vrot.slane %v5509, %v5515
    %v5517 = vcombine.low %v5516, %v5516
    %v5518 = vcombine.low %v5284, %v5285
    %v5519 = vcombine.low %v5286, %v5287
    %v5521 = vunpack.c.l.s4 1983009808
    %v5522 = vunpack.c.0.s8 %v5521
    %v5523 = vlaneseq
    %v5524 = vshrl.u32 %v5523, 7
    %v5525 = vsub.s32 %v5522, %v5524
    %v5526 = vrot.slane %v5518, %v5525
    %v5528 = vunpack.c.l.s4 1983009808
    %v5529 = vunpack.c.0.s8 %v5528
    %v5530 = vlaneseq
    %v5531 = vshrl.u32 %v5530, 7
    %v5532 = vsub.s32 %v5529, %v5531
    %v5533 = vrot.slane %v5519, %v5532
    %v5534 = vcombine.low %v5526, %v5533
    %v5535 = vcombine.low %v5288, %v5289
    %v5536 = vcombine.low %v5290, %v5291
    %v5538 = vunpack.c.l.s4 1983009808
    %v5539 = vunpack.c.0.s8 %v5538
    %v5540 = vlaneseq
    %v5541 = vshrl.u32 %v5540, 7
    %v5542 = vsub.s32 %v5539, %v5541
    %v5543 = vrot.slane %v5535, %v5542
    %v5545 = vunpack.c.l.s4 1983009808
    %v5546 = vunpack.c.0.s8 %v5545
    %v5547 = vlaneseq
    %v5548 = vshrl.u32 %v5547, 7
    %v5549 = vsub.s32 %v5546, %v5548
    %v5550 = vrot.slane %v5536, %v5549
    %v5551 = vcombine.low %v5543, %v5550
    %v5552 = vcombine.low %v5292, %v5293
    %v5553 = vcombine.low %v5294, %v5295
    %v5555 = vunpack.c.l.s4 1983009808
    %v5556 = vunpack.c.0.s8 %v5555
    %v5557 = vlaneseq
    %v5558 = vshrl.u32 %v5557, 7
    %v5559 = vsub.s32 %v5556, %v5558
    %v5560 = vrot.slane %v5552, %v5559
    %v5562 = vunpack.c.l.s4 1983009808
    %v5563 = vunpack.c.0.s8 %v5562
    %v5564 = vlaneseq
    %v5565 = vshrl.u32 %v5564, 7
    %v5566 = vsub.s32 %v5563, %v5565
    %v5567 = vrot.slane %v5553, %v5566
    %v5568 = vcombine.low %v5560, %v5567
    %v5573 = vcombine.low %v5430, %v5434
    %v5575 = vunpack.c.l.s4 1983009808
    %v5576 = vunpack.c.0.s8 %v5575
    %v5577 = vlaneseq
    %v5578 = vshrl.u32 %v5577, 7
    %v5579 = vsub.s32 %v5576, %v5578
    %v5580 = vrot.slane %v5573, %v5579
    %v5581 = vcombine.low %v5580, %v5580
    %v5582 = vcombine.low %v5438, %v5442
    %v5583 = vcombine.low %v5446, %v5450
    %v5585 = vunpack.c.l.s4 1983009808
    %v5586 = vunpack.c.0.s8 %v5585
    %v5587 = vlaneseq
    %v5588 = vshrl.u32 %v5587, 7
    %v5589 = vsub.s32 %v5586, %v5588
    %v5590 = vrot.slane %v5582, %v5589
    %v5592 = vunpack.c.l.s4 1983009808
    %v5593 = vunpack.c.0.s8 %v5592
    %v5594 = vlaneseq
    %v5595 = vshrl.u32 %v5594, 7
    %v5596 = vsub.s32 %v5593, %v5595
    %v5597 = vrot.slane %v5583, %v5596
    %v5598 = vcombine.low %v5590, %v5597
    %v5599 = vcombine.low %v5454, %v5458
    %v5600 = vcombine.low %v5462, %v5466
    %v5602 = vunpack.c.l.s4 1983009808
    %v5603 = vunpack.c.0.s8 %v5602
    %v5604 = vlaneseq
    %v5605 = vshrl.u32 %v5604, 7
    %v5606 = vsub.s32 %v5603, %v5605
    %v5607 = vrot.slane %v5599, %v5606
    %v5609 = vunpack.c.l.s4 1983009808
    %v5610 = vunpack.c.0.s8 %v5609
    %v5611 = vlaneseq
    %v5612 = vshrl.u32 %v5611, 7
    %v5613 = vsub.s32 %v5610, %v5612
    %v5614 = vrot.slane %v5600, %v5613
    %v5615 = vcombine.low %v5607, %v5614
    %v5616 = vcombine.low %v5470, %v5474
    %v5617 = vcombine.low %v5478, %v5482
    %v5619 = vunpack.c.l.s4 1983009808
    %v5620 = vunpack.c.0.s8 %v5619
    %v5621 = vlaneseq
    %v5622 = vshrl.u32 %v5621, 7
    %v5623 = vsub.s32 %v5620, %v5622
    %v5624 = vrot.slane %v5616, %v5623
    %v5626 = vunpack.c.l.s4 1983009808
    %v5627 = vunpack.c.0.s8 %v5626
    %v5628 = vlaneseq
    %v5629 = vshrl.u32 %v5628, 7
    %v5630 = vsub.s32 %v5627, %v5629
    %v5631 = vrot.slane %v5617, %v5630
    %v5632 = vcombine.low %v5624, %v5631
    %5633 = vrot.lane.b32.xlu0 %v5581, 64
    %v5634 = vpop.permute.xlu0 %5633
    %5635 = vrot.lane.b32.xlu0 %v5598, 64
    %v5636 = vpop.permute.xlu0 %5635
    %5637 = vrot.lane.b32.xlu0 %v5615, 64
    %v5638 = vpop.permute.xlu0 %5637
    %5639 = vrot.lane.b32.xlu0 %v5632, 64
    %v5640 = vpop.permute.xlu0 %5639
    %v5645 = vcombine.low %v5319, %v5327
    %v5647 = vunpack.c.l.s4 1983009808
    %v5648 = vunpack.c.0.s8 %v5647
    %v5649 = vlaneseq
    %v5650 = vshrl.u32 %v5649, 7
    %v5651 = vsub.s32 %v5648, %v5650
    %v5652 = vrot.slane %v5645, %v5651
    %v5653 = vcombine.low %v5652, %v5652
    %v5654 = vcombine.low %v5335, %v5343
    %v5655 = vcombine.low %v5351, %v5359
    %v5657 = vunpack.c.l.s4 1983009808
    %v5658 = vunpack.c.0.s8 %v5657
    %v5659 = vlaneseq
    %v5660 = vshrl.u32 %v5659, 7
    %v5661 = vsub.s32 %v5658, %v5660
    %v5662 = vrot.slane %v5654, %v5661
    %v5664 = vunpack.c.l.s4 1983009808
    %v5665 = vunpack.c.0.s8 %v5664
    %v5666 = vlaneseq
    %v5667 = vshrl.u32 %v5666, 7
    %v5668 = vsub.s32 %v5665, %v5667
    %v5669 = vrot.slane %v5655, %v5668
    %v5670 = vcombine.low %v5662, %v5669
    %v5671 = vcombine.low %v5367, %v5375
    %v5672 = vcombine.low %v5383, %v5391
    %v5674 = vunpack.c.l.s4 1983009808
    %v5675 = vunpack.c.0.s8 %v5674
    %v5676 = vlaneseq
    %v5677 = vshrl.u32 %v5676, 7
    %v5678 = vsub.s32 %v5675, %v5677
    %v5679 = vrot.slane %v5671, %v5678
    %v5681 = vunpack.c.l.s4 1983009808
    %v5682 = vunpack.c.0.s8 %v5681
    %v5683 = vlaneseq
    %v5684 = vshrl.u32 %v5683, 7
    %v5685 = vsub.s32 %v5682, %v5684
    %v5686 = vrot.slane %v5672, %v5685
    %v5687 = vcombine.low %v5679, %v5686
    %v5688 = vcombine.low %v5399, %v5407
    %v5689 = vcombine.low %v5415, %v5423
    %v5691 = vunpack.c.l.s4 1983009808
    %v5692 = vunpack.c.0.s8 %v5691
    %v5693 = vlaneseq
    %v5694 = vshrl.u32 %v5693, 7
    %v5695 = vsub.s32 %v5692, %v5694
    %v5696 = vrot.slane %v5688, %v5695
    %v5698 = vunpack.c.l.s4 1983009808
    %v5699 = vunpack.c.0.s8 %v5698
    %v5700 = vlaneseq
    %v5701 = vshrl.u32 %v5700, 7
    %v5702 = vsub.s32 %v5699, %v5701
    %v5703 = vrot.slane %v5689, %v5702
    %v5704 = vcombine.low %v5696, %v5703
    %v5709 = vcombine.low %v5516, %v5526
    %v5710 = vcombine.low %v5533, %v5543
    %v5711 = vcombine.low %v5550, %v5560
    %v5712 = vcombine.low %v5296, %v5297
    %v5714 = vunpack.c.l.s4 1983009808
    %v5715 = vunpack.c.0.s8 %v5714
    %v5716 = vlaneseq
    %v5717 = vshrl.u32 %v5716, 7
    %v5718 = vsub.s32 %v5715, %v5717
    %v5719 = vrot.slane %v5712, %v5718
    %v5720 = vcombine.low %v5567, %v5719
    %5721 = vrot.lane.b32.xlu0 %v5709, 64
    %v5722 = vpop.permute.xlu0 %5721
    %5723 = vrot.lane.b32.xlu0 %v5710, 64
    %v5724 = vpop.permute.xlu0 %5723
    %5725 = vrot.lane.b32.xlu0 %v5711, 64
    %v5726 = vpop.permute.xlu0 %5725
    %5727 = vrot.lane.b32.xlu0 %v5720, 64
    %v5728 = vpop.permute.xlu0 %5727
    %v5733 = vcombine.low %v5580, %v5590
    %v5734 = vcombine.low %v5597, %v5607
    %v5735 = vcombine.low %v5614, %v5624
    %v5736 = vcombine.low %v5504, %v5508
    %v5738 = vunpack.c.l.s4 1983009808
    %v5739 = vunpack.c.0.s8 %v5738
    %v5740 = vlaneseq
    %v5741 = vshrl.u32 %v5740, 7
    %v5742 = vsub.s32 %v5739, %v5741
    %v5743 = vrot.slane %v5736, %v5742
    %v5744 = vcombine.low %v5631, %v5743
    %v5749 = vcombine.low %v5652, %v5662
    %v5750 = vcombine.low %v5669, %v5679
    %v5751 = vcombine.low %v5686, %v5696
    %v5752 = vcombine.low %v5492, %v5500
    %v5754 = vunpack.c.l.s4 1983009808
    %v5755 = vunpack.c.0.s8 %v5754
    %v5756 = vlaneseq
    %v5757 = vshrl.u32 %v5756, 7
    %v5758 = vsub.s32 %v5755, %v5757
    %v5759 = vrot.slane %v5752, %v5758
    %v5760 = vcombine.low %v5703, %v5759
    %5761 = vrot.lane.b32.xlu0 %v5749, 64
    %v5762 = vpop.permute.xlu0 %5761
    %5763 = vrot.lane.b32.xlu0 %v5750, 64
    %v5764 = vpop.permute.xlu0 %5763
    %5765 = vrot.lane.b32.xlu0 %v5751, 64
    %v5766 = vpop.permute.xlu0 %5765
    %5767 = vrot.lane.b32.xlu0 %v5760, 64
    %v5768 = vpop.permute.xlu0 %5767
    %v5773 = vcombine.low %v5719, %v5719
    %v5775 = vcombine.low %v5743, %v5743
    %5776 = vrot.lane.b32.xlu0 %v5775, 64
    %v5777 = vpop.permute.xlu0 %5776
    %v5779 = vcombine.low %v5759, %v5759
    %v5780 = vsel %vm351, %v5517, %v5634
    %v5781 = vsel %vm351, %v5534, %v5636
    %v5782 = vsel %vm351, %v5551, %v5638
    %v5783 = vsel %vm351, %v5568, %v5640
    %v5784 = vsel %vm351, %v5653, %v5722
    %v5785 = vsel %vm351, %v5670, %v5724
    %v5786 = vsel %vm351, %v5687, %v5726
    %v5787 = vsel %vm351, %v5704, %v5728
    %v5788 = vsel %vm351, %v5733, %v5762
    %v5789 = vsel %vm351, %v5734, %v5764
    %v5790 = vsel %vm351, %v5735, %v5766
    %v5791 = vsel %vm351, %v5744, %v5768
    %v5792 = vsel %vm351, %v5773, %v5777
    %v5793 = vld [vmem:[%s6] sm:$0xff]
    %v5794 = vld [vmem:[%s6 + $0x8] sm:$0xff]
    %v5795 = vld [vmem:[%s6 + $0x10] sm:$0xff]
    %v5796 = vld [vmem:[%s6 + $0x18] sm:$0xff]
    %v5797 = vld [vmem:[%s6 + $0x20] sm:$0xff]
    %v5798 = vld [vmem:[%s6 + $0x28] sm:$0xff]
    %v5799 = vld [vmem:[%s6 + $0x30] sm:$0xff]
    %v5800 = vld [vmem:[%s6 + $0x38] sm:$0xff]
    %v5801 = vld [vmem:[%s6 + $0x40] sm:$0xff]
    %v5802 = vld [vmem:[%s6 + $0x48] sm:$0xff]
    %v5803 = vld [vmem:[%s6 + $0x50] sm:$0xff]
    %v5804 = vld [vmem:[%s6 + $0x58] sm:$0xff]
    %v5805 = vld [vmem:[%s6 + $0x60] sm:$0xff]
    %v5806 = vld [vmem:[%s6 + $0x68] sm:$0xff]
    %v5807 = vld [vmem:[%s6 + $0x70] sm:$0xff]
    %v5808 = vld [vmem:[%s6 + $0x78] sm:$0xff]
    %v5809 = vld [vmem:[%s6 + $0x80] sm:$0xff]
    %v5810 = vld [vmem:[%s6 + $0x88] sm:$0xff]
    %v5811 = vld [vmem:[%s6 + $0x90] sm:$0xff]
    %v5812 = vld [vmem:[%s6 + $0x98] sm:$0xff]
    %v5813 = vld [vmem:[%s6 + $0xa0] sm:$0xff]
    %v5814 = vld [vmem:[%s6 + $0xa8] sm:$0xff]
    %v5815 = vld [vmem:[%s6 + $0xb0] sm:$0xff]
    %v5816 = vld [vmem:[%s6 + $0xb8] sm:$0xff]
    %v5817 = vld [vmem:[%s6 + $0xc0] sm:$0xff]
    %v5818 = vld [vmem:[%s6 + $0xc8] sm:$0xff]
    %v5819 = vld [vmem:[%s6 + $0xd0] sm:$0xff]
    %v5820 = vld [vmem:[%s6 + $0xd8] sm:$0xff]
    %v5821 = vld [vmem:[%s6 + $0xe0] sm:$0xff]
    %v5822 = vld [vmem:[%s6 + $0xe8] sm:$0xff]
    %v5823 = vld [vmem:[%s6 + $0xf0] sm:$0xff]
    %v5824 = vld [vmem:[%s6 + $0xf8] sm:$0xff]
    %v5825 = vld [vmem:[%s6 + $0x100] sm:$0xff]
    %v5826 = vld [vmem:[%s6 + $0x108] sm:$0xff]
    %v5827 = vld [vmem:[%s6 + $0x110] sm:$0xff]
    %v5828 = vld [vmem:[%s6 + $0x118] sm:$0xff]
    %v5829 = vld [vmem:[%s6 + $0x120] sm:$0xff]
    %v5830 = vld [vmem:[%s6 + $0x128] sm:$0xff]
    %v5831 = vld [vmem:[%s6 + $0x130] sm:$0xff]
    %v5832 = vld [vmem:[%s6 + $0x138] sm:$0xff]
    %v5833 = vld [vmem:[%s6 + $0x140] sm:$0xff]
    %v5834 = vld [vmem:[%s6 + $0x148] sm:$0xff]
    %v5835 = vld [vmem:[%s6 + $0x150] sm:$0xff]
    %v5836 = vld [vmem:[%s6 + $0x158] sm:$0xff]
    %v5837 = vld [vmem:[%s6 + $0x160] sm:$0xff]
    %v5838 = vld [vmem:[%s6 + $0x168] sm:$0xff]
    %v5839 = vld [vmem:[%s6 + $0x170] sm:$0xff]
    %v5840 = vld [vmem:[%s6 + $0x178] sm:$0xff]
    %v5841 = vld [vmem:[%s6 + $0x180] sm:$0xff]
    %v5842 = vld [vmem:[%s6 + $0x188] sm:$0xff]
    %v5843 = vld [vmem:[%s6 + $0x190] sm:$0xff]
    %v5844 = vld [vmem:[%s6 + $0x198] sm:$0xff]
    %v5845 = vld [vmem:[%s6 + $0x1a0] sm:$0xff]
    %v5846 = vld [vmem:[%s6 + $0x1a8] sm:$0xff]
    %v5847 = vld [vmem:[%s6 + $0x1b0] sm:$0xff]
    %v5848 = vld [vmem:[%s6 + $0x1b8] sm:$0xff]
    %v5849 = vld [vmem:[%s6 + $0x1c0] sm:$0xff]
    %v5850 = vld [vmem:[%s6 + $0x1c8] sm:$0xff]
    %v5851 = vld [vmem:[%s6 + $0x1d0] sm:$0xff]
    %v5852 = vld [vmem:[%s6 + $0x1d8] sm:$0xff]
    %v5853 = vld [vmem:[%s6 + $0x1e0] sm:$0xff]
    %v5854 = vld [vmem:[%s6 + $0x1e8] sm:$0xff]
    %v5855 = vld [vmem:[%s6 + $0x1f0] sm:$0xff]
    %v5856 = vld [vmem:[%s6 + $0x1f8] sm:$0xff]
    %v5857 = vld [vmem:[%s6 + $0x200] sm:$0xff]
    %v5858 = vld [vmem:[%s6 + $0x208] sm:$0xff]
    %v5859 = vld [vmem:[%s6 + $0x210] sm:$0xff]
    %v5860 = vld [vmem:[%s6 + $0x218] sm:$0xff]
    %v5861 = vld [vmem:[%s6 + $0x220] sm:$0xff]
    %v5862 = vld [vmem:[%s6 + $0x228] sm:$0xff]
    %v5863 = vld [vmem:[%s6 + $0x230] sm:$0xff]
    %v5864 = vld [vmem:[%s6 + $0x238] sm:$0xff]
    %v5865 = vld [vmem:[%s7] sm:$0x1]
    %v5867 = vlaneseq
    %v5868 = vshrl.u32 %v5867, 7
    %v5869 = vsub.s32 0, %v5868
    %v5870 = vrot.slane %v5865, %v5869
    %v5872 = vsel %vm351, %v5670, 0
    %v5874 = vsel %vm351, %v5687, 0
    %v5876 = vsel %vm351, %v5704, 0
    %v5878 = vsel %vm351, %v5779, 0
    %5880 = vmatprep.subr.mxu0 0.0
    %5881 = vmatpush1.msra.mxu0 %v5793
    %5882 = vmatprep.subr.mxu0 0.0
    %5883 = vmatpush1.msra.mxu0 %v5794
    %5884 = vmatprep.subr.mxu0 0.0
    %5885 = vmatpush1.msra.mxu0 %v5795
    %5886 = vmatprep.subr.mxu0 0.0
    %5887 = vmatpush1.msra.mxu0 %v5796
    %5888 = vmatprep.subr.mxu0 0.0
    %5889 = vmatpush1.msra.mxu0 %v5797
    %5890 = vmatprep.subr.mxu0 0.0
    %5891 = vmatpush1.msra.mxu0 %v5798
    %5892 = vmatprep.subr.mxu0 0.0
    %5893 = vmatpush1.msra.mxu0 %v5799
    %5894 = vmatprep.subr.mxu0 0.0
    %5895 = vmatpush1.msra.mxu0 %v5800
    %5896 = vmatprep.subr.mxu0 0.0
    %5897 = vmatpush1.msra.mxu0 %v5801
    %5898 = vmatprep.subr.mxu0 0.0
    %5899 = vmatpush1.msra.mxu0 %v5802
    %5900 = vmatprep.subr.mxu0 0.0
    %5901 = vmatpush1.msra.mxu0 %v5803
    %5902 = vmatprep.subr.mxu0 0.0
    %5903 = vmatpush1.msra.mxu0 %v5804
    %5904 = vmatprep.subr.mxu0 0.0
    %5905 = vmatpush1.msra.mxu0 %v5805
    %5906 = vmatprep.subr.mxu0 0.0
    %5907 = vmatpush1.msra.mxu0 %v5806
    %5908 = vmatprep.subr.mxu0 0.0
    %5909 = vmatpush1.msra.mxu0 %v5807
    %5910 = vmatprep.subr.mxu0 0.0
    %5911 = vmatpush1.msra.mxu0 %v5808
    %5912 = vmatprep.subr.mxu0 0.0
    %5913 = vmatpush1.msra.mxu0 %v5809
    %5914 = vmatprep.subr.mxu0 0.0
    %5915 = vmatpush1.msra.mxu0 %v5810
    %5916 = vmatprep.subr.mxu0 0.0
    %5917 = vmatpush1.msra.mxu0 %v5811
    %5918 = vmatprep.subr.mxu0 0.0
    %5919 = vmatpush1.msra.mxu0 %v5812
    %5920 = vmatprep.subr.mxu0 0.0
    %5921 = vmatpush1.msra.mxu0 %v5813
    %5922 = vmatprep.subr.mxu0 0.0
    %5923 = vmatpush1.msra.mxu0 %v5814
    %5924 = vmatprep.subr.mxu0 0.0
    %5925 = vmatpush1.msra.mxu0 %v5815
    %5926 = vmatprep.subr.mxu0 0.0
    %5927 = vmatpush1.msra.mxu0 %v5816
    %5928 = vmatprep.subr.mxu0 0.0
    %5929 = vmatpush1.msra.mxu0 %v5817
    %5930 = vmatprep.subr.mxu0 0.0
    %5931 = vmatpush1.msra.mxu0 %v5818
    %5932 = vmatprep.subr.mxu0 0.0
    %5933 = vmatpush1.msra.mxu0 %v5819
    %5934 = vmatprep.subr.mxu0 0.0
    %5935 = vmatpush1.msra.mxu0 %v5820
    %5936 = vmatprep.subr.mxu0 0.0
    %5937 = vmatpush1.msra.mxu0 %v5821
    %5938 = vmatprep.subr.mxu0 0.0
    %5939 = vmatpush1.msra.mxu0 %v5822
    %5940 = vmatprep.subr.mxu0 0.0
    %5941 = vmatpush1.msra.mxu0 %v5823
    %5942 = vmatprep.subr.mxu0 0.0
    %5943 = vmatpush1.msra.mxu0 %v5824
    %5944 = vmatprep.mubr.f32.mxu0 %v5784
    %5945 = vmatmul.mubr.f32.gmra.mrb[0].mxu0 %v5780
    %v5946 = vpop.f32.mrb[0].mxu0
    %v5947 = vadd.f32 %v5870, %v5946
    %v5948 = vpop.f32.mrb[0].mxu0
    %5949 = vmatprep.mubr.f32.mxu0 %v5785
    %5950 = vmatmul.mubr.f32.gmra.mrb[0].mxu0 %v5781
    %v5951 = vpop.f32.mrb[0].mxu0
    %v5952 = vadd.f32 %v5870, %v5951
    %v5953 = vpop.f32.mrb[0].mxu0
    %5954 = vmatprep.mubr.f32.mxu0 %v5786
    %5955 = vmatmul.mubr.f32.gmra.mrb[0].mxu0 %v5782
    %v5956 = vpop.f32.mrb[0].mxu0
    %v5957 = vadd.f32 %v5870, %v5956
    %v5958 = vpop.f32.mrb[0].mxu0
    %5959 = vmatprep.mubr.f32.mxu0 %v5787
    %5960 = vmatmul.mubr.f32.gmra.mrb[0].mxu0 %v5783
    %v5961 = vpop.f32.mrb[0].mxu0
    %v5962 = vadd.f32 %v5870, %v5961
    %v5963 = vpop.f32.mrb[0].mxu0
    %5964 = vdwg.mxu0
    %5965 = vmatprep.subr.mxu0 0.0
    %5966 = vmatpush1.msra.mxu0 %v5825
    %5967 = vmatprep.subr.mxu0 0.0
    %5968 = vmatpush1.msra.mxu0 %v5826
    %5969 = vmatprep.subr.mxu0 0.0
    %5970 = vmatpush1.msra.mxu0 %v5827
    %5971 = vmatprep.subr.mxu0 0.0
    %5972 = vmatpush1.msra.mxu0 %v5828
    %5973 = vmatprep.subr.mxu0 0.0
    %5974 = vmatpush1.msra.mxu0 %v5829
    %5975 = vmatprep.subr.mxu0 0.0
    %5976 = vmatpush1.msra.mxu0 %v5830
    %5977 = vmatprep.subr.mxu0 0.0
    %5978 = vmatpush1.msra.mxu0 %v5831
    %5979 = vmatprep.subr.mxu0 0.0
    %5980 = vmatpush1.msra.mxu0 %v5832
    %5981 = vmatprep.subr.mxu0 0.0
    %5982 = vmatpush1.msra.mxu0 %v5833
    %5983 = vmatprep.subr.mxu0 0.0
    %5984 = vmatpush1.msra.mxu0 %v5834
    %5985 = vmatprep.subr.mxu0 0.0
    %5986 = vmatpush1.msra.mxu0 %v5835
    %5987 = vmatprep.subr.mxu0 0.0
    %5988 = vmatpush1.msra.mxu0 %v5836
    %5989 = vmatprep.subr.mxu0 0.0
    %5990 = vmatpush1.msra.mxu0 %v5837
    %5991 = vmatprep.subr.mxu0 0.0
    %5992 = vmatpush1.msra.mxu0 %v5838
    %5993 = vmatprep.subr.mxu0 0.0
    %5994 = vmatpush1.msra.mxu0 %v5839
    %5995 = vmatprep.subr.mxu0 0.0
    %5996 = vmatpush1.msra.mxu0 %v5840
    %5997 = vmatprep.subr.mxu0 0.0
    %5998 = vmatpush1.msra.mxu0 %v5841
    %5999 = vmatprep.subr.mxu0 0.0
    %6000 = vmatpush1.msra.mxu0 %v5842
    %6001 = vmatprep.subr.mxu0 0.0
    %6002 = vmatpush1.msra.mxu0 %v5843
    %6003 = vmatprep.subr.mxu0 0.0
    %6004 = vmatpush1.msra.mxu0 %v5844
    %6005 = vmatprep.subr.mxu0 0.0
    %6006 = vmatpush1.msra.mxu0 %v5845
    %6007 = vmatprep.subr.mxu0 0.0
    %6008 = vmatpush1.msra.mxu0 %v5846
    %6009 = vmatprep.subr.mxu0 0.0
    %6010 = vmatpush1.msra.mxu0 %v5847
    %6011 = vmatprep.subr.mxu0 0.0
    %6012 = vmatpush1.msra.mxu0 %v5848
    %6013 = vmatprep.subr.mxu0 0.0
    %6014 = vmatpush1.msra.mxu0 %v5849
    %6015 = vmatprep.subr.mxu0 0.0
    %6016 = vmatpush1.msra.mxu0 %v5850
    %6017 = vmatprep.subr.mxu0 0.0
    %6018 = vmatpush1.msra.mxu0 %v5851
    %6019 = vmatprep.subr.mxu0 0.0
    %6020 = vmatpush1.msra.mxu0 %v5852
    %6021 = vmatprep.subr.mxu0 0.0
    %6022 = vmatpush1.msra.mxu0 %v5853
    %6023 = vmatprep.subr.mxu0 0.0
    %6024 = vmatpush1.msra.mxu0 %v5854
    %6025 = vmatprep.subr.mxu0 0.0
    %6026 = vmatpush1.msra.mxu0 %v5855
    %6027 = vmatprep.subr.mxu0 0.0
    %6028 = vmatpush1.msra.mxu0 %v5856
    %6029 = vmatprep.mubr.f32.mxu0 %v5781
    %6030 = vmatmul.mubr.f32.gmra.mrb[0].mxu0 %v5788
    %v6031 = vpop.f32.mrb[0].mxu0
    %v6032 = vadd.f32 %v5947, %v6031
    %v6033 = vpop.f32.mrb[0].mxu0
    %6034 = vmatprep.mubr.f32.mxu0 %v5782
    %6035 = vmatmul.mubr.f32.gmra.mrb[0].mxu0 %v5789
    %v6036 = vpop.f32.mrb[0].mxu0
    %v6037 = vadd.f32 %v5952, %v6036
    %v6038 = vpop.f32.mrb[0].mxu0
    %6039 = vmatprep.mubr.f32.mxu0 %v5783
    %6040 = vmatmul.mubr.f32.gmra.mrb[0].mxu0 %v5790
    %v6041 = vpop.f32.mrb[0].mxu0
    %v6042 = vadd.f32 %v5957, %v6041
    %v6043 = vpop.f32.mrb[0].mxu0
    %6044 = vmatprep.mubr.f32.mxu0 %v5792
    %6045 = vmatmul.mubr.f32.gmra.mrb[0].mxu0 %v5791
    %v6046 = vpop.f32.mrb[0].mxu0
    %v6047 = vadd.f32 %v5962, %v6046
    %v6048 = vpop.f32.mrb[0].mxu0
    %6049 = vdwg.mxu0
    %6050 = vmatprep.subr.mxu0 0.0
    %6051 = vmatpush1.msra.mxu0 %v5857
    %6052 = vmatprep.subr.mxu0 0.0
    %6053 = vmatpush1.msra.mxu0 %v5858
    %6054 = vmatprep.subr.mxu0 0.0
    %6055 = vmatpush1.msra.mxu0 %v5859
    %6056 = vmatprep.subr.mxu0 0.0
    %6057 = vmatpush1.msra.mxu0 %v5860
    %6058 = vmatprep.subr.mxu0 0.0
    %6059 = vmatpush1.msra.mxu0 %v5861
    %6060 = vmatprep.subr.mxu0 0.0
    %6061 = vmatpush1.msra.mxu0 %v5862
    %6062 = vmatprep.subr.mxu0 0.0
    %6063 = vmatpush1.msra.mxu0 %v5863
    %6064 = vmatprep.subr.mxu0 0.0
    %6065 = vmatpush1.msra.mxu0 %v5864
    %6066 = vmatprep.subr.mxu0 0.0
    %6067 = vmatpush1.msra.mxu0 0.0
    %6068 = vmatprep.subr.mxu0 0.0
    %6069 = vmatpush1.msra.mxu0 0.0
    %6070 = vmatprep.subr.mxu0 0.0
    %6071 = vmatpush1.msra.mxu0 0.0
    %6072 = vmatprep.subr.mxu0 0.0
    %6073 = vmatpush1.msra.mxu0 0.0
    %6074 = vmatprep.subr.mxu0 0.0
    %6075 = vmatpush1.msra.mxu0 0.0
    %6076 = vmatprep.subr.mxu0 0.0
    %6077 = vmatpush1.msra.mxu0 0.0
    %6078 = vmatprep.subr.mxu0 0.0
    %6079 = vmatpush1.msra.mxu0 0.0
    %6080 = vmatprep.subr.mxu0 0.0
    %6081 = vmatpush1.msra.mxu0 0.0
    %6082 = vmatprep.subr.mxu0 0.0
    %6083 = vmatpush1.msra.mxu0 0.0
    %6084 = vmatprep.subr.mxu0 0.0
    %6085 = vmatpush1.msra.mxu0 0.0
    %6086 = vmatprep.subr.mxu0 0.0
    %6087 = vmatpush1.msra.mxu0 0.0
    %6088 = vmatprep.subr.mxu0 0.0
    %6089 = vmatpush1.msra.mxu0 0.0
    %6090 = vmatprep.subr.mxu0 0.0
    %6091 = vmatpush1.msra.mxu0 0.0
    %6092 = vmatprep.subr.mxu0 0.0
    %6093 = vmatpush1.msra.mxu0 0.0
    %6094 = vmatprep.subr.mxu0 0.0
    %6095 = vmatpush1.msra.mxu0 0.0
    %6096 = vmatprep.subr.mxu0 0.0
    %6097 = vmatpush1.msra.mxu0 0.0
    %6098 = vmatprep.subr.mxu0 0.0
    %6099 = vmatpush1.msra.mxu0 0.0
    %6100 = vmatprep.subr.mxu0 0.0
    %6101 = vmatpush1.msra.mxu0 0.0
    %6102 = vmatprep.subr.mxu0 0.0
    %6103 = vmatpush1.msra.mxu0 0.0
    %6104 = vmatprep.subr.mxu0 0.0
    %6105 = vmatpush1.msra.mxu0 0.0
    %6106 = vmatprep.subr.mxu0 0.0
    %6107 = vmatpush1.msra.mxu0 0.0
    %6108 = vmatprep.subr.mxu0 0.0
    %6109 = vmatpush1.msra.mxu0 0.0
    %6110 = vmatprep.subr.mxu0 0.0
    %6111 = vmatpush1.msra.mxu0 0.0
    %6112 = vmatprep.subr.mxu0 0.0
    %6113 = vmatpush1.msra.mxu0 0.0
    %6114 = vmatprep.mubr.f32.mxu0 0.0
    %6115 = vmatmul.mubr.f32.gmra.mrb[0].mxu0 %v5872
    %v6116 = vpop.f32.mrb[0].mxu0
    %v6117 = vadd.f32 %v6032, %v6116
    %v6118 = vpop.f32.mrb[0].mxu0
    %6119 = vmatprep.mubr.f32.mxu0 0.0
    %6120 = vmatmul.mubr.f32.gmra.mrb[0].mxu0 %v5874
    %v6121 = vpop.f32.mrb[0].mxu0
    %v6122 = vadd.f32 %v6037, %v6121
    %v6123 = vpop.f32.mrb[0].mxu0
    %6124 = vmatprep.mubr.f32.mxu0 0.0
    %6125 = vmatmul.mubr.f32.gmra.mrb[0].mxu0 %v5876
    %v6126 = vpop.f32.mrb[0].mxu0
    %v6127 = vadd.f32 %v6042, %v6126
    %v6128 = vpop.f32.mrb[0].mxu0
    %6129 = vmatprep.mubr.f32.mxu0 0.0
    %6130 = vmatmul.mubr.f32.gmra.mrb[0].mxu0 %v5878
    %v6131 = vpop.f32.mrb[0].mxu0
    %v6132 = vadd.f32 %v6047, %v6131
    %v6133 = vpop.f32.mrb[0].mxu0
    %6134 = vdwg.mxu0
    %v6135 = vmax.f32 %v6117, 0.0
    %v6136 = vmax.f32 %v6122, 0.0
    %v6137 = vmax.f32 %v6127, 0.0
    %v6138 = vmax.f32 %v6132, 0.0
    %v6143 = vcombine.high %v6135, %v6135
    %v6145 = vunpack.c.l.s4 1983009808
    %v6146 = vunpack.c.0.s8 %v6145
    %v6147 = vlaneseq
    %v6148 = vshrl.u32 %v6147, 7
    %v6149 = vsub.s32 %v6146, %v6148
    %v6150 = vrot.slane %v6135, %v6149
    %v6152 = vunpack.c.l.s4 1983009808
    %v6153 = vunpack.c.0.s8 %v6152
    %v6154 = vlaneseq
    %v6155 = vshrl.u32 %v6154, 7
    %v6156 = vsub.s32 %v6153, %v6155
    %v6157 = vrot.slane %v6143, %v6156
    %v6158 = vcombine.high %v6150, %v6150
    %v6159 = vcombine.high %v6157, %v6157
    %v6160 = vcombine.high %v6136, %v6136
    %v6162 = vunpack.c.l.s4 1983009808
    %v6163 = vunpack.c.0.s8 %v6162
    %v6164 = vlaneseq
    %v6165 = vshrl.u32 %v6164, 7
    %v6166 = vsub.s32 %v6163, %v6165
    %v6167 = vrot.slane %v6136, %v6166
    %v6169 = vunpack.c.l.s4 1983009808
    %v6170 = vunpack.c.0.s8 %v6169
    %v6171 = vlaneseq
    %v6172 = vshrl.u32 %v6171, 7
    %v6173 = vsub.s32 %v6170, %v6172
    %v6174 = vrot.slane %v6160, %v6173
    %v6175 = vcombine.high %v6167, %v6167
    %v6176 = vcombine.high %v6174, %v6174
    %v6177 = vcombine.high %v6137, %v6137
    %v6179 = vunpack.c.l.s4 1983009808
    %v6180 = vunpack.c.0.s8 %v6179
    %v6181 = vlaneseq
    %v6182 = vshrl.u32 %v6181, 7
    %v6183 = vsub.s32 %v6180, %v6182
    %v6184 = vrot.slane %v6137, %v6183
    %v6186 = vunpack.c.l.s4 1983009808
    %v6187 = vunpack.c.0.s8 %v6186
    %v6188 = vlaneseq
    %v6189 = vshrl.u32 %v6188, 7
    %v6190 = vsub.s32 %v6187, %v6189
    %v6191 = vrot.slane %v6177, %v6190
    %v6192 = vcombine.high %v6184, %v6184
    %v6193 = vcombine.high %v6191, %v6191
    %v6194 = vcombine.high %v6138, %v6138
    %v6196 = vunpack.c.l.s4 1983009808
    %v6197 = vunpack.c.0.s8 %v6196
    %v6198 = vlaneseq
    %v6199 = vshrl.u32 %v6198, 7
    %v6200 = vsub.s32 %v6197, %v6199
    %v6201 = vrot.slane %v6138, %v6200
    %v6203 = vunpack.c.l.s4 1983009808
    %v6204 = vunpack.c.0.s8 %v6203
    %v6205 = vlaneseq
    %v6206 = vshrl.u32 %v6205, 7
    %v6207 = vsub.s32 %v6204, %v6206
    %v6208 = vrot.slane %v6194, %v6207
    %v6209 = vcombine.high %v6201, %v6201
    %v6210 = vcombine.high %v6208, %v6208
    %vm6227 = vcmask 517120
    %v6228 = vsel %vm6227, %v6150, -inf
    %v6229 = vrot.slane %v6228, 4
    %v6230 = vmax.f32 %v6228, %v6229
    %v6231 = vrot.slane %v6230, 2
    %v6232 = vmax.f32 %v6230, %v6231
    %v6233 = vrot.slane %v6232, 1
    %v6234 = vmax.f32 %v6232, %v6233
    %v6235 = vsel %vm6227, %v6158, -inf
    %v6236 = vrot.slane %v6235, 4
    %v6237 = vmax.f32 %v6235, %v6236
    %v6238 = vrot.slane %v6237, 2
    %v6239 = vmax.f32 %v6237, %v6238
    %v6240 = vrot.slane %v6239, 1
    %v6241 = vmax.f32 %v6239, %v6240
    %v6242 = vsel %vm6227, %v6157, -inf
    %v6243 = vrot.slane %v6242, 4
    %v6244 = vmax.f32 %v6242, %v6243
    %v6245 = vrot.slane %v6244, 2
    %v6246 = vmax.f32 %v6244, %v6245
    %v6247 = vrot.slane %v6246, 1
    %v6248 = vmax.f32 %v6246, %v6247
    %v6249 = vsel %vm6227, %v6159, -inf
    %v6250 = vrot.slane %v6249, 4
    %v6251 = vmax.f32 %v6249, %v6250
    %v6252 = vrot.slane %v6251, 2
    %v6253 = vmax.f32 %v6251, %v6252
    %v6254 = vrot.slane %v6253, 1
    %v6255 = vmax.f32 %v6253, %v6254
    %v6256 = vsel %vm6227, %v6167, -inf
    %v6257 = vrot.slane %v6256, 4
    %v6258 = vmax.f32 %v6256, %v6257
    %v6259 = vrot.slane %v6258, 2
    %v6260 = vmax.f32 %v6258, %v6259
    %v6261 = vrot.slane %v6260, 1
    %v6262 = vmax.f32 %v6260, %v6261
    %v6263 = vsel %vm6227, %v6175, -inf
    %v6264 = vrot.slane %v6263, 4
    %v6265 = vmax.f32 %v6263, %v6264
    %v6266 = vrot.slane %v6265, 2
    %v6267 = vmax.f32 %v6265, %v6266
    %v6268 = vrot.slane %v6267, 1
    %v6269 = vmax.f32 %v6267, %v6268
    %v6270 = vsel %vm6227, %v6174, -inf
    %v6271 = vrot.slane %v6270, 4
    %v6272 = vmax.f32 %v6270, %v6271
    %v6273 = vrot.slane %v6272, 2
    %v6274 = vmax.f32 %v6272, %v6273
    %v6275 = vrot.slane %v6274, 1
    %v6276 = vmax.f32 %v6274, %v6275
    %v6277 = vsel %vm6227, %v6176, -inf
    %v6278 = vrot.slane %v6277, 4
    %v6279 = vmax.f32 %v6277, %v6278
    %v6280 = vrot.slane %v6279, 2
    %v6281 = vmax.f32 %v6279, %v6280
    %v6282 = vrot.slane %v6281, 1
    %v6283 = vmax.f32 %v6281, %v6282
    %v6284 = vsel %vm6227, %v6184, -inf
    %v6285 = vrot.slane %v6284, 4
    %v6286 = vmax.f32 %v6284, %v6285
    %v6287 = vrot.slane %v6286, 2
    %v6288 = vmax.f32 %v6286, %v6287
    %v6289 = vrot.slane %v6288, 1
    %v6290 = vmax.f32 %v6288, %v6289
    %v6291 = vsel %vm6227, %v6192, -inf
    %v6292 = vrot.slane %v6291, 4
    %v6293 = vmax.f32 %v6291, %v6292
    %v6294 = vrot.slane %v6293, 2
    %v6295 = vmax.f32 %v6293, %v6294
    %v6296 = vrot.slane %v6295, 1
    %v6297 = vmax.f32 %v6295, %v6296
    %v6298 = vsel %vm6227, %v6191, -inf
    %v6299 = vrot.slane %v6298, 4
    %v6300 = vmax.f32 %v6298, %v6299
    %v6301 = vrot.slane %v6300, 2
    %v6302 = vmax.f32 %v6300, %v6301
    %v6303 = vrot.slane %v6302, 1
    %v6304 = vmax.f32 %v6302, %v6303
    %v6305 = vsel %vm6227, %v6193, -inf
    %v6306 = vrot.slane %v6305, 4
    %v6307 = vmax.f32 %v6305, %v6306
    %v6308 = vrot.slane %v6307, 2
    %v6309 = vmax.f32 %v6307, %v6308
    %v6310 = vrot.slane %v6309, 1
    %v6311 = vmax.f32 %v6309, %v6310
    %v6312 = vsel %vm6227, %v6201, -inf
    %v6313 = vrot.slane %v6312, 4
    %v6314 = vmax.f32 %v6312, %v6313
    %v6315 = vrot.slane %v6314, 2
    %v6316 = vmax.f32 %v6314, %v6315
    %v6317 = vrot.slane %v6316, 1
    %v6318 = vmax.f32 %v6316, %v6317
    %v6319 = vsel %vm6227, %v6209, -inf
    %v6320 = vrot.slane %v6319, 4
    %v6321 = vmax.f32 %v6319, %v6320
    %v6322 = vrot.slane %v6321, 2
    %v6323 = vmax.f32 %v6321, %v6322
    %v6324 = vrot.slane %v6323, 1
    %v6325 = vmax.f32 %v6323, %v6324
    %v6326 = vsel %vm6227, %v6208, -inf
    %v6327 = vrot.slane %v6326, 4
    %v6328 = vmax.f32 %v6326, %v6327
    %v6329 = vrot.slane %v6328, 2
    %v6330 = vmax.f32 %v6328, %v6329
    %v6331 = vrot.slane %v6330, 1
    %v6332 = vmax.f32 %v6330, %v6331
    %v6333 = vsel %vm6227, %v6210, -inf
    %v6334 = vrot.slane %v6333, 4
    %v6335 = vmax.f32 %v6333, %v6334
    %v6336 = vrot.slane %v6335, 2
    %v6337 = vmax.f32 %v6335, %v6336
    %v6338 = vrot.slane %v6337, 1
    %v6339 = vmax.f32 %v6337, %v6338
    %v6340 = vld [vmem:[%s8] sm:$0xff]
    %v6341 = vld [vmem:[%s8 + $0x8] sm:$0xff]
    %v6342 = vld [vmem:[%s8 + $0x10] sm:$0xff]
    %v6343 = vld [vmem:[%s8 + $0x18] sm:$0xff]
    %v6344 = vld [vmem:[%s8 + $0x20] sm:$0xff]
    %v6345 = vld [vmem:[%s8 + $0x28] sm:$0xff]
    %v6346 = vld [vmem:[%s8 + $0x30] sm:$0xff]
    %v6347 = vld [vmem:[%s8 + $0x38] sm:$0xff]
    %v6348 = vld [vmem:[%s9] sm:$0x1]
    %v6350 = vlaneseq
    %v6351 = vshrl.u32 %v6350, 7
    %v6352 = vsub.s32 0, %v6351
    %v6353 = vrot.slane %v6348, %v6352
    %v6371 = vsel %vm2901, %v6241, %v6234
    %v6372 = vsel %vm2883, %v6248, %v6371
    %v6373 = vsel %vm2886, %v6255, %v6372
    %v6374 = vsel %vm2889, %v6262, %v6373
    %v6375 = vsel %vm2892, %v6269, %v6374
    %v6376 = vsel %vm2895, %v6276, %v6375
    %v6377 = vsel %vm2898, %v6283, %v6376
    %v6378 = vsel %vm2901, %v6297, %v6290
    %v6379 = vsel %vm2883, %v6304, %v6378
    %v6380 = vsel %vm2886, %v6311, %v6379
    %v6381 = vsel %vm2889, %v6318, %v6380
    %v6382 = vsel %vm2892, %v6325, %v6381
    %v6383 = vsel %vm2895, %v6332, %v6382
    %v6384 = vsel %vm2898, %v6339, %v6383
    %v6385 = vsel %vm351, %v6377, 0
    %v6387 = vsel %vm351, %v6384, 0
    %6389 = vmatprep.subr.mxu0 0.0
    %6390 = vmatpush1.msra.mxu0 %v6340
    %6391 = vmatprep.subr.mxu0 0.0
    %6392 = vmatpush1.msra.mxu0 %v6341
    %6393 = vmatprep.subr.mxu0 0.0
    %6394 = vmatpush1.msra.mxu0 %v6342
    %6395 = vmatprep.subr.mxu0 0.0
    %6396 = vmatpush1.msra.mxu0 %v6343
    %6397 = vmatprep.subr.mxu0 0.0
    %6398 = vmatpush1.msra.mxu0 %v6344
    %6399 = vmatprep.subr.mxu0 0.0
    %6400 = vmatpush1.msra.mxu0 %v6345
    %6401 = vmatprep.subr.mxu0 0.0
    %6402 = vmatpush1.msra.mxu0 %v6346
    %6403 = vmatprep.subr.mxu0 0.0
    %6404 = vmatpush1.msra.mxu0 %v6347
    %6405 = vmatprep.subr.mxu0 0.0
    %6406 = vmatpush1.msra.mxu0 0.0
    %6407 = vmatprep.subr.mxu0 0.0
    %6408 = vmatpush1.msra.mxu0 0.0
    %6409 = vmatprep.subr.mxu0 0.0
    %6410 = vmatpush1.msra.mxu0 0.0
    %6411 = vmatprep.subr.mxu0 0.0
    %6412 = vmatpush1.msra.mxu0 0.0
    %6413 = vmatprep.subr.mxu0 0.0
    %6414 = vmatpush1.msra.mxu0 0.0
    %6415 = vmatprep.subr.mxu0 0.0
    %6416 = vmatpush1.msra.mxu0 0.0
    %6417 = vmatprep.subr.mxu0 0.0
    %6418 = vmatpush1.msra.mxu0 0.0
    %6419 = vmatprep.subr.mxu0 0.0
    %6420 = vmatpush1.msra.mxu0 0.0
    %6421 = vmatprep.subr.mxu0 0.0
    %6422 = vmatpush1.msra.mxu0 0.0
    %6423 = vmatprep.subr.mxu0 0.0
    %6424 = vmatpush1.msra.mxu0 0.0
    %6425 = vmatprep.subr.mxu0 0.0
    %6426 = vmatpush1.msra.mxu0 0.0
    %6427 = vmatprep.subr.mxu0 0.0
    %6428 = vmatpush1.msra.mxu0 0.0
    %6429 = vmatprep.subr.mxu0 0.0
    %6430 = vmatpush1.msra.mxu0 0.0
    %6431 = vmatprep.subr.mxu0 0.0
    %6432 = vmatpush1.msra.mxu0 0.0
    %6433 = vmatprep.subr.mxu0 0.0
    %6434 = vmatpush1.msra.mxu0 0.0
    %6435 = vmatprep.subr.mxu0 0.0
    %6436 = vmatpush1.msra.mxu0 0.0
    %6437 = vmatprep.subr.mxu0 0.0
    %6438 = vmatpush1.msra.mxu0 0.0
    %6439 = vmatprep.subr.mxu0 0.0
    %6440 = vmatpush1.msra.mxu0 0.0
    %6441 = vmatprep.subr.mxu0 0.0
    %6442 = vmatpush1.msra.mxu0 0.0
    %6443 = vmatprep.subr.mxu0 0.0
    %6444 = vmatpush1.msra.mxu0 0.0
    %6445 = vmatprep.subr.mxu0 0.0
    %6446 = vmatpush1.msra.mxu0 0.0
    %6447 = vmatprep.subr.mxu0 0.0
    %6448 = vmatpush1.msra.mxu0 0.0
    %6449 = vmatprep.subr.mxu0 0.0
    %6450 = vmatpush1.msra.mxu0 0.0
    %6451 = vmatprep.subr.mxu0 0.0
    %6452 = vmatpush1.msra.mxu0 0.0
    %6453 = vmatprep.mubr.f32.mxu0 0.0
    %6454 = vmatmul.mubr.f32.gmra.mrb[0].mxu0 %v6385
    %v6455 = vpop.f32.mrb[0].mxu0
    %v6456 = vadd.f32 %v6353, %v6455
    %v6457 = vpop.f32.mrb[0].mxu0
    %6458 = vmatprep.mubr.f32.mxu0 0.0
    %6459 = vmatmul.mubr.f32.gmra.mrb[0].mxu0 %v6387
    %v6460 = vpop.f32.mrb[0].mxu0
    %v6461 = vadd.f32 %v6353, %v6460
    %v6462 = vpop.f32.mrb[0].mxu0
    %6463 = vdwg.mxu0
    %v6464 = vmax.f32 %v6456, 0.0
    %v6465 = vmax.f32 %v6461, 0.0
    %v6466 = vld [vmem:[%s10] sm:$0xff]
    %v6467 = vld [vmem:[%s10 + $0x8] sm:$0xff]
    %v6468 = vld [vmem:[%s10 + $0x10] sm:$0xff]
    %v6469 = vld [vmem:[%s10 + $0x18] sm:$0xff]
    %v6470 = vld [vmem:[%s10 + $0x20] sm:$0xff]
    %v6471 = vld [vmem:[%s10 + $0x28] sm:$0xff]
    %v6472 = vld [vmem:[%s10 + $0x30] sm:$0xff]
    %v6473 = vld [vmem:[%s10 + $0x38] sm:$0xff]
    %v6474 = vld [vmem:[%s10 + $0x40] sm:$0xff]
    %v6475 = vld [vmem:[%s10 + $0x48] sm:$0xff]
    %v6476 = vld [vmem:[%s10 + $0x50] sm:$0xff]
    %v6477 = vld [vmem:[%s10 + $0x58] sm:$0xff]
    %v6478 = vld [vmem:[%s10 + $0x60] sm:$0xff]
    %v6479 = vld [vmem:[%s10 + $0x68] sm:$0xff]
    %v6480 = vld [vmem:[%s10 + $0x70] sm:$0xff]
    %v6481 = vld [vmem:[%s10 + $0x78] sm:$0xff]
    %v6482 = vld [vmem:[%s11] sm:$0x1]
    %v6484 = vlaneseq
    %v6485 = vshrl.u32 %v6484, 7
    %v6486 = vsub.s32 0, %v6485
    %v6487 = vrot.slane %v6482, %v6486
    %6489 = vmatprep.subr.mxu0 0.0
    %6490 = vmatpush1.msra.mxu0 %v6466
    %6491 = vmatprep.subr.mxu0 0.0
    %6492 = vmatpush1.msra.mxu0 %v6467
    %6493 = vmatprep.subr.mxu0 0.0
    %6494 = vmatpush1.msra.mxu0 %v6468
    %6495 = vmatprep.subr.mxu0 0.0
    %6496 = vmatpush1.msra.mxu0 %v6469
    %6497 = vmatprep.subr.mxu0 0.0
    %6498 = vmatpush1.msra.mxu0 %v6470
    %6499 = vmatprep.subr.mxu0 0.0
    %6500 = vmatpush1.msra.mxu0 %v6471
    %6501 = vmatprep.subr.mxu0 0.0
    %6502 = vmatpush1.msra.mxu0 %v6472
    %6503 = vmatprep.subr.mxu0 0.0
    %6504 = vmatpush1.msra.mxu0 %v6473
    %6505 = vmatprep.subr.mxu0 0.0
    %6506 = vmatpush1.msra.mxu0 %v6474
    %6507 = vmatprep.subr.mxu0 0.0
    %6508 = vmatpush1.msra.mxu0 %v6475
    %6509 = vmatprep.subr.mxu0 0.0
    %6510 = vmatpush1.msra.mxu0 %v6476
    %6511 = vmatprep.subr.mxu0 0.0
    %6512 = vmatpush1.msra.mxu0 %v6477
    %6513 = vmatprep.subr.mxu0 0.0
    %6514 = vmatpush1.msra.mxu0 %v6478
    %6515 = vmatprep.subr.mxu0 0.0
    %6516 = vmatpush1.msra.mxu0 %v6479
    %6517 = vmatprep.subr.mxu0 0.0
    %6518 = vmatpush1.msra.mxu0 %v6480
    %6519 = vmatprep.subr.mxu0 0.0
    %6520 = vmatpush1.msra.mxu0 %v6481
    %6521 = vmatprep.subr.mxu0 0.0
    %6522 = vmatpush1.msra.mxu0 0.0
    %6523 = vmatprep.subr.mxu0 0.0
    %6524 = vmatpush1.msra.mxu0 0.0
    %6525 = vmatprep.subr.mxu0 0.0
    %6526 = vmatpush1.msra.mxu0 0.0
    %6527 = vmatprep.subr.mxu0 0.0
    %6528 = vmatpush1.msra.mxu0 0.0
    %6529 = vmatprep.subr.mxu0 0.0
    %6530 = vmatpush1.msra.mxu0 0.0
    %6531 = vmatprep.subr.mxu0 0.0
    %6532 = vmatpush1.msra.mxu0 0.0
    %6533 = vmatprep.subr.mxu0 0.0
    %6534 = vmatpush1.msra.mxu0 0.0
    %6535 = vmatprep.subr.mxu0 0.0
    %6536 = vmatpush1.msra.mxu0 0.0
    %6537 = vmatprep.subr.mxu0 0.0
    %6538 = vmatpush1.msra.mxu0 0.0
    %6539 = vmatprep.subr.mxu0 0.0
    %6540 = vmatpush1.msra.mxu0 0.0
    %6541 = vmatprep.subr.mxu0 0.0
    %6542 = vmatpush1.msra.mxu0 0.0
    %6543 = vmatprep.subr.mxu0 0.0
    %6544 = vmatpush1.msra.mxu0 0.0
    %6545 = vmatprep.subr.mxu0 0.0
    %6546 = vmatpush1.msra.mxu0 0.0
    %6547 = vmatprep.subr.mxu0 0.0
    %6548 = vmatpush1.msra.mxu0 0.0
    %6549 = vmatprep.subr.mxu0 0.0
    %6550 = vmatpush1.msra.mxu0 0.0
    %6551 = vmatprep.subr.mxu0 0.0
    %6552 = vmatpush1.msra.mxu0 0.0
    %6553 = vmatprep.mubr.f32.mxu0 0.0
    %6554 = vmatmul.mubr.f32.gmra.mrb[0].mxu0 %v6464
    %v6555 = vpop.f32.mrb[0].mxu0
    %v6556 = vadd.f32 %v6487, %v6555
    %v6557 = vpop.f32.mrb[0].mxu0
    %6558 = vmatprep.mubr.f32.mxu0 0.0
    %6559 = vmatmul.mubr.f32.gmra.mrb[0].mxu0 %v6465
    %v6560 = vpop.f32.mrb[0].mxu0
    %v6561 = vadd.f32 %v6487, %v6560
    %v6562 = vpop.f32.mrb[0].mxu0
    %6563 = vdwg.mxu0
    %v6564 = vmax.f32 %v6556, 0.0
    %v6565 = vmax.f32 %v6561, 0.0
    %v6566 = vld [vmem:[%s12] sm:$0xff]
    %v6567 = vld [vmem:[%s12 + $0x8] sm:$0xff]
    %v6568 = vld [vmem:[%s12 + $0x10] sm:$0xff]
    %v6569 = vld [vmem:[%s12 + $0x18] sm:$0xff]
    %v6570 = vld [vmem:[%s12 + $0x20] sm:$0xff]
    %v6571 = vld [vmem:[%s12 + $0x28] sm:$0xff]
    %v6572 = vld [vmem:[%s12 + $0x30] sm:$0xff]
    %v6573 = vld [vmem:[%s12 + $0x38] sm:$0xff]
    %v6574 = vld [vmem:[%s12 + $0x40] sm:$0xff]
    %v6575 = vld [vmem:[%s12 + $0x48] sm:$0xff]
    %v6576 = vld [vmem:[%s12 + $0x50] sm:$0xff]
    %v6577 = vld [vmem:[%s12 + $0x58] sm:$0xff]
    %v6578 = vld [vmem:[%s12 + $0x60] sm:$0xff]
    %v6579 = vld [vmem:[%s12 + $0x68] sm:$0xff]
    %v6580 = vld [vmem:[%s12 + $0x70] sm:$0xff]
    %v6581 = vld [vmem:[%s12 + $0x78] sm:$0xff]
    %v6582 = vld [vmem:[%s13] sm:$0x1]
    %v6584 = vlaneseq
    %v6585 = vshrl.u32 %v6584, 7
    %v6586 = vsub.s32 0, %v6585
    %v6587 = vrot.slane %v6582, %v6586
    %6589 = vmatprep.subr.mxu0 0.0
    %6590 = vmatpush1.msra.mxu0 %v6566
    %6591 = vmatprep.subr.mxu0 0.0
    %6592 = vmatpush1.msra.mxu0 %v6567
    %6593 = vmatprep.subr.mxu0 0.0
    %6594 = vmatpush1.msra.mxu0 %v6568
    %6595 = vmatprep.subr.mxu0 0.0
    %6596 = vmatpush1.msra.mxu0 %v6569
    %6597 = vmatprep.subr.mxu0 0.0
    %6598 = vmatpush1.msra.mxu0 %v6570
    %6599 = vmatprep.subr.mxu0 0.0
    %6600 = vmatpush1.msra.mxu0 %v6571
    %6601 = vmatprep.subr.mxu0 0.0
    %6602 = vmatpush1.msra.mxu0 %v6572
    %6603 = vmatprep.subr.mxu0 0.0
    %6604 = vmatpush1.msra.mxu0 %v6573
    %6605 = vmatprep.subr.mxu0 0.0
    %6606 = vmatpush1.msra.mxu0 %v6574
    %6607 = vmatprep.subr.mxu0 0.0
    %6608 = vmatpush1.msra.mxu0 %v6575
    %6609 = vmatprep.subr.mxu0 0.0
    %6610 = vmatpush1.msra.mxu0 %v6576
    %6611 = vmatprep.subr.mxu0 0.0
    %6612 = vmatpush1.msra.mxu0 %v6577
    %6613 = vmatprep.subr.mxu0 0.0
    %6614 = vmatpush1.msra.mxu0 %v6578
    %6615 = vmatprep.subr.mxu0 0.0
    %6616 = vmatpush1.msra.mxu0 %v6579
    %6617 = vmatprep.subr.mxu0 0.0
    %6618 = vmatpush1.msra.mxu0 %v6580
    %6619 = vmatprep.subr.mxu0 0.0
    %6620 = vmatpush1.msra.mxu0 %v6581
    %6621 = vmatprep.subr.mxu0 0.0
    %6622 = vmatpush1.msra.mxu0 0.0
    %6623 = vmatprep.subr.mxu0 0.0
    %6624 = vmatpush1.msra.mxu0 0.0
    %6625 = vmatprep.subr.mxu0 0.0
    %6626 = vmatpush1.msra.mxu0 0.0
    %6627 = vmatprep.subr.mxu0 0.0
    %6628 = vmatpush1.msra.mxu0 0.0
    %6629 = vmatprep.subr.mxu0 0.0
    %6630 = vmatpush1.msra.mxu0 0.0
    %6631 = vmatprep.subr.mxu0 0.0
    %6632 = vmatpush1.msra.mxu0 0.0
    %6633 = vmatprep.subr.mxu0 0.0
    %6634 = vmatpush1.msra.mxu0 0.0
    %6635 = vmatprep.subr.mxu0 0.0
    %6636 = vmatpush1.msra.mxu0 0.0
    %6637 = vmatprep.subr.mxu0 0.0
    %6638 = vmatpush1.msra.mxu0 0.0
    %6639 = vmatprep.subr.mxu0 0.0
    %6640 = vmatpush1.msra.mxu0 0.0
    %6641 = vmatprep.subr.mxu0 0.0
    %6642 = vmatpush1.msra.mxu0 0.0
    %6643 = vmatprep.subr.mxu0 0.0
    %6644 = vmatpush1.msra.mxu0 0.0
    %6645 = vmatprep.subr.mxu0 0.0
    %6646 = vmatpush1.msra.mxu0 0.0
    %6647 = vmatprep.subr.mxu0 0.0
    %6648 = vmatpush1.msra.mxu0 0.0
    %6649 = vmatprep.subr.mxu0 0.0
    %6650 = vmatpush1.msra.mxu0 0.0
    %6651 = vmatprep.subr.mxu0 0.0
    %6652 = vmatpush1.msra.mxu0 0.0
    %6653 = vmatprep.mubr.f32.mxu0 0.0
    %6654 = vmatmul.mubr.f32.gmra.mrb[0].mxu0 %v6564
    %v6655 = vpop.f32.mrb[0].mxu0
    %v6656 = vadd.f32 %v6587, %v6655
    %v6657 = vpop.f32.mrb[0].mxu0
    %6658 = vmatprep.mubr.f32.mxu0 0.0
    %6659 = vmatmul.mubr.f32.gmra.mrb[0].mxu0 %v6565
    %v6660 = vpop.f32.mrb[0].mxu0
    %v6661 = vadd.f32 %v6587, %v6660
    %v6662 = vpop.f32.mrb[0].mxu0
    %6663 = vdwg.mxu0
    %v6664 = vmax.f32 %v6656, 0.0
    %v6665 = vmax.f32 %v6661, 0.0
    %v6666 = vld [vmem:[%s14] sm:$0xff]
    %v6667 = vld [vmem:[%s14 + $0x8] sm:$0xff]
    %v6668 = vld [vmem:[%s14 + $0x10] sm:$0xff]
    %v6669 = vld [vmem:[%s14 + $0x18] sm:$0xff]
    %v6670 = vld [vmem:[%s14 + $0x20] sm:$0xff]
    %v6671 = vld [vmem:[%s14 + $0x28] sm:$0xff]
    %v6672 = vld [vmem:[%s14 + $0x30] sm:$0xff]
    %v6673 = vld [vmem:[%s14 + $0x38] sm:$0xff]
    %v6674 = vld [vmem:[%s14 + $0x40] sm:$0xff]
    %v6675 = vld [vmem:[%s14 + $0x48] sm:$0xff]
    %v6676 = vld [vmem:[%s14 + $0x50] sm:$0xff]
    %v6677 = vld [vmem:[%s14 + $0x58] sm:$0xff]
    %v6678 = vld [vmem:[%s14 + $0x60] sm:$0xff]
    %v6679 = vld [vmem:[%s14 + $0x68] sm:$0xff]
    %v6680 = vld [vmem:[%s14 + $0x70] sm:$0xff]
    %v6681 = vld [vmem:[%s14 + $0x78] sm:$0xff]
    %v6682 = vld [vmem:[%s14 + $0x80] sm:$0xff]
    %v6683 = vld [vmem:[%s14 + $0x88] sm:$0xff]
    %v6684 = vld [vmem:[%s14 + $0x90] sm:$0xff]
    %v6685 = vld [vmem:[%s14 + $0x98] sm:$0xff]
    %v6686 = vld [vmem:[%s14 + $0xa0] sm:$0xff]
    %v6687 = vld [vmem:[%s14 + $0xa8] sm:$0xff]
    %v6688 = vld [vmem:[%s14 + $0xb0] sm:$0xff]
    %v6689 = vld [vmem:[%s14 + $0xb8] sm:$0xff]
    %v6690 = vld [vmem:[%s14 + $0xc0] sm:$0xff]
    %v6691 = vld [vmem:[%s14 + $0xc8] sm:$0xff]
    %v6692 = vld [vmem:[%s14 + $0xd0] sm:$0xff]
    %v6693 = vld [vmem:[%s14 + $0xd8] sm:$0xff]
    %v6694 = vld [vmem:[%s14 + $0xe0] sm:$0xff]
    %v6695 = vld [vmem:[%s14 + $0xe8] sm:$0xff]
    %v6696 = vld [vmem:[%s14 + $0xf0] sm:$0xff]
    %v6697 = vld [vmem:[%s14 + $0xf8] sm:$0xff]
    %v6698 = vld [vmem:[%s15] sm:$0x3]
    %v6700 = vlaneseq
    %v6701 = vshrl.u32 %v6700, 7
    %v6702 = vsub.s32 0, %v6701
    %v6703 = vrot.slane %v6698, %v6702
    %v6704 = vlaneseq
    %v6705 = vshrl.u32 %v6704, 7
    %v6706 = vsub.s32 1, %v6705
    %v6707 = vrot.slane %v6698, %v6706
    %6710 = vmatprep.subr.mxu0 %v6667
    %6711 = vmatpush1.msra.mxu0 %v6666
    %6712 = vmatprep.subr.mxu0 %v6669
    %6713 = vmatpush1.msra.mxu0 %v6668
    %6714 = vmatprep.subr.mxu0 %v6671
    %6715 = vmatpush1.msra.mxu0 %v6670
    %6716 = vmatprep.subr.mxu0 %v6673
    %6717 = vmatpush1.msra.mxu0 %v6672
    %6718 = vmatprep.subr.mxu0 %v6675
    %6719 = vmatpush1.msra.mxu0 %v6674
    %6720 = vmatprep.subr.mxu0 %v6677
    %6721 = vmatpush1.msra.mxu0 %v6676
    %6722 = vmatprep.subr.mxu0 %v6679
    %6723 = vmatpush1.msra.mxu0 %v6678
    %6724 = vmatprep.subr.mxu0 %v6681
    %6725 = vmatpush1.msra.mxu0 %v6680
    %6726 = vmatprep.subr.mxu0 %v6683
    %6727 = vmatpush1.msra.mxu0 %v6682
    %6728 = vmatprep.subr.mxu0 %v6685
    %6729 = vmatpush1.msra.mxu0 %v6684
    %6730 = vmatprep.subr.mxu0 %v6687
    %6731 = vmatpush1.msra.mxu0 %v6686
    %6732 = vmatprep.subr.mxu0 %v6689
    %6733 = vmatpush1.msra.mxu0 %v6688
    %6734 = vmatprep.subr.mxu0 %v6691
    %6735 = vmatpush1.msra.mxu0 %v6690
    %6736 = vmatprep.subr.mxu0 %v6693
    %6737 = vmatpush1.msra.mxu0 %v6692
    %6738 = vmatprep.subr.mxu0 %v6695
    %6739 = vmatpush1.msra.mxu0 %v6694
    %6740 = vmatprep.subr.mxu0 %v6697
    %6741 = vmatpush1.msra.mxu0 %v6696
    %6742 = vmatprep.subr.mxu0 0.0
    %6743 = vmatpush1.msra.mxu0 0.0
    %6744 = vmatprep.subr.mxu0 0.0
    %6745 = vmatpush1.msra.mxu0 0.0
    %6746 = vmatprep.subr.mxu0 0.0
    %6747 = vmatpush1.msra.mxu0 0.0
    %6748 = vmatprep.subr.mxu0 0.0
    %6749 = vmatpush1.msra.mxu0 0.0
    %6750 = vmatprep.subr.mxu0 0.0
    %6751 = vmatpush1.msra.mxu0 0.0
    %6752 = vmatprep.subr.mxu0 0.0
    %6753 = vmatpush1.msra.mxu0 0.0
    %6754 = vmatprep.subr.mxu0 0.0
    %6755 = vmatpush1.msra.mxu0 0.0
    %6756 = vmatprep.subr.mxu0 0.0
    %6757 = vmatpush1.msra.mxu0 0.0
    %6758 = vmatprep.subr.mxu0 0.0
    %6759 = vmatpush1.msra.mxu0 0.0
    %6760 = vmatprep.subr.mxu0 0.0
    %6761 = vmatpush1.msra.mxu0 0.0
    %6762 = vmatprep.subr.mxu0 0.0
    %6763 = vmatpush1.msra.mxu0 0.0
    %6764 = vmatprep.subr.mxu0 0.0
    %6765 = vmatpush1.msra.mxu0 0.0
    %6766 = vmatprep.subr.mxu0 0.0
    %6767 = vmatpush1.msra.mxu0 0.0
    %6768 = vmatprep.subr.mxu0 0.0
    %6769 = vmatpush1.msra.mxu0 0.0
    %6770 = vmatprep.subr.mxu0 0.0
    %6771 = vmatpush1.msra.mxu0 0.0
    %6772 = vmatprep.subr.mxu0 0.0
    %6773 = vmatpush1.msra.mxu0 0.0
    %6774 = vmatprep.mubr.f32.mxu0 0.0
    %6775 = vmatmul.mubr.f32.gmra.mrb[0].mxu0 %v6664
    %v6776 = vpop.f32.mrb[0].mxu0
    %v6777 = vadd.f32 %v6703, %v6776
    %v6778 = vpop.f32.mrb[0].mxu0
    %v6779 = vadd.f32 %v6707, %v6778
    %6780 = vmatprep.mubr.f32.mxu0 0.0
    %6781 = vmatmul.mubr.f32.gmra.mrb[0].mxu0 %v6665
    %v6782 = vpop.f32.mrb[0].mxu0
    %v6783 = vadd.f32 %v6703, %v6782
    %v6784 = vpop.f32.mrb[0].mxu0
    %v6785 = vadd.f32 %v6707, %v6784
    %6786 = vdwg.mxu0
    %v6787 = vld [vmem:[%s16] sm:$0xff]
    %v6788 = vld [vmem:[%s16 + $0x8] sm:$0xff]
    %v6789 = vadd.f32 %v6777, %v6787
    %v6790 = vadd.f32 %v6783, %v6788
    %v6793 = vcombine.high %v6789, %v6789
    %v6795 = vunpack.c.l.s4 1983009808
    %v6796 = vunpack.c.0.s8 %v6795
    %v6797 = vlaneseq
    %v6798 = vshrl.u32 %v6797, 7
    %v6799 = vsub.s32 %v6796, %v6798
    %v6800 = vrot.slane %v6789, %v6799
    %v6802 = vunpack.c.l.s4 1983009808
    %v6803 = vunpack.c.0.s8 %v6802
    %v6804 = vlaneseq
    %v6805 = vshrl.u32 %v6804, 7
    %v6806 = vsub.s32 %v6803, %v6805
    %v6807 = vrot.slane %v6793, %v6806
    %v6808 = vcombine.high %v6800, %v6800
    %v6809 = vcombine.high %v6807, %v6807
    %v6810 = vcombine.high %v6790, %v6790
    %v6812 = vunpack.c.l.s4 1983009808
    %v6813 = vunpack.c.0.s8 %v6812
    %v6814 = vlaneseq
    %v6815 = vshrl.u32 %v6814, 7
    %v6816 = vsub.s32 %v6813, %v6815
    %v6817 = vrot.slane %v6790, %v6816
    %v6819 = vunpack.c.l.s4 1983009808
    %v6820 = vunpack.c.0.s8 %v6819
    %v6821 = vlaneseq
    %v6822 = vshrl.u32 %v6821, 7
    %v6823 = vsub.s32 %v6820, %v6822
    %v6824 = vrot.slane %v6810, %v6823
    %v6825 = vcombine.high %v6817, %v6817
    %v6826 = vcombine.high %v6824, %v6824
    %v6827 = vmul.f32 %v6779, 1.442695
    %v6828 = vpow.pop %v6827
    %v6829 = vmul.f32 %v6785, 1.442695
    %v6830 = vpow.pop %v6829
    %v6833 = vcombine.high %v6828, %v6828
    %v6835 = vunpack.c.l.s4 1983009808
    %v6836 = vunpack.c.0.s8 %v6835
    %v6837 = vlaneseq
    %v6838 = vshrl.u32 %v6837, 7
    %v6839 = vsub.s32 %v6836, %v6838
    %v6840 = vrot.slane %v6828, %v6839
    %v6842 = vunpack.c.l.s4 1983009808
    %v6843 = vunpack.c.0.s8 %v6842
    %v6844 = vlaneseq
    %v6845 = vshrl.u32 %v6844, 7
    %v6846 = vsub.s32 %v6843, %v6845
    %v6847 = vrot.slane %v6833, %v6846
    %v6848 = vcombine.high %v6840, %v6840
    %v6849 = vcombine.high %v6847, %v6847
    %v6850 = vcombine.high %v6830, %v6830
    %v6852 = vunpack.c.l.s4 1983009808
    %v6853 = vunpack.c.0.s8 %v6852
    %v6854 = vlaneseq
    %v6855 = vshrl.u32 %v6854, 7
    %v6856 = vsub.s32 %v6853, %v6855
    %v6857 = vrot.slane %v6830, %v6856
    %v6859 = vunpack.c.l.s4 1983009808
    %v6860 = vunpack.c.0.s8 %v6859
    %v6861 = vlaneseq
    %v6862 = vshrl.u32 %v6861, 7
    %v6863 = vsub.s32 %v6860, %v6862
    %v6864 = vrot.slane %v6850, %v6863
    %v6865 = vcombine.high %v6857, %v6857
    %v6866 = vcombine.high %v6864, %v6864
    %v6867 = vlaneseq
    %v6868 = vshrl.u32 %v6867, 7
    %v6869 = vsub.s32 0, %v6868
    %v6870 = vrot.slane %v6800, %v6869
    %v6871 = vlaneseq
    %v6872 = vshrl.u32 %v6871, 7
    %v6873 = vsub.s32 0, %v6872
    %v6874 = vrot.slane %v6808, %v6873
    %v6875 = vlaneseq
    %v6876 = vshrl.u32 %v6875, 7
    %v6877 = vsub.s32 0, %v6876
    %v6878 = vrot.slane %v6807, %v6877
    %v6879 = vlaneseq
    %v6880 = vshrl.u32 %v6879, 7
    %v6881 = vsub.s32 0, %v6880
    %v6882 = vrot.slane %v6809, %v6881
    %v6883 = vlaneseq
    %v6884 = vshrl.u32 %v6883, 7
    %v6885 = vsub.s32 0, %v6884
    %v6886 = vrot.slane %v6817, %v6885
    %v6887 = vlaneseq
    %v6888 = vshrl.u32 %v6887, 7
    %v6889 = vsub.s32 0, %v6888
    %v6890 = vrot.slane %v6825, %v6889
    %v6891 = vlaneseq
    %v6892 = vshrl.u32 %v6891, 7
    %v6893 = vsub.s32 0, %v6892
    %v6894 = vrot.slane %v6824, %v6893
    %v6895 = vlaneseq
    %v6896 = vshrl.u32 %v6895, 7
    %v6897 = vsub.s32 0, %v6896
    %v6898 = vrot.slane %v6826, %v6897
    %v6899 = vsel %vm2901, %v6874, %v6870
    %v6900 = vsel %vm2883, %v6878, %v6899
    %v6901 = vsel %vm2886, %v6882, %v6900
    %v6902 = vsel %vm2889, %v6886, %v6901
    %v6903 = vsel %vm2892, %v6890, %v6902
    %v6904 = vsel %vm2895, %v6894, %v6903
    %v6905 = vsel %vm2898, %v6898, %v6904
    %vm6907 = vcmask 261120
    %6908 = vst.msk [vmem:[#allocation2] sm:$0xff] %vm6907, %v6905
    %v6909 = vlaneseq
    %v6910 = vshrl.u32 %v6909, 7
    %v6911 = vsub.s32 0, %v6910
    %v6912 = vrot.slane %v6840, %v6911
    %v6913 = vlaneseq
    %v6914 = vshrl.u32 %v6913, 7
    %v6915 = vsub.s32 0, %v6914
    %v6916 = vrot.slane %v6848, %v6915
    %v6917 = vlaneseq
    %v6918 = vshrl.u32 %v6917, 7
    %v6919 = vsub.s32 0, %v6918
    %v6920 = vrot.slane %v6847, %v6919
    %v6921 = vlaneseq
    %v6922 = vshrl.u32 %v6921, 7
    %v6923 = vsub.s32 0, %v6922
    %v6924 = vrot.slane %v6849, %v6923
    %v6925 = vlaneseq
    %v6926 = vshrl.u32 %v6925, 7
    %v6927 = vsub.s32 0, %v6926
    %v6928 = vrot.slane %v6857, %v6927
    %v6929 = vlaneseq
    %v6930 = vshrl.u32 %v6929, 7
    %v6931 = vsub.s32 0, %v6930
    %v6932 = vrot.slane %v6865, %v6931
    %v6933 = vlaneseq
    %v6934 = vshrl.u32 %v6933, 7
    %v6935 = vsub.s32 0, %v6934
    %v6936 = vrot.slane %v6864, %v6935
    %v6937 = vlaneseq
    %v6938 = vshrl.u32 %v6937, 7
    %v6939 = vsub.s32 0, %v6938
    %v6940 = vrot.slane %v6866, %v6939
    %v6941 = vsel %vm2901, %v6916, %v6912
    %v6942 = vsel %vm2883, %v6920, %v6941
    %v6943 = vsel %vm2886, %v6924, %v6942
    %v6944 = vsel %vm2889, %v6928, %v6943
    %v6945 = vsel %vm2892, %v6932, %v6944
    %v6946 = vsel %vm2895, %v6936, %v6945
    %v6947 = vsel %vm2898, %v6940, %v6946
    %6949 = vst.msk [vmem:[#allocation4] sm:$0xff] %vm6907, %v6947
    %6950 = vrot.lane.b32.xlu0 %v6905, 96
    %v6951 = vpop.permute.xlu0 %6950
    %s6953 = scalar_lea.vmem [#allocation2], 8
    %6954 = vst.msk [vmem:[%s6953] sm:$0xff] %vm6907, %v6951
    %6955 = vrot.lane.b32.xlu0 %v6947, 96
    %v6956 = vpop.permute.xlu0 %6955
    %s6958 = scalar_lea.vmem [#allocation4], 8
    %6959 = vst.msk [vmem:[%s6958] sm:$0xff] %vm6907, %v6956
    %6960 = vrot.lane.b32.xlu0 %v6905, 64
    %v6961 = vpop.permute.xlu0 %6960
    %s6963 = scalar_lea.vmem [#allocation2], 16
    %6964 = vst.msk [vmem:[%s6963] sm:$0xff] %vm6907, %v6961
    %6965 = vrot.lane.b32.xlu0 %v6947, 64
    %v6966 = vpop.permute.xlu0 %6965
    %s6968 = scalar_lea.vmem [#allocation4], 16
    %6969 = vst.msk [vmem:[%s6968] sm:$0xff] %vm6907, %v6966
    %v6970 = vlaneseq
    %v6971 = vshrl.u32 %v6970, 7
    %v6972 = vsub.s32 1, %v6971
    %v6973 = vrot.slane %v6800, %v6972
    %v6974 = vlaneseq
    %v6975 = vshrl.u32 %v6974, 7
    %v6976 = vsub.s32 1, %v6975
    %v6977 = vrot.slane %v6808, %v6976
    %v6978 = vlaneseq
    %v6979 = vshrl.u32 %v6978, 7
    %v6980 = vsub.s32 1, %v6979
    %v6981 = vrot.slane %v6807, %v6980
    %v6982 = vlaneseq
    %v6983 = vshrl.u32 %v6982, 7
    %v6984 = vsub.s32 1, %v6983
    %v6985 = vrot.slane %v6809, %v6984
    %v6986 = vlaneseq
    %v6987 = vshrl.u32 %v6986, 7
    %v6988 = vsub.s32 1, %v6987
    %v6989 = vrot.slane %v6817, %v6988
    %v6990 = vlaneseq
    %v6991 = vshrl.u32 %v6990, 7
    %v6992 = vsub.s32 1, %v6991
    %v6993 = vrot.slane %v6825, %v6992
    %v6994 = vlaneseq
    %v6995 = vshrl.u32 %v6994, 7
    %v6996 = vsub.s32 1, %v6995
    %v6997 = vrot.slane %v6824, %v6996
    %v6998 = vlaneseq
    %v6999 = vshrl.u32 %v6998, 7
    %v7000 = vsub.s32 1, %v6999
    %v7001 = vrot.slane %v6826, %v7000
    %v7002 = vsel %vm2883, %v6977, %v6973
    %v7003 = vsel %vm2886, %v6981, %v7002
    %v7004 = vsel %vm2889, %v6985, %v7003
    %v7005 = vsel %vm2892, %v6989, %v7004
    %v7006 = vsel %vm2895, %v6993, %v7005
    %v7007 = vsel %vm2898, %v6997, %v7006
    %s7010 = scalar_lea.vmem [#allocation2], 24
    %vm7011 = vcmask 261121
    %7012 = vst.msk [vmem:[%s7010 - $0x1] sm:$0xfe] %vm7011, %v7007
    %vm7013 = vcmask 253952
    %7014 = vst.msk [vmem:[%s7010 + $0x7] sm:$0x1] %vm7013, %v7001
    %v7015 = vlaneseq
    %v7016 = vshrl.u32 %v7015, 7
    %v7017 = vsub.s32 1, %v7016
    %v7018 = vrot.slane %v6840, %v7017
    %v7019 = vlaneseq
    %v7020 = vshrl.u32 %v7019, 7
    %v7021 = vsub.s32 1, %v7020
    %v7022 = vrot.slane %v6848, %v7021
    %v7023 = vlaneseq
    %v7024 = vshrl.u32 %v7023, 7
    %v7025 = vsub.s32 1, %v7024
    %v7026 = vrot.slane %v6847, %v7025
    %v7027 = vlaneseq
    %v7028 = vshrl.u32 %v7027, 7
    %v7029 = vsub.s32 1, %v7028
    %v7030 = vrot.slane %v6849, %v7029
    %v7031 = vlaneseq
    %v7032 = vshrl.u32 %v7031, 7
    %v7033 = vsub.s32 1, %v7032
    %v7034 = vrot.slane %v6857, %v7033
    %v7035 = vlaneseq
    %v7036 = vshrl.u32 %v7035, 7
    %v7037 = vsub.s32 1, %v7036
    %v7038 = vrot.slane %v6865, %v7037
    %v7039 = vlaneseq
    %v7040 = vshrl.u32 %v7039, 7
    %v7041 = vsub.s32 1, %v7040
    %v7042 = vrot.slane %v6864, %v7041
    %v7043 = vlaneseq
    %v7044 = vshrl.u32 %v7043, 7
    %v7045 = vsub.s32 1, %v7044
    %v7046 = vrot.slane %v6866, %v7045
    %v7047 = vsel %vm2883, %v7022, %v7018
    %v7048 = vsel %vm2886, %v7026, %v7047
    %v7049 = vsel %vm2889, %v7030, %v7048
    %v7050 = vsel %vm2892, %v7034, %v7049
    %v7051 = vsel %vm2895, %v7038, %v7050
    %v7052 = vsel %vm2898, %v7042, %v7051
    %s7055 = scalar_lea.vmem [#allocation4], 24
    %7056 = vst.msk [vmem:[%s7055 - $0x1] sm:$0xfe] %vm7011, %v7052
    %7057 = vst.msk [vmem:[%s7055 + $0x7] sm:$0x1] %vm7013, %v7046
    %7058 = vrot.lane.b32.xlu0 %v7007, 96
    %v7059 = vpop.permute.xlu0 %7058
    %7060 = vrot.lane.b32.xlu0 %v7001, 96
    %v7061 = vpop.permute.xlu0 %7060
    %s7064 = scalar_lea.vmem [#allocation2], 32
    %7065 = vst.msk [vmem:[%s7064 - $0x1] sm:$0xfe] %vm7011, %v7059
    %7066 = vst.msk [vmem:[%s7064 + $0x7] sm:$0x1] %vm7013, %v7061
    %7067 = vrot.lane.b32.xlu0 %v7052, 96
    %v7068 = vpop.permute.xlu0 %7067
    %7069 = vrot.lane.b32.xlu0 %v7046, 96
    %v7070 = vpop.permute.xlu0 %7069
    %s7073 = scalar_lea.vmem [#allocation4], 32
    %7074 = vst.msk [vmem:[%s7073 - $0x1] sm:$0xfe] %vm7011, %v7068
    %7075 = vst.msk [vmem:[%s7073 + $0x7] sm:$0x1] %vm7013, %v7070
    %7076 = vrot.lane.b32.xlu0 %v7007, 64
    %v7077 = vpop.permute.xlu0 %7076
    %7078 = vrot.lane.b32.xlu0 %v7001, 64
    %v7079 = vpop.permute.xlu0 %7078
    %s7082 = scalar_lea.vmem [#allocation2], 40
    %7083 = vst.msk [vmem:[%s7082 - $0x1] sm:$0xfe] %vm7011, %v7077
    %7084 = vst.msk [vmem:[%s7082 + $0x7] sm:$0x1] %vm7013, %v7079
    %7085 = vrot.lane.b32.xlu0 %v7052, 64
    %v7086 = vpop.permute.xlu0 %7085
    %7087 = vrot.lane.b32.xlu0 %v7046, 64
    %v7088 = vpop.permute.xlu0 %7087
    %s7091 = scalar_lea.vmem [#allocation4], 40
    %7092 = vst.msk [vmem:[%s7091 - $0x1] sm:$0xfe] %vm7011, %v7086
    %7093 = vst.msk [vmem:[%s7091 + $0x7] sm:$0x1] %vm7013, %v7088
    // Predicated region
    $region70: #{_forward_impl.1} parent=1 // pred_check
      _
    $region71: #{_forward_impl.1} parent=1 // pred_check_branch
      %7095 = sbr.rel (0) target = $region73
    $region72: #{_forward_impl.1} parent=1 // pred_region
      %s7097 = ssub.s32 768, 768
      %7098 = vsyncadd [#allocation3], %s7097
      %s7099 = sshll.u32 [#allocation2], 4
      %s7100 = int_to_ptr.vmem [resolvable:$true] %s7099
      %7105 = dma.vmem_to_hbm [thread:$0]  %s7100, 768, %s17, [#allocation3], 128, 128, 8
    $region73: #{_forward_impl.1} parent=1 // pred_fallthru
      _
    // Predicated region
    $region74: #{_forward_impl.1} parent=1 // pred_check
      _
    $region75: #{_forward_impl.1} parent=1 // pred_check_branch
      %7107 = sbr.rel (0) target = $region77
    $region76: #{_forward_impl.1} parent=1 // pred_region
      %s7109 = ssub.s32 768, 768
      %7110 = vsyncadd [#allocation5], %s7109
      %s7111 = sshll.u32 [#allocation4], 4
      %s7112 = int_to_ptr.vmem [resolvable:$true] %s7111
      %7117 = dma.vmem_to_hbm [thread:$0]  %s7112, 768, %s18, [#allocation5], 128, 128, 8
    $region77: #{_forward_impl.1} parent=1 // pred_fallthru
      _
    // Predicated region
    $region78: #{_forward_impl.1} parent=1 // pred_check
      _
    $region79: #{_forward_impl.1} parent=1 // pred_check_branch
      %7119 = sbr.rel (0) target = $region81
    $region80: #{_forward_impl.1} parent=1 // pred_region
      %7120 = dma.done [#allocation3], 768
    $region81: #{_forward_impl.1} parent=1 // pred_fallthru
      _
    // Predicated region
    $region82: #{_forward_impl.1} parent=1 // pred_check
      _
    $region83: #{_forward_impl.1} parent=1 // pred_check_branch
      %7122 = sbr.rel (0) target = $region85
    $region84: #{_forward_impl.1} parent=1 // pred_region
      %7123 = dma.done [#allocation5], 768
    $region85: #{_forward_impl.1} parent=1 // pred_fallthru
      _
    %7124 = vsyncpa [#allocation3], 1
    %7125 = vsyncpa [#allocation5], 1

</llo_original>
